<compile_context>
chip_gen: v5e
topology: v5e:2x2
jax: 0.10.0
libtpu: 0.0.40
codegen_flags: <defaults>
</compile_context>

<pallas_src>
import functools

import jax
import jax.numpy as jnp
from jax import lax
from jax.experimental import pallas as pl
from jax.experimental.pallas import tpu as pltpu

LANE = 128        # lane width: channel padding granularity
MAX_ROWS = 1024   # cap on matmul M rows per grid step
MIN_STEPS = 4     # preferred minimum grid steps (>= 2 per v7x TensorCore)


def _round_up(x, m):
    return (x + m - 1) // m * m


def _choose_tiles(b, out_h, out_w):
    """Returns (tb, th): frames per step and output rows per step.

    If one plane already exceeds MAX_ROWS rows, row-tile inside the frame
    (tb=1); otherwise take whole planes, preferring >= MIN_STEPS grid steps.
    """
    rows_b = out_h * out_w
    if rows_b > MAX_ROWS:
        th = 1
        for c in range(1, out_h + 1):
            if out_h % c == 0 and c * out_w <= MAX_ROWS:
                th = c
        return 1, th
    cands = [c for c in range(1, b + 1) if b % c == 0 and c * rows_b <= MAX_ROWS]
    pref = ([c for c in cands if b // c >= MIN_STEPS]
            or [c for c in cands if b // c >= 2]
            or cands)
    return max(pref), out_h


# ----------------------------------------------------------------------------
# Fused tap-conv Pallas kernel
#   x block : (TB, P, Hq, Wq, Cp)  bf16   P = stride phases, lane-dense Cp
#   (opt) xr: (TB, out_h, out_w, Crp) bf16  fused 1x1x1-shortcut input
#   w       : (Ktot, Co)           bf16   Ktot = n_taps*Cp (+ Crp)
#   shift   : (1, Co)              f32    bias / folded BN shift
#   out blk : (M, Co)              M = TB * tile_h * out_w
# One grid step = concat all tap windows along lanes -> single wide-K MXU dot.
# ----------------------------------------------------------------------------
def _fused_conv_kernel(x_ref, *rest, taps, tile_h, out_w, relu,
                       fuse_residual, row_tiled):
    if fuse_residual:
        xr_ref, w_ref, b_ref, o_ref = rest
    else:
        w_ref, b_ref, o_ref = rest

    tb = x_ref.shape[0]
    m = tb * tile_h * out_w

    row0 = pl.program_id(1) * tile_h if row_tiled else 0

    # Direct bf16 collapse is only used when it is guaranteed layout
    # preserving: second-minor (out_w) a multiple of the bf16 packed tile (16)
    # and no column offset on any tap.  Otherwise keep the proven f32 detour
    # (layout preserving on (8,128) tiles, requires out_w % 8 == 0).
    clean_bf16 = (out_w % 16 == 0) and all(wo == 0 for (_, _, wo) in taps)

    def collapse(win4):                       # (tb, tile_h, out_w, c) -> (m, c)
        c = win4.shape[-1]
        if clean_bf16:
            return win4.reshape(m, c)
        return win4.astype(jnp.float32).reshape(m, c).astype(jnp.bfloat16)

    parts = []
    for (ph, ho, wo) in taps:
        if row_tiled:
            win = x_ref[:, ph, pl.ds(row0 + ho, tile_h), wo:wo + out_w, :]
        else:
            win = x_ref[:, ph, ho:ho + tile_h, wo:wo + out_w, :]
        parts.append(collapse(win))

    if fuse_residual:
        if row_tiled:
            rwin = xr_ref[:, pl.ds(row0, tile_h), :, :]
        else:
            rwin = xr_ref[...]
        parts.append(collapse(rwin))

    lhs = jnp.concatenate(parts, axis=-1) if len(parts) > 1 else parts[0]

    acc = jnp.dot(lhs, w_ref[...], preferred_element_type=jnp.float32)
    acc = acc + b_ref[...]                    # bias + folded BN (+ shortcut bias)
    if relu:
        acc = jnp.maximum(acc, 0.0)
    o_ref[...] = acc.astype(o_ref.dtype)


def _fused_conv(xph, w_packed, shift, taps, out_h, out_w, *,
                relu, out_dtype, residual=None):
    """xph: (B, P, Hq, Wq, Cp) bf16 -> (B*out_h*out_w, Co) out_dtype."""
    b, p, hq, wq, cpin = xph.shape
    ktot, co = w_packed.shape
    n_taps = len(taps)
    crp = residual.shape[-1] if residual is not None else 0

    assert cpin % LANE == 0 and co % LANE == 0 and crp % LANE == 0
    assert ktot == n_taps * cpin + crp
    assert out_w % 8 == 0, "TODO(synk): ragged output widths need a padded path"
    for (ph_, ho_, wo_) in taps:
        assert 0 <= ph_ < p and ho_ + out_h <= hq and wo_ + out_w <= wq
    if residual is not None:
        assert residual.shape == (b, out_h, out_w, crp)

    rows_b = out_h * out_w
    tb, th = _choose_tiles(b, out_h, out_w)
    row_tiled = th != out_h

    if row_tiled:
        n_rt = out_h // th
        grid = (b, n_rt)
        mblk = th * out_w
        x_spec = pl.BlockSpec((1, p, hq, wq, cpin), lambda i, j: (i, 0, 0, 0, 0))
        r_spec = pl.BlockSpec((1, out_h, out_w, crp), lambda i, j: (i, 0, 0, 0))
        w_spec = pl.BlockSpec((ktot, co), lambda i, j: (0, 0))
        b_spec = pl.BlockSpec((1, co), lambda i, j: (0, 0))
        out_spec = pl.BlockSpec((mblk, co), lambda i, j: (i * n_rt + j, 0))
        dims = ("parallel", "parallel")
    else:
        grid = (b // tb,)
        mblk = tb * rows_b
        x_spec = pl.BlockSpec((tb, p, hq, wq, cpin), lambda i: (i, 0, 0, 0, 0))
        r_spec = pl.BlockSpec((tb, out_h, out_w, crp), lambda i: (i, 0, 0, 0))
        w_spec = pl.BlockSpec((ktot, co), lambda i: (0, 0))
        b_spec = pl.BlockSpec((1, co), lambda i: (0, 0))
        out_spec = pl.BlockSpec((mblk, co), lambda i: (i, 0))
        dims = ("parallel",)

    in_specs = [x_spec]
    inputs = [xph]
    if residual is not None:
        in_specs.append(r_spec)
        inputs.append(residual)
    in_specs += [w_spec, b_spec]
    inputs += [w_packed, shift]

    kernel = functools.partial(
        _fused_conv_kernel, taps=tuple(taps), tile_h=th, out_w=out_w,
        relu=relu, fuse_residual=residual is not None, row_tiled=row_tiled)

    return pl.pallas_call(
        kernel,
        out_shape=jax.ShapeDtypeStruct((b * rows_b, co), out_dtype),
        grid_spec=pltpu.PrefetchScalarGridSpec(
            num_scalar_prefetch=0,
            grid=grid,
            in_specs=in_specs,
            out_specs=out_spec,
        ),
        compiler_params=pltpu.CompilerParams(
            dimension_semantics=dims,
            vmem_limit_bytes=32 * 1024 * 1024,
        ),
    )(*inputs)


# ----------------------------------------------------------------------------
# Host-side glue: stride-phase split (so every in-kernel tap read is a plain
# contiguous window), BN folding, one-time weight packing/padding.
# ----------------------------------------------------------------------------
def _phase_split(x, kh, kw, sh, sw, ph, pw):
    """x: (B, H, W, C) -> (B, sh*sw, Hq, Wq, C) phase-split padded activation,
    plus static taps [(phase, row_off, col_off)] and (Ho, Wo)."""
    b, h, w, c = x.shape
    ho = (h + 2 * ph - kh) // sh + 1
    wo = (w + 2 * pw - kw) // sw + 1
    hp = _round_up(h + 2 * ph, sh)
    wp = _round_up(w + 2 * pw, sw)
    xp = jnp.pad(x, ((0, 0), (ph, hp - h - ph), (pw, wp - w - pw), (0, 0)))
    xp = xp.reshape(b, hp // sh, sh, wp // sw, sw, c)
    xp = jnp.transpose(xp, (0, 2, 4, 1, 3, 5)).reshape(b, sh * sw, hp // sh,
                                                       wp // sw, c)
    taps = []
    for ki in range(kh):
        for kj in range(kw):
            taps.append(((ki % sh) * sw + (kj % sw), ki // sh, kj // sw))
    return xp, tuple(taps), ho, wo


def _bn_fold(gamma, beta, mean, var, eps=1e-5):
    scale = gamma / jnp.sqrt(var + eps)
    shift = beta - mean * scale
    return scale, shift


def _pack_taps(w3, cin_p, cout_p):
    """(T, cin, cout) f32 -> (T*cin_p, cout_p) bf16, zero padded per tap."""
    t, cin, cout = w3.shape
    w3 = jnp.pad(w3.astype(jnp.float32),
                 ((0, 0), (0, cin_p - cin), (0, cout_p - cout)))
    return w3.reshape(t * cin_p, cout_p).astype(jnp.bfloat16)


def _pad_mat(m2, cin_p, cout_p):
    cin, cout = m2.shape
    return jnp.pad(m2.astype(jnp.float32),
                   ((0, cin_p - cin), (0, cout_p - cout))).astype(jnp.bfloat16)


def _pad_row(v, cout_p):
    return jnp.pad(v.astype(jnp.float32), (0, cout_p - v.shape[0])).reshape(1, cout_p)


# ----------------------------------------------------------------------------
# ConvolutionalBlock forward (inference)
# ----------------------------------------------------------------------------
def convolutional_block(x_ncdhw, params):
    """x: [N, Cin, D, H, W] f32 -> [N, Cout, D/2, H/2, W/2] f32."""
    n, cin, d, h, w = x_ncdhw.shape
    cout = params["conv1"]["bs"].shape[0]
    cp = _round_up(cin, LANE)
    co = _round_up(cout, LANE)

    # entry: NCDHW -> NDHWC, channel-pad to lane width once, store bf16.
    x = jnp.transpose(x_ncdhw.astype(jnp.float32), (0, 2, 3, 4, 1))
    x = jnp.pad(x, ((0, 0),) * 4 + ((0, cp - cin),)).astype(jnp.bfloat16)

    # fold / pack parameters once (host side).
    s1, h1 = _bn_fold(*params["bn1"])
    s2, h2 = _bn_fold(*params["bn2"])

    w1s = _pack_taps(params["conv1"]["ws"].reshape(9, cin, cout), cp, co)
    b1s = _pad_row(params["conv1"]["bs"], co)
    w1t = _pack_taps(
        params["conv1"]["wt"].reshape(3, cout, cout) * s1[None, None, :], co, co)
    b1t = _pad_row(params["conv1"]["bt"] * s1 + h1, co)

    w2s = _pack_taps(params["conv2"]["ws"].reshape(9, cout, cout), co, co)
    b2s = _pad_row(params["conv2"]["bs"], co)

    # shortcut (1x1x1, stride 2): collapse its two 1x1 convs into one matrix and
    # append it to the conv2-temporal packed weight; fold its bias + BN2 shift
    # into that stage's shift row.
    wsc_f = params["shortcut"]["ws"] @ params["shortcut"]["wt"]               # (Cin, Cout)
    bsc = params["shortcut"]["bs"] @ params["shortcut"]["wt"] + params["shortcut"]["bt"]
    w2t = jnp.concatenate(
        [_pack_taps(params["conv2"]["wt"].reshape(3, cout, cout) * s2[None, None, :],
                    co, co),
         _pad_mat(wsc_f, cp, co)], axis=0)                                    # (3*Co+Cp, Co)
    b2t = _pad_row(params["conv2"]["bt"] * s2 + h2 + bsc, co)

    # --- conv1 spatial: (1,3,3), stride (1,2,2), pad (0,1,1)     [+ bias]
    xs = x.reshape(n * d, h, w, cp)
    xph, taps1s, ho, wo = _phase_split(xs, 3, 3, 2, 2, 1, 1)
    y = _fused_conv(xph, w1s, b1s, taps1s, ho, wo,
                    relu=False, out_dtype=jnp.bfloat16)           # (N*D*Ho*Wo, Co)

    # --- conv1 temporal: (3,1,1), stride (2,1,1), pad (1,0,0)    [+ bias, BN1, ReLU]
    yt = y.reshape(n, d, ho * wo, co)
    yph, taps1t, do_, hw = _phase_split(yt, 3, 1, 2, 1, 1, 0)
    y = _fused_conv(yph, w1t, b1t, taps1t, do_, hw,
                    relu=True, out_dtype=jnp.bfloat16)            # (N*Do*Ho*Wo, Co)

    # --- conv2 spatial: (1,3,3), stride 1, pad (0,1,1)           [+ bias]
    ys = y.reshape(n * do_, ho, wo, co)
    yph2, taps2s, ho2, wo2 = _phase_split(ys, 3, 3, 1, 1, 1, 1)
    y = _fused_conv(yph2, w2s, b2s, taps2s, ho2, wo2,
                    relu=False, out_dtype=jnp.bfloat16)           # (N*Do*Ho*Wo, Co)

    # --- conv2 temporal (stride 1) + bias + BN2 + Dropout(identity)
    #     + 1x1x1 shortcut conv + residual add + final ReLU : ONE fused kernel.
    x_sc = x[:, ::2, ::2, ::2, :].reshape(n, do_, ho * wo, cp)    # stride-2 subsample
    yt2 = y.reshape(n, do_, ho2 * wo2, co)
    yph3, taps2t, do2, hw2 = _phase_split(yt2, 3, 1, 1, 1, 1, 0)
    out = _fused_conv(yph3, w2t, b2t, taps2t, do2, hw2,
                      relu=True, out_dtype=jnp.bfloat16,
                      residual=x_sc)                              # (N*Do*Ho*Wo, Co) bf16

    out = out.reshape(n, do_, ho, wo, co)[..., :cout].astype(jnp.float32)
    return jnp.transpose(out, (0, 4, 1, 2, 3))                    # -> NCDHW f32


# ----------------------------------------------------------------------------
# Pure-JAX f32 reference (same Conv2Plus1D decomposition / inference BN+Dropout)
# ----------------------------------------------------------------------------
def _ref_conv2plus1d(x, p, k, s, pad):
    kt, kh, kw = k
    cin = x.shape[1]
    cout = p["bs"].shape[0]
    ws = p["ws"].reshape(kh, kw, cin, cout).transpose(3, 2, 0, 1)[:, :, None, :, :]
    wt = p["wt"].reshape(kt, cout, cout).transpose(2, 1, 0)[:, :, :, None, None]
    y = lax.conv_general_dilated(
        x, ws, window_strides=(1, s[1], s[2]),
        padding=[(0, 0), (pad[1], pad[1]), (pad[2], pad[2])],
        dimension_numbers=("NCDHW", "OIDHW", "NCDHW"),
        precision=lax.Precision.HIGHEST)
    y = y + p["bs"].reshape(1, -1, 1, 1, 1)
    z = lax.conv_general_dilated(
        y, wt, window_strides=(s[0], 1, 1),
        padding=[(pad[0], pad[0]), (0, 0), (0, 0)],
        dimension_numbers=("NCDHW", "OIDHW", "NCDHW"),
        precision=lax.Precision.HIGHEST)
    return z + p["bt"].reshape(1, -1, 1, 1, 1)


def _ref_convolutional_block(x, params):
    def bn(y, gamma, beta, mean, var, eps=1e-5):
        s = gamma / jnp.sqrt(var + eps)
        return y * s.reshape(1, -1, 1, 1, 1) + (beta - mean * s).reshape(1, -1, 1, 1, 1)

    y = _ref_conv2plus1d(x, params["conv1"], (3, 3, 3), (2, 2, 2), (1, 1, 1))
    y = jnp.maximum(bn(y, *params["bn1"]), 0.0)
    y = _ref_conv2plus1d(y, params["conv2"], (3, 3, 3), (1, 1, 1), (1, 1, 1))
    y = bn(y, *params["bn2"])                                     # Dropout = identity
    sc = _ref_conv2plus1d(x, params["shortcut"], (1, 1, 1), (2, 2, 2), (0, 0, 0))
    return jnp.maximum(y + sc, 0.0)


# ----------------------------------------------------------------------------
# Deterministic synthetic parameters
# ----------------------------------------------------------------------------
def init_params(key, cin, cout):
    ks = list(jax.random.split(key, 20))

    def nrm(k, shape, scale=0.1):
        return scale * jax.random.normal(k, shape, jnp.float32)

    def c2p1(k1, k2, k3, k4, cin_, cout_, kh, kw, kt):
        return {
            "ws": nrm(k1, (kh * kw * cin_, cout_)),
            "bs": nrm(k2, (cout_,)),
            "wt": nrm(k3, (kt * cout_, cout_)),
            "bt": nrm(k4, (cout_,)),
        }

    def bn(k1, k2, k3, k4, c):
        return (1.0 + 0.1 * jax.random.normal(k1, (c,), jnp.float32),   # gamma
                0.1 * jax.random.normal(k2, (c,), jnp.float32),          # beta
                0.1 * jax.random.normal(k3, (c,), jnp.float32),          # running mean
                jax.random.uniform(k4, (c,), jnp.float32, 0.5, 1.5))     # running var

    return {
        "conv1": c2p1(ks[0], ks[1], ks[2], ks[3], cin, cout, 3, 3, 3),
        "bn1": bn(ks[4], ks[5], ks[6], ks[7], cout),
        "conv2": c2p1(ks[8], ks[9], ks[10], ks[11], cout, cout, 3, 3, 3),
        "bn2": bn(ks[12], ks[13], ks[14], ks[15], cout),
        "shortcut": c2p1(ks[16], ks[17], ks[18], ks[19], cin, cout, 1, 1, 1),
    }


if __name__ == "__main__":
    key = jax.random.PRNGKey(0)
    kx, kp = jax.random.split(key)

    N, Cin, D, H, W = 2, 4, 8, 16, 16
    Cout = 8
    x = jax.random.normal(kx, (N, Cin, D, H, W), jnp.float32)
    params = init_params(kp, Cin, Cout)

    fwd = jax.jit(convolutional_block)
    out = jax.block_until_ready(fwd(x, params))
    assert out.shape == (N, Cout, D // 2, H // 2, W // 2), out.shape
    assert bool(jnp.all(out >= 0.0))                               # final ReLU

    # numerical check vs. pure-JAX f32 reference (bf16 MXU operands -> loose tol)
    ref = jax.block_until_ready(jax.jit(_ref_convolutional_block)(x, params))
    err = float(jnp.max(jnp.abs(out - ref)))
    scale = float(jnp.max(jnp.abs(ref))) + 1e-6
    assert err <= 0.1 * scale + 0.05, (err, scale)

    print("KERNEL_OK")
</pallas_src>

<mosaic_0001>
module attributes {stable_mosaic.version = 11 : i64} {
  func.func @_fused_conv_kernel(%arg0: i32, %arg1: memref<4x4x9x9x128xbf16, #tpu.memory_space<vmem>>, %arg2: memref<1152x128xbf16, #tpu.memory_space<vmem>>, %arg3: memref<1x128xf32, #tpu.memory_space<vmem>>, %arg4: memref<256x128xbf16, #tpu.memory_space<vmem>>) attributes {dimension_semantics = [#tpu.dimension_semantics<parallel>], iteration_bounds = array<i64: 4>, scalar_prefetch = 0 : i64, scratch_operands = 0 : i64, tpu.core_type = #tpu.core_type<tc>, window_params = [{transform_indices = @transform_0, window_bounds = array<i64: 4, 4, 9, 9, 128>}, {pipeline_mode = #tpu.pipeline_mode<synchronous>, transform_indices = @transform_1, window_bounds = array<i64: 1152, 128>}, {pipeline_mode = #tpu.pipeline_mode<synchronous>, transform_indices = @transform_2, window_bounds = array<i64: 1, 128>}, {transform_indices = @transform_3, window_bounds = array<i64: 256, 128>}]} {
    %c0 = arith.constant 0 : index
    %c0_0 = arith.constant 0 : index
    %c0_1 = arith.constant 0 : index
    %c0_2 = arith.constant 0 : index
    %c0_3 = arith.constant 0 : index
    %0 = vector.load %arg1[%c0, %c0_0, %c0_1, %c0_2, %c0_3] : memref<4x4x9x9x128xbf16, #tpu.memory_space<vmem>>, vector<4x1x8x8x128xbf16>
    %1 = vector.shape_cast %0 : vector<4x1x8x8x128xbf16> to vector<4x8x8x128xbf16>
    %2 = arith.extf %1 : vector<4x8x8x128xbf16> to vector<4x8x8x128xf32>
    %3 = vector.shape_cast %2 : vector<4x8x8x128xf32> to vector<256x128xf32>
    %4 = arith.truncf %3 : vector<256x128xf32> to vector<256x128xbf16>
    %c0_4 = arith.constant 0 : index
    %c1 = arith.constant 1 : index
    %c0_5 = arith.constant 0 : index
    %c0_6 = arith.constant 0 : index
    %c0_7 = arith.constant 0 : index
    %5 = vector.load %arg1[%c0_4, %c1, %c0_5, %c0_6, %c0_7] : memref<4x4x9x9x128xbf16, #tpu.memory_space<vmem>>, vector<4x1x8x8x128xbf16>
    %6 = vector.shape_cast %5 : vector<4x1x8x8x128xbf16> to vector<4x8x8x128xbf16>
    %7 = arith.extf %6 : vector<4x8x8x128xbf16> to vector<4x8x8x128xf32>
    %8 = vector.shape_cast %7 : vector<4x8x8x128xf32> to vector<256x128xf32>
    %9 = arith.truncf %8 : vector<256x128xf32> to vector<256x128xbf16>
    %c0_8 = arith.constant 0 : index
    %c0_9 = arith.constant 0 : index
    %c0_10 = arith.constant 0 : index
    %c1_11 = arith.constant 1 : index
    %c0_12 = arith.constant 0 : index
    %10 = vector.load %arg1[%c0_8, %c0_9, %c0_10, %c1_11, %c0_12] : memref<4x4x9x9x128xbf16, #tpu.memory_space<vmem>>, vector<4x1x8x8x128xbf16>
    %11 = vector.shape_cast %10 : vector<4x1x8x8x128xbf16> to vector<4x8x8x128xbf16>
    %12 = arith.extf %11 : vector<4x8x8x128xbf16> to vector<4x8x8x128xf32>
    %13 = vector.shape_cast %12 : vector<4x8x8x128xf32> to vector<256x128xf32>
    %14 = arith.truncf %13 : vector<256x128xf32> to vector<256x128xbf16>
    %c0_13 = arith.constant 0 : index
    %c2 = arith.constant 2 : index
    %c0_14 = arith.constant 0 : index
    %c0_15 = arith.constant 0 : index
    %c0_16 = arith.constant 0 : index
    %15 = vector.load %arg1[%c0_13, %c2, %c0_14, %c0_15, %c0_16] : memref<4x4x9x9x128xbf16, #tpu.memory_space<vmem>>, vector<4x1x8x8x128xbf16>
    %16 = vector.shape_cast %15 : vector<4x1x8x8x128xbf16> to vector<4x8x8x128xbf16>
    %17 = arith.extf %16 : vector<4x8x8x128xbf16> to vector<4x8x8x128xf32>
    %18 = vector.shape_cast %17 : vector<4x8x8x128xf32> to vector<256x128xf32>
    %19 = arith.truncf %18 : vector<256x128xf32> to vector<256x128xbf16>
    %c0_17 = arith.constant 0 : index
    %c3 = arith.constant 3 : index
    %c0_18 = arith.constant 0 : index
    %c0_19 = arith.constant 0 : index
    %c0_20 = arith.constant 0 : index
    %20 = vector.load %arg1[%c0_17, %c3, %c0_18, %c0_19, %c0_20] : memref<4x4x9x9x128xbf16, #tpu.memory_space<vmem>>, vector<4x1x8x8x128xbf16>
    %21 = vector.shape_cast %20 : vector<4x1x8x8x128xbf16> to vector<4x8x8x128xbf16>
    %22 = arith.extf %21 : vector<4x8x8x128xbf16> to vector<4x8x8x128xf32>
    %23 = vector.shape_cast %22 : vector<4x8x8x128xf32> to vector<256x128xf32>
    %24 = arith.truncf %23 : vector<256x128xf32> to vector<256x128xbf16>
    %c0_21 = arith.constant 0 : index
    %c2_22 = arith.constant 2 : index
    %c0_23 = arith.constant 0 : index
    %c1_24 = arith.constant 1 : index
    %c0_25 = arith.constant 0 : index
    %25 = vector.load %arg1[%c0_21, %c2_22, %c0_23, %c1_24, %c0_25] : memref<4x4x9x9x128xbf16, #tpu.memory_space<vmem>>, vector<4x1x8x8x128xbf16>
    %26 = vector.shape_cast %25 : vector<4x1x8x8x128xbf16> to vector<4x8x8x128xbf16>
    %27 = arith.extf %26 : vector<4x8x8x128xbf16> to vector<4x8x8x128xf32>
    %28 = vector.shape_cast %27 : vector<4x8x8x128xf32> to vector<256x128xf32>
    %29 = arith.truncf %28 : vector<256x128xf32> to vector<256x128xbf16>
    %c0_26 = arith.constant 0 : index
    %c0_27 = arith.constant 0 : index
    %c1_28 = arith.constant 1 : index
    %c0_29 = arith.constant 0 : index
    %c0_30 = arith.constant 0 : index
    %30 = vector.load %arg1[%c0_26, %c0_27, %c1_28, %c0_29, %c0_30] : memref<4x4x9x9x128xbf16, #tpu.memory_space<vmem>>, vector<4x1x8x8x128xbf16>
    %31 = vector.shape_cast %30 : vector<4x1x8x8x128xbf16> to vector<4x8x8x128xbf16>
    %32 = arith.extf %31 : vector<4x8x8x128xbf16> to vector<4x8x8x128xf32>
    %33 = vector.shape_cast %32 : vector<4x8x8x128xf32> to vector<256x128xf32>
    %34 = arith.truncf %33 : vector<256x128xf32> to vector<256x128xbf16>
    %c0_31 = arith.constant 0 : index
    %c1_32 = arith.constant 1 : index
    %c1_33 = arith.constant 1 : index
    %c0_34 = arith.constant 0 : index
    %c0_35 = arith.constant 0 : index
    %35 = vector.load %arg1[%c0_31, %c1_32, %c1_33, %c0_34, %c0_35] : memref<4x4x9x9x128xbf16, #tpu.memory_space<vmem>>, vector<4x1x8x8x128xbf16>
    %36 = vector.shape_cast %35 : vector<4x1x8x8x128xbf16> to vector<4x8x8x128xbf16>
    %37 = arith.extf %36 : vector<4x8x8x128xbf16> to vector<4x8x8x128xf32>
    %38 = vector.shape_cast %37 : vector<4x8x8x128xf32> to vector<256x128xf32>
    %39 = arith.truncf %38 : vector<256x128xf32> to vector<256x128xbf16>
    %c0_36 = arith.constant 0 : index
    %c0_37 = arith.constant 0 : index
    %c1_38 = arith.constant 1 : index
    %c1_39 = arith.constant 1 : index
    %c0_40 = arith.constant 0 : index
    %40 = vector.load %arg1[%c0_36, %c0_37, %c1_38, %c1_39, %c0_40] : memref<4x4x9x9x128xbf16, #tpu.memory_space<vmem>>, vector<4x1x8x8x128xbf16>
    %41 = vector.shape_cast %40 : vector<4x1x8x8x128xbf16> to vector<4x8x8x128xbf16>
    %42 = arith.extf %41 : vector<4x8x8x128xbf16> to vector<4x8x8x128xf32>
    %43 = vector.shape_cast %42 : vector<4x8x8x128xf32> to vector<256x128xf32>
    %44 = arith.truncf %43 : vector<256x128xf32> to vector<256x128xbf16>
    %45 = tpu.concatenate %4, %9, %14, %19, %24, %29, %34, %39, %44 in 1 : vector<256x128xbf16>, vector<256x128xbf16>, vector<256x128xbf16>, vector<256x128xbf16>, vector<256x128xbf16>, vector<256x128xbf16>, vector<256x128xbf16>, vector<256x128xbf16>, vector<256x128xbf16> -> vector<256x1152xbf16>
    %c0_41 = arith.constant 0 : index
    %c0_42 = arith.constant 0 : index
    %46 = vector.load %arg2[%c0_41, %c0_42] : memref<1152x128xbf16, #tpu.memory_space<vmem>>, vector<1152x128xbf16>
    %cst = arith.constant dense<0.000000e+00> : vector<256x128xf32>
    %47 = tpu.matmul %45, %46, %cst {dimension_numbers = #tpu.dot_dimension_numbers<[1], [0], [0], [1], [0, 0, 1, 1], [], []>} : vector<256x1152xbf16>, vector<1152x128xbf16>, vector<256x128xf32> -> vector<256x128xf32>
    %c0_43 = arith.constant 0 : index
    %c0_44 = arith.constant 0 : index
    %48 = vector.load %arg3[%c0_43, %c0_44] : memref<1x128xf32, #tpu.memory_space<vmem>>, vector<1x128xf32>
    %49 = vector.broadcast %48 : vector<1x128xf32> to vector<256x128xf32>
    %50 = arith.addf %47, %49 : vector<256x128xf32>
    %51 = arith.truncf %50 : vector<256x128xf32> to vector<256x128xbf16>
    %c0_45 = arith.constant 0 : index
    %c0_46 = arith.constant 0 : index
    %52 = vector.load %arg4[%c0_45, %c0_46] : memref<256x128xbf16, #tpu.memory_space<vmem>>, vector<256x128xbf16>
    tpu.vector_store %arg4[%c0_45, %c0_46], %51 {strides = array<i32>} : memref<256x128xbf16, #tpu.memory_space<vmem>>, vector<256x128xbf16>,
    return
  }
  func.func @transform_0(%arg0: i32) -> (i32, i32, i32, i32, i32) {
    %c0_i32 = arith.constant 0 : i32
    %c0_i32_0 = arith.constant 0 : i32
    %c0_i32_1 = arith.constant 0 : i32
    %c0_i32_2 = arith.constant 0 : i32
    %c0_i32_3 = arith.constant 0 : i32
    return %arg0, %c0_i32, %c0_i32_0, %c0_i32_1, %c0_i32_2 : i32, i32, i32, i32, i32
  }
  func.func @transform_1(%arg0: i32) -> (i32, i32) {
    %c0_i32 = arith.constant 0 : i32
    %c0_i32_0 = arith.constant 0 : i32
    %c0_i32_1 = arith.constant 0 : i32
    return %c0_i32, %c0_i32_0 : i32, i32
  }
  func.func @transform_2(%arg0: i32) -> (i32, i32) {
    %c0_i32 = arith.constant 0 : i32
    %c0_i32_0 = arith.constant 0 : i32
    %c0_i32_1 = arith.constant 0 : i32
    return %c0_i32, %c0_i32_0 : i32, i32
  }
  func.func @transform_3(%arg0: i32) -> (i32, i32) {
    %c0_i32 = arith.constant 0 : i32
    %c0_i32_0 = arith.constant 0 : i32
    return %arg0, %c0_i32 : i32, i32
  }
}

module attributes {stable_mosaic.version = 11 : i64} {
  func.func @_fused_conv_kernel(%arg0: i32, %arg1: memref<1x2x5x64x128xbf16, #tpu.memory_space<vmem>>, %arg2: memref<384x128xbf16, #tpu.memory_space<vmem>>, %arg3: memref<1x128xf32, #tpu.memory_space<vmem>>, %arg4: memref<256x128xbf16, #tpu.memory_space<vmem>>) attributes {dimension_semantics = [#tpu.dimension_semantics<parallel>], iteration_bounds = array<i64: 2>, scalar_prefetch = 0 : i64, scratch_operands = 0 : i64, tpu.core_type = #tpu.core_type<tc>, window_params = [{transform_indices = @transform_0, window_bounds = array<i64: 1, 2, 5, 64, 128>}, {pipeline_mode = #tpu.pipeline_mode<synchronous>, transform_indices = @transform_1, window_bounds = array<i64: 384, 128>}, {pipeline_mode = #tpu.pipeline_mode<synchronous>, transform_indices = @transform_2, window_bounds = array<i64: 1, 128>}, {transform_indices = @transform_3, window_bounds = array<i64: 256, 128>}]} {
    %c0 = arith.constant 0 : index
    %c0_0 = arith.constant 0 : index
    %c0_1 = arith.constant 0 : index
    %c0_2 = arith.constant 0 : index
    %c0_3 = arith.constant 0 : index
    %0 = vector.load %arg1[%c0, %c0_0, %c0_1, %c0_2, %c0_3] : memref<1x2x5x64x128xbf16, #tpu.memory_space<vmem>>, vector<1x1x4x64x128xbf16>
    %1 = vector.shape_cast %0 : vector<1x1x4x64x128xbf16> to vector<1x4x64x128xbf16>
    %2 = vector.shape_cast %1 : vector<1x4x64x128xbf16> to vector<256x128xbf16>
    %c0_4 = arith.constant 0 : index
    %c1 = arith.constant 1 : index
    %c0_5 = arith.constant 0 : index
    %c0_6 = arith.constant 0 : index
    %c0_7 = arith.constant 0 : index
    %3 = vector.load %arg1[%c0_4, %c1, %c0_5, %c0_6, %c0_7] : memref<1x2x5x64x128xbf16, #tpu.memory_space<vmem>>, vector<1x1x4x64x128xbf16>
    %4 = vector.shape_cast %3 : vector<1x1x4x64x128xbf16> to vector<1x4x64x128xbf16>
    %5 = vector.shape_cast %4 : vector<1x4x64x128xbf16> to vector<256x128xbf16>
    %c0_8 = arith.constant 0 : index
    %c0_9 = arith.constant 0 : index
    %c1_10 = arith.constant 1 : index
    %c0_11 = arith.constant 0 : index
    %c0_12 = arith.constant 0 : index
    %6 = vector.load %arg1[%c0_8, %c0_9, %c1_10, %c0_11, %c0_12] : memref<1x2x5x64x128xbf16, #tpu.memory_space<vmem>>, vector<1x1x4x64x128xbf16>
    %7 = vector.shape_cast %6 : vector<1x1x4x64x128xbf16> to vector<1x4x64x128xbf16>
    %8 = vector.shape_cast %7 : vector<1x4x64x128xbf16> to vector<256x128xbf16>
    %9 = tpu.concatenate %2, %5, %8 in 1 : vector<256x128xbf16>, vector<256x128xbf16>, vector<256x128xbf16> -> vector<256x384xbf16>
    %c0_13 = arith.constant 0 : index
    %c0_14 = arith.constant 0 : index
    %10 = vector.load %arg2[%c0_13, %c0_14] : memref<384x128xbf16, #tpu.memory_space<vmem>>, vector<384x128xbf16>
    %cst = arith.constant dense<0.000000e+00> : vector<256x128xf32>
    %11 = tpu.matmul %9, %10, %cst {dimension_numbers = #tpu.dot_dimension_numbers<[1], [0], [0], [1], [0, 0, 1, 1], [], []>} : vector<256x384xbf16>, vector<384x128xbf16>, vector<256x128xf32> -> vector<256x128xf32>
    %c0_15 = arith.constant 0 : index
    %c0_16 = arith.constant 0 : index
    %12 = vector.load %arg3[%c0_15, %c0_16] : memref<1x128xf32, #tpu.memory_space<vmem>>, vector<1x128xf32>
    %13 = vector.broadcast %12 : vector<1x128xf32> to vector<256x128xf32>
    %14 = arith.addf %11, %13 : vector<256x128xf32>
    %cst_17 = arith.constant 0.000000e+00 : f32
    %15 = vector.broadcast %cst_17 : f32 to vector<256x128xf32>
    %16 = arith.maximumf %14, %15 : vector<256x128xf32>
    %17 = arith.truncf %16 : vector<256x128xf32> to vector<256x128xbf16>
    %c0_18 = arith.constant 0 : index
    %c0_19 = arith.constant 0 : index
    %18 = vector.load %arg4[%c0_18, %c0_19] : memref<256x128xbf16, #tpu.memory_space<vmem>>, vector<256x128xbf16>
    tpu.vector_store %arg4[%c0_18, %c0_19], %17 {strides = array<i32>} : memref<256x128xbf16, #tpu.memory_space<vmem>>, vector<256x128xbf16>,
    return
  }
  func.func @transform_0(%arg0: i32) -> (i32, i32, i32, i32, i32) {
    %c0_i32 = arith.constant 0 : i32
    %c0_i32_0 = arith.constant 0 : i32
    %c0_i32_1 = arith.constant 0 : i32
    %c0_i32_2 = arith.constant 0 : i32
    %c0_i32_3 = arith.constant 0 : i32
    return %arg0, %c0_i32, %c0_i32_0, %c0_i32_1, %c0_i32_2 : i32, i32, i32, i32, i32
  }
  func.func @transform_1(%arg0: i32) -> (i32, i32) {
    %c0_i32 = arith.constant 0 : i32
    %c0_i32_0 = arith.constant 0 : i32
    %c0_i32_1 = arith.constant 0 : i32
    return %c0_i32, %c0_i32_0 : i32, i32
  }
  func.func @transform_2(%arg0: i32) -> (i32, i32) {
    %c0_i32 = arith.constant 0 : i32
    %c0_i32_0 = arith.constant 0 : i32
    %c0_i32_1 = arith.constant 0 : i32
    return %c0_i32, %c0_i32_0 : i32, i32
  }
  func.func @transform_3(%arg0: i32) -> (i32, i32) {
    %c0_i32 = arith.constant 0 : i32
    %c0_i32_0 = arith.constant 0 : i32
    return %arg0, %c0_i32 : i32, i32
  }
}

module attributes {stable_mosaic.version = 11 : i64} {
  func.func @_fused_conv_kernel(%arg0: i32, %arg1: memref<2x1x10x10x128xbf16, #tpu.memory_space<vmem>>, %arg2: memref<1152x128xbf16, #tpu.memory_space<vmem>>, %arg3: memref<1x128xf32, #tpu.memory_space<vmem>>, %arg4: memref<128x128xbf16, #tpu.memory_space<vmem>>) attributes {dimension_semantics = [#tpu.dimension_semantics<parallel>], iteration_bounds = array<i64: 4>, scalar_prefetch = 0 : i64, scratch_operands = 0 : i64, tpu.core_type = #tpu.core_type<tc>, window_params = [{transform_indices = @transform_0, window_bounds = array<i64: 2, 1, 10, 10, 128>}, {pipeline_mode = #tpu.pipeline_mode<synchronous>, transform_indices = @transform_1, window_bounds = array<i64: 1152, 128>}, {pipeline_mode = #tpu.pipeline_mode<synchronous>, transform_indices = @transform_2, window_bounds = array<i64: 1, 128>}, {transform_indices = @transform_3, window_bounds = array<i64: 128, 128>}]} {
    %c0 = arith.constant 0 : index
    %c0_0 = arith.constant 0 : index
    %c0_1 = arith.constant 0 : index
    %c0_2 = arith.constant 0 : index
    %c0_3 = arith.constant 0 : index
    %0 = vector.load %arg1[%c0, %c0_0, %c0_1, %c0_2, %c0_3] : memref<2x1x10x10x128xbf16, #tpu.memory_space<vmem>>, vector<2x1x8x8x128xbf16>
    %1 = vector.shape_cast %0 : vector<2x1x8x8x128xbf16> to vector<2x8x8x128xbf16>
    %2 = arith.extf %1 : vector<2x8x8x128xbf16> to vector<2x8x8x128xf32>
    %3 = vector.shape_cast %2 : vector<2x8x8x128xf32> to vector<128x128xf32>
    %4 = arith.truncf %3 : vector<128x128xf32> to vector<128x128xbf16>
    %c0_4 = arith.constant 0 : index
    %c0_5 = arith.constant 0 : index
    %c0_6 = arith.constant 0 : index
    %c1 = arith.constant 1 : index
    %c0_7 = arith.constant 0 : index
    %5 = vector.load %arg1[%c0_4, %c0_5, %c0_6, %c1, %c0_7] : memref<2x1x10x10x128xbf16, #tpu.memory_space<vmem>>, vector<2x1x8x8x128xbf16>
    %6 = vector.shape_cast %5 : vector<2x1x8x8x128xbf16> to vector<2x8x8x128xbf16>
    %7 = arith.extf %6 : vector<2x8x8x128xbf16> to vector<2x8x8x128xf32>
    %8 = vector.shape_cast %7 : vector<2x8x8x128xf32> to vector<128x128xf32>
    %9 = arith.truncf %8 : vector<128x128xf32> to vector<128x128xbf16>
    %c0_8 = arith.constant 0 : index
    %c0_9 = arith.constant 0 : index
    %c0_10 = arith.constant 0 : index
    %c2 = arith.constant 2 : index
    %c0_11 = arith.constant 0 : index
    %10 = vector.load %arg1[%c0_8, %c0_9, %c0_10, %c2, %c0_11] : memref<2x1x10x10x128xbf16, #tpu.memory_space<vmem>>, vector<2x1x8x8x128xbf16>
    %11 = vector.shape_cast %10 : vector<2x1x8x8x128xbf16> to vector<2x8x8x128xbf16>
    %12 = arith.extf %11 : vector<2x8x8x128xbf16> to vector<2x8x8x128xf32>
    %13 = vector.shape_cast %12 : vector<2x8x8x128xf32> to vector<128x128xf32>
    %14 = arith.truncf %13 : vector<128x128xf32> to vector<128x128xbf16>
    %c0_12 = arith.constant 0 : index
    %c0_13 = arith.constant 0 : index
    %c1_14 = arith.constant 1 : index
    %c0_15 = arith.constant 0 : index
    %c0_16 = arith.constant 0 : index
    %15 = vector.load %arg1[%c0_12, %c0_13, %c1_14, %c0_15, %c0_16] : memref<2x1x10x10x128xbf16, #tpu.memory_space<vmem>>, vector<2x1x8x8x128xbf16>
    %16 = vector.shape_cast %15 : vector<2x1x8x8x128xbf16> to vector<2x8x8x128xbf16>
    %17 = arith.extf %16 : vector<2x8x8x128xbf16> to vector<2x8x8x128xf32>
    %18 = vector.shape_cast %17 : vector<2x8x8x128xf32> to vector<128x128xf32>
    %19 = arith.truncf %18 : vector<128x128xf32> to vector<128x128xbf16>
    %c0_17 = arith.constant 0 : index
    %c0_18 = arith.constant 0 : index
    %c1_19 = arith.constant 1 : index
    %c1_20 = arith.constant 1 : index
    %c0_21 = arith.constant 0 : index
    %20 = vector.load %arg1[%c0_17, %c0_18, %c1_19, %c1_20, %c0_21] : memref<2x1x10x10x128xbf16, #tpu.memory_space<vmem>>, vector<2x1x8x8x128xbf16>
    %21 = vector.shape_cast %20 : vector<2x1x8x8x128xbf16> to vector<2x8x8x128xbf16>
    %22 = arith.extf %21 : vector<2x8x8x128xbf16> to vector<2x8x8x128xf32>
    %23 = vector.shape_cast %22 : vector<2x8x8x128xf32> to vector<128x128xf32>
    %24 = arith.truncf %23 : vector<128x128xf32> to vector<128x128xbf16>
    %c0_22 = arith.constant 0 : index
    %c0_23 = arith.constant 0 : index
    %c1_24 = arith.constant 1 : index
    %c2_25 = arith.constant 2 : index
    %c0_26 = arith.constant 0 : index
    %25 = vector.load %arg1[%c0_22, %c0_23, %c1_24, %c2_25, %c0_26] : memref<2x1x10x10x128xbf16, #tpu.memory_space<vmem>>, vector<2x1x8x8x128xbf16>
    %26 = vector.shape_cast %25 : vector<2x1x8x8x128xbf16> to vector<2x8x8x128xbf16>
    %27 = arith.extf %26 : vector<2x8x8x128xbf16> to vector<2x8x8x128xf32>
    %28 = vector.shape_cast %27 : vector<2x8x8x128xf32> to vector<128x128xf32>
    %29 = arith.truncf %28 : vector<128x128xf32> to vector<128x128xbf16>
    %c0_27 = arith.constant 0 : index
    %c0_28 = arith.constant 0 : index
    %c2_29 = arith.constant 2 : index
    %c0_30 = arith.constant 0 : index
    %c0_31 = arith.constant 0 : index
    %30 = vector.load %arg1[%c0_27, %c0_28, %c2_29, %c0_30, %c0_31] : memref<2x1x10x10x128xbf16, #tpu.memory_space<vmem>>, vector<2x1x8x8x128xbf16>
    %31 = vector.shape_cast %30 : vector<2x1x8x8x128xbf16> to vector<2x8x8x128xbf16>
    %32 = arith.extf %31 : vector<2x8x8x128xbf16> to vector<2x8x8x128xf32>
    %33 = vector.shape_cast %32 : vector<2x8x8x128xf32> to vector<128x128xf32>
    %34 = arith.truncf %33 : vector<128x128xf32> to vector<128x128xbf16>
    %c0_32 = arith.constant 0 : index
    %c0_33 = arith.constant 0 : index
    %c2_34 = arith.constant 2 : index
    %c1_35 = arith.constant 1 : index
    %c0_36 = arith.constant 0 : index
    %35 = vector.load %arg1[%c0_32, %c0_33, %c2_34, %c1_35, %c0_36] : memref<2x1x10x10x128xbf16, #tpu.memory_space<vmem>>, vector<2x1x8x8x128xbf16>
    %36 = vector.shape_cast %35 : vector<2x1x8x8x128xbf16> to vector<2x8x8x128xbf16>
    %37 = arith.extf %36 : vector<2x8x8x128xbf16> to vector<2x8x8x128xf32>
    %38 = vector.shape_cast %37 : vector<2x8x8x128xf32> to vector<128x128xf32>
    %39 = arith.truncf %38 : vector<128x128xf32> to vector<128x128xbf16>
    %c0_37 = arith.constant 0 : index
    %c0_38 = arith.constant 0 : index
    %c2_39 = arith.constant 2 : index
    %c2_40 = arith.constant 2 : index
    %c0_41 = arith.constant 0 : index
    %40 = vector.load %arg1[%c0_37, %c0_38, %c2_39, %c2_40, %c0_41] : memref<2x1x10x10x128xbf16, #tpu.memory_space<vmem>>, vector<2x1x8x8x128xbf16>
    %41 = vector.shape_cast %40 : vector<2x1x8x8x128xbf16> to vector<2x8x8x128xbf16>
    %42 = arith.extf %41 : vector<2x8x8x128xbf16> to vector<2x8x8x128xf32>
    %43 = vector.shape_cast %42 : vector<2x8x8x128xf32> to vector<128x128xf32>
    %44 = arith.truncf %43 : vector<128x128xf32> to vector<128x128xbf16>
    %45 = tpu.concatenate %4, %9, %14, %19, %24, %29, %34, %39, %44 in 1 : vector<128x128xbf16>, vector<128x128xbf16>, vector<128x128xbf16>, vector<128x128xbf16>, vector<128x128xbf16>, vector<128x128xbf16>, vector<128x128xbf16>, vector<128x128xbf16>, vector<128x128xbf16> -> vector<128x1152xbf16>
    %c0_42 = arith.constant 0 : index
    %c0_43 = arith.constant 0 : index
    %46 = vector.load %arg2[%c0_42, %c0_43] : memref<1152x128xbf16, #tpu.memory_space<vmem>>, vector<1152x128xbf16>
    %cst = arith.constant dense<0.000000e+00> : vector<128x128xf32>
    %47 = tpu.matmul %45, %46, %cst {dimension_numbers = #tpu.dot_dimension_numbers<[1], [0], [0], [1], [0, 0, 1, 1], [], []>} : vector<128x1152xbf16>, vector<1152x128xbf16>, vector<128x128xf32> -> vector<128x128xf32>
    %c0_44 = arith.constant 0 : index
    %c0_45 = arith.constant 0 : index
    %48 = vector.load %arg3[%c0_44, %c0_45] : memref<1x128xf32, #tpu.memory_space<vmem>>, vector<1x128xf32>
    %49 = vector.broadcast %48 : vector<1x128xf32> to vector<128x128xf32>
    %50 = arith.addf %47, %49 : vector<128x128xf32>
    %51 = arith.truncf %50 : vector<128x128xf32> to vector<128x128xbf16>
    %c0_46 = arith.constant 0 : index
    %c0_47 = arith.constant 0 : index
    %52 = vector.load %arg4[%c0_46, %c0_47] : memref<128x128xbf16, #tpu.memory_space<vmem>>, vector<128x128xbf16>
    tpu.vector_store %arg4[%c0_46, %c0_47], %51 {strides = array<i32>} : memref<128x128xbf16, #tpu.memory_space<vmem>>, vector<128x128xbf16>,
    return
  }
  func.func @transform_0(%arg0: i32) -> (i32, i32, i32, i32, i32) {
    %c0_i32 = arith.constant 0 : i32
    %c0_i32_0 = arith.constant 0 : i32
    %c0_i32_1 = arith.constant 0 : i32
    %c0_i32_2 = arith.constant 0 : i32
    %c0_i32_3 = arith.constant 0 : i32
    return %arg0, %c0_i32, %c0_i32_0, %c0_i32_1, %c0_i32_2 : i32, i32, i32, i32, i32
  }
  func.func @transform_1(%arg0: i32) -> (i32, i32) {
    %c0_i32 = arith.constant 0 : i32
    %c0_i32_0 = arith.constant 0 : i32
    %c0_i32_1 = arith.constant 0 : i32
    return %c0_i32, %c0_i32_0 : i32, i32
  }
  func.func @transform_2(%arg0: i32) -> (i32, i32) {
    %c0_i32 = arith.constant 0 : i32
    %c0_i32_0 = arith.constant 0 : i32
    %c0_i32_1 = arith.constant 0 : i32
    return %c0_i32, %c0_i32_0 : i32, i32
  }
  func.func @transform_3(%arg0: i32) -> (i32, i32) {
    %c0_i32 = arith.constant 0 : i32
    %c0_i32_0 = arith.constant 0 : i32
    return %arg0, %c0_i32 : i32, i32
  }
}

module attributes {stable_mosaic.version = 11 : i64} {
  func.func @_fused_conv_kernel(%arg0: i32, %arg1: memref<1x1x6x64x128xbf16, #tpu.memory_space<vmem>>, %arg2: memref<1x4x64x128xbf16, #tpu.memory_space<vmem>>, %arg3: memref<512x128xbf16, #tpu.memory_space<vmem>>, %arg4: memref<1x128xf32, #tpu.memory_space<vmem>>, %arg5: memref<256x128xbf16, #tpu.memory_space<vmem>>) attributes {dimension_semantics = [#tpu.dimension_semantics<parallel>], iteration_bounds = array<i64: 2>, scalar_prefetch = 0 : i64, scratch_operands = 0 : i64, tpu.core_type = #tpu.core_type<tc>, window_params = [{transform_indices = @transform_0, window_bounds = array<i64: 1, 1, 6, 64, 128>}, {transform_indices = @transform_1, window_bounds = array<i64: 1, 4, 64, 128>}, {pipeline_mode = #tpu.pipeline_mode<synchronous>, transform_indices = @transform_2, window_bounds = array<i64: 512, 128>}, {pipeline_mode = #tpu.pipeline_mode<synchronous>, transform_indices = @transform_3, window_bounds = array<i64: 1, 128>}, {transform_indices = @transform_4, window_bounds = array<i64: 256, 128>}]} {
    %c0 = arith.constant 0 : index
    %c0_0 = arith.constant 0 : index
    %c0_1 = arith.constant 0 : index
    %c0_2 = arith.constant 0 : index
    %c0_3 = arith.constant 0 : index
    %0 = vector.load %arg1[%c0, %c0_0, %c0_1, %c0_2, %c0_3] : memref<1x1x6x64x128xbf16, #tpu.memory_space<vmem>>, vector<1x1x4x64x128xbf16>
    %1 = vector.shape_cast %0 : vector<1x1x4x64x128xbf16> to vector<1x4x64x128xbf16>
    %2 = vector.shape_cast %1 : vector<1x4x64x128xbf16> to vector<256x128xbf16>
    %c0_4 = arith.constant 0 : index
    %c0_5 = arith.constant 0 : index
    %c1 = arith.constant 1 : index
    %c0_6 = arith.constant 0 : index
    %c0_7 = arith.constant 0 : index
    %3 = vector.load %arg1[%c0_4, %c0_5, %c1, %c0_6, %c0_7] : memref<1x1x6x64x128xbf16, #tpu.memory_space<vmem>>, vector<1x1x4x64x128xbf16>
    %4 = vector.shape_cast %3 : vector<1x1x4x64x128xbf16> to vector<1x4x64x128xbf16>
    %5 = vector.shape_cast %4 : vector<1x4x64x128xbf16> to vector<256x128xbf16>
    %c0_8 = arith.constant 0 : index
    %c0_9 = arith.constant 0 : index
    %c2 = arith.constant 2 : index
    %c0_10 = arith.constant 0 : index
    %c0_11 = arith.constant 0 : index
    %6 = vector.load %arg1[%c0_8, %c0_9, %c2, %c0_10, %c0_11] : memref<1x1x6x64x128xbf16, #tpu.memory_space<vmem>>, vector<1x1x4x64x128xbf16>
    %7 = vector.shape_cast %6 : vector<1x1x4x64x128xbf16> to vector<1x4x64x128xbf16>
    %8 = vector.shape_cast %7 : vector<1x4x64x128xbf16> to vector<256x128xbf16>
    %c0_12 = arith.constant 0 : index
    %c0_13 = arith.constant 0 : index
    %c0_14 = arith.constant 0 : index
    %c0_15 = arith.constant 0 : index
    %9 = vector.load %arg2[%c0_12, %c0_13, %c0_14, %c0_15] : memref<1x4x64x128xbf16, #tpu.memory_space<vmem>>, vector<1x4x64x128xbf16>
    %10 = vector.shape_cast %9 : vector<1x4x64x128xbf16> to vector<256x128xbf16>
    %11 = tpu.concatenate %2, %5, %8, %10 in 1 : vector<256x128xbf16>, vector<256x128xbf16>, vector<256x128xbf16>, vector<256x128xbf16> -> vector<256x512xbf16>
    %c0_16 = arith.constant 0 : index
    %c0_17 = arith.constant 0 : index
    %12 = vector.load %arg3[%c0_16, %c0_17] : memref<512x128xbf16, #tpu.memory_space<vmem>>, vector<512x128xbf16>
    %cst = arith.constant dense<0.000000e+00> : vector<256x128xf32>
    %13 = tpu.matmul %11, %12, %cst {dimension_numbers = #tpu.dot_dimension_numbers<[1], [0], [0], [1], [0, 0, 1, 1], [], []>} : vector<256x512xbf16>, vector<512x128xbf16>, vector<256x128xf32> -> vector<256x128xf32>
    %c0_18 = arith.constant 0 : index
    %c0_19 = arith.constant 0 : index
    %14 = vector.load %arg4[%c0_18, %c0_19] : memref<1x128xf32, #tpu.memory_space<vmem>>, vector<1x128xf32>
    %15 = vector.broadcast %14 : vector<1x128xf32> to vector<256x128xf32>
    %16 = arith.addf %13, %15 : vector<256x128xf32>
    %cst_20 = arith.constant 0.000000e+00 : f32
    %17 = vector.broadcast %cst_20 : f32 to vector<256x128xf32>
    %18 = arith.maximumf %16, %17 : vector<256x128xf32>
    %19 = arith.truncf %18 : vector<256x128xf32> to vector<256x128xbf16>
    %c0_21 = arith.constant 0 : index
    %c0_22 = arith.constant 0 : index
    %20 = vector.load %arg5[%c0_21, %c0_22] : memref<256x128xbf16, #tpu.memory_space<vmem>>, vector<256x128xbf16>
    tpu.vector_store %arg5[%c0_21, %c0_22], %19 {strides = array<i32>} : memref<256x128xbf16, #tpu.memory_space<vmem>>, vector<256x128xbf16>,
    return
  }
  func.func @transform_0(%arg0: i32) -> (i32, i32, i32, i32, i32) {
    %c0_i32 = arith.constant 0 : i32
    %c0_i32_0 = arith.constant 0 : i32
    %c0_i32_1 = arith.constant 0 : i32
    %c0_i32_2 = arith.constant 0 : i32
    %c0_i32_3 = arith.constant 0 : i32
    return %arg0, %c0_i32, %c0_i32_0, %c0_i32_1, %c0_i32_2 : i32, i32, i32, i32, i32
  }
  func.func @transform_1(%arg0: i32) -> (i32, i32, i32, i32) {
    %c0_i32 = arith.constant 0 : i32
    %c0_i32_0 = arith.constant 0 : i32
    %c0_i32_1 = arith.constant 0 : i32
    %c0_i32_2 = arith.constant 0 : i32
    return %arg0, %c0_i32, %c0_i32_0, %c0_i32_1 : i32, i32, i32, i32
  }
  func.func @transform_2(%arg0: i32) -> (i32, i32) {
    %c0_i32 = arith.constant 0 : i32
    %c0_i32_0 = arith.constant 0 : i32
    %c0_i32_1 = arith.constant 0 : i32
    return %c0_i32, %c0_i32_0 : i32, i32
  }
  func.func @transform_3(%arg0: i32) -> (i32, i32) {
    %c0_i32 = arith.constant 0 : i32
    %c0_i32_0 = arith.constant 0 : i32
    %c0_i32_1 = arith.constant 0 : i32
    return %c0_i32, %c0_i32_0 : i32, i32
  }
  func.func @transform_4(%arg0: i32) -> (i32, i32) {
    %c0_i32 = arith.constant 0 : i32
    %c0_i32_0 = arith.constant 0 : i32
    return %arg0, %c0_i32 : i32, i32
  }
}

</mosaic_0001>

<llo_original>
// kernel: convolutional_block.4
$region0: #{convolutional_block.4}
  #allocation0 [shape = 'u32[]', space=smem, size = 0x4, offset = 0x4, fixed_abs, tag = 'smem constant byte address 0x4 - core index']
  #allocation1 [shape = 'u32[72,128]{1,0:T(1,128)}', space=vmem, size = 0x9000, scoped, tag = 'internal scratch']
  %s0 = inlined_call_operand.vmem [shape: bf16[16,4,9,9,128], index: 0, kind: input, shape index: {}]
  %s1 = inlined_call_operand.vmem [shape: bf16[1152,128], index: 1, kind: input, shape index: {}]
  %s2 = inlined_call_operand.vmem [shape: f32[1,128], index: 2, kind: input, shape index: {}]
  %s3 = inlined_call_operand.vmem [shape: bf16[1024,128], index: 3, kind: output, shape index: {}]
  %s4 = sld [smem:[#allocation0]]
  $region45: #{convolutional_block.4} parent=0
    _
  %s6 = ssub.s32 1, %s4
  %s7 = scalar_select 0, %s6, %s4
  loop: start=0, step=1, limit=6
  $region2: #{convolutional_block.4} parent=0 // loop_pre_header
    _
  $region3: #{convolutional_block.4} parent=0 // loop_header
    %s9 = sphi 0, %s13
    %p10 = scmp.ge.s32.totalorder %s9, 6
    %s19 = sphi 0, %s21
    %s22 = sphi 0, %s19
    %s23 = sphi 0, %s22
    %s39 = sphi 0, %s23
    %s43 = sphi 0, %s43
    %s45 = sphi 0, %s43
    %s46 = sphi 0, %s45
    %s60 = sphi 0, %s46
    %s64 = sphi 0, %s64
    %s66 = sphi 0, %s64
    %s67 = sphi 0, %s66
    %s81 = sphi 0, %s67
    %s87 = sphi 0, %s89
    %s90 = sphi 0, %s87
    %s91 = sphi 0, %s90
    %s107 = sphi 0, %s91
  $region4: #{convolutional_block.4} parent=0 // loop_header_branch
    %12 = sbr.rel (%p10) target = $region8
  $region5: #{convolutional_block.4} parent=0 // loop_body
    %s14 = ssub.s32 %s9, 1
    %s15 = ssub.s32 %s9, 2
    %s16 = sadd.s32 %s9, 1
    %s17 = ssub.s32 %s9, %s16
    %p18 = scmp.eq.s32.totalorder %s17, 0
    %s20 = sadd.s32 %s19, 1
    %s21 = scalar_select %p18, %s19, %s20
    %p24 = pneg %p18
    %p25 = scmp.eq.s32.totalorder %s9, 3
    %p26 = por %p24, %p25
    %p27 = scmp.ne.s32.totalorder %s19, %s22
    %p28 = scmp.eq.s32.totalorder %s9, 0
    %p29 = por %p27, %p28
    %p30 = scmp.ne.s32.totalorder %s19, %s22
    %p31 = scmp.eq.s32.totalorder %s14, 3
    %p32 = por %p30, %p31
    %p33 = scmp.ne.s32.totalorder %s22, %s23
    %p34 = scmp.eq.s32.totalorder %s14, 0
    %p35 = por %p33, %p34
    %p36 = scmp.ne.s32.totalorder %s22, %s23
    %p37 = scmp.eq.s32.totalorder %s15, 3
    %p38 = por %p36, %p37
    %p40 = scmp.ne.s32.totalorder %s23, %s39
    %p41 = scmp.eq.s32.totalorder %s15, 0
    %p42 = por %p40, %p41
    %s44 = sadd.s32 %s43, 1
    %p47 = scmp.eq.s32.totalorder %s9, 3
    %p48 = scmp.ne.s32.totalorder %s43, %s45
    %p49 = scmp.eq.s32.totalorder %s9, 0
    %p50 = por %p48, %p49
    %p51 = scmp.ne.s32.totalorder %s43, %s45
    %p52 = scmp.eq.s32.totalorder %s14, 3
    %p53 = por %p51, %p52
    %p54 = scmp.ne.s32.totalorder %s45, %s46
    %p55 = scmp.eq.s32.totalorder %s14, 0
    %p56 = por %p54, %p55
    %p57 = scmp.ne.s32.totalorder %s45, %s46
    %p58 = scmp.eq.s32.totalorder %s15, 3
    %p59 = por %p57, %p58
    %p61 = scmp.ne.s32.totalorder %s46, %s60
    %p62 = scmp.eq.s32.totalorder %s15, 0
    %p63 = por %p61, %p62
    %s65 = sadd.s32 %s64, 1
    %p68 = scmp.eq.s32.totalorder %s9, 3
    %p69 = scmp.ne.s32.totalorder %s64, %s66
    %p70 = scmp.eq.s32.totalorder %s9, 0
    %p71 = por %p69, %p70
    %p72 = scmp.ne.s32.totalorder %s64, %s66
    %p73 = scmp.eq.s32.totalorder %s14, 3
    %p74 = por %p72, %p73
    %p75 = scmp.ne.s32.totalorder %s66, %s67
    %p76 = scmp.eq.s32.totalorder %s14, 0
    %p77 = por %p75, %p76
    %p78 = scmp.ne.s32.totalorder %s66, %s67
    %p79 = scmp.eq.s32.totalorder %s15, 3
    %p80 = por %p78, %p79
    %p82 = scmp.ne.s32.totalorder %s67, %s81
    %p83 = scmp.eq.s32.totalorder %s15, 0
    %p84 = por %p82, %p83
    %s85 = ssub.s32 %s9, %s16
    %p86 = scmp.eq.s32.totalorder %s85, 0
    %s88 = sadd.s32 %s87, 1
    %s89 = scalar_select %p86, %s87, %s88
    %p92 = pneg %p86
    %p93 = scmp.eq.s32.totalorder %s9, 3
    %p94 = por %p92, %p93
    %p95 = scmp.ne.s32.totalorder %s87, %s90
    %p96 = scmp.eq.s32.totalorder %s9, 0
    %p97 = por %p95, %p96
    %p98 = scmp.ne.s32.totalorder %s87, %s90
    %p99 = scmp.eq.s32.totalorder %s14, 3
    %p100 = por %p98, %p99
    %p101 = scmp.ne.s32.totalorder %s90, %s91
    %p102 = scmp.eq.s32.totalorder %s14, 0
    %p103 = por %p101, %p102
    %p104 = scmp.ne.s32.totalorder %s90, %s91
    %p105 = scmp.eq.s32.totalorder %s15, 3
    %p106 = por %p104, %p105
    %p108 = scmp.ne.s32.totalorder %s91, %s107
    %p109 = scmp.eq.s32.totalorder %s15, 0
    %p110 = por %p108, %p109
    %p111 = scmp.le.s32.totalorder 1, %s9
    %p112 = scmp.lt.s32.totalorder %s9, 5
    %p113 = pnand %p111, %p112
    %p114 = pneg %p113
    // Predicated region
    $region9: #{convolutional_block.4} parent=5 // pred_check
      _
    $region10: #{convolutional_block.4} parent=5 // pred_check_branch
      %116 = sbr.rel (%p113) target = $region12
    $region11: #{convolutional_block.4} parent=5 // pred_region
      %s117 = ssub.s32 %s9, 1
      // Predicated region
      $region13: #{convolutional_block.4} parent=11 // pred_check
        %p118 = pneg %p56
      $region14: #{convolutional_block.4} parent=11 // pred_check_branch
        %120 = sbr.rel (%p118) target = $region16
      $region15: #{convolutional_block.4} parent=11 // pred_region
        _
      $region16: #{convolutional_block.4} parent=11 // pred_fallthru
        _
      // Predicated region
      $region17: #{convolutional_block.4} parent=11 // pred_check
        %p121 = pneg %p77
      $region18: #{convolutional_block.4} parent=11 // pred_check_branch
        %123 = sbr.rel (%p121) target = $region20
      $region19: #{convolutional_block.4} parent=11 // pred_region
        _
      $region20: #{convolutional_block.4} parent=11 // pred_fallthru
        _
    $region12: #{convolutional_block.4} parent=5 // pred_fallthru
      _
    %p124 = scmp.lt.s32.totalorder %s9, 4
    // Predicated region
    $region21: #{convolutional_block.4} parent=5 // pred_check
      %p125 = pneg %p124
    $region22: #{convolutional_block.4} parent=5 // pred_check_branch
      %127 = sbr.rel (%p125) target = $region24
    $region23: #{convolutional_block.4} parent=5 // pred_region
      // Predicated region
      $region25: #{convolutional_block.4} parent=23 // pred_check
        %p128 = pneg %p29
      $region26: #{convolutional_block.4} parent=23 // pred_check_branch
        %130 = sbr.rel (%p128) target = $region28
      $region27: #{convolutional_block.4} parent=23 // pred_region
        %s131 = smul.u32 4, %s9
        %p132 = scmp.lt.s32.totalorder %s131, 15
        %s133 = scalar_select %p132, %s131, 15
        %s134 = smul.addr %s133, 72
        %s135 = smul.addr %s134, 4
        %s136 = scalar_lea.vmem %s0, %s135
        %s137 = smul.u32 4, %s9
      $region28: #{convolutional_block.4} parent=23 // pred_fallthru
        _
    $region24: #{convolutional_block.4} parent=5 // pred_fallthru
      _
    %p138 = scmp.le.s32.totalorder 1, %s9
    %p139 = scmp.lt.s32.totalorder %s9, 5
    %p140 = pnand %p138, %p139
    %p141 = pneg %p140
    // Predicated region
    $region29: #{convolutional_block.4} parent=5 // pred_check
      _
    $region30: #{convolutional_block.4} parent=5 // pred_check_branch
      %143 = sbr.rel (%p140) target = $region32
    $region31: #{convolutional_block.4} parent=5 // pred_region
      %s144 = ssub.s32 %s9, 1
      %s145 = smul.u32 4, %s14
      %p146 = scmp.lt.s32.totalorder %s145, 15
      %s147 = scalar_select %p146, %s145, 15
      %s148 = smul.addr %s147, 72
      %s149 = smul.addr %s148, 4
      %s150 = scalar_lea.vmem %s0, %s149
      %p151 = pneg %p35
      %p152 = pneg %p32
      %p153 = pneg %p56
      %p154 = pneg %p53
      %p155 = pneg %p77
      %p156 = pneg %p74
      %p157 = pneg %p103
      %p158 = pneg %p100
      %s159 = smul.u32 32, %s14
      %p160 = scmp.lt.s32.totalorder %s159, 127
      %s161 = scalar_select %p160, %s159, 127
      %s162 = smul.addr %s161, 4
      %s163 = scalar_lea.vmem %s3, %s162
      %s164 = smul.u32 4, %s14
      %p165 = scmp.lt.s32.totalorder %s164, 15
      %s166 = scalar_select %p165, %s164, 15
      %s167 = smul.addr %s166, 72
      %s168 = smul.addr %s167, 4
      %s169 = scalar_lea.vmem %s0, %s168
      %s170 = smul.u32 4, %s14
      %s171 = smul.u32 32, %s14
      %p172 = scmp.lt.s32.totalorder %s171, 127
      %s173 = scalar_select %p172, %s171, 127
      %s174 = smul.addr %s173, 4
      %s175 = scalar_lea.vmem %s3, %s174
      %s176 = smul.u32 32, %s14
      %v177 = vld [vmem:[%s169] sm:$0xf]
      %v178 = vld [vmem:[%s169 + $0x8] sm:$0xf]
      %v179 = vld [vmem:[%s169 + $0x10] sm:$0xf]
      %v180 = vld [vmem:[%s169 + $0x18] sm:$0xf]
      %v181 = vld [vmem:[%s169 + $0x20] sm:$0xf]
      %v182 = vld [vmem:[%s169 + $0x28] sm:$0xf]
      %v183 = vld [vmem:[%s169 + $0x30] sm:$0xf]
      %v184 = vld [vmem:[%s169 + $0x38] sm:$0xf]
      %v185 = vld [vmem:[%s169 + $0x120] sm:$0xf]
      %v186 = vld [vmem:[%s169 + $0x128] sm:$0xf]
      %v187 = vld [vmem:[%s169 + $0x130] sm:$0xf]
      %v188 = vld [vmem:[%s169 + $0x138] sm:$0xf]
      %v189 = vld [vmem:[%s169 + $0x140] sm:$0xf]
      %v190 = vld [vmem:[%s169 + $0x148] sm:$0xf]
      %v191 = vld [vmem:[%s169 + $0x150] sm:$0xf]
      %v192 = vld [vmem:[%s169 + $0x158] sm:$0xf]
      %v193 = vld [vmem:[%s169 + $0x240] sm:$0xf]
      %v194 = vld [vmem:[%s169 + $0x248] sm:$0xf]
      %v195 = vld [vmem:[%s169 + $0x250] sm:$0xf]
      %v196 = vld [vmem:[%s169 + $0x258] sm:$0xf]
      %v197 = vld [vmem:[%s169 + $0x260] sm:$0xf]
      %v198 = vld [vmem:[%s169 + $0x268] sm:$0xf]
      %v199 = vld [vmem:[%s169 + $0x270] sm:$0xf]
      %v200 = vld [vmem:[%s169 + $0x278] sm:$0xf]
      %v201 = vld [vmem:[%s169 + $0x360] sm:$0xf]
      %v202 = vld [vmem:[%s169 + $0x368] sm:$0xf]
      %v203 = vld [vmem:[%s169 + $0x370] sm:$0xf]
      %v204 = vld [vmem:[%s169 + $0x378] sm:$0xf]
      %v205 = vld [vmem:[%s169 + $0x380] sm:$0xf]
      %v206 = vld [vmem:[%s169 + $0x388] sm:$0xf]
      %v207 = vld [vmem:[%s169 + $0x390] sm:$0xf]
      %v208 = vld [vmem:[%s169 + $0x398] sm:$0xf]
      %v209 = vunpack.c.l.bf16 %v177
      %v210 = vunpack.c.l.bf16 %v178
      %v211 = vunpack.c.l.bf16 %v179
      %v212 = vunpack.c.l.bf16 %v180
      %v213 = vunpack.c.l.bf16 %v181
      %v214 = vunpack.c.l.bf16 %v182
      %v215 = vunpack.c.l.bf16 %v183
      %v216 = vunpack.c.l.bf16 %v184
      %v217 = vunpack.c.l.bf16 %v185
      %v218 = vunpack.c.l.bf16 %v186
      %v219 = vunpack.c.l.bf16 %v187
      %v220 = vunpack.c.l.bf16 %v188
      %v221 = vunpack.c.l.bf16 %v189
      %v222 = vunpack.c.l.bf16 %v190
      %v223 = vunpack.c.l.bf16 %v191
      %v224 = vunpack.c.l.bf16 %v192
      %v225 = vunpack.c.l.bf16 %v193
      %v226 = vunpack.c.l.bf16 %v194
      %v227 = vunpack.c.l.bf16 %v195
      %v228 = vunpack.c.l.bf16 %v196
      %v229 = vunpack.c.l.bf16 %v197
      %v230 = vunpack.c.l.bf16 %v198
      %v231 = vunpack.c.l.bf16 %v199
      %v232 = vunpack.c.l.bf16 %v200
      %v233 = vunpack.c.l.bf16 %v201
      %v234 = vunpack.c.l.bf16 %v202
      %v235 = vunpack.c.l.bf16 %v203
      %v236 = vunpack.c.l.bf16 %v204
      %v237 = vunpack.c.l.bf16 %v205
      %v238 = vunpack.c.l.bf16 %v206
      %v239 = vunpack.c.l.bf16 %v207
      %v240 = vunpack.c.l.bf16 %v208
      %v241 = vpack.c.bf16 %v209, %v209
      %v242 = vpack.c.bf16 %v210, %v210
      %v243 = vpack.c.bf16 %v211, %v211
      %v244 = vpack.c.bf16 %v212, %v212
      %v245 = vpack.c.bf16 %v213, %v213
      %v246 = vpack.c.bf16 %v214, %v214
      %v247 = vpack.c.bf16 %v215, %v215
      %v248 = vpack.c.bf16 %v216, %v216
      %v249 = vpack.c.bf16 %v217, %v217
      %v250 = vpack.c.bf16 %v218, %v218
      %v251 = vpack.c.bf16 %v219, %v219
      %v252 = vpack.c.bf16 %v220, %v220
      %v253 = vpack.c.bf16 %v221, %v221
      %v254 = vpack.c.bf16 %v222, %v222
      %v255 = vpack.c.bf16 %v223, %v223
      %v256 = vpack.c.bf16 %v224, %v224
      %v257 = vpack.c.bf16 %v225, %v225
      %v258 = vpack.c.bf16 %v226, %v226
      %v259 = vpack.c.bf16 %v227, %v227
      %v260 = vpack.c.bf16 %v228, %v228
      %v261 = vpack.c.bf16 %v229, %v229
      %v262 = vpack.c.bf16 %v230, %v230
      %v263 = vpack.c.bf16 %v231, %v231
      %v264 = vpack.c.bf16 %v232, %v232
      %v265 = vpack.c.bf16 %v233, %v233
      %v266 = vpack.c.bf16 %v234, %v234
      %v267 = vpack.c.bf16 %v235, %v235
      %v268 = vpack.c.bf16 %v236, %v236
      %v269 = vpack.c.bf16 %v237, %v237
      %v270 = vpack.c.bf16 %v238, %v238
      %v271 = vpack.c.bf16 %v239, %v239
      %v272 = vpack.c.bf16 %v240, %v240
      %s273 = scalar_lea.vmem %s169, 72
      %v274 = vld [vmem:[%s273] sm:$0xf]
      %v275 = vld [vmem:[%s273 + $0x8] sm:$0xf]
      %v276 = vld [vmem:[%s273 + $0x10] sm:$0xf]
      %v277 = vld [vmem:[%s273 + $0x18] sm:$0xf]
      %v278 = vld [vmem:[%s273 + $0x20] sm:$0xf]
      %v279 = vld [vmem:[%s273 + $0x28] sm:$0xf]
      %v280 = vld [vmem:[%s273 + $0x30] sm:$0xf]
      %v281 = vld [vmem:[%s273 + $0x38] sm:$0xf]
      %v282 = vld [vmem:[%s273 + $0x120] sm:$0xf]
      %v283 = vld [vmem:[%s273 + $0x128] sm:$0xf]
      %v284 = vld [vmem:[%s273 + $0x130] sm:$0xf]
      %v285 = vld [vmem:[%s273 + $0x138] sm:$0xf]
      %v286 = vld [vmem:[%s273 + $0x140] sm:$0xf]
      %v287 = vld [vmem:[%s273 + $0x148] sm:$0xf]
      %v288 = vld [vmem:[%s273 + $0x150] sm:$0xf]
      %v289 = vld [vmem:[%s273 + $0x158] sm:$0xf]
      %v290 = vld [vmem:[%s273 + $0x240] sm:$0xf]
      %v291 = vld [vmem:[%s273 + $0x248] sm:$0xf]
      %v292 = vld [vmem:[%s273 + $0x250] sm:$0xf]
      %v293 = vld [vmem:[%s273 + $0x258] sm:$0xf]
      %v294 = vld [vmem:[%s273 + $0x260] sm:$0xf]
      %v295 = vld [vmem:[%s273 + $0x268] sm:$0xf]
      %v296 = vld [vmem:[%s273 + $0x270] sm:$0xf]
      %v297 = vld [vmem:[%s273 + $0x278] sm:$0xf]
      %v298 = vld [vmem:[%s273 + $0x360] sm:$0xf]
      %v299 = vld [vmem:[%s273 + $0x368] sm:$0xf]
      %v300 = vld [vmem:[%s273 + $0x370] sm:$0xf]
      %v301 = vld [vmem:[%s273 + $0x378] sm:$0xf]
      %v302 = vld [vmem:[%s273 + $0x380] sm:$0xf]
      %v303 = vld [vmem:[%s273 + $0x388] sm:$0xf]
      %v304 = vld [vmem:[%s273 + $0x390] sm:$0xf]
      %v305 = vld [vmem:[%s273 + $0x398] sm:$0xf]
      %v306 = vunpack.c.l.bf16 %v274
      %v307 = vunpack.c.l.bf16 %v275
      %v308 = vunpack.c.l.bf16 %v276
      %v309 = vunpack.c.l.bf16 %v277
      %v310 = vunpack.c.l.bf16 %v278
      %v311 = vunpack.c.l.bf16 %v279
      %v312 = vunpack.c.l.bf16 %v280
      %v313 = vunpack.c.l.bf16 %v281
      %v314 = vunpack.c.l.bf16 %v282
      %v315 = vunpack.c.l.bf16 %v283
      %v316 = vunpack.c.l.bf16 %v284
      %v317 = vunpack.c.l.bf16 %v285
      %v318 = vunpack.c.l.bf16 %v286
      %v319 = vunpack.c.l.bf16 %v287
      %v320 = vunpack.c.l.bf16 %v288
      %v321 = vunpack.c.l.bf16 %v289
      %v322 = vunpack.c.l.bf16 %v290
      %v323 = vunpack.c.l.bf16 %v291
      %v324 = vunpack.c.l.bf16 %v292
      %v325 = vunpack.c.l.bf16 %v293
      %v326 = vunpack.c.l.bf16 %v294
      %v327 = vunpack.c.l.bf16 %v295
      %v328 = vunpack.c.l.bf16 %v296
      %v329 = vunpack.c.l.bf16 %v297
      %v330 = vunpack.c.l.bf16 %v298
      %v331 = vunpack.c.l.bf16 %v299
      %v332 = vunpack.c.l.bf16 %v300
      %v333 = vunpack.c.l.bf16 %v301
      %v334 = vunpack.c.l.bf16 %v302
      %v335 = vunpack.c.l.bf16 %v303
      %v336 = vunpack.c.l.bf16 %v304
      %v337 = vunpack.c.l.bf16 %v305
      %v338 = vpack.c.bf16 %v306, %v306
      %v339 = vpack.c.bf16 %v307, %v307
      %v340 = vpack.c.bf16 %v308, %v308
      %v341 = vpack.c.bf16 %v309, %v309
      %v342 = vpack.c.bf16 %v310, %v310
      %v343 = vpack.c.bf16 %v311, %v311
      %v344 = vpack.c.bf16 %v312, %v312
      %v345 = vpack.c.bf16 %v313, %v313
      %v346 = vpack.c.bf16 %v314, %v314
      %v347 = vpack.c.bf16 %v315, %v315
      %v348 = vpack.c.bf16 %v316, %v316
      %v349 = vpack.c.bf16 %v317, %v317
      %v350 = vpack.c.bf16 %v318, %v318
      %v351 = vpack.c.bf16 %v319, %v319
      %v352 = vpack.c.bf16 %v320, %v320
      %v353 = vpack.c.bf16 %v321, %v321
      %v354 = vpack.c.bf16 %v322, %v322
      %v355 = vpack.c.bf16 %v323, %v323
      %v356 = vpack.c.bf16 %v324, %v324
      %v357 = vpack.c.bf16 %v325, %v325
      %v358 = vpack.c.bf16 %v326, %v326
      %v359 = vpack.c.bf16 %v327, %v327
      %v360 = vpack.c.bf16 %v328, %v328
      %v361 = vpack.c.bf16 %v329, %v329
      %v362 = vpack.c.bf16 %v330, %v330
      %v363 = vpack.c.bf16 %v331, %v331
      %v364 = vpack.c.bf16 %v332, %v332
      %v365 = vpack.c.bf16 %v333, %v333
      %v366 = vpack.c.bf16 %v334, %v334
      %v367 = vpack.c.bf16 %v335, %v335
      %v368 = vpack.c.bf16 %v336, %v336
      %v369 = vpack.c.bf16 %v337, %v337
      %v370 = vld [vmem:[%s169 + $0x4] sm:$0x1]
      %v371 = vld [vmem:[%s169 + $0xc] sm:$0x1]
      %v372 = vld [vmem:[%s169 + $0x14] sm:$0x1]
      %v373 = vld [vmem:[%s169 + $0x1c] sm:$0x1]
      %v374 = vld [vmem:[%s169 + $0x24] sm:$0x1]
      %v375 = vld [vmem:[%s169 + $0x2c] sm:$0x1]
      %v376 = vld [vmem:[%s169 + $0x34] sm:$0x1]
      %v377 = vld [vmem:[%s169 + $0x3c] sm:$0x1]
      %v378 = vld [vmem:[%s169 + $0x124] sm:$0x1]
      %v379 = vld [vmem:[%s169 + $0x12c] sm:$0x1]
      %v380 = vld [vmem:[%s169 + $0x134] sm:$0x1]
      %v381 = vld [vmem:[%s169 + $0x13c] sm:$0x1]
      %v382 = vld [vmem:[%s169 + $0x144] sm:$0x1]
      %v383 = vld [vmem:[%s169 + $0x14c] sm:$0x1]
      %v384 = vld [vmem:[%s169 + $0x154] sm:$0x1]
      %v385 = vld [vmem:[%s169 + $0x15c] sm:$0x1]
      %v386 = vld [vmem:[%s169 + $0x244] sm:$0x1]
      %v387 = vld [vmem:[%s169 + $0x24c] sm:$0x1]
      %v388 = vld [vmem:[%s169 + $0x254] sm:$0x1]
      %v389 = vld [vmem:[%s169 + $0x25c] sm:$0x1]
      %v390 = vld [vmem:[%s169 + $0x264] sm:$0x1]
      %v391 = vld [vmem:[%s169 + $0x26c] sm:$0x1]
      %v392 = vld [vmem:[%s169 + $0x274] sm:$0x1]
      %v393 = vld [vmem:[%s169 + $0x27c] sm:$0x1]
      %v394 = vld [vmem:[%s169 + $0x364] sm:$0x1]
      %v395 = vld [vmem:[%s169 + $0x36c] sm:$0x1]
      %v396 = vld [vmem:[%s169 + $0x374] sm:$0x1]
      %v397 = vld [vmem:[%s169 + $0x37c] sm:$0x1]
      %v398 = vld [vmem:[%s169 + $0x384] sm:$0x1]
      %v399 = vld [vmem:[%s169 + $0x38c] sm:$0x1]
      %v400 = vld [vmem:[%s169 + $0x394] sm:$0x1]
      %v401 = vld [vmem:[%s169 + $0x39c] sm:$0x1]
      %v402 = vunpack.c.l.bf16 %v370
      %v403 = vunpack.c.l.bf16 %v371
      %v404 = vunpack.c.l.bf16 %v372
      %v405 = vunpack.c.l.bf16 %v373
      %v406 = vunpack.c.l.bf16 %v374
      %v407 = vunpack.c.l.bf16 %v375
      %v408 = vunpack.c.l.bf16 %v376
      %v409 = vunpack.c.l.bf16 %v377
      %v410 = vunpack.c.l.bf16 %v378
      %v411 = vunpack.c.l.bf16 %v379
      %v412 = vunpack.c.l.bf16 %v380
      %v413 = vunpack.c.l.bf16 %v381
      %v414 = vunpack.c.l.bf16 %v382
      %v415 = vunpack.c.l.bf16 %v383
      %v416 = vunpack.c.l.bf16 %v384
      %v417 = vunpack.c.l.bf16 %v385
      %v418 = vunpack.c.l.bf16 %v386
      %v419 = vunpack.c.l.bf16 %v387
      %v420 = vunpack.c.l.bf16 %v388
      %v421 = vunpack.c.l.bf16 %v389
      %v422 = vunpack.c.l.bf16 %v390
      %v423 = vunpack.c.l.bf16 %v391
      %v424 = vunpack.c.l.bf16 %v392
      %v425 = vunpack.c.l.bf16 %v393
      %v426 = vunpack.c.l.bf16 %v394
      %v427 = vunpack.c.l.bf16 %v395
      %v428 = vunpack.c.l.bf16 %v396
      %v429 = vunpack.c.l.bf16 %v397
      %v430 = vunpack.c.l.bf16 %v398
      %v431 = vunpack.c.l.bf16 %v399
      %v432 = vunpack.c.l.bf16 %v400
      %v433 = vunpack.c.l.bf16 %v401
      %vm498 = vcmask 1046528
      %v499 = vrot.slane %v209, 1
      %v500 = vrot.slane %v402, 1
      %v501 = vsel %vm498, %v499, %v500
      %v502 = vrot.slane %v210, 1
      %v503 = vrot.slane %v403, 1
      %v504 = vsel %vm498, %v502, %v503
      %v505 = vrot.slane %v211, 1
      %v506 = vrot.slane %v404, 1
      %v507 = vsel %vm498, %v505, %v506
      %v508 = vrot.slane %v212, 1
      %v509 = vrot.slane %v405, 1
      %v510 = vsel %vm498, %v508, %v509
      %v511 = vrot.slane %v213, 1
      %v512 = vrot.slane %v406, 1
      %v513 = vsel %vm498, %v511, %v512
      %v514 = vrot.slane %v214, 1
      %v515 = vrot.slane %v407, 1
      %v516 = vsel %vm498, %v514, %v515
      %v517 = vrot.slane %v215, 1
      %v518 = vrot.slane %v408, 1
      %v519 = vsel %vm498, %v517, %v518
      %v520 = vrot.slane %v216, 1
      %v521 = vrot.slane %v409, 1
      %v522 = vsel %vm498, %v520, %v521
      %v523 = vrot.slane %v217, 1
      %v524 = vrot.slane %v410, 1
      %v525 = vsel %vm498, %v523, %v524
      %v526 = vrot.slane %v218, 1
      %v527 = vrot.slane %v411, 1
      %v528 = vsel %vm498, %v526, %v527
      %v529 = vrot.slane %v219, 1
      %v530 = vrot.slane %v412, 1
      %v531 = vsel %vm498, %v529, %v530
      %v532 = vrot.slane %v220, 1
      %v533 = vrot.slane %v413, 1
      %v534 = vsel %vm498, %v532, %v533
      %v535 = vrot.slane %v221, 1
      %v536 = vrot.slane %v414, 1
      %v537 = vsel %vm498, %v535, %v536
      %v538 = vrot.slane %v222, 1
      %v539 = vrot.slane %v415, 1
      %v540 = vsel %vm498, %v538, %v539
      %v541 = vrot.slane %v223, 1
      %v542 = vrot.slane %v416, 1
      %v543 = vsel %vm498, %v541, %v542
      %v544 = vrot.slane %v224, 1
      %v545 = vrot.slane %v417, 1
      %v546 = vsel %vm498, %v544, %v545
      %v547 = vrot.slane %v225, 1
      %v548 = vrot.slane %v418, 1
      %v549 = vsel %vm498, %v547, %v548
      %v550 = vrot.slane %v226, 1
      %v551 = vrot.slane %v419, 1
      %v552 = vsel %vm498, %v550, %v551
      %v553 = vrot.slane %v227, 1
      %v554 = vrot.slane %v420, 1
      %v555 = vsel %vm498, %v553, %v554
      %v556 = vrot.slane %v228, 1
      %v557 = vrot.slane %v421, 1
      %v558 = vsel %vm498, %v556, %v557
      %v559 = vrot.slane %v229, 1
      %v560 = vrot.slane %v422, 1
      %v561 = vsel %vm498, %v559, %v560
      %v562 = vrot.slane %v230, 1
      %v563 = vrot.slane %v423, 1
      %v564 = vsel %vm498, %v562, %v563
      %v565 = vrot.slane %v231, 1
      %v566 = vrot.slane %v424, 1
      %v567 = vsel %vm498, %v565, %v566
      %v568 = vrot.slane %v232, 1
      %v569 = vrot.slane %v425, 1
      %v570 = vsel %vm498, %v568, %v569
      %v571 = vrot.slane %v233, 1
      %v572 = vrot.slane %v426, 1
      %v573 = vsel %vm498, %v571, %v572
      %v574 = vrot.slane %v234, 1
      %v575 = vrot.slane %v427, 1
      %v576 = vsel %vm498, %v574, %v575
      %v577 = vrot.slane %v235, 1
      %v578 = vrot.slane %v428, 1
      %v579 = vsel %vm498, %v577, %v578
      %v580 = vrot.slane %v236, 1
      %v581 = vrot.slane %v429, 1
      %v582 = vsel %vm498, %v580, %v581
      %v583 = vrot.slane %v237, 1
      %v584 = vrot.slane %v430, 1
      %v585 = vsel %vm498, %v583, %v584
      %v586 = vrot.slane %v238, 1
      %v587 = vrot.slane %v431, 1
      %v588 = vsel %vm498, %v586, %v587
      %v589 = vrot.slane %v239, 1
      %v590 = vrot.slane %v432, 1
      %v591 = vsel %vm498, %v589, %v590
      %v592 = vrot.slane %v240, 1
      %v593 = vrot.slane %v433, 1
      %v594 = vsel %vm498, %v592, %v593
      %v627 = vpack.c.bf16 %v501, %v501
      %v628 = vpack.c.bf16 %v504, %v504
      %v629 = vpack.c.bf16 %v507, %v507
      %v630 = vpack.c.bf16 %v510, %v510
      %v631 = vpack.c.bf16 %v513, %v513
      %v632 = vpack.c.bf16 %v516, %v516
      %v633 = vpack.c.bf16 %v519, %v519
      %v634 = vpack.c.bf16 %v522, %v522
      %v635 = vpack.c.bf16 %v525, %v525
      %v636 = vpack.c.bf16 %v528, %v528
      %v637 = vpack.c.bf16 %v531, %v531
      %v638 = vpack.c.bf16 %v534, %v534
      %v639 = vpack.c.bf16 %v537, %v537
      %v640 = vpack.c.bf16 %v540, %v540
      %v641 = vpack.c.bf16 %v543, %v543
      %v642 = vpack.c.bf16 %v546, %v546
      %v643 = vpack.c.bf16 %v549, %v549
      %v644 = vpack.c.bf16 %v552, %v552
      %v645 = vpack.c.bf16 %v555, %v555
      %v646 = vpack.c.bf16 %v558, %v558
      %v647 = vpack.c.bf16 %v561, %v561
      %v648 = vpack.c.bf16 %v564, %v564
      %v649 = vpack.c.bf16 %v567, %v567
      %v650 = vpack.c.bf16 %v570, %v570
      %v651 = vpack.c.bf16 %v573, %v573
      %v652 = vpack.c.bf16 %v576, %v576
      %v653 = vpack.c.bf16 %v579, %v579
      %v654 = vpack.c.bf16 %v582, %v582
      %v655 = vpack.c.bf16 %v585, %v585
      %v656 = vpack.c.bf16 %v588, %v588
      %v657 = vpack.c.bf16 %v591, %v591
      %v658 = vpack.c.bf16 %v594, %v594
      %s659 = scalar_lea.vmem %s169, 144
      %v660 = vld [vmem:[%s659] sm:$0xf]
      %v661 = vld [vmem:[%s659 + $0x8] sm:$0xf]
      %v662 = vld [vmem:[%s659 + $0x10] sm:$0xf]
      %v663 = vld [vmem:[%s659 + $0x18] sm:$0xf]
      %v664 = vld [vmem:[%s659 + $0x20] sm:$0xf]
      %v665 = vld [vmem:[%s659 + $0x28] sm:$0xf]
      %v666 = vld [vmem:[%s659 + $0x30] sm:$0xf]
      %v667 = vld [vmem:[%s659 + $0x38] sm:$0xf]
      %v668 = vld [vmem:[%s659 + $0x120] sm:$0xf]
      %v669 = vld [vmem:[%s659 + $0x128] sm:$0xf]
      %v670 = vld [vmem:[%s659 + $0x130] sm:$0xf]
      %v671 = vld [vmem:[%s659 + $0x138] sm:$0xf]
      %v672 = vld [vmem:[%s659 + $0x140] sm:$0xf]
      %v673 = vld [vmem:[%s659 + $0x148] sm:$0xf]
      %v674 = vld [vmem:[%s659 + $0x150] sm:$0xf]
      %v675 = vld [vmem:[%s659 + $0x158] sm:$0xf]
      %v676 = vld [vmem:[%s659 + $0x240] sm:$0xf]
      %v677 = vld [vmem:[%s659 + $0x248] sm:$0xf]
      %v678 = vld [vmem:[%s659 + $0x250] sm:$0xf]
      %v679 = vld [vmem:[%s659 + $0x258] sm:$0xf]
      %v680 = vld [vmem:[%s659 + $0x260] sm:$0xf]
      %v681 = vld [vmem:[%s659 + $0x268] sm:$0xf]
      %v682 = vld [vmem:[%s659 + $0x270] sm:$0xf]
      %v683 = vld [vmem:[%s659 + $0x278] sm:$0xf]
      %v684 = vld [vmem:[%s659 + $0x360] sm:$0xf]
      %v685 = vld [vmem:[%s659 + $0x368] sm:$0xf]
      %v686 = vld [vmem:[%s659 + $0x370] sm:$0xf]
      %v687 = vld [vmem:[%s659 + $0x378] sm:$0xf]
      %v688 = vld [vmem:[%s659 + $0x380] sm:$0xf]
      %v689 = vld [vmem:[%s659 + $0x388] sm:$0xf]
      %v690 = vld [vmem:[%s659 + $0x390] sm:$0xf]
      %v691 = vld [vmem:[%s659 + $0x398] sm:$0xf]
      %v692 = vunpack.c.l.bf16 %v660
      %v693 = vunpack.c.l.bf16 %v661
      %v694 = vunpack.c.l.bf16 %v662
      %v695 = vunpack.c.l.bf16 %v663
      %v696 = vunpack.c.l.bf16 %v664
      %v697 = vunpack.c.l.bf16 %v665
      %v698 = vunpack.c.l.bf16 %v666
      %v699 = vunpack.c.l.bf16 %v667
      %v700 = vunpack.c.l.bf16 %v668
      %v701 = vunpack.c.l.bf16 %v669
      %v702 = vunpack.c.l.bf16 %v670
      %v703 = vunpack.c.l.bf16 %v671
      %v704 = vunpack.c.l.bf16 %v672
      %v705 = vunpack.c.l.bf16 %v673
      %v706 = vunpack.c.l.bf16 %v674
      %v707 = vunpack.c.l.bf16 %v675
      %v708 = vunpack.c.l.bf16 %v676
      %v709 = vunpack.c.l.bf16 %v677
      %v710 = vunpack.c.l.bf16 %v678
      %v711 = vunpack.c.l.bf16 %v679
      %v712 = vunpack.c.l.bf16 %v680
      %v713 = vunpack.c.l.bf16 %v681
      %v714 = vunpack.c.l.bf16 %v682
      %v715 = vunpack.c.l.bf16 %v683
      %v716 = vunpack.c.l.bf16 %v684
      %v717 = vunpack.c.l.bf16 %v685
      %v718 = vunpack.c.l.bf16 %v686
      %v719 = vunpack.c.l.bf16 %v687
      %v720 = vunpack.c.l.bf16 %v688
      %v721 = vunpack.c.l.bf16 %v689
      %v722 = vunpack.c.l.bf16 %v690
      %v723 = vunpack.c.l.bf16 %v691
      %v724 = vpack.c.bf16 %v692, %v692
      %v725 = vpack.c.bf16 %v693, %v693
      %v726 = vpack.c.bf16 %v694, %v694
      %v727 = vpack.c.bf16 %v695, %v695
      %v728 = vpack.c.bf16 %v696, %v696
      %v729 = vpack.c.bf16 %v697, %v697
      %v730 = vpack.c.bf16 %v698, %v698
      %v731 = vpack.c.bf16 %v699, %v699
      %v732 = vpack.c.bf16 %v700, %v700
      %v733 = vpack.c.bf16 %v701, %v701
      %v734 = vpack.c.bf16 %v702, %v702
      %v735 = vpack.c.bf16 %v703, %v703
      %v736 = vpack.c.bf16 %v704, %v704
      %v737 = vpack.c.bf16 %v705, %v705
      %v738 = vpack.c.bf16 %v706, %v706
      %v739 = vpack.c.bf16 %v707, %v707
      %v740 = vpack.c.bf16 %v708, %v708
      %v741 = vpack.c.bf16 %v709, %v709
      %v742 = vpack.c.bf16 %v710, %v710
      %v743 = vpack.c.bf16 %v711, %v711
      %v744 = vpack.c.bf16 %v712, %v712
      %v745 = vpack.c.bf16 %v713, %v713
      %v746 = vpack.c.bf16 %v714, %v714
      %v747 = vpack.c.bf16 %v715, %v715
      %v748 = vpack.c.bf16 %v716, %v716
      %v749 = vpack.c.bf16 %v717, %v717
      %v750 = vpack.c.bf16 %v718, %v718
      %v751 = vpack.c.bf16 %v719, %v719
      %v752 = vpack.c.bf16 %v720, %v720
      %v753 = vpack.c.bf16 %v721, %v721
      %v754 = vpack.c.bf16 %v722, %v722
      %v755 = vpack.c.bf16 %v723, %v723
      %s756 = scalar_lea.vmem %s169, 216
      %v757 = vld [vmem:[%s756] sm:$0xf]
      %v758 = vld [vmem:[%s756 + $0x8] sm:$0xf]
      %v759 = vld [vmem:[%s756 + $0x10] sm:$0xf]
      %v760 = vld [vmem:[%s756 + $0x18] sm:$0xf]
      %v761 = vld [vmem:[%s756 + $0x20] sm:$0xf]
      %v762 = vld [vmem:[%s756 + $0x28] sm:$0xf]
      %v763 = vld [vmem:[%s756 + $0x30] sm:$0xf]
      %v764 = vld [vmem:[%s756 + $0x38] sm:$0xf]
      %v765 = vld [vmem:[%s756 + $0x120] sm:$0xf]
      %v766 = vld [vmem:[%s756 + $0x128] sm:$0xf]
      %v767 = vld [vmem:[%s756 + $0x130] sm:$0xf]
      %v768 = vld [vmem:[%s756 + $0x138] sm:$0xf]
      %v769 = vld [vmem:[%s756 + $0x140] sm:$0xf]
      %v770 = vld [vmem:[%s756 + $0x148] sm:$0xf]
      %v771 = vld [vmem:[%s756 + $0x150] sm:$0xf]
      %v772 = vld [vmem:[%s756 + $0x158] sm:$0xf]
      %v773 = vld [vmem:[%s756 + $0x240] sm:$0xf]
      %v774 = vld [vmem:[%s756 + $0x248] sm:$0xf]
      %v775 = vld [vmem:[%s756 + $0x250] sm:$0xf]
      %v776 = vld [vmem:[%s756 + $0x258] sm:$0xf]
      %v777 = vld [vmem:[%s756 + $0x260] sm:$0xf]
      %v778 = vld [vmem:[%s756 + $0x268] sm:$0xf]
      %v779 = vld [vmem:[%s756 + $0x270] sm:$0xf]
      %v780 = vld [vmem:[%s756 + $0x278] sm:$0xf]
      %v781 = vld [vmem:[%s756 + $0x360] sm:$0xf]
      %v782 = vld [vmem:[%s756 + $0x368] sm:$0xf]
      %v783 = vld [vmem:[%s756 + $0x370] sm:$0xf]
      %v784 = vld [vmem:[%s756 + $0x378] sm:$0xf]
      %v785 = vld [vmem:[%s756 + $0x380] sm:$0xf]
      %v786 = vld [vmem:[%s756 + $0x388] sm:$0xf]
      %v787 = vld [vmem:[%s756 + $0x390] sm:$0xf]
      %v788 = vld [vmem:[%s756 + $0x398] sm:$0xf]
      %v789 = vunpack.c.l.bf16 %v757
      %v790 = vunpack.c.l.bf16 %v758
      %v791 = vunpack.c.l.bf16 %v759
      %v792 = vunpack.c.l.bf16 %v760
      %v793 = vunpack.c.l.bf16 %v761
      %v794 = vunpack.c.l.bf16 %v762
      %v795 = vunpack.c.l.bf16 %v763
      %v796 = vunpack.c.l.bf16 %v764
      %v797 = vunpack.c.l.bf16 %v765
      %v798 = vunpack.c.l.bf16 %v766
      %v799 = vunpack.c.l.bf16 %v767
      %v800 = vunpack.c.l.bf16 %v768
      %v801 = vunpack.c.l.bf16 %v769
      %v802 = vunpack.c.l.bf16 %v770
      %v803 = vunpack.c.l.bf16 %v771
      %v804 = vunpack.c.l.bf16 %v772
      %v805 = vunpack.c.l.bf16 %v773
      %v806 = vunpack.c.l.bf16 %v774
      %v807 = vunpack.c.l.bf16 %v775
      %v808 = vunpack.c.l.bf16 %v776
      %v809 = vunpack.c.l.bf16 %v777
      %v810 = vunpack.c.l.bf16 %v778
      %v811 = vunpack.c.l.bf16 %v779
      %v812 = vunpack.c.l.bf16 %v780
      %v813 = vunpack.c.l.bf16 %v781
      %v814 = vunpack.c.l.bf16 %v782
      %v815 = vunpack.c.l.bf16 %v783
      %v816 = vunpack.c.l.bf16 %v784
      %v817 = vunpack.c.l.bf16 %v785
      %v818 = vunpack.c.l.bf16 %v786
      %v819 = vunpack.c.l.bf16 %v787
      %v820 = vunpack.c.l.bf16 %v788
      %v821 = vpack.c.bf16 %v789, %v789
      %v822 = vpack.c.bf16 %v790, %v790
      %v823 = vpack.c.bf16 %v791, %v791
      %v824 = vpack.c.bf16 %v792, %v792
      %v825 = vpack.c.bf16 %v793, %v793
      %v826 = vpack.c.bf16 %v794, %v794
      %v827 = vpack.c.bf16 %v795, %v795
      %v828 = vpack.c.bf16 %v796, %v796
      %v829 = vpack.c.bf16 %v797, %v797
      %v830 = vpack.c.bf16 %v798, %v798
      %v831 = vpack.c.bf16 %v799, %v799
      %v832 = vpack.c.bf16 %v800, %v800
      %v833 = vpack.c.bf16 %v801, %v801
      %v834 = vpack.c.bf16 %v802, %v802
      %v835 = vpack.c.bf16 %v803, %v803
      %v836 = vpack.c.bf16 %v804, %v804
      %v837 = vpack.c.bf16 %v805, %v805
      %v838 = vpack.c.bf16 %v806, %v806
      %v839 = vpack.c.bf16 %v807, %v807
      %v840 = vpack.c.bf16 %v808, %v808
      %v841 = vpack.c.bf16 %v809, %v809
      %v842 = vpack.c.bf16 %v810, %v810
      %v843 = vpack.c.bf16 %v811, %v811
      %v844 = vpack.c.bf16 %v812, %v812
      %v845 = vpack.c.bf16 %v813, %v813
      %v846 = vpack.c.bf16 %v814, %v814
      %v847 = vpack.c.bf16 %v815, %v815
      %v848 = vpack.c.bf16 %v816, %v816
      %v849 = vpack.c.bf16 %v817, %v817
      %v850 = vpack.c.bf16 %v818, %v818
      %v851 = vpack.c.bf16 %v819, %v819
      %v852 = vpack.c.bf16 %v820, %v820
      %v853 = vld [vmem:[%s659 + $0x4] sm:$0x1]
      %v854 = vld [vmem:[%s659 + $0xc] sm:$0x1]
      %v855 = vld [vmem:[%s659 + $0x14] sm:$0x1]
      %v856 = vld [vmem:[%s659 + $0x1c] sm:$0x1]
      %v857 = vld [vmem:[%s659 + $0x24] sm:$0x1]
      %v858 = vld [vmem:[%s659 + $0x2c] sm:$0x1]
      %v859 = vld [vmem:[%s659 + $0x34] sm:$0x1]
      %v860 = vld [vmem:[%s659 + $0x3c] sm:$0x1]
      %v861 = vld [vmem:[%s659 + $0x124] sm:$0x1]
      %v862 = vld [vmem:[%s659 + $0x12c] sm:$0x1]
      %v863 = vld [vmem:[%s659 + $0x134] sm:$0x1]
      %v864 = vld [vmem:[%s659 + $0x13c] sm:$0x1]
      %v865 = vld [vmem:[%s659 + $0x144] sm:$0x1]
      %v866 = vld [vmem:[%s659 + $0x14c] sm:$0x1]
      %v867 = vld [vmem:[%s659 + $0x154] sm:$0x1]
      %v868 = vld [vmem:[%s659 + $0x15c] sm:$0x1]
      %v869 = vld [vmem:[%s659 + $0x244] sm:$0x1]
      %v870 = vld [vmem:[%s659 + $0x24c] sm:$0x1]
      %v871 = vld [vmem:[%s659 + $0x254] sm:$0x1]
      %v872 = vld [vmem:[%s659 + $0x25c] sm:$0x1]
      %v873 = vld [vmem:[%s659 + $0x264] sm:$0x1]
      %v874 = vld [vmem:[%s659 + $0x26c] sm:$0x1]
      %v875 = vld [vmem:[%s659 + $0x274] sm:$0x1]
      %v876 = vld [vmem:[%s659 + $0x27c] sm:$0x1]
      %v877 = vld [vmem:[%s659 + $0x364] sm:$0x1]
      %v878 = vld [vmem:[%s659 + $0x36c] sm:$0x1]
      %v879 = vld [vmem:[%s659 + $0x374] sm:$0x1]
      %v880 = vld [vmem:[%s659 + $0x37c] sm:$0x1]
      %v881 = vld [vmem:[%s659 + $0x384] sm:$0x1]
      %v882 = vld [vmem:[%s659 + $0x38c] sm:$0x1]
      %v883 = vld [vmem:[%s659 + $0x394] sm:$0x1]
      %v884 = vld [vmem:[%s659 + $0x39c] sm:$0x1]
      %v885 = vunpack.c.l.bf16 %v853
      %v886 = vunpack.c.l.bf16 %v854
      %v887 = vunpack.c.l.bf16 %v855
      %v888 = vunpack.c.l.bf16 %v856
      %v889 = vunpack.c.l.bf16 %v857
      %v890 = vunpack.c.l.bf16 %v858
      %v891 = vunpack.c.l.bf16 %v859
      %v892 = vunpack.c.l.bf16 %v860
      %v893 = vunpack.c.l.bf16 %v861
      %v894 = vunpack.c.l.bf16 %v862
      %v895 = vunpack.c.l.bf16 %v863
      %v896 = vunpack.c.l.bf16 %v864
      %v897 = vunpack.c.l.bf16 %v865
      %v898 = vunpack.c.l.bf16 %v866
      %v899 = vunpack.c.l.bf16 %v867
      %v900 = vunpack.c.l.bf16 %v868
      %v901 = vunpack.c.l.bf16 %v869
      %v902 = vunpack.c.l.bf16 %v870
      %v903 = vunpack.c.l.bf16 %v871
      %v904 = vunpack.c.l.bf16 %v872
      %v905 = vunpack.c.l.bf16 %v873
      %v906 = vunpack.c.l.bf16 %v874
      %v907 = vunpack.c.l.bf16 %v875
      %v908 = vunpack.c.l.bf16 %v876
      %v909 = vunpack.c.l.bf16 %v877
      %v910 = vunpack.c.l.bf16 %v878
      %v911 = vunpack.c.l.bf16 %v879
      %v912 = vunpack.c.l.bf16 %v880
      %v913 = vunpack.c.l.bf16 %v881
      %v914 = vunpack.c.l.bf16 %v882
      %v915 = vunpack.c.l.bf16 %v883
      %v916 = vunpack.c.l.bf16 %v884
      %v981 = vrot.slane %v692, 1
      %v982 = vrot.slane %v885, 1
      %v983 = vsel %vm498, %v981, %v982
      %v984 = vrot.slane %v693, 1
      %v985 = vrot.slane %v886, 1
      %v986 = vsel %vm498, %v984, %v985
      %v987 = vrot.slane %v694, 1
      %v988 = vrot.slane %v887, 1
      %v989 = vsel %vm498, %v987, %v988
      %v990 = vrot.slane %v695, 1
      %v991 = vrot.slane %v888, 1
      %v992 = vsel %vm498, %v990, %v991
      %v993 = vrot.slane %v696, 1
      %v994 = vrot.slane %v889, 1
      %v995 = vsel %vm498, %v993, %v994
      %v996 = vrot.slane %v697, 1
      %v997 = vrot.slane %v890, 1
      %v998 = vsel %vm498, %v996, %v997
      %v999 = vrot.slane %v698, 1
      %v1000 = vrot.slane %v891, 1
      %v1001 = vsel %vm498, %v999, %v1000
      %v1002 = vrot.slane %v699, 1
      %v1003 = vrot.slane %v892, 1
      %v1004 = vsel %vm498, %v1002, %v1003
      %v1005 = vrot.slane %v700, 1
      %v1006 = vrot.slane %v893, 1
      %v1007 = vsel %vm498, %v1005, %v1006
      %v1008 = vrot.slane %v701, 1
      %v1009 = vrot.slane %v894, 1
      %v1010 = vsel %vm498, %v1008, %v1009
      %v1011 = vrot.slane %v702, 1
      %v1012 = vrot.slane %v895, 1
      %v1013 = vsel %vm498, %v1011, %v1012
      %v1014 = vrot.slane %v703, 1
      %v1015 = vrot.slane %v896, 1
      %v1016 = vsel %vm498, %v1014, %v1015
      %v1017 = vrot.slane %v704, 1
      %v1018 = vrot.slane %v897, 1
      %v1019 = vsel %vm498, %v1017, %v1018
      %v1020 = vrot.slane %v705, 1
      %v1021 = vrot.slane %v898, 1
      %v1022 = vsel %vm498, %v1020, %v1021
      %v1023 = vrot.slane %v706, 1
      %v1024 = vrot.slane %v899, 1
      %v1025 = vsel %vm498, %v1023, %v1024
      %v1026 = vrot.slane %v707, 1
      %v1027 = vrot.slane %v900, 1
      %v1028 = vsel %vm498, %v1026, %v1027
      %v1029 = vrot.slane %v708, 1
      %v1030 = vrot.slane %v901, 1
      %v1031 = vsel %vm498, %v1029, %v1030
      %v1032 = vrot.slane %v709, 1
      %v1033 = vrot.slane %v902, 1
      %v1034 = vsel %vm498, %v1032, %v1033
      %v1035 = vrot.slane %v710, 1
      %v1036 = vrot.slane %v903, 1
      %v1037 = vsel %vm498, %v1035, %v1036
      %v1038 = vrot.slane %v711, 1
      %v1039 = vrot.slane %v904, 1
      %v1040 = vsel %vm498, %v1038, %v1039
      %v1041 = vrot.slane %v712, 1
      %v1042 = vrot.slane %v905, 1
      %v1043 = vsel %vm498, %v1041, %v1042
      %v1044 = vrot.slane %v713, 1
      %v1045 = vrot.slane %v906, 1
      %v1046 = vsel %vm498, %v1044, %v1045
      %v1047 = vrot.slane %v714, 1
      %v1048 = vrot.slane %v907, 1
      %v1049 = vsel %vm498, %v1047, %v1048
      %v1050 = vrot.slane %v715, 1
      %v1051 = vrot.slane %v908, 1
      %v1052 = vsel %vm498, %v1050, %v1051
      %v1053 = vrot.slane %v716, 1
      %v1054 = vrot.slane %v909, 1
      %v1055 = vsel %vm498, %v1053, %v1054
      %v1056 = vrot.slane %v717, 1
      %v1057 = vrot.slane %v910, 1
      %v1058 = vsel %vm498, %v1056, %v1057
      %v1059 = vrot.slane %v718, 1
      %v1060 = vrot.slane %v911, 1
      %v1061 = vsel %vm498, %v1059, %v1060
      %v1062 = vrot.slane %v719, 1
      %v1063 = vrot.slane %v912, 1
      %v1064 = vsel %vm498, %v1062, %v1063
      %v1065 = vrot.slane %v720, 1
      %v1066 = vrot.slane %v913, 1
      %v1067 = vsel %vm498, %v1065, %v1066
      %v1068 = vrot.slane %v721, 1
      %v1069 = vrot.slane %v914, 1
      %v1070 = vsel %vm498, %v1068, %v1069
      %v1071 = vrot.slane %v722, 1
      %v1072 = vrot.slane %v915, 1
      %v1073 = vsel %vm498, %v1071, %v1072
      %v1074 = vrot.slane %v723, 1
      %v1075 = vrot.slane %v916, 1
      %v1076 = vsel %vm498, %v1074, %v1075
      %v1109 = vpack.c.bf16 %v983, %v983
      %v1110 = vpack.c.bf16 %v986, %v986
      %v1111 = vpack.c.bf16 %v989, %v989
      %v1112 = vpack.c.bf16 %v992, %v992
      %v1113 = vpack.c.bf16 %v995, %v995
      %v1114 = vpack.c.bf16 %v998, %v998
      %v1115 = vpack.c.bf16 %v1001, %v1001
      %v1116 = vpack.c.bf16 %v1004, %v1004
      %v1117 = vpack.c.bf16 %v1007, %v1007
      %v1118 = vpack.c.bf16 %v1010, %v1010
      %v1119 = vpack.c.bf16 %v1013, %v1013
      %v1120 = vpack.c.bf16 %v1016, %v1016
      %v1121 = vpack.c.bf16 %v1019, %v1019
      %v1122 = vpack.c.bf16 %v1022, %v1022
      %v1123 = vpack.c.bf16 %v1025, %v1025
      %v1124 = vpack.c.bf16 %v1028, %v1028
      %v1125 = vpack.c.bf16 %v1031, %v1031
      %v1126 = vpack.c.bf16 %v1034, %v1034
      %v1127 = vpack.c.bf16 %v1037, %v1037
      %v1128 = vpack.c.bf16 %v1040, %v1040
      %v1129 = vpack.c.bf16 %v1043, %v1043
      %v1130 = vpack.c.bf16 %v1046, %v1046
      %v1131 = vpack.c.bf16 %v1049, %v1049
      %v1132 = vpack.c.bf16 %v1052, %v1052
      %v1133 = vpack.c.bf16 %v1055, %v1055
      %v1134 = vpack.c.bf16 %v1058, %v1058
      %v1135 = vpack.c.bf16 %v1061, %v1061
      %v1136 = vpack.c.bf16 %v1064, %v1064
      %v1137 = vpack.c.bf16 %v1067, %v1067
      %v1138 = vpack.c.bf16 %v1070, %v1070
      %v1139 = vpack.c.bf16 %v1073, %v1073
      %v1140 = vpack.c.bf16 %v1076, %v1076
      %s1141 = scalar_lea.vmem %s169, 8
      %v1142 = vld [vmem:[%s1141] sm:$0xf]
      %v1143 = vld [vmem:[%s1141 + $0x8] sm:$0xf]
      %v1144 = vld [vmem:[%s1141 + $0x10] sm:$0xf]
      %v1145 = vld [vmem:[%s1141 + $0x18] sm:$0xf]
      %v1146 = vld [vmem:[%s1141 + $0x20] sm:$0xf]
      %v1147 = vld [vmem:[%s1141 + $0x28] sm:$0xf]
      %v1148 = vld [vmem:[%s1141 + $0x30] sm:$0xf]
      %v1149 = vld [vmem:[%s1141 + $0x38] sm:$0xf]
      %v1150 = vld [vmem:[%s1141 + $0x120] sm:$0xf]
      %v1151 = vld [vmem:[%s1141 + $0x128] sm:$0xf]
      %v1152 = vld [vmem:[%s1141 + $0x130] sm:$0xf]
      %v1153 = vld [vmem:[%s1141 + $0x138] sm:$0xf]
      %v1154 = vld [vmem:[%s1141 + $0x140] sm:$0xf]
      %v1155 = vld [vmem:[%s1141 + $0x148] sm:$0xf]
      %v1156 = vld [vmem:[%s1141 + $0x150] sm:$0xf]
      %v1157 = vld [vmem:[%s1141 + $0x158] sm:$0xf]
      %v1158 = vld [vmem:[%s1141 + $0x240] sm:$0xf]
      %v1159 = vld [vmem:[%s1141 + $0x248] sm:$0xf]
      %v1160 = vld [vmem:[%s1141 + $0x250] sm:$0xf]
      %v1161 = vld [vmem:[%s1141 + $0x258] sm:$0xf]
      %v1162 = vld [vmem:[%s1141 + $0x260] sm:$0xf]
      %v1163 = vld [vmem:[%s1141 + $0x268] sm:$0xf]
      %v1164 = vld [vmem:[%s1141 + $0x270] sm:$0xf]
      %v1165 = vld [vmem:[%s1141 + $0x278] sm:$0xf]
      %v1166 = vld [vmem:[%s1141 + $0x360] sm:$0xf]
      %v1167 = vld [vmem:[%s1141 + $0x368] sm:$0xf]
      %v1168 = vld [vmem:[%s1141 + $0x370] sm:$0xf]
      %v1169 = vld [vmem:[%s1141 + $0x378] sm:$0xf]
      %v1170 = vld [vmem:[%s1141 + $0x380] sm:$0xf]
      %v1171 = vld [vmem:[%s1141 + $0x388] sm:$0xf]
      %v1172 = vld [vmem:[%s1141 + $0x390] sm:$0xf]
      %v1173 = vld [vmem:[%s1141 + $0x398] sm:$0xf]
      %v1174 = vunpack.c.l.bf16 %v1142
      %v1175 = vunpack.c.l.bf16 %v1143
      %v1176 = vunpack.c.l.bf16 %v1144
      %v1177 = vunpack.c.l.bf16 %v1145
      %v1178 = vunpack.c.l.bf16 %v1146
      %v1179 = vunpack.c.l.bf16 %v1147
      %v1180 = vunpack.c.l.bf16 %v1148
      %v1181 = vunpack.c.l.bf16 %v1149
      %v1182 = vunpack.c.l.bf16 %v1150
      %v1183 = vunpack.c.l.bf16 %v1151
      %v1184 = vunpack.c.l.bf16 %v1152
      %v1185 = vunpack.c.l.bf16 %v1153
      %v1186 = vunpack.c.l.bf16 %v1154
      %v1187 = vunpack.c.l.bf16 %v1155
      %v1188 = vunpack.c.l.bf16 %v1156
      %v1189 = vunpack.c.l.bf16 %v1157
      %v1190 = vunpack.c.l.bf16 %v1158
      %v1191 = vunpack.c.l.bf16 %v1159
      %v1192 = vunpack.c.l.bf16 %v1160
      %v1193 = vunpack.c.l.bf16 %v1161
      %v1194 = vunpack.c.l.bf16 %v1162
      %v1195 = vunpack.c.l.bf16 %v1163
      %v1196 = vunpack.c.l.bf16 %v1164
      %v1197 = vunpack.c.l.bf16 %v1165
      %v1198 = vunpack.c.l.bf16 %v1166
      %v1199 = vunpack.c.l.bf16 %v1167
      %v1200 = vunpack.c.l.bf16 %v1168
      %v1201 = vunpack.c.l.bf16 %v1169
      %v1202 = vunpack.c.l.bf16 %v1170
      %v1203 = vunpack.c.l.bf16 %v1171
      %v1204 = vunpack.c.l.bf16 %v1172
      %v1205 = vunpack.c.l.bf16 %v1173
      %v1206 = vpack.c.bf16 %v1174, %v1174
      %v1207 = vpack.c.bf16 %v1175, %v1175
      %v1208 = vpack.c.bf16 %v1176, %v1176
      %v1209 = vpack.c.bf16 %v1177, %v1177
      %v1210 = vpack.c.bf16 %v1178, %v1178
      %v1211 = vpack.c.bf16 %v1179, %v1179
      %v1212 = vpack.c.bf16 %v1180, %v1180
      %v1213 = vpack.c.bf16 %v1181, %v1181
      %v1214 = vpack.c.bf16 %v1182, %v1182
      %v1215 = vpack.c.bf16 %v1183, %v1183
      %v1216 = vpack.c.bf16 %v1184, %v1184
      %v1217 = vpack.c.bf16 %v1185, %v1185
      %v1218 = vpack.c.bf16 %v1186, %v1186
      %v1219 = vpack.c.bf16 %v1187, %v1187
      %v1220 = vpack.c.bf16 %v1188, %v1188
      %v1221 = vpack.c.bf16 %v1189, %v1189
      %v1222 = vpack.c.bf16 %v1190, %v1190
      %v1223 = vpack.c.bf16 %v1191, %v1191
      %v1224 = vpack.c.bf16 %v1192, %v1192
      %v1225 = vpack.c.bf16 %v1193, %v1193
      %v1226 = vpack.c.bf16 %v1194, %v1194
      %v1227 = vpack.c.bf16 %v1195, %v1195
      %v1228 = vpack.c.bf16 %v1196, %v1196
      %v1229 = vpack.c.bf16 %v1197, %v1197
      %v1230 = vpack.c.bf16 %v1198, %v1198
      %v1231 = vpack.c.bf16 %v1199, %v1199
      %v1232 = vpack.c.bf16 %v1200, %v1200
      %v1233 = vpack.c.bf16 %v1201, %v1201
      %v1234 = vpack.c.bf16 %v1202, %v1202
      %v1235 = vpack.c.bf16 %v1203, %v1203
      %v1236 = vpack.c.bf16 %v1204, %v1204
      %v1237 = vpack.c.bf16 %v1205, %v1205
      %s1238 = scalar_lea.vmem %s169, 80
      %v1239 = vld [vmem:[%s1238] sm:$0xf]
      %v1240 = vld [vmem:[%s1238 + $0x8] sm:$0xf]
      %v1241 = vld [vmem:[%s1238 + $0x10] sm:$0xf]
      %v1242 = vld [vmem:[%s1238 + $0x18] sm:$0xf]
      %v1243 = vld [vmem:[%s1238 + $0x20] sm:$0xf]
      %v1244 = vld [vmem:[%s1238 + $0x28] sm:$0xf]
      %v1245 = vld [vmem:[%s1238 + $0x30] sm:$0xf]
      %v1246 = vld [vmem:[%s1238 + $0x38] sm:$0xf]
      %v1247 = vld [vmem:[%s1238 + $0x120] sm:$0xf]
      %v1248 = vld [vmem:[%s1238 + $0x128] sm:$0xf]
      %v1249 = vld [vmem:[%s1238 + $0x130] sm:$0xf]
      %v1250 = vld [vmem:[%s1238 + $0x138] sm:$0xf]
      %v1251 = vld [vmem:[%s1238 + $0x140] sm:$0xf]
      %v1252 = vld [vmem:[%s1238 + $0x148] sm:$0xf]
      %v1253 = vld [vmem:[%s1238 + $0x150] sm:$0xf]
      %v1254 = vld [vmem:[%s1238 + $0x158] sm:$0xf]
      %v1255 = vld [vmem:[%s1238 + $0x240] sm:$0xf]
      %v1256 = vld [vmem:[%s1238 + $0x248] sm:$0xf]
      %v1257 = vld [vmem:[%s1238 + $0x250] sm:$0xf]
      %v1258 = vld [vmem:[%s1238 + $0x258] sm:$0xf]
      %v1259 = vld [vmem:[%s1238 + $0x260] sm:$0xf]
      %v1260 = vld [vmem:[%s1238 + $0x268] sm:$0xf]
      %v1261 = vld [vmem:[%s1238 + $0x270] sm:$0xf]
      %v1262 = vld [vmem:[%s1238 + $0x278] sm:$0xf]
      %v1263 = vld [vmem:[%s1238 + $0x360] sm:$0xf]
      %v1264 = vld [vmem:[%s1238 + $0x368] sm:$0xf]
      %v1265 = vld [vmem:[%s1238 + $0x370] sm:$0xf]
      %v1266 = vld [vmem:[%s1238 + $0x378] sm:$0xf]
      %v1267 = vld [vmem:[%s1238 + $0x380] sm:$0xf]
      %v1268 = vld [vmem:[%s1238 + $0x388] sm:$0xf]
      %v1269 = vld [vmem:[%s1238 + $0x390] sm:$0xf]
      %v1270 = vld [vmem:[%s1238 + $0x398] sm:$0xf]
      %v1271 = vunpack.c.l.bf16 %v1239
      %v1272 = vunpack.c.l.bf16 %v1240
      %v1273 = vunpack.c.l.bf16 %v1241
      %v1274 = vunpack.c.l.bf16 %v1242
      %v1275 = vunpack.c.l.bf16 %v1243
      %v1276 = vunpack.c.l.bf16 %v1244
      %v1277 = vunpack.c.l.bf16 %v1245
      %v1278 = vunpack.c.l.bf16 %v1246
      %v1279 = vunpack.c.l.bf16 %v1247
      %v1280 = vunpack.c.l.bf16 %v1248
      %v1281 = vunpack.c.l.bf16 %v1249
      %v1282 = vunpack.c.l.bf16 %v1250
      %v1283 = vunpack.c.l.bf16 %v1251
      %v1284 = vunpack.c.l.bf16 %v1252
      %v1285 = vunpack.c.l.bf16 %v1253
      %v1286 = vunpack.c.l.bf16 %v1254
      %v1287 = vunpack.c.l.bf16 %v1255
      %v1288 = vunpack.c.l.bf16 %v1256
      %v1289 = vunpack.c.l.bf16 %v1257
      %v1290 = vunpack.c.l.bf16 %v1258
      %v1291 = vunpack.c.l.bf16 %v1259
      %v1292 = vunpack.c.l.bf16 %v1260
      %v1293 = vunpack.c.l.bf16 %v1261
      %v1294 = vunpack.c.l.bf16 %v1262
      %v1295 = vunpack.c.l.bf16 %v1263
      %v1296 = vunpack.c.l.bf16 %v1264
      %v1297 = vunpack.c.l.bf16 %v1265
      %v1298 = vunpack.c.l.bf16 %v1266
      %v1299 = vunpack.c.l.bf16 %v1267
      %v1300 = vunpack.c.l.bf16 %v1268
      %v1301 = vunpack.c.l.bf16 %v1269
      %v1302 = vunpack.c.l.bf16 %v1270
      %v1303 = vpack.c.bf16 %v1271, %v1271
      %v1304 = vpack.c.bf16 %v1272, %v1272
      %v1305 = vpack.c.bf16 %v1273, %v1273
      %v1306 = vpack.c.bf16 %v1274, %v1274
      %v1307 = vpack.c.bf16 %v1275, %v1275
      %v1308 = vpack.c.bf16 %v1276, %v1276
      %v1309 = vpack.c.bf16 %v1277, %v1277
      %v1310 = vpack.c.bf16 %v1278, %v1278
      %v1311 = vpack.c.bf16 %v1279, %v1279
      %v1312 = vpack.c.bf16 %v1280, %v1280
      %v1313 = vpack.c.bf16 %v1281, %v1281
      %v1314 = vpack.c.bf16 %v1282, %v1282
      %v1315 = vpack.c.bf16 %v1283, %v1283
      %v1316 = vpack.c.bf16 %v1284, %v1284
      %v1317 = vpack.c.bf16 %v1285, %v1285
      %v1318 = vpack.c.bf16 %v1286, %v1286
      %v1319 = vpack.c.bf16 %v1287, %v1287
      %v1320 = vpack.c.bf16 %v1288, %v1288
      %v1321 = vpack.c.bf16 %v1289, %v1289
      %v1322 = vpack.c.bf16 %v1290, %v1290
      %v1323 = vpack.c.bf16 %v1291, %v1291
      %v1324 = vpack.c.bf16 %v1292, %v1292
      %v1325 = vpack.c.bf16 %v1293, %v1293
      %v1326 = vpack.c.bf16 %v1294, %v1294
      %v1327 = vpack.c.bf16 %v1295, %v1295
      %v1328 = vpack.c.bf16 %v1296, %v1296
      %v1329 = vpack.c.bf16 %v1297, %v1297
      %v1330 = vpack.c.bf16 %v1298, %v1298
      %v1331 = vpack.c.bf16 %v1299, %v1299
      %v1332 = vpack.c.bf16 %v1300, %v1300
      %v1333 = vpack.c.bf16 %v1301, %v1301
      %v1334 = vpack.c.bf16 %v1302, %v1302
      %v1335 = vld [vmem:[%s1141 + $0x4] sm:$0x1]
      %v1336 = vld [vmem:[%s1141 + $0xc] sm:$0x1]
      %v1337 = vld [vmem:[%s1141 + $0x14] sm:$0x1]
      %v1338 = vld [vmem:[%s1141 + $0x1c] sm:$0x1]
      %v1339 = vld [vmem:[%s1141 + $0x24] sm:$0x1]
      %v1340 = vld [vmem:[%s1141 + $0x2c] sm:$0x1]
      %v1341 = vld [vmem:[%s1141 + $0x34] sm:$0x1]
      %v1342 = vld [vmem:[%s1141 + $0x3c] sm:$0x1]
      %v1343 = vld [vmem:[%s1141 + $0x124] sm:$0x1]
      %v1344 = vld [vmem:[%s1141 + $0x12c] sm:$0x1]
      %v1345 = vld [vmem:[%s1141 + $0x134] sm:$0x1]
      %v1346 = vld [vmem:[%s1141 + $0x13c] sm:$0x1]
      %v1347 = vld [vmem:[%s1141 + $0x144] sm:$0x1]
      %v1348 = vld [vmem:[%s1141 + $0x14c] sm:$0x1]
      %v1349 = vld [vmem:[%s1141 + $0x154] sm:$0x1]
      %v1350 = vld [vmem:[%s1141 + $0x15c] sm:$0x1]
      %v1351 = vld [vmem:[%s1141 + $0x244] sm:$0x1]
      %v1352 = vld [vmem:[%s1141 + $0x24c] sm:$0x1]
      %v1353 = vld [vmem:[%s1141 + $0x254] sm:$0x1]
      %v1354 = vld [vmem:[%s1141 + $0x25c] sm:$0x1]
      %v1355 = vld [vmem:[%s1141 + $0x264] sm:$0x1]
      %v1356 = vld [vmem:[%s1141 + $0x26c] sm:$0x1]
      %v1357 = vld [vmem:[%s1141 + $0x274] sm:$0x1]
      %v1358 = vld [vmem:[%s1141 + $0x27c] sm:$0x1]
      %v1359 = vld [vmem:[%s1141 + $0x364] sm:$0x1]
      %v1360 = vld [vmem:[%s1141 + $0x36c] sm:$0x1]
      %v1361 = vld [vmem:[%s1141 + $0x374] sm:$0x1]
      %v1362 = vld [vmem:[%s1141 + $0x37c] sm:$0x1]
      %v1363 = vld [vmem:[%s1141 + $0x384] sm:$0x1]
      %v1364 = vld [vmem:[%s1141 + $0x38c] sm:$0x1]
      %v1365 = vld [vmem:[%s1141 + $0x394] sm:$0x1]
      %v1366 = vld [vmem:[%s1141 + $0x39c] sm:$0x1]
      %v1367 = vunpack.c.l.bf16 %v1335
      %v1368 = vunpack.c.l.bf16 %v1336
      %v1369 = vunpack.c.l.bf16 %v1337
      %v1370 = vunpack.c.l.bf16 %v1338
      %v1371 = vunpack.c.l.bf16 %v1339
      %v1372 = vunpack.c.l.bf16 %v1340
      %v1373 = vunpack.c.l.bf16 %v1341
      %v1374 = vunpack.c.l.bf16 %v1342
      %v1375 = vunpack.c.l.bf16 %v1343
      %v1376 = vunpack.c.l.bf16 %v1344
      %v1377 = vunpack.c.l.bf16 %v1345
      %v1378 = vunpack.c.l.bf16 %v1346
      %v1379 = vunpack.c.l.bf16 %v1347
      %v1380 = vunpack.c.l.bf16 %v1348
      %v1381 = vunpack.c.l.bf16 %v1349
      %v1382 = vunpack.c.l.bf16 %v1350
      %v1383 = vunpack.c.l.bf16 %v1351
      %v1384 = vunpack.c.l.bf16 %v1352
      %v1385 = vunpack.c.l.bf16 %v1353
      %v1386 = vunpack.c.l.bf16 %v1354
      %v1387 = vunpack.c.l.bf16 %v1355
      %v1388 = vunpack.c.l.bf16 %v1356
      %v1389 = vunpack.c.l.bf16 %v1357
      %v1390 = vunpack.c.l.bf16 %v1358
      %v1391 = vunpack.c.l.bf16 %v1359
      %v1392 = vunpack.c.l.bf16 %v1360
      %v1393 = vunpack.c.l.bf16 %v1361
      %v1394 = vunpack.c.l.bf16 %v1362
      %v1395 = vunpack.c.l.bf16 %v1363
      %v1396 = vunpack.c.l.bf16 %v1364
      %v1397 = vunpack.c.l.bf16 %v1365
      %v1398 = vunpack.c.l.bf16 %v1366
      %v1463 = vrot.slane %v1174, 1
      %v1464 = vrot.slane %v1367, 1
      %v1465 = vsel %vm498, %v1463, %v1464
      %v1466 = vrot.slane %v1175, 1
      %v1467 = vrot.slane %v1368, 1
      %v1468 = vsel %vm498, %v1466, %v1467
      %v1469 = vrot.slane %v1176, 1
      %v1470 = vrot.slane %v1369, 1
      %v1471 = vsel %vm498, %v1469, %v1470
      %v1472 = vrot.slane %v1177, 1
      %v1473 = vrot.slane %v1370, 1
      %v1474 = vsel %vm498, %v1472, %v1473
      %v1475 = vrot.slane %v1178, 1
      %v1476 = vrot.slane %v1371, 1
      %v1477 = vsel %vm498, %v1475, %v1476
      %v1478 = vrot.slane %v1179, 1
      %v1479 = vrot.slane %v1372, 1
      %v1480 = vsel %vm498, %v1478, %v1479
      %v1481 = vrot.slane %v1180, 1
      %v1482 = vrot.slane %v1373, 1
      %v1483 = vsel %vm498, %v1481, %v1482
      %v1484 = vrot.slane %v1181, 1
      %v1485 = vrot.slane %v1374, 1
      %v1486 = vsel %vm498, %v1484, %v1485
      %v1487 = vrot.slane %v1182, 1
      %v1488 = vrot.slane %v1375, 1
      %v1489 = vsel %vm498, %v1487, %v1488
      %v1490 = vrot.slane %v1183, 1
      %v1491 = vrot.slane %v1376, 1
      %v1492 = vsel %vm498, %v1490, %v1491
      %v1493 = vrot.slane %v1184, 1
      %v1494 = vrot.slane %v1377, 1
      %v1495 = vsel %vm498, %v1493, %v1494
      %v1496 = vrot.slane %v1185, 1
      %v1497 = vrot.slane %v1378, 1
      %v1498 = vsel %vm498, %v1496, %v1497
      %v1499 = vrot.slane %v1186, 1
      %v1500 = vrot.slane %v1379, 1
      %v1501 = vsel %vm498, %v1499, %v1500
      %v1502 = vrot.slane %v1187, 1
      %v1503 = vrot.slane %v1380, 1
      %v1504 = vsel %vm498, %v1502, %v1503
      %v1505 = vrot.slane %v1188, 1
      %v1506 = vrot.slane %v1381, 1
      %v1507 = vsel %vm498, %v1505, %v1506
      %v1508 = vrot.slane %v1189, 1
      %v1509 = vrot.slane %v1382, 1
      %v1510 = vsel %vm498, %v1508, %v1509
      %v1511 = vrot.slane %v1190, 1
      %v1512 = vrot.slane %v1383, 1
      %v1513 = vsel %vm498, %v1511, %v1512
      %v1514 = vrot.slane %v1191, 1
      %v1515 = vrot.slane %v1384, 1
      %v1516 = vsel %vm498, %v1514, %v1515
      %v1517 = vrot.slane %v1192, 1
      %v1518 = vrot.slane %v1385, 1
      %v1519 = vsel %vm498, %v1517, %v1518
      %v1520 = vrot.slane %v1193, 1
      %v1521 = vrot.slane %v1386, 1
      %v1522 = vsel %vm498, %v1520, %v1521
      %v1523 = vrot.slane %v1194, 1
      %v1524 = vrot.slane %v1387, 1
      %v1525 = vsel %vm498, %v1523, %v1524
      %v1526 = vrot.slane %v1195, 1
      %v1527 = vrot.slane %v1388, 1
      %v1528 = vsel %vm498, %v1526, %v1527
      %v1529 = vrot.slane %v1196, 1
      %v1530 = vrot.slane %v1389, 1
      %v1531 = vsel %vm498, %v1529, %v1530
      %v1532 = vrot.slane %v1197, 1
      %v1533 = vrot.slane %v1390, 1
      %v1534 = vsel %vm498, %v1532, %v1533
      %v1535 = vrot.slane %v1198, 1
      %v1536 = vrot.slane %v1391, 1
      %v1537 = vsel %vm498, %v1535, %v1536
      %v1538 = vrot.slane %v1199, 1
      %v1539 = vrot.slane %v1392, 1
      %v1540 = vsel %vm498, %v1538, %v1539
      %v1541 = vrot.slane %v1200, 1
      %v1542 = vrot.slane %v1393, 1
      %v1543 = vsel %vm498, %v1541, %v1542
      %v1544 = vrot.slane %v1201, 1
      %v1545 = vrot.slane %v1394, 1
      %v1546 = vsel %vm498, %v1544, %v1545
      %v1547 = vrot.slane %v1202, 1
      %v1548 = vrot.slane %v1395, 1
      %v1549 = vsel %vm498, %v1547, %v1548
      %v1550 = vrot.slane %v1203, 1
      %v1551 = vrot.slane %v1396, 1
      %v1552 = vsel %vm498, %v1550, %v1551
      %v1553 = vrot.slane %v1204, 1
      %v1554 = vrot.slane %v1397, 1
      %v1555 = vsel %vm498, %v1553, %v1554
      %v1556 = vrot.slane %v1205, 1
      %v1557 = vrot.slane %v1398, 1
      %v1558 = vsel %vm498, %v1556, %v1557
      %v1591 = vpack.c.bf16 %v1465, %v1465
      %v1592 = vpack.c.bf16 %v1468, %v1468
      %v1593 = vpack.c.bf16 %v1471, %v1471
      %v1594 = vpack.c.bf16 %v1474, %v1474
      %v1595 = vpack.c.bf16 %v1477, %v1477
      %v1596 = vpack.c.bf16 %v1480, %v1480
      %v1597 = vpack.c.bf16 %v1483, %v1483
      %v1598 = vpack.c.bf16 %v1486, %v1486
      %v1599 = vpack.c.bf16 %v1489, %v1489
      %v1600 = vpack.c.bf16 %v1492, %v1492
      %v1601 = vpack.c.bf16 %v1495, %v1495
      %v1602 = vpack.c.bf16 %v1498, %v1498
      %v1603 = vpack.c.bf16 %v1501, %v1501
      %v1604 = vpack.c.bf16 %v1504, %v1504
      %v1605 = vpack.c.bf16 %v1507, %v1507
      %v1606 = vpack.c.bf16 %v1510, %v1510
      %v1607 = vpack.c.bf16 %v1513, %v1513
      %v1608 = vpack.c.bf16 %v1516, %v1516
      %v1609 = vpack.c.bf16 %v1519, %v1519
      %v1610 = vpack.c.bf16 %v1522, %v1522
      %v1611 = vpack.c.bf16 %v1525, %v1525
      %v1612 = vpack.c.bf16 %v1528, %v1528
      %v1613 = vpack.c.bf16 %v1531, %v1531
      %v1614 = vpack.c.bf16 %v1534, %v1534
      %v1615 = vpack.c.bf16 %v1537, %v1537
      %v1616 = vpack.c.bf16 %v1540, %v1540
      %v1617 = vpack.c.bf16 %v1543, %v1543
      %v1618 = vpack.c.bf16 %v1546, %v1546
      %v1619 = vpack.c.bf16 %v1549, %v1549
      %v1620 = vpack.c.bf16 %v1552, %v1552
      %v1621 = vpack.c.bf16 %v1555, %v1555
      %v1622 = vpack.c.bf16 %v1558, %v1558
      %v1655 = vunpack.c.l.b16 %v241
      %v1656 = vunpack.c.l.b16 %v242
      %v1657 = vunpack.c.l.b16 %v243
      %v1658 = vunpack.c.l.b16 %v244
      %v1659 = vunpack.c.l.b16 %v245
      %v1660 = vunpack.c.l.b16 %v246
      %v1661 = vunpack.c.l.b16 %v247
      %v1662 = vunpack.c.l.b16 %v248
      %v1663 = vunpack.c.l.b16 %v249
      %v1664 = vunpack.c.l.b16 %v250
      %v1665 = vunpack.c.l.b16 %v251
      %v1666 = vunpack.c.l.b16 %v252
      %v1667 = vunpack.c.l.b16 %v253
      %v1668 = vunpack.c.l.b16 %v254
      %v1669 = vunpack.c.l.b16 %v255
      %v1670 = vunpack.c.l.b16 %v256
      %v1671 = vunpack.c.l.b16 %v257
      %v1672 = vunpack.c.l.b16 %v258
      %v1673 = vunpack.c.l.b16 %v259
      %v1674 = vunpack.c.l.b16 %v260
      %v1675 = vunpack.c.l.b16 %v261
      %v1676 = vunpack.c.l.b16 %v262
      %v1677 = vunpack.c.l.b16 %v263
      %v1678 = vunpack.c.l.b16 %v264
      %v1679 = vunpack.c.l.b16 %v265
      %v1680 = vunpack.c.l.b16 %v266
      %v1681 = vunpack.c.l.b16 %v267
      %v1682 = vunpack.c.l.b16 %v268
      %v1683 = vunpack.c.l.b16 %v269
      %v1684 = vunpack.c.l.b16 %v270
      %v1685 = vunpack.c.l.b16 %v271
      %v1686 = vunpack.c.l.b16 %v272
      %v1687 = vpack.c.b16 %v1656, %v1655
      %v1688 = vpack.c.b16 %v1658, %v1657
      %v1689 = vpack.c.b16 %v1660, %v1659
      %v1690 = vpack.c.b16 %v1662, %v1661
      %v1691 = vpack.c.b16 %v1664, %v1663
      %v1692 = vpack.c.b16 %v1666, %v1665
      %v1693 = vpack.c.b16 %v1668, %v1667
      %v1694 = vpack.c.b16 %v1670, %v1669
      %v1695 = vpack.c.b16 %v1672, %v1671
      %v1696 = vpack.c.b16 %v1674, %v1673
      %v1697 = vpack.c.b16 %v1676, %v1675
      %v1698 = vpack.c.b16 %v1678, %v1677
      %v1699 = vpack.c.b16 %v1680, %v1679
      %v1700 = vpack.c.b16 %v1682, %v1681
      %v1701 = vpack.c.b16 %v1684, %v1683
      %v1702 = vpack.c.b16 %v1686, %v1685
      %v1751 = vunpack.c.l.b16 %v338
      %v1752 = vunpack.c.l.b16 %v339
      %v1753 = vunpack.c.l.b16 %v340
      %v1754 = vunpack.c.l.b16 %v341
      %v1755 = vunpack.c.l.b16 %v342
      %v1756 = vunpack.c.l.b16 %v343
      %v1757 = vunpack.c.l.b16 %v344
      %v1758 = vunpack.c.l.b16 %v345
      %v1759 = vunpack.c.l.b16 %v346
      %v1760 = vunpack.c.l.b16 %v347
      %v1761 = vunpack.c.l.b16 %v348
      %v1762 = vunpack.c.l.b16 %v349
      %v1763 = vunpack.c.l.b16 %v350
      %v1764 = vunpack.c.l.b16 %v351
      %v1765 = vunpack.c.l.b16 %v352
      %v1766 = vunpack.c.l.b16 %v353
      %v1767 = vunpack.c.l.b16 %v354
      %v1768 = vunpack.c.l.b16 %v355
      %v1769 = vunpack.c.l.b16 %v356
      %v1770 = vunpack.c.l.b16 %v357
      %v1771 = vunpack.c.l.b16 %v358
      %v1772 = vunpack.c.l.b16 %v359
      %v1773 = vunpack.c.l.b16 %v360
      %v1774 = vunpack.c.l.b16 %v361
      %v1775 = vunpack.c.l.b16 %v362
      %v1776 = vunpack.c.l.b16 %v363
      %v1777 = vunpack.c.l.b16 %v364
      %v1778 = vunpack.c.l.b16 %v365
      %v1779 = vunpack.c.l.b16 %v366
      %v1780 = vunpack.c.l.b16 %v367
      %v1781 = vunpack.c.l.b16 %v368
      %v1782 = vunpack.c.l.b16 %v369
      %v1783 = vpack.c.b16 %v1752, %v1751
      %v1784 = vpack.c.b16 %v1754, %v1753
      %v1785 = vpack.c.b16 %v1756, %v1755
      %v1786 = vpack.c.b16 %v1758, %v1757
      %v1787 = vpack.c.b16 %v1760, %v1759
      %v1788 = vpack.c.b16 %v1762, %v1761
      %v1789 = vpack.c.b16 %v1764, %v1763
      %v1790 = vpack.c.b16 %v1766, %v1765
      %v1791 = vpack.c.b16 %v1768, %v1767
      %v1792 = vpack.c.b16 %v1770, %v1769
      %v1793 = vpack.c.b16 %v1772, %v1771
      %v1794 = vpack.c.b16 %v1774, %v1773
      %v1795 = vpack.c.b16 %v1776, %v1775
      %v1796 = vpack.c.b16 %v1778, %v1777
      %v1797 = vpack.c.b16 %v1780, %v1779
      %v1798 = vpack.c.b16 %v1782, %v1781
      %v1847 = vunpack.c.l.b16 %v627
      %v1848 = vunpack.c.l.b16 %v628
      %v1849 = vunpack.c.l.b16 %v629
      %v1850 = vunpack.c.l.b16 %v630
      %v1851 = vunpack.c.l.b16 %v631
      %v1852 = vunpack.c.l.b16 %v632
      %v1853 = vunpack.c.l.b16 %v633
      %v1854 = vunpack.c.l.b16 %v634
      %v1855 = vunpack.c.l.b16 %v635
      %v1856 = vunpack.c.l.b16 %v636
      %v1857 = vunpack.c.l.b16 %v637
      %v1858 = vunpack.c.l.b16 %v638
      %v1859 = vunpack.c.l.b16 %v639
      %v1860 = vunpack.c.l.b16 %v640
      %v1861 = vunpack.c.l.b16 %v641
      %v1862 = vunpack.c.l.b16 %v642
      %v1863 = vunpack.c.l.b16 %v643
      %v1864 = vunpack.c.l.b16 %v644
      %v1865 = vunpack.c.l.b16 %v645
      %v1866 = vunpack.c.l.b16 %v646
      %v1867 = vunpack.c.l.b16 %v647
      %v1868 = vunpack.c.l.b16 %v648
      %v1869 = vunpack.c.l.b16 %v649
      %v1870 = vunpack.c.l.b16 %v650
      %v1871 = vunpack.c.l.b16 %v651
      %v1872 = vunpack.c.l.b16 %v652
      %v1873 = vunpack.c.l.b16 %v653
      %v1874 = vunpack.c.l.b16 %v654
      %v1875 = vunpack.c.l.b16 %v655
      %v1876 = vunpack.c.l.b16 %v656
      %v1877 = vunpack.c.l.b16 %v657
      %v1878 = vunpack.c.l.b16 %v658
      %v1879 = vpack.c.b16 %v1848, %v1847
      %v1880 = vpack.c.b16 %v1850, %v1849
      %v1881 = vpack.c.b16 %v1852, %v1851
      %v1882 = vpack.c.b16 %v1854, %v1853
      %v1883 = vpack.c.b16 %v1856, %v1855
      %v1884 = vpack.c.b16 %v1858, %v1857
      %v1885 = vpack.c.b16 %v1860, %v1859
      %v1886 = vpack.c.b16 %v1862, %v1861
      %v1887 = vpack.c.b16 %v1864, %v1863
      %v1888 = vpack.c.b16 %v1866, %v1865
      %v1889 = vpack.c.b16 %v1868, %v1867
      %v1890 = vpack.c.b16 %v1870, %v1869
      %v1891 = vpack.c.b16 %v1872, %v1871
      %v1892 = vpack.c.b16 %v1874, %v1873
      %v1893 = vpack.c.b16 %v1876, %v1875
      %v1894 = vpack.c.b16 %v1878, %v1877
      %v1943 = vunpack.c.l.b16 %v724
      %v1944 = vunpack.c.l.b16 %v725
      %v1945 = vunpack.c.l.b16 %v726
      %v1946 = vunpack.c.l.b16 %v727
      %v1947 = vunpack.c.l.b16 %v728
      %v1948 = vunpack.c.l.b16 %v729
      %v1949 = vunpack.c.l.b16 %v730
      %v1950 = vunpack.c.l.b16 %v731
      %v1951 = vunpack.c.l.b16 %v732
      %v1952 = vunpack.c.l.b16 %v733
      %v1953 = vunpack.c.l.b16 %v734
      %v1954 = vunpack.c.l.b16 %v735
      %v1955 = vunpack.c.l.b16 %v736
      %v1956 = vunpack.c.l.b16 %v737
      %v1957 = vunpack.c.l.b16 %v738
      %v1958 = vunpack.c.l.b16 %v739
      %v1959 = vunpack.c.l.b16 %v740
      %v1960 = vunpack.c.l.b16 %v741
      %v1961 = vunpack.c.l.b16 %v742
      %v1962 = vunpack.c.l.b16 %v743
      %v1963 = vunpack.c.l.b16 %v744
      %v1964 = vunpack.c.l.b16 %v745
      %v1965 = vunpack.c.l.b16 %v746
      %v1966 = vunpack.c.l.b16 %v747
      %v1967 = vunpack.c.l.b16 %v748
      %v1968 = vunpack.c.l.b16 %v749
      %v1969 = vunpack.c.l.b16 %v750
      %v1970 = vunpack.c.l.b16 %v751
      %v1971 = vunpack.c.l.b16 %v752
      %v1972 = vunpack.c.l.b16 %v753
      %v1973 = vunpack.c.l.b16 %v754
      %v1974 = vunpack.c.l.b16 %v755
      %v1975 = vpack.c.b16 %v1944, %v1943
      %v1976 = vpack.c.b16 %v1946, %v1945
      %v1977 = vpack.c.b16 %v1948, %v1947
      %v1978 = vpack.c.b16 %v1950, %v1949
      %v1979 = vpack.c.b16 %v1952, %v1951
      %v1980 = vpack.c.b16 %v1954, %v1953
      %v1981 = vpack.c.b16 %v1956, %v1955
      %v1982 = vpack.c.b16 %v1958, %v1957
      %v1983 = vpack.c.b16 %v1960, %v1959
      %v1984 = vpack.c.b16 %v1962, %v1961
      %v1985 = vpack.c.b16 %v1964, %v1963
      %v1986 = vpack.c.b16 %v1966, %v1965
      %v1987 = vpack.c.b16 %v1968, %v1967
      %v1988 = vpack.c.b16 %v1970, %v1969
      %v1989 = vpack.c.b16 %v1972, %v1971
      %v1990 = vpack.c.b16 %v1974, %v1973
      %v2039 = vunpack.c.l.b16 %v821
      %v2040 = vunpack.c.l.b16 %v822
      %v2041 = vunpack.c.l.b16 %v823
      %v2042 = vunpack.c.l.b16 %v824
      %v2043 = vunpack.c.l.b16 %v825
      %v2044 = vunpack.c.l.b16 %v826
      %v2045 = vunpack.c.l.b16 %v827
      %v2046 = vunpack.c.l.b16 %v828
      %v2047 = vunpack.c.l.b16 %v829
      %v2048 = vunpack.c.l.b16 %v830
      %v2049 = vunpack.c.l.b16 %v831
      %v2050 = vunpack.c.l.b16 %v832
      %v2051 = vunpack.c.l.b16 %v833
      %v2052 = vunpack.c.l.b16 %v834
      %v2053 = vunpack.c.l.b16 %v835
      %v2054 = vunpack.c.l.b16 %v836
      %v2055 = vunpack.c.l.b16 %v837
      %v2056 = vunpack.c.l.b16 %v838
      %v2057 = vunpack.c.l.b16 %v839
      %v2058 = vunpack.c.l.b16 %v840
      %v2059 = vunpack.c.l.b16 %v841
      %v2060 = vunpack.c.l.b16 %v842
      %v2061 = vunpack.c.l.b16 %v843
      %v2062 = vunpack.c.l.b16 %v844
      %v2063 = vunpack.c.l.b16 %v845
      %v2064 = vunpack.c.l.b16 %v846
      %v2065 = vunpack.c.l.b16 %v847
      %v2066 = vunpack.c.l.b16 %v848
      %v2067 = vunpack.c.l.b16 %v849
      %v2068 = vunpack.c.l.b16 %v850
      %v2069 = vunpack.c.l.b16 %v851
      %v2070 = vunpack.c.l.b16 %v852
      %v2071 = vpack.c.b16 %v2040, %v2039
      %v2072 = vpack.c.b16 %v2042, %v2041
      %v2073 = vpack.c.b16 %v2044, %v2043
      %v2074 = vpack.c.b16 %v2046, %v2045
      %v2075 = vpack.c.b16 %v2048, %v2047
      %v2076 = vpack.c.b16 %v2050, %v2049
      %v2077 = vpack.c.b16 %v2052, %v2051
      %v2078 = vpack.c.b16 %v2054, %v2053
      %v2079 = vpack.c.b16 %v2056, %v2055
      %v2080 = vpack.c.b16 %v2058, %v2057
      %v2081 = vpack.c.b16 %v2060, %v2059
      %v2082 = vpack.c.b16 %v2062, %v2061
      %v2083 = vpack.c.b16 %v2064, %v2063
      %v2084 = vpack.c.b16 %v2066, %v2065
      %v2085 = vpack.c.b16 %v2068, %v2067
      %v2086 = vpack.c.b16 %v2070, %v2069
      %v2135 = vunpack.c.l.b16 %v1109
      %v2136 = vunpack.c.l.b16 %v1110
      %v2137 = vunpack.c.l.b16 %v1111
      %v2138 = vunpack.c.l.b16 %v1112
      %v2139 = vunpack.c.l.b16 %v1113
      %v2140 = vunpack.c.l.b16 %v1114
      %v2141 = vunpack.c.l.b16 %v1115
      %v2142 = vunpack.c.l.b16 %v1116
      %v2143 = vunpack.c.l.b16 %v1117
      %v2144 = vunpack.c.l.b16 %v1118
      %v2145 = vunpack.c.l.b16 %v1119
      %v2146 = vunpack.c.l.b16 %v1120
      %v2147 = vunpack.c.l.b16 %v1121
      %v2148 = vunpack.c.l.b16 %v1122
      %v2149 = vunpack.c.l.b16 %v1123
      %v2150 = vunpack.c.l.b16 %v1124
      %v2151 = vunpack.c.l.b16 %v1125
      %v2152 = vunpack.c.l.b16 %v1126
      %v2153 = vunpack.c.l.b16 %v1127
      %v2154 = vunpack.c.l.b16 %v1128
      %v2155 = vunpack.c.l.b16 %v1129
      %v2156 = vunpack.c.l.b16 %v1130
      %v2157 = vunpack.c.l.b16 %v1131
      %v2158 = vunpack.c.l.b16 %v1132
      %v2159 = vunpack.c.l.b16 %v1133
      %v2160 = vunpack.c.l.b16 %v1134
      %v2161 = vunpack.c.l.b16 %v1135
      %v2162 = vunpack.c.l.b16 %v1136
      %v2163 = vunpack.c.l.b16 %v1137
      %v2164 = vunpack.c.l.b16 %v1138
      %v2165 = vunpack.c.l.b16 %v1139
      %v2166 = vunpack.c.l.b16 %v1140
      %v2167 = vpack.c.b16 %v2136, %v2135
      %v2168 = vpack.c.b16 %v2138, %v2137
      %v2169 = vpack.c.b16 %v2140, %v2139
      %v2170 = vpack.c.b16 %v2142, %v2141
      %v2171 = vpack.c.b16 %v2144, %v2143
      %v2172 = vpack.c.b16 %v2146, %v2145
      %v2173 = vpack.c.b16 %v2148, %v2147
      %v2174 = vpack.c.b16 %v2150, %v2149
      %v2175 = vpack.c.b16 %v2152, %v2151
      %v2176 = vpack.c.b16 %v2154, %v2153
      %v2177 = vpack.c.b16 %v2156, %v2155
      %v2178 = vpack.c.b16 %v2158, %v2157
      %v2179 = vpack.c.b16 %v2160, %v2159
      %v2180 = vpack.c.b16 %v2162, %v2161
      %v2181 = vpack.c.b16 %v2164, %v2163
      %v2182 = vpack.c.b16 %v2166, %v2165
      %v2231 = vunpack.c.l.b16 %v1206
      %v2232 = vunpack.c.l.b16 %v1207
      %v2233 = vunpack.c.l.b16 %v1208
      %v2234 = vunpack.c.l.b16 %v1209
      %v2235 = vunpack.c.l.b16 %v1210
      %v2236 = vunpack.c.l.b16 %v1211
      %v2237 = vunpack.c.l.b16 %v1212
      %v2238 = vunpack.c.l.b16 %v1213
      %v2239 = vunpack.c.l.b16 %v1214
      %v2240 = vunpack.c.l.b16 %v1215
      %v2241 = vunpack.c.l.b16 %v1216
      %v2242 = vunpack.c.l.b16 %v1217
      %v2243 = vunpack.c.l.b16 %v1218
      %v2244 = vunpack.c.l.b16 %v1219
      %v2245 = vunpack.c.l.b16 %v1220
      %v2246 = vunpack.c.l.b16 %v1221
      %v2247 = vunpack.c.l.b16 %v1222
      %v2248 = vunpack.c.l.b16 %v1223
      %v2249 = vunpack.c.l.b16 %v1224
      %v2250 = vunpack.c.l.b16 %v1225
      %v2251 = vunpack.c.l.b16 %v1226
      %v2252 = vunpack.c.l.b16 %v1227
      %v2253 = vunpack.c.l.b16 %v1228
      %v2254 = vunpack.c.l.b16 %v1229
      %v2255 = vunpack.c.l.b16 %v1230
      %v2256 = vunpack.c.l.b16 %v1231
      %v2257 = vunpack.c.l.b16 %v1232
      %v2258 = vunpack.c.l.b16 %v1233
      %v2259 = vunpack.c.l.b16 %v1234
      %v2260 = vunpack.c.l.b16 %v1235
      %v2261 = vunpack.c.l.b16 %v1236
      %v2262 = vunpack.c.l.b16 %v1237
      %v2263 = vpack.c.b16 %v2232, %v2231
      %v2264 = vpack.c.b16 %v2234, %v2233
      %v2265 = vpack.c.b16 %v2236, %v2235
      %v2266 = vpack.c.b16 %v2238, %v2237
      %v2267 = vpack.c.b16 %v2240, %v2239
      %v2268 = vpack.c.b16 %v2242, %v2241
      %v2269 = vpack.c.b16 %v2244, %v2243
      %v2270 = vpack.c.b16 %v2246, %v2245
      %v2271 = vpack.c.b16 %v2248, %v2247
      %v2272 = vpack.c.b16 %v2250, %v2249
      %v2273 = vpack.c.b16 %v2252, %v2251
      %v2274 = vpack.c.b16 %v2254, %v2253
      %v2275 = vpack.c.b16 %v2256, %v2255
      %v2276 = vpack.c.b16 %v2258, %v2257
      %v2277 = vpack.c.b16 %v2260, %v2259
      %v2278 = vpack.c.b16 %v2262, %v2261
      %v2327 = vunpack.c.l.b16 %v1303
      %v2328 = vunpack.c.l.b16 %v1304
      %v2329 = vunpack.c.l.b16 %v1305
      %v2330 = vunpack.c.l.b16 %v1306
      %v2331 = vunpack.c.l.b16 %v1307
      %v2332 = vunpack.c.l.b16 %v1308
      %v2333 = vunpack.c.l.b16 %v1309
      %v2334 = vunpack.c.l.b16 %v1310
      %v2335 = vunpack.c.l.b16 %v1311
      %v2336 = vunpack.c.l.b16 %v1312
      %v2337 = vunpack.c.l.b16 %v1313
      %v2338 = vunpack.c.l.b16 %v1314
      %v2339 = vunpack.c.l.b16 %v1315
      %v2340 = vunpack.c.l.b16 %v1316
      %v2341 = vunpack.c.l.b16 %v1317
      %v2342 = vunpack.c.l.b16 %v1318
      %v2343 = vunpack.c.l.b16 %v1319
      %v2344 = vunpack.c.l.b16 %v1320
      %v2345 = vunpack.c.l.b16 %v1321
      %v2346 = vunpack.c.l.b16 %v1322
      %v2347 = vunpack.c.l.b16 %v1323
      %v2348 = vunpack.c.l.b16 %v1324
      %v2349 = vunpack.c.l.b16 %v1325
      %v2350 = vunpack.c.l.b16 %v1326
      %v2351 = vunpack.c.l.b16 %v1327
      %v2352 = vunpack.c.l.b16 %v1328
      %v2353 = vunpack.c.l.b16 %v1329
      %v2354 = vunpack.c.l.b16 %v1330
      %v2355 = vunpack.c.l.b16 %v1331
      %v2356 = vunpack.c.l.b16 %v1332
      %v2357 = vunpack.c.l.b16 %v1333
      %v2358 = vunpack.c.l.b16 %v1334
      %v2359 = vpack.c.b16 %v2328, %v2327
      %v2360 = vpack.c.b16 %v2330, %v2329
      %v2361 = vpack.c.b16 %v2332, %v2331
      %v2362 = vpack.c.b16 %v2334, %v2333
      %v2363 = vpack.c.b16 %v2336, %v2335
      %v2364 = vpack.c.b16 %v2338, %v2337
      %v2365 = vpack.c.b16 %v2340, %v2339
      %v2366 = vpack.c.b16 %v2342, %v2341
      %v2367 = vpack.c.b16 %v2344, %v2343
      %v2368 = vpack.c.b16 %v2346, %v2345
      %v2369 = vpack.c.b16 %v2348, %v2347
      %v2370 = vpack.c.b16 %v2350, %v2349
      %v2371 = vpack.c.b16 %v2352, %v2351
      %v2372 = vpack.c.b16 %v2354, %v2353
      %v2373 = vpack.c.b16 %v2356, %v2355
      %v2374 = vpack.c.b16 %v2358, %v2357
      %v2423 = vunpack.c.l.b16 %v1591
      %v2424 = vunpack.c.l.b16 %v1592
      %v2425 = vunpack.c.l.b16 %v1593
      %v2426 = vunpack.c.l.b16 %v1594
      %v2427 = vunpack.c.l.b16 %v1595
      %v2428 = vunpack.c.l.b16 %v1596
      %v2429 = vunpack.c.l.b16 %v1597
      %v2430 = vunpack.c.l.b16 %v1598
      %v2431 = vunpack.c.l.b16 %v1599
      %v2432 = vunpack.c.l.b16 %v1600
      %v2433 = vunpack.c.l.b16 %v1601
      %v2434 = vunpack.c.l.b16 %v1602
      %v2435 = vunpack.c.l.b16 %v1603
      %v2436 = vunpack.c.l.b16 %v1604
      %v2437 = vunpack.c.l.b16 %v1605
      %v2438 = vunpack.c.l.b16 %v1606
      %v2439 = vunpack.c.l.b16 %v1607
      %v2440 = vunpack.c.l.b16 %v1608
      %v2441 = vunpack.c.l.b16 %v1609
      %v2442 = vunpack.c.l.b16 %v1610
      %v2443 = vunpack.c.l.b16 %v1611
      %v2444 = vunpack.c.l.b16 %v1612
      %v2445 = vunpack.c.l.b16 %v1613
      %v2446 = vunpack.c.l.b16 %v1614
      %v2447 = vunpack.c.l.b16 %v1615
      %v2448 = vunpack.c.l.b16 %v1616
      %v2449 = vunpack.c.l.b16 %v1617
      %v2450 = vunpack.c.l.b16 %v1618
      %v2451 = vunpack.c.l.b16 %v1619
      %v2452 = vunpack.c.l.b16 %v1620
      %v2453 = vunpack.c.l.b16 %v1621
      %v2454 = vunpack.c.l.b16 %v1622
      %v2455 = vpack.c.b16 %v2424, %v2423
      %v2456 = vpack.c.b16 %v2426, %v2425
      %v2457 = vpack.c.b16 %v2428, %v2427
      %v2458 = vpack.c.b16 %v2430, %v2429
      %v2459 = vpack.c.b16 %v2432, %v2431
      %v2460 = vpack.c.b16 %v2434, %v2433
      %v2461 = vpack.c.b16 %v2436, %v2435
      %v2462 = vpack.c.b16 %v2438, %v2437
      %v2463 = vpack.c.b16 %v2440, %v2439
      %v2464 = vpack.c.b16 %v2442, %v2441
      %v2465 = vpack.c.b16 %v2444, %v2443
      %v2466 = vpack.c.b16 %v2446, %v2445
      %v2467 = vpack.c.b16 %v2448, %v2447
      %v2468 = vpack.c.b16 %v2450, %v2449
      %v2469 = vpack.c.b16 %v2452, %v2451
      %v2470 = vpack.c.b16 %v2454, %v2453
      %v2487 = vld [vmem:[%s1] sm:$0xf]
      %v2488 = vld [vmem:[%s1 + $0x4] sm:$0xf]
      %v2489 = vld [vmem:[%s1 + $0x8] sm:$0xf]
      %v2490 = vld [vmem:[%s1 + $0xc] sm:$0xf]
      %v2491 = vld [vmem:[%s1 + $0x10] sm:$0xf]
      %v2492 = vld [vmem:[%s1 + $0x14] sm:$0xf]
      %v2493 = vld [vmem:[%s1 + $0x18] sm:$0xf]
      %v2494 = vld [vmem:[%s1 + $0x1c] sm:$0xf]
      %v2495 = vld [vmem:[%s1 + $0x20] sm:$0xf]
      %v2496 = vld [vmem:[%s1 + $0x24] sm:$0xf]
      %v2497 = vld [vmem:[%s1 + $0x28] sm:$0xf]
      %v2498 = vld [vmem:[%s1 + $0x2c] sm:$0xf]
      %v2499 = vld [vmem:[%s1 + $0x30] sm:$0xf]
      %v2500 = vld [vmem:[%s1 + $0x34] sm:$0xf]
      %v2501 = vld [vmem:[%s1 + $0x38] sm:$0xf]
      %v2502 = vld [vmem:[%s1 + $0x3c] sm:$0xf]
      %v2503 = vld [vmem:[%s1 + $0x40] sm:$0xf]
      %v2504 = vld [vmem:[%s1 + $0x44] sm:$0xf]
      %v2505 = vld [vmem:[%s1 + $0x48] sm:$0xf]
      %v2506 = vld [vmem:[%s1 + $0x4c] sm:$0xf]
      %v2507 = vld [vmem:[%s1 + $0x50] sm:$0xf]
      %v2508 = vld [vmem:[%s1 + $0x54] sm:$0xf]
      %v2509 = vld [vmem:[%s1 + $0x58] sm:$0xf]
      %v2510 = vld [vmem:[%s1 + $0x5c] sm:$0xf]
      %v2511 = vld [vmem:[%s1 + $0x60] sm:$0xf]
      %v2512 = vld [vmem:[%s1 + $0x64] sm:$0xf]
      %v2513 = vld [vmem:[%s1 + $0x68] sm:$0xf]
      %v2514 = vld [vmem:[%s1 + $0x6c] sm:$0xf]
      %v2515 = vld [vmem:[%s1 + $0x70] sm:$0xf]
      %v2516 = vld [vmem:[%s1 + $0x74] sm:$0xf]
      %v2517 = vld [vmem:[%s1 + $0x78] sm:$0xf]
      %v2518 = vld [vmem:[%s1 + $0x7c] sm:$0xf]
      %v2519 = vld [vmem:[%s1 + $0x80] sm:$0xf]
      %v2520 = vld [vmem:[%s1 + $0x84] sm:$0xf]
      %v2521 = vld [vmem:[%s1 + $0x88] sm:$0xf]
      %v2522 = vld [vmem:[%s1 + $0x8c] sm:$0xf]
      %v2523 = vld [vmem:[%s1 + $0x90] sm:$0xf]
      %v2524 = vld [vmem:[%s1 + $0x94] sm:$0xf]
      %v2525 = vld [vmem:[%s1 + $0x98] sm:$0xf]
      %v2526 = vld [vmem:[%s1 + $0x9c] sm:$0xf]
      %v2527 = vld [vmem:[%s1 + $0xa0] sm:$0xf]
      %v2528 = vld [vmem:[%s1 + $0xa4] sm:$0xf]
      %v2529 = vld [vmem:[%s1 + $0xa8] sm:$0xf]
      %v2530 = vld [vmem:[%s1 + $0xac] sm:$0xf]
      %v2531 = vld [vmem:[%s1 + $0xb0] sm:$0xf]
      %v2532 = vld [vmem:[%s1 + $0xb4] sm:$0xf]
      %v2533 = vld [vmem:[%s1 + $0xb8] sm:$0xf]
      %v2534 = vld [vmem:[%s1 + $0xbc] sm:$0xf]
      %v2535 = vld [vmem:[%s1 + $0xc0] sm:$0xf]
      %v2536 = vld [vmem:[%s1 + $0xc4] sm:$0xf]
      %v2537 = vld [vmem:[%s1 + $0xc8] sm:$0xf]
      %v2538 = vld [vmem:[%s1 + $0xcc] sm:$0xf]
      %v2539 = vld [vmem:[%s1 + $0xd0] sm:$0xf]
      %v2540 = vld [vmem:[%s1 + $0xd4] sm:$0xf]
      %v2541 = vld [vmem:[%s1 + $0xd8] sm:$0xf]
      %v2542 = vld [vmem:[%s1 + $0xdc] sm:$0xf]
      %v2543 = vld [vmem:[%s1 + $0xe0] sm:$0xf]
      %v2544 = vld [vmem:[%s1 + $0xe4] sm:$0xf]
      %v2545 = vld [vmem:[%s1 + $0xe8] sm:$0xf]
      %v2546 = vld [vmem:[%s1 + $0xec] sm:$0xf]
      %v2547 = vld [vmem:[%s1 + $0xf0] sm:$0xf]
      %v2548 = vld [vmem:[%s1 + $0xf4] sm:$0xf]
      %v2549 = vld [vmem:[%s1 + $0xf8] sm:$0xf]
      %v2550 = vld [vmem:[%s1 + $0xfc] sm:$0xf]
      %v2551 = vld [vmem:[%s1 + $0x100] sm:$0xf]
      %v2552 = vld [vmem:[%s1 + $0x104] sm:$0xf]
      %v2553 = vld [vmem:[%s1 + $0x108] sm:$0xf]
      %v2554 = vld [vmem:[%s1 + $0x10c] sm:$0xf]
      %v2555 = vld [vmem:[%s1 + $0x110] sm:$0xf]
      %v2556 = vld [vmem:[%s1 + $0x114] sm:$0xf]
      %v2557 = vld [vmem:[%s1 + $0x118] sm:$0xf]
      %v2558 = vld [vmem:[%s1 + $0x11c] sm:$0xf]
      %v2559 = vld [vmem:[%s1 + $0x120] sm:$0xf]
      %v2560 = vld [vmem:[%s1 + $0x124] sm:$0xf]
      %v2561 = vld [vmem:[%s1 + $0x128] sm:$0xf]
      %v2562 = vld [vmem:[%s1 + $0x12c] sm:$0xf]
      %v2563 = vld [vmem:[%s1 + $0x130] sm:$0xf]
      %v2564 = vld [vmem:[%s1 + $0x134] sm:$0xf]
      %v2565 = vld [vmem:[%s1 + $0x138] sm:$0xf]
      %v2566 = vld [vmem:[%s1 + $0x13c] sm:$0xf]
      %v2567 = vld [vmem:[%s1 + $0x140] sm:$0xf]
      %v2568 = vld [vmem:[%s1 + $0x144] sm:$0xf]
      %v2569 = vld [vmem:[%s1 + $0x148] sm:$0xf]
      %v2570 = vld [vmem:[%s1 + $0x14c] sm:$0xf]
      %v2571 = vld [vmem:[%s1 + $0x150] sm:$0xf]
      %v2572 = vld [vmem:[%s1 + $0x154] sm:$0xf]
      %v2573 = vld [vmem:[%s1 + $0x158] sm:$0xf]
      %v2574 = vld [vmem:[%s1 + $0x15c] sm:$0xf]
      %v2575 = vld [vmem:[%s1 + $0x160] sm:$0xf]
      %v2576 = vld [vmem:[%s1 + $0x164] sm:$0xf]
      %v2577 = vld [vmem:[%s1 + $0x168] sm:$0xf]
      %v2578 = vld [vmem:[%s1 + $0x16c] sm:$0xf]
      %v2579 = vld [vmem:[%s1 + $0x170] sm:$0xf]
      %v2580 = vld [vmem:[%s1 + $0x174] sm:$0xf]
      %v2581 = vld [vmem:[%s1 + $0x178] sm:$0xf]
      %v2582 = vld [vmem:[%s1 + $0x17c] sm:$0xf]
      %v2583 = vld [vmem:[%s1 + $0x180] sm:$0xf]
      %v2584 = vld [vmem:[%s1 + $0x184] sm:$0xf]
      %v2585 = vld [vmem:[%s1 + $0x188] sm:$0xf]
      %v2586 = vld [vmem:[%s1 + $0x18c] sm:$0xf]
      %v2587 = vld [vmem:[%s1 + $0x190] sm:$0xf]
      %v2588 = vld [vmem:[%s1 + $0x194] sm:$0xf]
      %v2589 = vld [vmem:[%s1 + $0x198] sm:$0xf]
      %v2590 = vld [vmem:[%s1 + $0x19c] sm:$0xf]
      %v2591 = vld [vmem:[%s1 + $0x1a0] sm:$0xf]
      %v2592 = vld [vmem:[%s1 + $0x1a4] sm:$0xf]
      %v2593 = vld [vmem:[%s1 + $0x1a8] sm:$0xf]
      %v2594 = vld [vmem:[%s1 + $0x1ac] sm:$0xf]
      %v2595 = vld [vmem:[%s1 + $0x1b0] sm:$0xf]
      %v2596 = vld [vmem:[%s1 + $0x1b4] sm:$0xf]
      %v2597 = vld [vmem:[%s1 + $0x1b8] sm:$0xf]
      %v2598 = vld [vmem:[%s1 + $0x1bc] sm:$0xf]
      %v2599 = vld [vmem:[%s1 + $0x1c0] sm:$0xf]
      %v2600 = vld [vmem:[%s1 + $0x1c4] sm:$0xf]
      %v2601 = vld [vmem:[%s1 + $0x1c8] sm:$0xf]
      %v2602 = vld [vmem:[%s1 + $0x1cc] sm:$0xf]
      %v2603 = vld [vmem:[%s1 + $0x1d0] sm:$0xf]
      %v2604 = vld [vmem:[%s1 + $0x1d4] sm:$0xf]
      %v2605 = vld [vmem:[%s1 + $0x1d8] sm:$0xf]
      %v2606 = vld [vmem:[%s1 + $0x1dc] sm:$0xf]
      %v2607 = vld [vmem:[%s1 + $0x1e0] sm:$0xf]
      %v2608 = vld [vmem:[%s1 + $0x1e4] sm:$0xf]
      %v2609 = vld [vmem:[%s1 + $0x1e8] sm:$0xf]
      %v2610 = vld [vmem:[%s1 + $0x1ec] sm:$0xf]
      %v2611 = vld [vmem:[%s1 + $0x1f0] sm:$0xf]
      %v2612 = vld [vmem:[%s1 + $0x1f4] sm:$0xf]
      %v2613 = vld [vmem:[%s1 + $0x1f8] sm:$0xf]
      %v2614 = vld [vmem:[%s1 + $0x1fc] sm:$0xf]
      %v2615 = vld [vmem:[%s1 + $0x200] sm:$0xf]
      %v2616 = vld [vmem:[%s1 + $0x204] sm:$0xf]
      %v2617 = vld [vmem:[%s1 + $0x208] sm:$0xf]
      %v2618 = vld [vmem:[%s1 + $0x20c] sm:$0xf]
      %v2619 = vld [vmem:[%s1 + $0x210] sm:$0xf]
      %v2620 = vld [vmem:[%s1 + $0x214] sm:$0xf]
      %v2621 = vld [vmem:[%s1 + $0x218] sm:$0xf]
      %v2622 = vld [vmem:[%s1 + $0x21c] sm:$0xf]
      %v2623 = vld [vmem:[%s1 + $0x220] sm:$0xf]
      %v2624 = vld [vmem:[%s1 + $0x224] sm:$0xf]
      %v2625 = vld [vmem:[%s1 + $0x228] sm:$0xf]
      %v2626 = vld [vmem:[%s1 + $0x22c] sm:$0xf]
      %v2627 = vld [vmem:[%s1 + $0x230] sm:$0xf]
      %v2628 = vld [vmem:[%s1 + $0x234] sm:$0xf]
      %v2629 = vld [vmem:[%s1 + $0x238] sm:$0xf]
      %v2630 = vld [vmem:[%s1 + $0x23c] sm:$0xf]
      %v2631 = vld [vmem:[%s2] sm:$0x1]
      %v2633 = vperm.slane %v2631, 0
      %v2779 = vunpack.c.l.b16 %v2487
      %v2780 = vunpack.c.l.b16 %v2488
      %v2781 = vunpack.c.l.b16 %v2489
      %v2782 = vunpack.c.l.b16 %v2490
      %v2783 = vunpack.c.l.b16 %v2491
      %v2784 = vunpack.c.l.b16 %v2492
      %v2785 = vunpack.c.l.b16 %v2493
      %v2786 = vunpack.c.l.b16 %v2494
      %v2787 = vunpack.c.l.b16 %v2495
      %v2788 = vunpack.c.l.b16 %v2496
      %v2789 = vunpack.c.l.b16 %v2497
      %v2790 = vunpack.c.l.b16 %v2498
      %v2791 = vunpack.c.l.b16 %v2499
      %v2792 = vunpack.c.l.b16 %v2500
      %v2793 = vunpack.c.l.b16 %v2501
      %v2794 = vunpack.c.l.b16 %v2502
      %v2795 = vunpack.c.l.b16 %v2503
      %v2796 = vunpack.c.l.b16 %v2504
      %v2797 = vunpack.c.l.b16 %v2505
      %v2798 = vunpack.c.l.b16 %v2506
      %v2799 = vunpack.c.l.b16 %v2507
      %v2800 = vunpack.c.l.b16 %v2508
      %v2801 = vunpack.c.l.b16 %v2509
      %v2802 = vunpack.c.l.b16 %v2510
      %v2803 = vunpack.c.l.b16 %v2511
      %v2804 = vunpack.c.l.b16 %v2512
      %v2805 = vunpack.c.l.b16 %v2513
      %v2806 = vunpack.c.l.b16 %v2514
      %v2807 = vunpack.c.l.b16 %v2515
      %v2808 = vunpack.c.l.b16 %v2516
      %v2809 = vunpack.c.l.b16 %v2517
      %v2810 = vunpack.c.l.b16 %v2518
      %v2811 = vunpack.c.l.b16 %v2519
      %v2812 = vunpack.c.l.b16 %v2520
      %v2813 = vunpack.c.l.b16 %v2521
      %v2814 = vunpack.c.l.b16 %v2522
      %v2815 = vunpack.c.l.b16 %v2523
      %v2816 = vunpack.c.l.b16 %v2524
      %v2817 = vunpack.c.l.b16 %v2525
      %v2818 = vunpack.c.l.b16 %v2526
      %v2819 = vunpack.c.l.b16 %v2527
      %v2820 = vunpack.c.l.b16 %v2528
      %v2821 = vunpack.c.l.b16 %v2529
      %v2822 = vunpack.c.l.b16 %v2530
      %v2823 = vunpack.c.l.b16 %v2531
      %v2824 = vunpack.c.l.b16 %v2532
      %v2825 = vunpack.c.l.b16 %v2533
      %v2826 = vunpack.c.l.b16 %v2534
      %v2827 = vunpack.c.l.b16 %v2535
      %v2828 = vunpack.c.l.b16 %v2536
      %v2829 = vunpack.c.l.b16 %v2537
      %v2830 = vunpack.c.l.b16 %v2538
      %v2831 = vunpack.c.l.b16 %v2539
      %v2832 = vunpack.c.l.b16 %v2540
      %v2833 = vunpack.c.l.b16 %v2541
      %v2834 = vunpack.c.l.b16 %v2542
      %v2835 = vunpack.c.l.b16 %v2543
      %v2836 = vunpack.c.l.b16 %v2544
      %v2837 = vunpack.c.l.b16 %v2545
      %v2838 = vunpack.c.l.b16 %v2546
      %v2839 = vunpack.c.l.b16 %v2547
      %v2840 = vunpack.c.l.b16 %v2548
      %v2841 = vunpack.c.l.b16 %v2549
      %v2842 = vunpack.c.l.b16 %v2550
      %v2843 = vunpack.c.l.b16 %v2551
      %v2844 = vunpack.c.l.b16 %v2552
      %v2845 = vunpack.c.l.b16 %v2553
      %v2846 = vunpack.c.l.b16 %v2554
      %v2847 = vunpack.c.l.b16 %v2555
      %v2848 = vunpack.c.l.b16 %v2556
      %v2849 = vunpack.c.l.b16 %v2557
      %v2850 = vunpack.c.l.b16 %v2558
      %v2851 = vunpack.c.l.b16 %v2559
      %v2852 = vunpack.c.l.b16 %v2560
      %v2853 = vunpack.c.l.b16 %v2561
      %v2854 = vunpack.c.l.b16 %v2562
      %v2855 = vunpack.c.l.b16 %v2563
      %v2856 = vunpack.c.l.b16 %v2564
      %v2857 = vunpack.c.l.b16 %v2565
      %v2858 = vunpack.c.l.b16 %v2566
      %v2859 = vunpack.c.l.b16 %v2567
      %v2860 = vunpack.c.l.b16 %v2568
      %v2861 = vunpack.c.l.b16 %v2569
      %v2862 = vunpack.c.l.b16 %v2570
      %v2863 = vunpack.c.l.b16 %v2571
      %v2864 = vunpack.c.l.b16 %v2572
      %v2865 = vunpack.c.l.b16 %v2573
      %v2866 = vunpack.c.l.b16 %v2574
      %v2867 = vunpack.c.l.b16 %v2575
      %v2868 = vunpack.c.l.b16 %v2576
      %v2869 = vunpack.c.l.b16 %v2577
      %v2870 = vunpack.c.l.b16 %v2578
      %v2871 = vunpack.c.l.b16 %v2579
      %v2872 = vunpack.c.l.b16 %v2580
      %v2873 = vunpack.c.l.b16 %v2581
      %v2874 = vunpack.c.l.b16 %v2582
      %v2875 = vunpack.c.l.b16 %v2583
      %v2876 = vunpack.c.l.b16 %v2584
      %v2877 = vunpack.c.l.b16 %v2585
      %v2878 = vunpack.c.l.b16 %v2586
      %v2879 = vunpack.c.l.b16 %v2587
      %v2880 = vunpack.c.l.b16 %v2588
      %v2881 = vunpack.c.l.b16 %v2589
      %v2882 = vunpack.c.l.b16 %v2590
      %v2883 = vunpack.c.l.b16 %v2591
      %v2884 = vunpack.c.l.b16 %v2592
      %v2885 = vunpack.c.l.b16 %v2593
      %v2886 = vunpack.c.l.b16 %v2594
      %v2887 = vunpack.c.l.b16 %v2595
      %v2888 = vunpack.c.l.b16 %v2596
      %v2889 = vunpack.c.l.b16 %v2597
      %v2890 = vunpack.c.l.b16 %v2598
      %v2891 = vunpack.c.l.b16 %v2599
      %v2892 = vunpack.c.l.b16 %v2600
      %v2893 = vunpack.c.l.b16 %v2601
      %v2894 = vunpack.c.l.b16 %v2602
      %v2895 = vunpack.c.l.b16 %v2603
      %v2896 = vunpack.c.l.b16 %v2604
      %v2897 = vunpack.c.l.b16 %v2605
      %v2898 = vunpack.c.l.b16 %v2606
      %v2899 = vunpack.c.l.b16 %v2607
      %v2900 = vunpack.c.l.b16 %v2608
      %v2901 = vunpack.c.l.b16 %v2609
      %v2902 = vunpack.c.l.b16 %v2610
      %v2903 = vunpack.c.l.b16 %v2611
      %v2904 = vunpack.c.l.b16 %v2612
      %v2905 = vunpack.c.l.b16 %v2613
      %v2906 = vunpack.c.l.b16 %v2614
      %v2907 = vunpack.c.l.b16 %v2615
      %v2908 = vunpack.c.l.b16 %v2616
      %v2909 = vunpack.c.l.b16 %v2617
      %v2910 = vunpack.c.l.b16 %v2618
      %v2911 = vunpack.c.l.b16 %v2619
      %v2912 = vunpack.c.l.b16 %v2620
      %v2913 = vunpack.c.l.b16 %v2621
      %v2914 = vunpack.c.l.b16 %v2622
      %v2915 = vunpack.c.l.b16 %v2623
      %v2916 = vunpack.c.l.b16 %v2624
      %v2917 = vunpack.c.l.b16 %v2625
      %v2918 = vunpack.c.l.b16 %v2626
      %v2919 = vunpack.c.l.b16 %v2627
      %v2920 = vunpack.c.l.b16 %v2628
      %v2921 = vunpack.c.l.b16 %v2629
      %v2922 = vunpack.c.l.b16 %v2630
      %v2923 = vpack.c.b16 %v2780, %v2779
      %v2924 = vpack.c.b16 %v2782, %v2781
      %v2925 = vpack.c.b16 %v2784, %v2783
      %v2926 = vpack.c.b16 %v2786, %v2785
      %v2927 = vpack.c.b16 %v2788, %v2787
      %v2928 = vpack.c.b16 %v2790, %v2789
      %v2929 = vpack.c.b16 %v2792, %v2791
      %v2930 = vpack.c.b16 %v2794, %v2793
      %v2931 = vpack.c.b16 %v2796, %v2795
      %v2932 = vpack.c.b16 %v2798, %v2797
      %v2933 = vpack.c.b16 %v2800, %v2799
      %v2934 = vpack.c.b16 %v2802, %v2801
      %v2935 = vpack.c.b16 %v2804, %v2803
      %v2936 = vpack.c.b16 %v2806, %v2805
      %v2937 = vpack.c.b16 %v2808, %v2807
      %v2938 = vpack.c.b16 %v2810, %v2809
      %v2939 = vpack.c.b16 %v2812, %v2811
      %v2940 = vpack.c.b16 %v2814, %v2813
      %v2941 = vpack.c.b16 %v2816, %v2815
      %v2942 = vpack.c.b16 %v2818, %v2817
      %v2943 = vpack.c.b16 %v2820, %v2819
      %v2944 = vpack.c.b16 %v2822, %v2821
      %v2945 = vpack.c.b16 %v2824, %v2823
      %v2946 = vpack.c.b16 %v2826, %v2825
      %v2947 = vpack.c.b16 %v2828, %v2827
      %v2948 = vpack.c.b16 %v2830, %v2829
      %v2949 = vpack.c.b16 %v2832, %v2831
      %v2950 = vpack.c.b16 %v2834, %v2833
      %v2951 = vpack.c.b16 %v2836, %v2835
      %v2952 = vpack.c.b16 %v2838, %v2837
      %v2953 = vpack.c.b16 %v2840, %v2839
      %v2954 = vpack.c.b16 %v2842, %v2841
      %v2955 = vpack.c.b16 %v2844, %v2843
      %v2956 = vpack.c.b16 %v2846, %v2845
      %v2957 = vpack.c.b16 %v2848, %v2847
      %v2958 = vpack.c.b16 %v2850, %v2849
      %v2959 = vpack.c.b16 %v2852, %v2851
      %v2960 = vpack.c.b16 %v2854, %v2853
      %v2961 = vpack.c.b16 %v2856, %v2855
      %v2962 = vpack.c.b16 %v2858, %v2857
      %v2963 = vpack.c.b16 %v2860, %v2859
      %v2964 = vpack.c.b16 %v2862, %v2861
      %v2965 = vpack.c.b16 %v2864, %v2863
      %v2966 = vpack.c.b16 %v2866, %v2865
      %v2967 = vpack.c.b16 %v2868, %v2867
      %v2968 = vpack.c.b16 %v2870, %v2869
      %v2969 = vpack.c.b16 %v2872, %v2871
      %v2970 = vpack.c.b16 %v2874, %v2873
      %v2971 = vpack.c.b16 %v2876, %v2875
      %v2972 = vpack.c.b16 %v2878, %v2877
      %v2973 = vpack.c.b16 %v2880, %v2879
      %v2974 = vpack.c.b16 %v2882, %v2881
      %v2975 = vpack.c.b16 %v2884, %v2883
      %v2976 = vpack.c.b16 %v2886, %v2885
      %v2977 = vpack.c.b16 %v2888, %v2887
      %v2978 = vpack.c.b16 %v2890, %v2889
      %v2979 = vpack.c.b16 %v2892, %v2891
      %v2980 = vpack.c.b16 %v2894, %v2893
      %v2981 = vpack.c.b16 %v2896, %v2895
      %v2982 = vpack.c.b16 %v2898, %v2897
      %v2983 = vpack.c.b16 %v2900, %v2899
      %v2984 = vpack.c.b16 %v2902, %v2901
      %v2985 = vpack.c.b16 %v2904, %v2903
      %v2986 = vpack.c.b16 %v2906, %v2905
      %v2987 = vpack.c.b16 %v2908, %v2907
      %v2988 = vpack.c.b16 %v2910, %v2909
      %v2989 = vpack.c.b16 %v2912, %v2911
      %v2990 = vpack.c.b16 %v2914, %v2913
      %v2991 = vpack.c.b16 %v2916, %v2915
      %v2992 = vpack.c.b16 %v2918, %v2917
      %v2993 = vpack.c.b16 %v2920, %v2919
      %v2994 = vpack.c.b16 %v2922, %v2921
      %3067 = vmatpush.bf16.msra.mxu0 %v2930
      %3068 = vmatpush.bf16.msra.mxu0 %v2929
      %3069 = vmatpush.bf16.msra.mxu0 %v2928
      %3070 = vmatpush.bf16.msra.mxu0 %v2927
      %3071 = vmatpush.bf16.msra.mxu0 %v2926
      %3072 = vmatpush.bf16.msra.mxu0 %v2925
      %3073 = vmatpush.bf16.msra.mxu0 %v2924
      %3074 = vmatpush.bf16.msra.mxu0 %v2923
      %3075 = vmatmul.bf16.gmra.mxu0 %v1687
      %v3076 = vpop.f32.mrf.mxu0
      %v3077 = vadd.f32 %v2633, %v3076
      %v3078 = vpop.f32.mrf.mxu0
      %v3079 = vadd.f32 %v2633, %v3078
      %3080 = vmatmul.bf16.gmra.mxu0 %v1688
      %v3081 = vpop.f32.mrf.mxu0
      %v3082 = vadd.f32 %v2633, %v3081
      %v3083 = vpop.f32.mrf.mxu0
      %v3084 = vadd.f32 %v2633, %v3083
      %3085 = vmatmul.bf16.gmra.mxu0 %v1689
      %v3086 = vpop.f32.mrf.mxu0
      %v3087 = vadd.f32 %v2633, %v3086
      %v3088 = vpop.f32.mrf.mxu0
      %v3089 = vadd.f32 %v2633, %v3088
      %3090 = vmatmul.bf16.gmra.mxu0 %v1690
      %v3091 = vpop.f32.mrf.mxu0
      %v3092 = vadd.f32 %v2633, %v3091
      %v3093 = vpop.f32.mrf.mxu0
      %v3094 = vadd.f32 %v2633, %v3093
      %3095 = vmatmul.bf16.gmra.mxu0 %v1691
      %v3096 = vpop.f32.mrf.mxu0
      %v3097 = vadd.f32 %v2633, %v3096
      %v3098 = vpop.f32.mrf.mxu0
      %v3099 = vadd.f32 %v2633, %v3098
      %3100 = vmatmul.bf16.gmra.mxu0 %v1692
      %v3101 = vpop.f32.mrf.mxu0
      %v3102 = vadd.f32 %v2633, %v3101
      %v3103 = vpop.f32.mrf.mxu0
      %v3104 = vadd.f32 %v2633, %v3103
      %3105 = vmatmul.bf16.gmra.mxu0 %v1693
      %v3106 = vpop.f32.mrf.mxu0
      %v3107 = vadd.f32 %v2633, %v3106
      %v3108 = vpop.f32.mrf.mxu0
      %v3109 = vadd.f32 %v2633, %v3108
      %3110 = vmatmul.bf16.gmra.mxu0 %v1694
      %v3111 = vpop.f32.mrf.mxu0
      %v3112 = vadd.f32 %v2633, %v3111
      %v3113 = vpop.f32.mrf.mxu0
      %v3114 = vadd.f32 %v2633, %v3113
      %3115 = vmatmul.bf16.gmra.mxu0 %v1695
      %v3116 = vpop.f32.mrf.mxu0
      %v3117 = vadd.f32 %v2633, %v3116
      %v3118 = vpop.f32.mrf.mxu0
      %v3119 = vadd.f32 %v2633, %v3118
      %3120 = vmatmul.bf16.gmra.mxu0 %v1696
      %v3121 = vpop.f32.mrf.mxu0
      %v3122 = vadd.f32 %v2633, %v3121
      %v3123 = vpop.f32.mrf.mxu0
      %v3124 = vadd.f32 %v2633, %v3123
      %3125 = vmatmul.bf16.gmra.mxu0 %v1697
      %v3126 = vpop.f32.mrf.mxu0
      %v3127 = vadd.f32 %v2633, %v3126
      %v3128 = vpop.f32.mrf.mxu0
      %v3129 = vadd.f32 %v2633, %v3128
      %3130 = vmatmul.bf16.gmra.mxu0 %v1698
      %v3131 = vpop.f32.mrf.mxu0
      %v3132 = vadd.f32 %v2633, %v3131
      %v3133 = vpop.f32.mrf.mxu0
      %v3134 = vadd.f32 %v2633, %v3133
      %3135 = vmatmul.bf16.gmra.mxu0 %v1699
      %v3136 = vpop.f32.mrf.mxu0
      %v3137 = vadd.f32 %v2633, %v3136
      %v3138 = vpop.f32.mrf.mxu0
      %v3139 = vadd.f32 %v2633, %v3138
      %3140 = vmatmul.bf16.gmra.mxu0 %v1700
      %v3141 = vpop.f32.mrf.mxu0
      %v3142 = vadd.f32 %v2633, %v3141
      %v3143 = vpop.f32.mrf.mxu0
      %v3144 = vadd.f32 %v2633, %v3143
      %3145 = vmatmul.bf16.gmra.mxu0 %v1701
      %v3146 = vpop.f32.mrf.mxu0
      %v3147 = vadd.f32 %v2633, %v3146
      %v3148 = vpop.f32.mrf.mxu0
      %v3149 = vadd.f32 %v2633, %v3148
      %3150 = vmatmul.bf16.gmra.mxu0 %v1702
      %v3151 = vpop.f32.mrf.mxu0
      %v3152 = vadd.f32 %v2633, %v3151
      %v3153 = vpop.f32.mrf.mxu0
      %v3154 = vadd.f32 %v2633, %v3153
      %3155 = vdwg.mxu0
      %3156 = vmatpush.bf16.msra.mxu0 %v2938
      %3157 = vmatpush.bf16.msra.mxu0 %v2937
      %3158 = vmatpush.bf16.msra.mxu0 %v2936
      %3159 = vmatpush.bf16.msra.mxu0 %v2935
      %3160 = vmatpush.bf16.msra.mxu0 %v2934
      %3161 = vmatpush.bf16.msra.mxu0 %v2933
      %3162 = vmatpush.bf16.msra.mxu0 %v2932
      %3163 = vmatpush.bf16.msra.mxu0 %v2931
      %3164 = vmatmul.bf16.gmra.mxu0 %v1783
      %v3165 = vpop.f32.mrf.mxu0
      %v3166 = vadd.f32 %v3077, %v3165
      %v3167 = vpop.f32.mrf.mxu0
      %v3168 = vadd.f32 %v3079, %v3167
      %3169 = vmatmul.bf16.gmra.mxu0 %v1784
      %v3170 = vpop.f32.mrf.mxu0
      %v3171 = vadd.f32 %v3082, %v3170
      %v3172 = vpop.f32.mrf.mxu0
      %v3173 = vadd.f32 %v3084, %v3172
      %3174 = vmatmul.bf16.gmra.mxu0 %v1785
      %v3175 = vpop.f32.mrf.mxu0
      %v3176 = vadd.f32 %v3087, %v3175
      %v3177 = vpop.f32.mrf.mxu0
      %v3178 = vadd.f32 %v3089, %v3177
      %3179 = vmatmul.bf16.gmra.mxu0 %v1786
      %v3180 = vpop.f32.mrf.mxu0
      %v3181 = vadd.f32 %v3092, %v3180
      %v3182 = vpop.f32.mrf.mxu0
      %v3183 = vadd.f32 %v3094, %v3182
      %3184 = vmatmul.bf16.gmra.mxu0 %v1787
      %v3185 = vpop.f32.mrf.mxu0
      %v3186 = vadd.f32 %v3097, %v3185
      %v3187 = vpop.f32.mrf.mxu0
      %v3188 = vadd.f32 %v3099, %v3187
      %3189 = vmatmul.bf16.gmra.mxu0 %v1788
      %v3190 = vpop.f32.mrf.mxu0
      %v3191 = vadd.f32 %v3102, %v3190
      %v3192 = vpop.f32.mrf.mxu0
      %v3193 = vadd.f32 %v3104, %v3192
      %3194 = vmatmul.bf16.gmra.mxu0 %v1789
      %v3195 = vpop.f32.mrf.mxu0
      %v3196 = vadd.f32 %v3107, %v3195
      %v3197 = vpop.f32.mrf.mxu0
      %v3198 = vadd.f32 %v3109, %v3197
      %3199 = vmatmul.bf16.gmra.mxu0 %v1790
      %v3200 = vpop.f32.mrf.mxu0
      %v3201 = vadd.f32 %v3112, %v3200
      %v3202 = vpop.f32.mrf.mxu0
      %v3203 = vadd.f32 %v3114, %v3202
      %3204 = vmatmul.bf16.gmra.mxu0 %v1791
      %v3205 = vpop.f32.mrf.mxu0
      %v3206 = vadd.f32 %v3117, %v3205
      %v3207 = vpop.f32.mrf.mxu0
      %v3208 = vadd.f32 %v3119, %v3207
      %3209 = vmatmul.bf16.gmra.mxu0 %v1792
      %v3210 = vpop.f32.mrf.mxu0
      %v3211 = vadd.f32 %v3122, %v3210
      %v3212 = vpop.f32.mrf.mxu0
      %v3213 = vadd.f32 %v3124, %v3212
      %3214 = vmatmul.bf16.gmra.mxu0 %v1793
      %v3215 = vpop.f32.mrf.mxu0
      %v3216 = vadd.f32 %v3127, %v3215
      %v3217 = vpop.f32.mrf.mxu0
      %v3218 = vadd.f32 %v3129, %v3217
      %3219 = vmatmul.bf16.gmra.mxu0 %v1794
      %v3220 = vpop.f32.mrf.mxu0
      %v3221 = vadd.f32 %v3132, %v3220
      %v3222 = vpop.f32.mrf.mxu0
      %v3223 = vadd.f32 %v3134, %v3222
      %3224 = vmatmul.bf16.gmra.mxu0 %v1795
      %v3225 = vpop.f32.mrf.mxu0
      %v3226 = vadd.f32 %v3137, %v3225
      %v3227 = vpop.f32.mrf.mxu0
      %v3228 = vadd.f32 %v3139, %v3227
      %3229 = vmatmul.bf16.gmra.mxu0 %v1796
      %v3230 = vpop.f32.mrf.mxu0
      %v3231 = vadd.f32 %v3142, %v3230
      %v3232 = vpop.f32.mrf.mxu0
      %v3233 = vadd.f32 %v3144, %v3232
      %3234 = vmatmul.bf16.gmra.mxu0 %v1797
      %v3235 = vpop.f32.mrf.mxu0
      %v3236 = vadd.f32 %v3147, %v3235
      %v3237 = vpop.f32.mrf.mxu0
      %v3238 = vadd.f32 %v3149, %v3237
      %3239 = vmatmul.bf16.gmra.mxu0 %v1798
      %v3240 = vpop.f32.mrf.mxu0
      %v3241 = vadd.f32 %v3152, %v3240
      %v3242 = vpop.f32.mrf.mxu0
      %v3243 = vadd.f32 %v3154, %v3242
      %3244 = vdwg.mxu0
      %3245 = vmatpush.bf16.msra.mxu0 %v2946
      %3246 = vmatpush.bf16.msra.mxu0 %v2945
      %3247 = vmatpush.bf16.msra.mxu0 %v2944
      %3248 = vmatpush.bf16.msra.mxu0 %v2943
      %3249 = vmatpush.bf16.msra.mxu0 %v2942
      %3250 = vmatpush.bf16.msra.mxu0 %v2941
      %3251 = vmatpush.bf16.msra.mxu0 %v2940
      %3252 = vmatpush.bf16.msra.mxu0 %v2939
      %3253 = vmatmul.bf16.gmra.mxu0 %v1879
      %v3254 = vpop.f32.mrf.mxu0
      %v3255 = vadd.f32 %v3166, %v3254
      %v3256 = vpop.f32.mrf.mxu0
      %v3257 = vadd.f32 %v3168, %v3256
      %3258 = vmatmul.bf16.gmra.mxu0 %v1880
      %v3259 = vpop.f32.mrf.mxu0
      %v3260 = vadd.f32 %v3171, %v3259
      %v3261 = vpop.f32.mrf.mxu0
      %v3262 = vadd.f32 %v3173, %v3261
      %3263 = vmatmul.bf16.gmra.mxu0 %v1881
      %v3264 = vpop.f32.mrf.mxu0
      %v3265 = vadd.f32 %v3176, %v3264
      %v3266 = vpop.f32.mrf.mxu0
      %v3267 = vadd.f32 %v3178, %v3266
      %3268 = vmatmul.bf16.gmra.mxu0 %v1882
      %v3269 = vpop.f32.mrf.mxu0
      %v3270 = vadd.f32 %v3181, %v3269
      %v3271 = vpop.f32.mrf.mxu0
      %v3272 = vadd.f32 %v3183, %v3271
      %3273 = vmatmul.bf16.gmra.mxu0 %v1883
      %v3274 = vpop.f32.mrf.mxu0
      %v3275 = vadd.f32 %v3186, %v3274
      %v3276 = vpop.f32.mrf.mxu0
      %v3277 = vadd.f32 %v3188, %v3276
      %3278 = vmatmul.bf16.gmra.mxu0 %v1884
      %v3279 = vpop.f32.mrf.mxu0
      %v3280 = vadd.f32 %v3191, %v3279
      %v3281 = vpop.f32.mrf.mxu0
      %v3282 = vadd.f32 %v3193, %v3281
      %3283 = vmatmul.bf16.gmra.mxu0 %v1885
      %v3284 = vpop.f32.mrf.mxu0
      %v3285 = vadd.f32 %v3196, %v3284
      %v3286 = vpop.f32.mrf.mxu0
      %v3287 = vadd.f32 %v3198, %v3286
      %3288 = vmatmul.bf16.gmra.mxu0 %v1886
      %v3289 = vpop.f32.mrf.mxu0
      %v3290 = vadd.f32 %v3201, %v3289
      %v3291 = vpop.f32.mrf.mxu0
      %v3292 = vadd.f32 %v3203, %v3291
      %3293 = vmatmul.bf16.gmra.mxu0 %v1887
      %v3294 = vpop.f32.mrf.mxu0
      %v3295 = vadd.f32 %v3206, %v3294
      %v3296 = vpop.f32.mrf.mxu0
      %v3297 = vadd.f32 %v3208, %v3296
      %3298 = vmatmul.bf16.gmra.mxu0 %v1888
      %v3299 = vpop.f32.mrf.mxu0
      %v3300 = vadd.f32 %v3211, %v3299
      %v3301 = vpop.f32.mrf.mxu0
      %v3302 = vadd.f32 %v3213, %v3301
      %3303 = vmatmul.bf16.gmra.mxu0 %v1889
      %v3304 = vpop.f32.mrf.mxu0
      %v3305 = vadd.f32 %v3216, %v3304
      %v3306 = vpop.f32.mrf.mxu0
      %v3307 = vadd.f32 %v3218, %v3306
      %3308 = vmatmul.bf16.gmra.mxu0 %v1890
      %v3309 = vpop.f32.mrf.mxu0
      %v3310 = vadd.f32 %v3221, %v3309
      %v3311 = vpop.f32.mrf.mxu0
      %v3312 = vadd.f32 %v3223, %v3311
      %3313 = vmatmul.bf16.gmra.mxu0 %v1891
      %v3314 = vpop.f32.mrf.mxu0
      %v3315 = vadd.f32 %v3226, %v3314
      %v3316 = vpop.f32.mrf.mxu0
      %v3317 = vadd.f32 %v3228, %v3316
      %3318 = vmatmul.bf16.gmra.mxu0 %v1892
      %v3319 = vpop.f32.mrf.mxu0
      %v3320 = vadd.f32 %v3231, %v3319
      %v3321 = vpop.f32.mrf.mxu0
      %v3322 = vadd.f32 %v3233, %v3321
      %3323 = vmatmul.bf16.gmra.mxu0 %v1893
      %v3324 = vpop.f32.mrf.mxu0
      %v3325 = vadd.f32 %v3236, %v3324
      %v3326 = vpop.f32.mrf.mxu0
      %v3327 = vadd.f32 %v3238, %v3326
      %3328 = vmatmul.bf16.gmra.mxu0 %v1894
      %v3329 = vpop.f32.mrf.mxu0
      %v3330 = vadd.f32 %v3241, %v3329
      %v3331 = vpop.f32.mrf.mxu0
      %v3332 = vadd.f32 %v3243, %v3331
      %3333 = vdwg.mxu0
      %3334 = vmatpush.bf16.msra.mxu0 %v2954
      %3335 = vmatpush.bf16.msra.mxu0 %v2953
      %3336 = vmatpush.bf16.msra.mxu0 %v2952
      %3337 = vmatpush.bf16.msra.mxu0 %v2951
      %3338 = vmatpush.bf16.msra.mxu0 %v2950
      %3339 = vmatpush.bf16.msra.mxu0 %v2949
      %3340 = vmatpush.bf16.msra.mxu0 %v2948
      %3341 = vmatpush.bf16.msra.mxu0 %v2947
      %3342 = vmatmul.bf16.gmra.mxu0 %v1975
      %v3343 = vpop.f32.mrf.mxu0
      %v3344 = vadd.f32 %v3255, %v3343
      %v3345 = vpop.f32.mrf.mxu0
      %v3346 = vadd.f32 %v3257, %v3345
      %3347 = vmatmul.bf16.gmra.mxu0 %v1976
      %v3348 = vpop.f32.mrf.mxu0
      %v3349 = vadd.f32 %v3260, %v3348
      %v3350 = vpop.f32.mrf.mxu0
      %v3351 = vadd.f32 %v3262, %v3350
      %3352 = vmatmul.bf16.gmra.mxu0 %v1977
      %v3353 = vpop.f32.mrf.mxu0
      %v3354 = vadd.f32 %v3265, %v3353
      %v3355 = vpop.f32.mrf.mxu0
      %v3356 = vadd.f32 %v3267, %v3355
      %3357 = vmatmul.bf16.gmra.mxu0 %v1978
      %v3358 = vpop.f32.mrf.mxu0
      %v3359 = vadd.f32 %v3270, %v3358
      %v3360 = vpop.f32.mrf.mxu0
      %v3361 = vadd.f32 %v3272, %v3360
      %3362 = vmatmul.bf16.gmra.mxu0 %v1979
      %v3363 = vpop.f32.mrf.mxu0
      %v3364 = vadd.f32 %v3275, %v3363
      %v3365 = vpop.f32.mrf.mxu0
      %v3366 = vadd.f32 %v3277, %v3365
      %3367 = vmatmul.bf16.gmra.mxu0 %v1980
      %v3368 = vpop.f32.mrf.mxu0
      %v3369 = vadd.f32 %v3280, %v3368
      %v3370 = vpop.f32.mrf.mxu0
      %v3371 = vadd.f32 %v3282, %v3370
      %3372 = vmatmul.bf16.gmra.mxu0 %v1981
      %v3373 = vpop.f32.mrf.mxu0
      %v3374 = vadd.f32 %v3285, %v3373
      %v3375 = vpop.f32.mrf.mxu0
      %v3376 = vadd.f32 %v3287, %v3375
      %3377 = vmatmul.bf16.gmra.mxu0 %v1982
      %v3378 = vpop.f32.mrf.mxu0
      %v3379 = vadd.f32 %v3290, %v3378
      %v3380 = vpop.f32.mrf.mxu0
      %v3381 = vadd.f32 %v3292, %v3380
      %3382 = vmatmul.bf16.gmra.mxu0 %v1983
      %v3383 = vpop.f32.mrf.mxu0
      %v3384 = vadd.f32 %v3295, %v3383
      %v3385 = vpop.f32.mrf.mxu0
      %v3386 = vadd.f32 %v3297, %v3385
      %3387 = vmatmul.bf16.gmra.mxu0 %v1984
      %v3388 = vpop.f32.mrf.mxu0
      %v3389 = vadd.f32 %v3300, %v3388
      %v3390 = vpop.f32.mrf.mxu0
      %v3391 = vadd.f32 %v3302, %v3390
      %3392 = vmatmul.bf16.gmra.mxu0 %v1985
      %v3393 = vpop.f32.mrf.mxu0
      %v3394 = vadd.f32 %v3305, %v3393
      %v3395 = vpop.f32.mrf.mxu0
      %v3396 = vadd.f32 %v3307, %v3395
      %3397 = vmatmul.bf16.gmra.mxu0 %v1986
      %v3398 = vpop.f32.mrf.mxu0
      %v3399 = vadd.f32 %v3310, %v3398
      %v3400 = vpop.f32.mrf.mxu0
      %v3401 = vadd.f32 %v3312, %v3400
      %3402 = vmatmul.bf16.gmra.mxu0 %v1987
      %v3403 = vpop.f32.mrf.mxu0
      %v3404 = vadd.f32 %v3315, %v3403
      %v3405 = vpop.f32.mrf.mxu0
      %v3406 = vadd.f32 %v3317, %v3405
      %3407 = vmatmul.bf16.gmra.mxu0 %v1988
      %v3408 = vpop.f32.mrf.mxu0
      %v3409 = vadd.f32 %v3320, %v3408
      %v3410 = vpop.f32.mrf.mxu0
      %v3411 = vadd.f32 %v3322, %v3410
      %3412 = vmatmul.bf16.gmra.mxu0 %v1989
      %v3413 = vpop.f32.mrf.mxu0
      %v3414 = vadd.f32 %v3325, %v3413
      %v3415 = vpop.f32.mrf.mxu0
      %v3416 = vadd.f32 %v3327, %v3415
      %3417 = vmatmul.bf16.gmra.mxu0 %v1990
      %v3418 = vpop.f32.mrf.mxu0
      %v3419 = vadd.f32 %v3330, %v3418
      %v3420 = vpop.f32.mrf.mxu0
      %v3421 = vadd.f32 %v3332, %v3420
      %3422 = vdwg.mxu0
      %3423 = vmatpush.bf16.msra.mxu0 %v2962
      %3424 = vmatpush.bf16.msra.mxu0 %v2961
      %3425 = vmatpush.bf16.msra.mxu0 %v2960
      %3426 = vmatpush.bf16.msra.mxu0 %v2959
      %3427 = vmatpush.bf16.msra.mxu0 %v2958
      %3428 = vmatpush.bf16.msra.mxu0 %v2957
      %3429 = vmatpush.bf16.msra.mxu0 %v2956
      %3430 = vmatpush.bf16.msra.mxu0 %v2955
      %3431 = vmatmul.bf16.gmra.mxu0 %v2071
      %v3432 = vpop.f32.mrf.mxu0
      %v3433 = vadd.f32 %v3344, %v3432
      %v3434 = vpop.f32.mrf.mxu0
      %v3435 = vadd.f32 %v3346, %v3434
      %3436 = vmatmul.bf16.gmra.mxu0 %v2072
      %v3437 = vpop.f32.mrf.mxu0
      %v3438 = vadd.f32 %v3349, %v3437
      %v3439 = vpop.f32.mrf.mxu0
      %v3440 = vadd.f32 %v3351, %v3439
      %3441 = vmatmul.bf16.gmra.mxu0 %v2073
      %v3442 = vpop.f32.mrf.mxu0
      %v3443 = vadd.f32 %v3354, %v3442
      %v3444 = vpop.f32.mrf.mxu0
      %v3445 = vadd.f32 %v3356, %v3444
      %3446 = vmatmul.bf16.gmra.mxu0 %v2074
      %v3447 = vpop.f32.mrf.mxu0
      %v3448 = vadd.f32 %v3359, %v3447
      %v3449 = vpop.f32.mrf.mxu0
      %v3450 = vadd.f32 %v3361, %v3449
      %3451 = vmatmul.bf16.gmra.mxu0 %v2075
      %v3452 = vpop.f32.mrf.mxu0
      %v3453 = vadd.f32 %v3364, %v3452
      %v3454 = vpop.f32.mrf.mxu0
      %v3455 = vadd.f32 %v3366, %v3454
      %3456 = vmatmul.bf16.gmra.mxu0 %v2076
      %v3457 = vpop.f32.mrf.mxu0
      %v3458 = vadd.f32 %v3369, %v3457
      %v3459 = vpop.f32.mrf.mxu0
      %v3460 = vadd.f32 %v3371, %v3459
      %3461 = vmatmul.bf16.gmra.mxu0 %v2077
      %v3462 = vpop.f32.mrf.mxu0
      %v3463 = vadd.f32 %v3374, %v3462
      %v3464 = vpop.f32.mrf.mxu0
      %v3465 = vadd.f32 %v3376, %v3464
      %3466 = vmatmul.bf16.gmra.mxu0 %v2078
      %v3467 = vpop.f32.mrf.mxu0
      %v3468 = vadd.f32 %v3379, %v3467
      %v3469 = vpop.f32.mrf.mxu0
      %v3470 = vadd.f32 %v3381, %v3469
      %3471 = vmatmul.bf16.gmra.mxu0 %v2079
      %v3472 = vpop.f32.mrf.mxu0
      %v3473 = vadd.f32 %v3384, %v3472
      %v3474 = vpop.f32.mrf.mxu0
      %v3475 = vadd.f32 %v3386, %v3474
      %3476 = vmatmul.bf16.gmra.mxu0 %v2080
      %v3477 = vpop.f32.mrf.mxu0
      %v3478 = vadd.f32 %v3389, %v3477
      %v3479 = vpop.f32.mrf.mxu0
      %v3480 = vadd.f32 %v3391, %v3479
      %3481 = vmatmul.bf16.gmra.mxu0 %v2081
      %v3482 = vpop.f32.mrf.mxu0
      %v3483 = vadd.f32 %v3394, %v3482
      %v3484 = vpop.f32.mrf.mxu0
      %v3485 = vadd.f32 %v3396, %v3484
      %3486 = vmatmul.bf16.gmra.mxu0 %v2082
      %v3487 = vpop.f32.mrf.mxu0
      %v3488 = vadd.f32 %v3399, %v3487
      %v3489 = vpop.f32.mrf.mxu0
      %v3490 = vadd.f32 %v3401, %v3489
      %3491 = vmatmul.bf16.gmra.mxu0 %v2083
      %v3492 = vpop.f32.mrf.mxu0
      %v3493 = vadd.f32 %v3404, %v3492
      %v3494 = vpop.f32.mrf.mxu0
      %v3495 = vadd.f32 %v3406, %v3494
      %3496 = vmatmul.bf16.gmra.mxu0 %v2084
      %v3497 = vpop.f32.mrf.mxu0
      %v3498 = vadd.f32 %v3409, %v3497
      %v3499 = vpop.f32.mrf.mxu0
      %v3500 = vadd.f32 %v3411, %v3499
      %3501 = vmatmul.bf16.gmra.mxu0 %v2085
      %v3502 = vpop.f32.mrf.mxu0
      %v3503 = vadd.f32 %v3414, %v3502
      %v3504 = vpop.f32.mrf.mxu0
      %v3505 = vadd.f32 %v3416, %v3504
      %3506 = vmatmul.bf16.gmra.mxu0 %v2086
      %v3507 = vpop.f32.mrf.mxu0
      %v3508 = vadd.f32 %v3419, %v3507
      %v3509 = vpop.f32.mrf.mxu0
      %v3510 = vadd.f32 %v3421, %v3509
      %3511 = vdwg.mxu0
      %3512 = vmatpush.bf16.msra.mxu0 %v2970
      %3513 = vmatpush.bf16.msra.mxu0 %v2969
      %3514 = vmatpush.bf16.msra.mxu0 %v2968
      %3515 = vmatpush.bf16.msra.mxu0 %v2967
      %3516 = vmatpush.bf16.msra.mxu0 %v2966
      %3517 = vmatpush.bf16.msra.mxu0 %v2965
      %3518 = vmatpush.bf16.msra.mxu0 %v2964
      %3519 = vmatpush.bf16.msra.mxu0 %v2963
      %3520 = vmatmul.bf16.gmra.mxu0 %v2167
      %v3521 = vpop.f32.mrf.mxu0
      %v3522 = vadd.f32 %v3433, %v3521
      %v3523 = vpop.f32.mrf.mxu0
      %v3524 = vadd.f32 %v3435, %v3523
      %3525 = vmatmul.bf16.gmra.mxu0 %v2168
      %v3526 = vpop.f32.mrf.mxu0
      %v3527 = vadd.f32 %v3438, %v3526
      %v3528 = vpop.f32.mrf.mxu0
      %v3529 = vadd.f32 %v3440, %v3528
      %3530 = vmatmul.bf16.gmra.mxu0 %v2169
      %v3531 = vpop.f32.mrf.mxu0
      %v3532 = vadd.f32 %v3443, %v3531
      %v3533 = vpop.f32.mrf.mxu0
      %v3534 = vadd.f32 %v3445, %v3533
      %3535 = vmatmul.bf16.gmra.mxu0 %v2170
      %v3536 = vpop.f32.mrf.mxu0
      %v3537 = vadd.f32 %v3448, %v3536
      %v3538 = vpop.f32.mrf.mxu0
      %v3539 = vadd.f32 %v3450, %v3538
      %3540 = vmatmul.bf16.gmra.mxu0 %v2171
      %v3541 = vpop.f32.mrf.mxu0
      %v3542 = vadd.f32 %v3453, %v3541
      %v3543 = vpop.f32.mrf.mxu0
      %v3544 = vadd.f32 %v3455, %v3543
      %3545 = vmatmul.bf16.gmra.mxu0 %v2172
      %v3546 = vpop.f32.mrf.mxu0
      %v3547 = vadd.f32 %v3458, %v3546
      %v3548 = vpop.f32.mrf.mxu0
      %v3549 = vadd.f32 %v3460, %v3548
      %3550 = vmatmul.bf16.gmra.mxu0 %v2173
      %v3551 = vpop.f32.mrf.mxu0
      %v3552 = vadd.f32 %v3463, %v3551
      %v3553 = vpop.f32.mrf.mxu0
      %v3554 = vadd.f32 %v3465, %v3553
      %3555 = vmatmul.bf16.gmra.mxu0 %v2174
      %v3556 = vpop.f32.mrf.mxu0
      %v3557 = vadd.f32 %v3468, %v3556
      %v3558 = vpop.f32.mrf.mxu0
      %v3559 = vadd.f32 %v3470, %v3558
      %3560 = vmatmul.bf16.gmra.mxu0 %v2175
      %v3561 = vpop.f32.mrf.mxu0
      %v3562 = vadd.f32 %v3473, %v3561
      %v3563 = vpop.f32.mrf.mxu0
      %v3564 = vadd.f32 %v3475, %v3563
      %3565 = vmatmul.bf16.gmra.mxu0 %v2176
      %v3566 = vpop.f32.mrf.mxu0
      %v3567 = vadd.f32 %v3478, %v3566
      %v3568 = vpop.f32.mrf.mxu0
      %v3569 = vadd.f32 %v3480, %v3568
      %3570 = vmatmul.bf16.gmra.mxu0 %v2177
      %v3571 = vpop.f32.mrf.mxu0
      %v3572 = vadd.f32 %v3483, %v3571
      %v3573 = vpop.f32.mrf.mxu0
      %v3574 = vadd.f32 %v3485, %v3573
      %3575 = vmatmul.bf16.gmra.mxu0 %v2178
      %v3576 = vpop.f32.mrf.mxu0
      %v3577 = vadd.f32 %v3488, %v3576
      %v3578 = vpop.f32.mrf.mxu0
      %v3579 = vadd.f32 %v3490, %v3578
      %3580 = vmatmul.bf16.gmra.mxu0 %v2179
      %v3581 = vpop.f32.mrf.mxu0
      %v3582 = vadd.f32 %v3493, %v3581
      %v3583 = vpop.f32.mrf.mxu0
      %v3584 = vadd.f32 %v3495, %v3583
      %3585 = vmatmul.bf16.gmra.mxu0 %v2180
      %v3586 = vpop.f32.mrf.mxu0
      %v3587 = vadd.f32 %v3498, %v3586
      %v3588 = vpop.f32.mrf.mxu0
      %v3589 = vadd.f32 %v3500, %v3588
      %3590 = vmatmul.bf16.gmra.mxu0 %v2181
      %v3591 = vpop.f32.mrf.mxu0
      %v3592 = vadd.f32 %v3503, %v3591
      %v3593 = vpop.f32.mrf.mxu0
      %v3594 = vadd.f32 %v3505, %v3593
      %3595 = vmatmul.bf16.gmra.mxu0 %v2182
      %v3596 = vpop.f32.mrf.mxu0
      %v3597 = vadd.f32 %v3508, %v3596
      %v3598 = vpop.f32.mrf.mxu0
      %v3599 = vadd.f32 %v3510, %v3598
      %3600 = vdwg.mxu0
      %3601 = vmatpush.bf16.msra.mxu0 %v2978
      %3602 = vmatpush.bf16.msra.mxu0 %v2977
      %3603 = vmatpush.bf16.msra.mxu0 %v2976
      %3604 = vmatpush.bf16.msra.mxu0 %v2975
      %3605 = vmatpush.bf16.msra.mxu0 %v2974
      %3606 = vmatpush.bf16.msra.mxu0 %v2973
      %3607 = vmatpush.bf16.msra.mxu0 %v2972
      %3608 = vmatpush.bf16.msra.mxu0 %v2971
      %3609 = vmatmul.bf16.gmra.mxu0 %v2263
      %v3610 = vpop.f32.mrf.mxu0
      %v3611 = vadd.f32 %v3522, %v3610
      %v3612 = vpop.f32.mrf.mxu0
      %v3613 = vadd.f32 %v3524, %v3612
      %3614 = vmatmul.bf16.gmra.mxu0 %v2264
      %v3615 = vpop.f32.mrf.mxu0
      %v3616 = vadd.f32 %v3527, %v3615
      %v3617 = vpop.f32.mrf.mxu0
      %v3618 = vadd.f32 %v3529, %v3617
      %3619 = vmatmul.bf16.gmra.mxu0 %v2265
      %v3620 = vpop.f32.mrf.mxu0
      %v3621 = vadd.f32 %v3532, %v3620
      %v3622 = vpop.f32.mrf.mxu0
      %v3623 = vadd.f32 %v3534, %v3622
      %3624 = vmatmul.bf16.gmra.mxu0 %v2266
      %v3625 = vpop.f32.mrf.mxu0
      %v3626 = vadd.f32 %v3537, %v3625
      %v3627 = vpop.f32.mrf.mxu0
      %v3628 = vadd.f32 %v3539, %v3627
      %3629 = vmatmul.bf16.gmra.mxu0 %v2267
      %v3630 = vpop.f32.mrf.mxu0
      %v3631 = vadd.f32 %v3542, %v3630
      %v3632 = vpop.f32.mrf.mxu0
      %v3633 = vadd.f32 %v3544, %v3632
      %3634 = vmatmul.bf16.gmra.mxu0 %v2268
      %v3635 = vpop.f32.mrf.mxu0
      %v3636 = vadd.f32 %v3547, %v3635
      %v3637 = vpop.f32.mrf.mxu0
      %v3638 = vadd.f32 %v3549, %v3637
      %3639 = vmatmul.bf16.gmra.mxu0 %v2269
      %v3640 = vpop.f32.mrf.mxu0
      %v3641 = vadd.f32 %v3552, %v3640
      %v3642 = vpop.f32.mrf.mxu0
      %v3643 = vadd.f32 %v3554, %v3642
      %3644 = vmatmul.bf16.gmra.mxu0 %v2270
      %v3645 = vpop.f32.mrf.mxu0
      %v3646 = vadd.f32 %v3557, %v3645
      %v3647 = vpop.f32.mrf.mxu0
      %v3648 = vadd.f32 %v3559, %v3647
      %3649 = vmatmul.bf16.gmra.mxu0 %v2271
      %v3650 = vpop.f32.mrf.mxu0
      %v3651 = vadd.f32 %v3562, %v3650
      %v3652 = vpop.f32.mrf.mxu0
      %v3653 = vadd.f32 %v3564, %v3652
      %3654 = vmatmul.bf16.gmra.mxu0 %v2272
      %v3655 = vpop.f32.mrf.mxu0
      %v3656 = vadd.f32 %v3567, %v3655
      %v3657 = vpop.f32.mrf.mxu0
      %v3658 = vadd.f32 %v3569, %v3657
      %3659 = vmatmul.bf16.gmra.mxu0 %v2273
      %v3660 = vpop.f32.mrf.mxu0
      %v3661 = vadd.f32 %v3572, %v3660
      %v3662 = vpop.f32.mrf.mxu0
      %v3663 = vadd.f32 %v3574, %v3662
      %3664 = vmatmul.bf16.gmra.mxu0 %v2274
      %v3665 = vpop.f32.mrf.mxu0
      %v3666 = vadd.f32 %v3577, %v3665
      %v3667 = vpop.f32.mrf.mxu0
      %v3668 = vadd.f32 %v3579, %v3667
      %3669 = vmatmul.bf16.gmra.mxu0 %v2275
      %v3670 = vpop.f32.mrf.mxu0
      %v3671 = vadd.f32 %v3582, %v3670
      %v3672 = vpop.f32.mrf.mxu0
      %v3673 = vadd.f32 %v3584, %v3672
      %3674 = vmatmul.bf16.gmra.mxu0 %v2276
      %v3675 = vpop.f32.mrf.mxu0
      %v3676 = vadd.f32 %v3587, %v3675
      %v3677 = vpop.f32.mrf.mxu0
      %v3678 = vadd.f32 %v3589, %v3677
      %3679 = vmatmul.bf16.gmra.mxu0 %v2277
      %v3680 = vpop.f32.mrf.mxu0
      %v3681 = vadd.f32 %v3592, %v3680
      %v3682 = vpop.f32.mrf.mxu0
      %v3683 = vadd.f32 %v3594, %v3682
      %3684 = vmatmul.bf16.gmra.mxu0 %v2278
      %v3685 = vpop.f32.mrf.mxu0
      %v3686 = vadd.f32 %v3597, %v3685
      %v3687 = vpop.f32.mrf.mxu0
      %v3688 = vadd.f32 %v3599, %v3687
      %3689 = vdwg.mxu0
      %3690 = vmatpush.bf16.msra.mxu0 %v2986
      %3691 = vmatpush.bf16.msra.mxu0 %v2985
      %3692 = vmatpush.bf16.msra.mxu0 %v2984
      %3693 = vmatpush.bf16.msra.mxu0 %v2983
      %3694 = vmatpush.bf16.msra.mxu0 %v2982
      %3695 = vmatpush.bf16.msra.mxu0 %v2981
      %3696 = vmatpush.bf16.msra.mxu0 %v2980
      %3697 = vmatpush.bf16.msra.mxu0 %v2979
      %3698 = vmatmul.bf16.gmra.mxu0 %v2359
      %v3699 = vpop.f32.mrf.mxu0
      %v3700 = vadd.f32 %v3611, %v3699
      %v3701 = vpop.f32.mrf.mxu0
      %v3702 = vadd.f32 %v3613, %v3701
      %3703 = vmatmul.bf16.gmra.mxu0 %v2360
      %v3704 = vpop.f32.mrf.mxu0
      %v3705 = vadd.f32 %v3616, %v3704
      %v3706 = vpop.f32.mrf.mxu0
      %v3707 = vadd.f32 %v3618, %v3706
      %3708 = vmatmul.bf16.gmra.mxu0 %v2361
      %v3709 = vpop.f32.mrf.mxu0
      %v3710 = vadd.f32 %v3621, %v3709
      %v3711 = vpop.f32.mrf.mxu0
      %v3712 = vadd.f32 %v3623, %v3711
      %3713 = vmatmul.bf16.gmra.mxu0 %v2362
      %v3714 = vpop.f32.mrf.mxu0
      %v3715 = vadd.f32 %v3626, %v3714
      %v3716 = vpop.f32.mrf.mxu0
      %v3717 = vadd.f32 %v3628, %v3716
      %3718 = vmatmul.bf16.gmra.mxu0 %v2363
      %v3719 = vpop.f32.mrf.mxu0
      %v3720 = vadd.f32 %v3631, %v3719
      %v3721 = vpop.f32.mrf.mxu0
      %v3722 = vadd.f32 %v3633, %v3721
      %3723 = vmatmul.bf16.gmra.mxu0 %v2364
      %v3724 = vpop.f32.mrf.mxu0
      %v3725 = vadd.f32 %v3636, %v3724
      %v3726 = vpop.f32.mrf.mxu0
      %v3727 = vadd.f32 %v3638, %v3726
      %3728 = vmatmul.bf16.gmra.mxu0 %v2365
      %v3729 = vpop.f32.mrf.mxu0
      %v3730 = vadd.f32 %v3641, %v3729
      %v3731 = vpop.f32.mrf.mxu0
      %v3732 = vadd.f32 %v3643, %v3731
      %3733 = vmatmul.bf16.gmra.mxu0 %v2366
      %v3734 = vpop.f32.mrf.mxu0
      %v3735 = vadd.f32 %v3646, %v3734
      %v3736 = vpop.f32.mrf.mxu0
      %v3737 = vadd.f32 %v3648, %v3736
      %3738 = vmatmul.bf16.gmra.mxu0 %v2367
      %v3739 = vpop.f32.mrf.mxu0
      %v3740 = vadd.f32 %v3651, %v3739
      %v3741 = vpop.f32.mrf.mxu0
      %v3742 = vadd.f32 %v3653, %v3741
      %3743 = vmatmul.bf16.gmra.mxu0 %v2368
      %v3744 = vpop.f32.mrf.mxu0
      %v3745 = vadd.f32 %v3656, %v3744
      %v3746 = vpop.f32.mrf.mxu0
      %v3747 = vadd.f32 %v3658, %v3746
      %3748 = vmatmul.bf16.gmra.mxu0 %v2369
      %v3749 = vpop.f32.mrf.mxu0
      %v3750 = vadd.f32 %v3661, %v3749
      %v3751 = vpop.f32.mrf.mxu0
      %v3752 = vadd.f32 %v3663, %v3751
      %3753 = vmatmul.bf16.gmra.mxu0 %v2370
      %v3754 = vpop.f32.mrf.mxu0
      %v3755 = vadd.f32 %v3666, %v3754
      %v3756 = vpop.f32.mrf.mxu0
      %v3757 = vadd.f32 %v3668, %v3756
      %3758 = vmatmul.bf16.gmra.mxu0 %v2371
      %v3759 = vpop.f32.mrf.mxu0
      %v3760 = vadd.f32 %v3671, %v3759
      %v3761 = vpop.f32.mrf.mxu0
      %v3762 = vadd.f32 %v3673, %v3761
      %3763 = vmatmul.bf16.gmra.mxu0 %v2372
      %v3764 = vpop.f32.mrf.mxu0
      %v3765 = vadd.f32 %v3676, %v3764
      %v3766 = vpop.f32.mrf.mxu0
      %v3767 = vadd.f32 %v3678, %v3766
      %3768 = vmatmul.bf16.gmra.mxu0 %v2373
      %v3769 = vpop.f32.mrf.mxu0
      %v3770 = vadd.f32 %v3681, %v3769
      %v3771 = vpop.f32.mrf.mxu0
      %v3772 = vadd.f32 %v3683, %v3771
      %3773 = vmatmul.bf16.gmra.mxu0 %v2374
      %v3774 = vpop.f32.mrf.mxu0
      %v3775 = vadd.f32 %v3686, %v3774
      %v3776 = vpop.f32.mrf.mxu0
      %v3777 = vadd.f32 %v3688, %v3776
      %3778 = vdwg.mxu0
      %3779 = vmatpush.bf16.msra.mxu0 %v2994
      %3780 = vmatpush.bf16.msra.mxu0 %v2993
      %3781 = vmatpush.bf16.msra.mxu0 %v2992
      %3782 = vmatpush.bf16.msra.mxu0 %v2991
      %3783 = vmatpush.bf16.msra.mxu0 %v2990
      %3784 = vmatpush.bf16.msra.mxu0 %v2989
      %3785 = vmatpush.bf16.msra.mxu0 %v2988
      %3786 = vmatpush.bf16.msra.mxu0 %v2987
      %3787 = vmatmul.bf16.gmra.mxu0 %v2455
      %v3788 = vpop.f32.mrf.mxu0
      %v3789 = vadd.f32 %v3700, %v3788
      %v3790 = vpop.f32.mrf.mxu0
      %v3791 = vadd.f32 %v3702, %v3790
      %3792 = vmatmul.bf16.gmra.mxu0 %v2456
      %v3793 = vpop.f32.mrf.mxu0
      %v3794 = vadd.f32 %v3705, %v3793
      %v3795 = vpop.f32.mrf.mxu0
      %v3796 = vadd.f32 %v3707, %v3795
      %3797 = vmatmul.bf16.gmra.mxu0 %v2457
      %v3798 = vpop.f32.mrf.mxu0
      %v3799 = vadd.f32 %v3710, %v3798
      %v3800 = vpop.f32.mrf.mxu0
      %v3801 = vadd.f32 %v3712, %v3800
      %3802 = vmatmul.bf16.gmra.mxu0 %v2458
      %v3803 = vpop.f32.mrf.mxu0
      %v3804 = vadd.f32 %v3715, %v3803
      %v3805 = vpop.f32.mrf.mxu0
      %v3806 = vadd.f32 %v3717, %v3805
      %3807 = vmatmul.bf16.gmra.mxu0 %v2459
      %v3808 = vpop.f32.mrf.mxu0
      %v3809 = vadd.f32 %v3720, %v3808
      %v3810 = vpop.f32.mrf.mxu0
      %v3811 = vadd.f32 %v3722, %v3810
      %3812 = vmatmul.bf16.gmra.mxu0 %v2460
      %v3813 = vpop.f32.mrf.mxu0
      %v3814 = vadd.f32 %v3725, %v3813
      %v3815 = vpop.f32.mrf.mxu0
      %v3816 = vadd.f32 %v3727, %v3815
      %3817 = vmatmul.bf16.gmra.mxu0 %v2461
      %v3818 = vpop.f32.mrf.mxu0
      %v3819 = vadd.f32 %v3730, %v3818
      %v3820 = vpop.f32.mrf.mxu0
      %v3821 = vadd.f32 %v3732, %v3820
      %3822 = vmatmul.bf16.gmra.mxu0 %v2462
      %v3823 = vpop.f32.mrf.mxu0
      %v3824 = vadd.f32 %v3735, %v3823
      %v3825 = vpop.f32.mrf.mxu0
      %v3826 = vadd.f32 %v3737, %v3825
      %3827 = vmatmul.bf16.gmra.mxu0 %v2463
      %v3828 = vpop.f32.mrf.mxu0
      %v3829 = vadd.f32 %v3740, %v3828
      %v3830 = vpop.f32.mrf.mxu0
      %v3831 = vadd.f32 %v3742, %v3830
      %3832 = vmatmul.bf16.gmra.mxu0 %v2464
      %v3833 = vpop.f32.mrf.mxu0
      %v3834 = vadd.f32 %v3745, %v3833
      %v3835 = vpop.f32.mrf.mxu0
      %v3836 = vadd.f32 %v3747, %v3835
      %3837 = vmatmul.bf16.gmra.mxu0 %v2465
      %v3838 = vpop.f32.mrf.mxu0
      %v3839 = vadd.f32 %v3750, %v3838
      %v3840 = vpop.f32.mrf.mxu0
      %v3841 = vadd.f32 %v3752, %v3840
      %3842 = vmatmul.bf16.gmra.mxu0 %v2466
      %v3843 = vpop.f32.mrf.mxu0
      %v3844 = vadd.f32 %v3755, %v3843
      %v3845 = vpop.f32.mrf.mxu0
      %v3846 = vadd.f32 %v3757, %v3845
      %3847 = vmatmul.bf16.gmra.mxu0 %v2467
      %v3848 = vpop.f32.mrf.mxu0
      %v3849 = vadd.f32 %v3760, %v3848
      %v3850 = vpop.f32.mrf.mxu0
      %v3851 = vadd.f32 %v3762, %v3850
      %3852 = vmatmul.bf16.gmra.mxu0 %v2468
      %v3853 = vpop.f32.mrf.mxu0
      %v3854 = vadd.f32 %v3765, %v3853
      %v3855 = vpop.f32.mrf.mxu0
      %v3856 = vadd.f32 %v3767, %v3855
      %3857 = vmatmul.bf16.gmra.mxu0 %v2469
      %v3858 = vpop.f32.mrf.mxu0
      %v3859 = vadd.f32 %v3770, %v3858
      %v3860 = vpop.f32.mrf.mxu0
      %v3861 = vadd.f32 %v3772, %v3860
      %3862 = vmatmul.bf16.gmra.mxu0 %v2470
      %v3863 = vpop.f32.mrf.mxu0
      %v3864 = vadd.f32 %v3775, %v3863
      %v3865 = vpop.f32.mrf.mxu0
      %v3866 = vadd.f32 %v3777, %v3865
      %3867 = vdwg.mxu0
      %v3868 = vpack.c.bf16 %v3789, %v3789
      %v3869 = vpack.c.bf16 %v3791, %v3791
      %v3870 = vpack.c.bf16 %v3794, %v3794
      %v3871 = vpack.c.bf16 %v3796, %v3796
      %v3872 = vpack.c.bf16 %v3799, %v3799
      %v3873 = vpack.c.bf16 %v3801, %v3801
      %v3874 = vpack.c.bf16 %v3804, %v3804
      %v3875 = vpack.c.bf16 %v3806, %v3806
      %v3876 = vpack.c.bf16 %v3809, %v3809
      %v3877 = vpack.c.bf16 %v3811, %v3811
      %v3878 = vpack.c.bf16 %v3814, %v3814
      %v3879 = vpack.c.bf16 %v3816, %v3816
      %v3880 = vpack.c.bf16 %v3819, %v3819
      %v3881 = vpack.c.bf16 %v3821, %v3821
      %v3882 = vpack.c.bf16 %v3824, %v3824
      %v3883 = vpack.c.bf16 %v3826, %v3826
      %v3884 = vpack.c.bf16 %v3829, %v3829
      %v3885 = vpack.c.bf16 %v3831, %v3831
      %v3886 = vpack.c.bf16 %v3834, %v3834
      %v3887 = vpack.c.bf16 %v3836, %v3836
      %v3888 = vpack.c.bf16 %v3839, %v3839
      %v3889 = vpack.c.bf16 %v3841, %v3841
      %v3890 = vpack.c.bf16 %v3844, %v3844
      %v3891 = vpack.c.bf16 %v3846, %v3846
      %v3892 = vpack.c.bf16 %v3849, %v3849
      %v3893 = vpack.c.bf16 %v3851, %v3851
      %v3894 = vpack.c.bf16 %v3854, %v3854
      %v3895 = vpack.c.bf16 %v3856, %v3856
      %v3896 = vpack.c.bf16 %v3859, %v3859
      %v3897 = vpack.c.bf16 %v3861, %v3861
      %v3898 = vpack.c.bf16 %v3864, %v3864
      %v3899 = vpack.c.bf16 %v3866, %v3866
      %3900 = vst [vmem:[%s175] sm:$0xf] %v3868
      %3901 = vst [vmem:[%s175 + $0x4] sm:$0xf] %v3869
      %3902 = vst [vmem:[%s175 + $0x8] sm:$0xf] %v3870
      %3903 = vst [vmem:[%s175 + $0xc] sm:$0xf] %v3871
      %3904 = vst [vmem:[%s175 + $0x10] sm:$0xf] %v3872
      %3905 = vst [vmem:[%s175 + $0x14] sm:$0xf] %v3873
      %3906 = vst [vmem:[%s175 + $0x18] sm:$0xf] %v3874
      %3907 = vst [vmem:[%s175 + $0x1c] sm:$0xf] %v3875
      %3908 = vst [vmem:[%s175 + $0x20] sm:$0xf] %v3876
      %3909 = vst [vmem:[%s175 + $0x24] sm:$0xf] %v3877
      %3910 = vst [vmem:[%s175 + $0x28] sm:$0xf] %v3878
      %3911 = vst [vmem:[%s175 + $0x2c] sm:$0xf] %v3879
      %3912 = vst [vmem:[%s175 + $0x30] sm:$0xf] %v3880
      %3913 = vst [vmem:[%s175 + $0x34] sm:$0xf] %v3881
      %3914 = vst [vmem:[%s175 + $0x38] sm:$0xf] %v3882
      %3915 = vst [vmem:[%s175 + $0x3c] sm:$0xf] %v3883
      %3916 = vst [vmem:[%s175 + $0x40] sm:$0xf] %v3884
      %3917 = vst [vmem:[%s175 + $0x44] sm:$0xf] %v3885
      %3918 = vst [vmem:[%s175 + $0x48] sm:$0xf] %v3886
      %3919 = vst [vmem:[%s175 + $0x4c] sm:$0xf] %v3887
      %3920 = vst [vmem:[%s175 + $0x50] sm:$0xf] %v3888
      %3921 = vst [vmem:[%s175 + $0x54] sm:$0xf] %v3889
      %3922 = vst [vmem:[%s175 + $0x58] sm:$0xf] %v3890
      %3923 = vst [vmem:[%s175 + $0x5c] sm:$0xf] %v3891
      %3924 = vst [vmem:[%s175 + $0x60] sm:$0xf] %v3892
      %3925 = vst [vmem:[%s175 + $0x64] sm:$0xf] %v3893
      %3926 = vst [vmem:[%s175 + $0x68] sm:$0xf] %v3894
      %3927 = vst [vmem:[%s175 + $0x6c] sm:$0xf] %v3895
      %3928 = vst [vmem:[%s175 + $0x70] sm:$0xf] %v3896
      %3929 = vst [vmem:[%s175 + $0x74] sm:$0xf] %v3897
      %3930 = vst [vmem:[%s175 + $0x78] sm:$0xf] %v3898
      %3931 = vst [vmem:[%s175 + $0x7c] sm:$0xf] %v3899
      %s3932 = smul.u32 32, %s14
      %p3933 = scmp.lt.s32.totalorder %s3932, 127
      %s3934 = scalar_select %p3933, %s3932, 127
      %s3935 = smul.addr %s3934, 4
      %s3936 = scalar_lea.vmem %s3, %s3935
      // Predicated region
      $region33: #{convolutional_block.4} parent=31 // pred_check
        %p3937 = pneg %p100
      $region34: #{convolutional_block.4} parent=31 // pred_check_branch
        %3939 = sbr.rel (%p3937) target = $region36
      $region35: #{convolutional_block.4} parent=31 // pred_region
        %s3940 = smul.u32 32, %s14
      $region36: #{convolutional_block.4} parent=31 // pred_fallthru
        _
    $region32: #{convolutional_block.4} parent=5 // pred_fallthru
      _
    %p3941 = scmp.le.s32.totalorder 2, %s9
    // Predicated region
    $region37: #{convolutional_block.4} parent=5 // pred_check
      %p3942 = pneg %p3941
    $region38: #{convolutional_block.4} parent=5 // pred_check_branch
      %3944 = sbr.rel (%p3942) target = $region40
    $region39: #{convolutional_block.4} parent=5 // pred_region
      %s3945 = ssub.s32 %s9, 2
      // Predicated region
      $region41: #{convolutional_block.4} parent=39 // pred_check
        %p3946 = pneg %p106
      $region42: #{convolutional_block.4} parent=39 // pred_check_branch
        %3948 = sbr.rel (%p3946) target = $region44
      $region43: #{convolutional_block.4} parent=39 // pred_region
        %s3949 = smul.u32 32, %s15
        %p3950 = scmp.lt.s32.totalorder %s3949, 127
        %s3951 = scalar_select %p3950, %s3949, 127
        %s3952 = smul.addr %s3951, 4
        %s3953 = scalar_lea.vmem %s3, %s3952
      $region44: #{convolutional_block.4} parent=39 // pred_fallthru
        _
    $region40: #{convolutional_block.4} parent=5 // pred_fallthru
      _
  $region6: #{convolutional_block.4} parent=0 // loop_footer
    %s13 = sadd.s32 1, %s9
  $region7: #{convolutional_block.4} parent=0 // loop_footer_branch
    %8 = sbr.rel target = $region3
  $region8: #{convolutional_block.4} parent=0 // loop_exit
    _

// kernel: convolutional_block.5
$region0: #{convolutional_block.5}
  #allocation0 [shape = 'u32[]', space=smem, size = 0x4, offset = 0x4, fixed_abs, tag = 'smem constant byte address 0x4 - core index']
  #allocation1 [shape = 'u32[72,128]{1,0:T(1,128)}', space=vmem, size = 0x9000, scoped, tag = 'internal scratch']
  %s0 = inlined_call_operand.vmem [shape: bf16[2,2,5,64,128], index: 0, kind: input, shape index: {}]
  %s1 = inlined_call_operand.vmem [shape: bf16[384,128], index: 1, kind: input, shape index: {}]
  %s2 = inlined_call_operand.vmem [shape: f32[1,128], index: 2, kind: input, shape index: {}]
  %s3 = inlined_call_operand.vmem [shape: bf16[512,128], index: 3, kind: output, shape index: {}]
  %s4 = sld [smem:[#allocation0]]
  $region45: #{convolutional_block.5} parent=0
    _
  %s6 = ssub.s32 1, %s4
  %s7 = scalar_select 0, %s6, %s4
  loop: start=0, step=1, limit=4
  $region2: #{convolutional_block.5} parent=0 // loop_pre_header
    _
  $region3: #{convolutional_block.5} parent=0 // loop_header
    %s9 = sphi 0, %s13
    %p10 = scmp.ge.s32.totalorder %s9, 4
    %s19 = sphi 0, %s21
    %s22 = sphi 0, %s19
    %s23 = sphi 0, %s22
    %s39 = sphi 0, %s23
    %s43 = sphi 0, %s43
    %s45 = sphi 0, %s43
    %s46 = sphi 0, %s45
    %s60 = sphi 0, %s46
    %s64 = sphi 0, %s64
    %s66 = sphi 0, %s64
    %s67 = sphi 0, %s66
    %s81 = sphi 0, %s67
    %s87 = sphi 0, %s89
    %s90 = sphi 0, %s87
    %s91 = sphi 0, %s90
    %s107 = sphi 0, %s91
  $region4: #{convolutional_block.5} parent=0 // loop_header_branch
    %12 = sbr.rel (%p10) target = $region8
  $region5: #{convolutional_block.5} parent=0 // loop_body
    %s14 = ssub.s32 %s9, 1
    %s15 = ssub.s32 %s9, 2
    %s16 = sadd.s32 %s9, 1
    %s17 = ssub.s32 %s9, %s16
    %p18 = scmp.eq.s32.totalorder %s17, 0
    %s20 = sadd.s32 %s19, 1
    %s21 = scalar_select %p18, %s19, %s20
    %p24 = pneg %p18
    %p25 = scmp.eq.s32.totalorder %s9, 1
    %p26 = por %p24, %p25
    %p27 = scmp.ne.s32.totalorder %s19, %s22
    %p28 = scmp.eq.s32.totalorder %s9, 0
    %p29 = por %p27, %p28
    %p30 = scmp.ne.s32.totalorder %s19, %s22
    %p31 = scmp.eq.s32.totalorder %s14, 1
    %p32 = por %p30, %p31
    %p33 = scmp.ne.s32.totalorder %s22, %s23
    %p34 = scmp.eq.s32.totalorder %s14, 0
    %p35 = por %p33, %p34
    %p36 = scmp.ne.s32.totalorder %s22, %s23
    %p37 = scmp.eq.s32.totalorder %s15, 1
    %p38 = por %p36, %p37
    %p40 = scmp.ne.s32.totalorder %s23, %s39
    %p41 = scmp.eq.s32.totalorder %s15, 0
    %p42 = por %p40, %p41
    %s44 = sadd.s32 %s43, 1
    %p47 = scmp.eq.s32.totalorder %s9, 1
    %p48 = scmp.ne.s32.totalorder %s43, %s45
    %p49 = scmp.eq.s32.totalorder %s9, 0
    %p50 = por %p48, %p49
    %p51 = scmp.ne.s32.totalorder %s43, %s45
    %p52 = scmp.eq.s32.totalorder %s14, 1
    %p53 = por %p51, %p52
    %p54 = scmp.ne.s32.totalorder %s45, %s46
    %p55 = scmp.eq.s32.totalorder %s14, 0
    %p56 = por %p54, %p55
    %p57 = scmp.ne.s32.totalorder %s45, %s46
    %p58 = scmp.eq.s32.totalorder %s15, 1
    %p59 = por %p57, %p58
    %p61 = scmp.ne.s32.totalorder %s46, %s60
    %p62 = scmp.eq.s32.totalorder %s15, 0
    %p63 = por %p61, %p62
    %s65 = sadd.s32 %s64, 1
    %p68 = scmp.eq.s32.totalorder %s9, 1
    %p69 = scmp.ne.s32.totalorder %s64, %s66
    %p70 = scmp.eq.s32.totalorder %s9, 0
    %p71 = por %p69, %p70
    %p72 = scmp.ne.s32.totalorder %s64, %s66
    %p73 = scmp.eq.s32.totalorder %s14, 1
    %p74 = por %p72, %p73
    %p75 = scmp.ne.s32.totalorder %s66, %s67
    %p76 = scmp.eq.s32.totalorder %s14, 0
    %p77 = por %p75, %p76
    %p78 = scmp.ne.s32.totalorder %s66, %s67
    %p79 = scmp.eq.s32.totalorder %s15, 1
    %p80 = por %p78, %p79
    %p82 = scmp.ne.s32.totalorder %s67, %s81
    %p83 = scmp.eq.s32.totalorder %s15, 0
    %p84 = por %p82, %p83
    %s85 = ssub.s32 %s9, %s16
    %p86 = scmp.eq.s32.totalorder %s85, 0
    %s88 = sadd.s32 %s87, 1
    %s89 = scalar_select %p86, %s87, %s88
    %p92 = pneg %p86
    %p93 = scmp.eq.s32.totalorder %s9, 1
    %p94 = por %p92, %p93
    %p95 = scmp.ne.s32.totalorder %s87, %s90
    %p96 = scmp.eq.s32.totalorder %s9, 0
    %p97 = por %p95, %p96
    %p98 = scmp.ne.s32.totalorder %s87, %s90
    %p99 = scmp.eq.s32.totalorder %s14, 1
    %p100 = por %p98, %p99
    %p101 = scmp.ne.s32.totalorder %s90, %s91
    %p102 = scmp.eq.s32.totalorder %s14, 0
    %p103 = por %p101, %p102
    %p104 = scmp.ne.s32.totalorder %s90, %s91
    %p105 = scmp.eq.s32.totalorder %s15, 1
    %p106 = por %p104, %p105
    %p108 = scmp.ne.s32.totalorder %s91, %s107
    %p109 = scmp.eq.s32.totalorder %s15, 0
    %p110 = por %p108, %p109
    %p111 = scmp.le.s32.totalorder 1, %s9
    %p112 = scmp.lt.s32.totalorder %s9, 3
    %p113 = pnand %p111, %p112
    %p114 = pneg %p113
    // Predicated region
    $region9: #{convolutional_block.5} parent=5 // pred_check
      _
    $region10: #{convolutional_block.5} parent=5 // pred_check_branch
      %116 = sbr.rel (%p113) target = $region12
    $region11: #{convolutional_block.5} parent=5 // pred_region
      %s117 = ssub.s32 %s9, 1
      // Predicated region
      $region13: #{convolutional_block.5} parent=11 // pred_check
        %p118 = pneg %p56
      $region14: #{convolutional_block.5} parent=11 // pred_check_branch
        %120 = sbr.rel (%p118) target = $region16
      $region15: #{convolutional_block.5} parent=11 // pred_region
        _
      $region16: #{convolutional_block.5} parent=11 // pred_fallthru
        _
      // Predicated region
      $region17: #{convolutional_block.5} parent=11 // pred_check
        %p121 = pneg %p77
      $region18: #{convolutional_block.5} parent=11 // pred_check_branch
        %123 = sbr.rel (%p121) target = $region20
      $region19: #{convolutional_block.5} parent=11 // pred_region
        _
      $region20: #{convolutional_block.5} parent=11 // pred_fallthru
        _
    $region12: #{convolutional_block.5} parent=5 // pred_fallthru
      _
    %p124 = scmp.lt.s32.totalorder %s9, 2
    // Predicated region
    $region21: #{convolutional_block.5} parent=5 // pred_check
      %p125 = pneg %p124
    $region22: #{convolutional_block.5} parent=5 // pred_check_branch
      %127 = sbr.rel (%p125) target = $region24
    $region23: #{convolutional_block.5} parent=5 // pred_region
      // Predicated region
      $region25: #{convolutional_block.5} parent=23 // pred_check
        %p128 = pneg %p29
      $region26: #{convolutional_block.5} parent=23 // pred_check_branch
        %130 = sbr.rel (%p128) target = $region28
      $region27: #{convolutional_block.5} parent=23 // pred_region
        %p131 = scmp.lt.s32.totalorder %s9, 1
        %s132 = scalar_select %p131, %s9, 1
        %s133 = smul.addr %s132, 80
        %s134 = smul.addr %s133, 4
        %s135 = scalar_lea.vmem %s0, %s134
      $region28: #{convolutional_block.5} parent=23 // pred_fallthru
        _
    $region24: #{convolutional_block.5} parent=5 // pred_fallthru
      _
    %p136 = scmp.le.s32.totalorder 1, %s9
    %p137 = scmp.lt.s32.totalorder %s9, 3
    %p138 = pnand %p136, %p137
    %p139 = pneg %p138
    // Predicated region
    $region29: #{convolutional_block.5} parent=5 // pred_check
      _
    $region30: #{convolutional_block.5} parent=5 // pred_check_branch
      %141 = sbr.rel (%p138) target = $region32
    $region31: #{convolutional_block.5} parent=5 // pred_region
      %s142 = ssub.s32 %s9, 1
      %p143 = scmp.lt.s32.totalorder %s14, 1
      %s144 = scalar_select %p143, %s14, 1
      %s145 = smul.addr %s144, 80
      %s146 = smul.addr %s145, 4
      %s147 = scalar_lea.vmem %s0, %s146
      %p148 = pneg %p35
      %p149 = pneg %p32
      %p150 = pneg %p56
      %p151 = pneg %p53
      %p152 = pneg %p77
      %p153 = pneg %p74
      %p154 = pneg %p103
      %p155 = pneg %p100
      %s156 = smul.u32 32, %s14
      %p157 = scmp.lt.s32.totalorder %s156, 63
      %s158 = scalar_select %p157, %s156, 63
      %s159 = smul.addr %s158, 4
      %s160 = scalar_lea.vmem %s3, %s159
      %p161 = scmp.lt.s32.totalorder %s14, 1
      %s162 = scalar_select %p161, %s14, 1
      %s163 = smul.addr %s162, 80
      %s164 = smul.addr %s163, 4
      %s165 = scalar_lea.vmem %s0, %s164
      %s166 = smul.u32 32, %s14
      %p167 = scmp.lt.s32.totalorder %s166, 63
      %s168 = scalar_select %p167, %s166, 63
      %s169 = smul.addr %s168, 4
      %s170 = scalar_lea.vmem %s3, %s169
      %s171 = smul.u32 32, %s14
      %v172 = vld [vmem:[%s165] sm:$0xf]
      %v173 = vld [vmem:[%s165 + $0x4] sm:$0xf]
      %v174 = vld [vmem:[%s165 + $0x8] sm:$0xf]
      %v175 = vld [vmem:[%s165 + $0xc] sm:$0xf]
      %v176 = vld [vmem:[%s165 + $0x10] sm:$0xf]
      %v177 = vld [vmem:[%s165 + $0x14] sm:$0xf]
      %v178 = vld [vmem:[%s165 + $0x18] sm:$0xf]
      %v179 = vld [vmem:[%s165 + $0x1c] sm:$0xf]
      %v180 = vld [vmem:[%s165 + $0x20] sm:$0xf]
      %v181 = vld [vmem:[%s165 + $0x24] sm:$0xf]
      %v182 = vld [vmem:[%s165 + $0x28] sm:$0xf]
      %v183 = vld [vmem:[%s165 + $0x2c] sm:$0xf]
      %v184 = vld [vmem:[%s165 + $0x30] sm:$0xf]
      %v185 = vld [vmem:[%s165 + $0x34] sm:$0xf]
      %v186 = vld [vmem:[%s165 + $0x38] sm:$0xf]
      %v187 = vld [vmem:[%s165 + $0x3c] sm:$0xf]
      %v188 = vld [vmem:[%s165 + $0x40] sm:$0xf]
      %v189 = vld [vmem:[%s165 + $0x44] sm:$0xf]
      %v190 = vld [vmem:[%s165 + $0x48] sm:$0xf]
      %v191 = vld [vmem:[%s165 + $0x4c] sm:$0xf]
      %v192 = vld [vmem:[%s165 + $0x50] sm:$0xf]
      %v193 = vld [vmem:[%s165 + $0x54] sm:$0xf]
      %v194 = vld [vmem:[%s165 + $0x58] sm:$0xf]
      %v195 = vld [vmem:[%s165 + $0x5c] sm:$0xf]
      %v196 = vld [vmem:[%s165 + $0x60] sm:$0xf]
      %v197 = vld [vmem:[%s165 + $0x64] sm:$0xf]
      %v198 = vld [vmem:[%s165 + $0x68] sm:$0xf]
      %v199 = vld [vmem:[%s165 + $0x6c] sm:$0xf]
      %v200 = vld [vmem:[%s165 + $0x70] sm:$0xf]
      %v201 = vld [vmem:[%s165 + $0x74] sm:$0xf]
      %v202 = vld [vmem:[%s165 + $0x78] sm:$0xf]
      %v203 = vld [vmem:[%s165 + $0x7c] sm:$0xf]
      %s204 = scalar_lea.vmem %s165, 160
      %v205 = vld [vmem:[%s204] sm:$0xf]
      %v206 = vld [vmem:[%s204 + $0x4] sm:$0xf]
      %v207 = vld [vmem:[%s204 + $0x8] sm:$0xf]
      %v208 = vld [vmem:[%s204 + $0xc] sm:$0xf]
      %v209 = vld [vmem:[%s204 + $0x10] sm:$0xf]
      %v210 = vld [vmem:[%s204 + $0x14] sm:$0xf]
      %v211 = vld [vmem:[%s204 + $0x18] sm:$0xf]
      %v212 = vld [vmem:[%s204 + $0x1c] sm:$0xf]
      %v213 = vld [vmem:[%s204 + $0x20] sm:$0xf]
      %v214 = vld [vmem:[%s204 + $0x24] sm:$0xf]
      %v215 = vld [vmem:[%s204 + $0x28] sm:$0xf]
      %v216 = vld [vmem:[%s204 + $0x2c] sm:$0xf]
      %v217 = vld [vmem:[%s204 + $0x30] sm:$0xf]
      %v218 = vld [vmem:[%s204 + $0x34] sm:$0xf]
      %v219 = vld [vmem:[%s204 + $0x38] sm:$0xf]
      %v220 = vld [vmem:[%s204 + $0x3c] sm:$0xf]
      %v221 = vld [vmem:[%s204 + $0x40] sm:$0xf]
      %v222 = vld [vmem:[%s204 + $0x44] sm:$0xf]
      %v223 = vld [vmem:[%s204 + $0x48] sm:$0xf]
      %v224 = vld [vmem:[%s204 + $0x4c] sm:$0xf]
      %v225 = vld [vmem:[%s204 + $0x50] sm:$0xf]
      %v226 = vld [vmem:[%s204 + $0x54] sm:$0xf]
      %v227 = vld [vmem:[%s204 + $0x58] sm:$0xf]
      %v228 = vld [vmem:[%s204 + $0x5c] sm:$0xf]
      %v229 = vld [vmem:[%s204 + $0x60] sm:$0xf]
      %v230 = vld [vmem:[%s204 + $0x64] sm:$0xf]
      %v231 = vld [vmem:[%s204 + $0x68] sm:$0xf]
      %v232 = vld [vmem:[%s204 + $0x6c] sm:$0xf]
      %v233 = vld [vmem:[%s204 + $0x70] sm:$0xf]
      %v234 = vld [vmem:[%s204 + $0x74] sm:$0xf]
      %v235 = vld [vmem:[%s204 + $0x78] sm:$0xf]
      %v236 = vld [vmem:[%s204 + $0x7c] sm:$0xf]
      %s237 = scalar_lea.vmem %s165, 32
      %v238 = vld [vmem:[%s237] sm:$0xf]
      %v239 = vld [vmem:[%s237 + $0x4] sm:$0xf]
      %v240 = vld [vmem:[%s237 + $0x8] sm:$0xf]
      %v241 = vld [vmem:[%s237 + $0xc] sm:$0xf]
      %v242 = vld [vmem:[%s237 + $0x10] sm:$0xf]
      %v243 = vld [vmem:[%s237 + $0x14] sm:$0xf]
      %v244 = vld [vmem:[%s237 + $0x18] sm:$0xf]
      %v245 = vld [vmem:[%s237 + $0x1c] sm:$0xf]
      %v246 = vld [vmem:[%s237 + $0x20] sm:$0xf]
      %v247 = vld [vmem:[%s237 + $0x24] sm:$0xf]
      %v248 = vld [vmem:[%s237 + $0x28] sm:$0xf]
      %v249 = vld [vmem:[%s237 + $0x2c] sm:$0xf]
      %v250 = vld [vmem:[%s237 + $0x30] sm:$0xf]
      %v251 = vld [vmem:[%s237 + $0x34] sm:$0xf]
      %v252 = vld [vmem:[%s237 + $0x38] sm:$0xf]
      %v253 = vld [vmem:[%s237 + $0x3c] sm:$0xf]
      %v254 = vld [vmem:[%s237 + $0x40] sm:$0xf]
      %v255 = vld [vmem:[%s237 + $0x44] sm:$0xf]
      %v256 = vld [vmem:[%s237 + $0x48] sm:$0xf]
      %v257 = vld [vmem:[%s237 + $0x4c] sm:$0xf]
      %v258 = vld [vmem:[%s237 + $0x50] sm:$0xf]
      %v259 = vld [vmem:[%s237 + $0x54] sm:$0xf]
      %v260 = vld [vmem:[%s237 + $0x58] sm:$0xf]
      %v261 = vld [vmem:[%s237 + $0x5c] sm:$0xf]
      %v262 = vld [vmem:[%s237 + $0x60] sm:$0xf]
      %v263 = vld [vmem:[%s237 + $0x64] sm:$0xf]
      %v264 = vld [vmem:[%s237 + $0x68] sm:$0xf]
      %v265 = vld [vmem:[%s237 + $0x6c] sm:$0xf]
      %v266 = vld [vmem:[%s237 + $0x70] sm:$0xf]
      %v267 = vld [vmem:[%s237 + $0x74] sm:$0xf]
      %v268 = vld [vmem:[%s237 + $0x78] sm:$0xf]
      %v269 = vld [vmem:[%s237 + $0x7c] sm:$0xf]
      %v302 = vunpack.c.l.b16 %v172
      %v303 = vunpack.c.l.b16 %v173
      %v304 = vunpack.c.l.b16 %v174
      %v305 = vunpack.c.l.b16 %v175
      %v306 = vunpack.c.l.b16 %v176
      %v307 = vunpack.c.l.b16 %v177
      %v308 = vunpack.c.l.b16 %v178
      %v309 = vunpack.c.l.b16 %v179
      %v310 = vunpack.c.l.b16 %v180
      %v311 = vunpack.c.l.b16 %v181
      %v312 = vunpack.c.l.b16 %v182
      %v313 = vunpack.c.l.b16 %v183
      %v314 = vunpack.c.l.b16 %v184
      %v315 = vunpack.c.l.b16 %v185
      %v316 = vunpack.c.l.b16 %v186
      %v317 = vunpack.c.l.b16 %v187
      %v318 = vunpack.c.l.b16 %v188
      %v319 = vunpack.c.l.b16 %v189
      %v320 = vunpack.c.l.b16 %v190
      %v321 = vunpack.c.l.b16 %v191
      %v322 = vunpack.c.l.b16 %v192
      %v323 = vunpack.c.l.b16 %v193
      %v324 = vunpack.c.l.b16 %v194
      %v325 = vunpack.c.l.b16 %v195
      %v326 = vunpack.c.l.b16 %v196
      %v327 = vunpack.c.l.b16 %v197
      %v328 = vunpack.c.l.b16 %v198
      %v329 = vunpack.c.l.b16 %v199
      %v330 = vunpack.c.l.b16 %v200
      %v331 = vunpack.c.l.b16 %v201
      %v332 = vunpack.c.l.b16 %v202
      %v333 = vunpack.c.l.b16 %v203
      %v334 = vpack.c.b16 %v303, %v302
      %v335 = vpack.c.b16 %v305, %v304
      %v336 = vpack.c.b16 %v307, %v306
      %v337 = vpack.c.b16 %v309, %v308
      %v338 = vpack.c.b16 %v311, %v310
      %v339 = vpack.c.b16 %v313, %v312
      %v340 = vpack.c.b16 %v315, %v314
      %v341 = vpack.c.b16 %v317, %v316
      %v342 = vpack.c.b16 %v319, %v318
      %v343 = vpack.c.b16 %v321, %v320
      %v344 = vpack.c.b16 %v323, %v322
      %v345 = vpack.c.b16 %v325, %v324
      %v346 = vpack.c.b16 %v327, %v326
      %v347 = vpack.c.b16 %v329, %v328
      %v348 = vpack.c.b16 %v331, %v330
      %v349 = vpack.c.b16 %v333, %v332
      %v398 = vunpack.c.l.b16 %v205
      %v399 = vunpack.c.l.b16 %v206
      %v400 = vunpack.c.l.b16 %v207
      %v401 = vunpack.c.l.b16 %v208
      %v402 = vunpack.c.l.b16 %v209
      %v403 = vunpack.c.l.b16 %v210
      %v404 = vunpack.c.l.b16 %v211
      %v405 = vunpack.c.l.b16 %v212
      %v406 = vunpack.c.l.b16 %v213
      %v407 = vunpack.c.l.b16 %v214
      %v408 = vunpack.c.l.b16 %v215
      %v409 = vunpack.c.l.b16 %v216
      %v410 = vunpack.c.l.b16 %v217
      %v411 = vunpack.c.l.b16 %v218
      %v412 = vunpack.c.l.b16 %v219
      %v413 = vunpack.c.l.b16 %v220
      %v414 = vunpack.c.l.b16 %v221
      %v415 = vunpack.c.l.b16 %v222
      %v416 = vunpack.c.l.b16 %v223
      %v417 = vunpack.c.l.b16 %v224
      %v418 = vunpack.c.l.b16 %v225
      %v419 = vunpack.c.l.b16 %v226
      %v420 = vunpack.c.l.b16 %v227
      %v421 = vunpack.c.l.b16 %v228
      %v422 = vunpack.c.l.b16 %v229
      %v423 = vunpack.c.l.b16 %v230
      %v424 = vunpack.c.l.b16 %v231
      %v425 = vunpack.c.l.b16 %v232
      %v426 = vunpack.c.l.b16 %v233
      %v427 = vunpack.c.l.b16 %v234
      %v428 = vunpack.c.l.b16 %v235
      %v429 = vunpack.c.l.b16 %v236
      %v430 = vpack.c.b16 %v399, %v398
      %v431 = vpack.c.b16 %v401, %v400
      %v432 = vpack.c.b16 %v403, %v402
      %v433 = vpack.c.b16 %v405, %v404
      %v434 = vpack.c.b16 %v407, %v406
      %v435 = vpack.c.b16 %v409, %v408
      %v436 = vpack.c.b16 %v411, %v410
      %v437 = vpack.c.b16 %v413, %v412
      %v438 = vpack.c.b16 %v415, %v414
      %v439 = vpack.c.b16 %v417, %v416
      %v440 = vpack.c.b16 %v419, %v418
      %v441 = vpack.c.b16 %v421, %v420
      %v442 = vpack.c.b16 %v423, %v422
      %v443 = vpack.c.b16 %v425, %v424
      %v444 = vpack.c.b16 %v427, %v426
      %v445 = vpack.c.b16 %v429, %v428
      %v494 = vunpack.c.l.b16 %v238
      %v495 = vunpack.c.l.b16 %v239
      %v496 = vunpack.c.l.b16 %v240
      %v497 = vunpack.c.l.b16 %v241
      %v498 = vunpack.c.l.b16 %v242
      %v499 = vunpack.c.l.b16 %v243
      %v500 = vunpack.c.l.b16 %v244
      %v501 = vunpack.c.l.b16 %v245
      %v502 = vunpack.c.l.b16 %v246
      %v503 = vunpack.c.l.b16 %v247
      %v504 = vunpack.c.l.b16 %v248
      %v505 = vunpack.c.l.b16 %v249
      %v506 = vunpack.c.l.b16 %v250
      %v507 = vunpack.c.l.b16 %v251
      %v508 = vunpack.c.l.b16 %v252
      %v509 = vunpack.c.l.b16 %v253
      %v510 = vunpack.c.l.b16 %v254
      %v511 = vunpack.c.l.b16 %v255
      %v512 = vunpack.c.l.b16 %v256
      %v513 = vunpack.c.l.b16 %v257
      %v514 = vunpack.c.l.b16 %v258
      %v515 = vunpack.c.l.b16 %v259
      %v516 = vunpack.c.l.b16 %v260
      %v517 = vunpack.c.l.b16 %v261
      %v518 = vunpack.c.l.b16 %v262
      %v519 = vunpack.c.l.b16 %v263
      %v520 = vunpack.c.l.b16 %v264
      %v521 = vunpack.c.l.b16 %v265
      %v522 = vunpack.c.l.b16 %v266
      %v523 = vunpack.c.l.b16 %v267
      %v524 = vunpack.c.l.b16 %v268
      %v525 = vunpack.c.l.b16 %v269
      %v526 = vpack.c.b16 %v495, %v494
      %v527 = vpack.c.b16 %v497, %v496
      %v528 = vpack.c.b16 %v499, %v498
      %v529 = vpack.c.b16 %v501, %v500
      %v530 = vpack.c.b16 %v503, %v502
      %v531 = vpack.c.b16 %v505, %v504
      %v532 = vpack.c.b16 %v507, %v506
      %v533 = vpack.c.b16 %v509, %v508
      %v534 = vpack.c.b16 %v511, %v510
      %v535 = vpack.c.b16 %v513, %v512
      %v536 = vpack.c.b16 %v515, %v514
      %v537 = vpack.c.b16 %v517, %v516
      %v538 = vpack.c.b16 %v519, %v518
      %v539 = vpack.c.b16 %v521, %v520
      %v540 = vpack.c.b16 %v523, %v522
      %v541 = vpack.c.b16 %v525, %v524
      %v558 = vld [vmem:[%s1] sm:$0xf]
      %v559 = vld [vmem:[%s1 + $0x4] sm:$0xf]
      %v560 = vld [vmem:[%s1 + $0x8] sm:$0xf]
      %v561 = vld [vmem:[%s1 + $0xc] sm:$0xf]
      %v562 = vld [vmem:[%s1 + $0x10] sm:$0xf]
      %v563 = vld [vmem:[%s1 + $0x14] sm:$0xf]
      %v564 = vld [vmem:[%s1 + $0x18] sm:$0xf]
      %v565 = vld [vmem:[%s1 + $0x1c] sm:$0xf]
      %v566 = vld [vmem:[%s1 + $0x20] sm:$0xf]
      %v567 = vld [vmem:[%s1 + $0x24] sm:$0xf]
      %v568 = vld [vmem:[%s1 + $0x28] sm:$0xf]
      %v569 = vld [vmem:[%s1 + $0x2c] sm:$0xf]
      %v570 = vld [vmem:[%s1 + $0x30] sm:$0xf]
      %v571 = vld [vmem:[%s1 + $0x34] sm:$0xf]
      %v572 = vld [vmem:[%s1 + $0x38] sm:$0xf]
      %v573 = vld [vmem:[%s1 + $0x3c] sm:$0xf]
      %v574 = vld [vmem:[%s1 + $0x40] sm:$0xf]
      %v575 = vld [vmem:[%s1 + $0x44] sm:$0xf]
      %v576 = vld [vmem:[%s1 + $0x48] sm:$0xf]
      %v577 = vld [vmem:[%s1 + $0x4c] sm:$0xf]
      %v578 = vld [vmem:[%s1 + $0x50] sm:$0xf]
      %v579 = vld [vmem:[%s1 + $0x54] sm:$0xf]
      %v580 = vld [vmem:[%s1 + $0x58] sm:$0xf]
      %v581 = vld [vmem:[%s1 + $0x5c] sm:$0xf]
      %v582 = vld [vmem:[%s1 + $0x60] sm:$0xf]
      %v583 = vld [vmem:[%s1 + $0x64] sm:$0xf]
      %v584 = vld [vmem:[%s1 + $0x68] sm:$0xf]
      %v585 = vld [vmem:[%s1 + $0x6c] sm:$0xf]
      %v586 = vld [vmem:[%s1 + $0x70] sm:$0xf]
      %v587 = vld [vmem:[%s1 + $0x74] sm:$0xf]
      %v588 = vld [vmem:[%s1 + $0x78] sm:$0xf]
      %v589 = vld [vmem:[%s1 + $0x7c] sm:$0xf]
      %v590 = vld [vmem:[%s1 + $0x80] sm:$0xf]
      %v591 = vld [vmem:[%s1 + $0x84] sm:$0xf]
      %v592 = vld [vmem:[%s1 + $0x88] sm:$0xf]
      %v593 = vld [vmem:[%s1 + $0x8c] sm:$0xf]
      %v594 = vld [vmem:[%s1 + $0x90] sm:$0xf]
      %v595 = vld [vmem:[%s1 + $0x94] sm:$0xf]
      %v596 = vld [vmem:[%s1 + $0x98] sm:$0xf]
      %v597 = vld [vmem:[%s1 + $0x9c] sm:$0xf]
      %v598 = vld [vmem:[%s1 + $0xa0] sm:$0xf]
      %v599 = vld [vmem:[%s1 + $0xa4] sm:$0xf]
      %v600 = vld [vmem:[%s1 + $0xa8] sm:$0xf]
      %v601 = vld [vmem:[%s1 + $0xac] sm:$0xf]
      %v602 = vld [vmem:[%s1 + $0xb0] sm:$0xf]
      %v603 = vld [vmem:[%s1 + $0xb4] sm:$0xf]
      %v604 = vld [vmem:[%s1 + $0xb8] sm:$0xf]
      %v605 = vld [vmem:[%s1 + $0xbc] sm:$0xf]
      %v606 = vld [vmem:[%s2] sm:$0x1]
      %v608 = vperm.slane %v606, 0
      %v658 = vunpack.c.l.b16 %v558
      %v659 = vunpack.c.l.b16 %v559
      %v660 = vunpack.c.l.b16 %v560
      %v661 = vunpack.c.l.b16 %v561
      %v662 = vunpack.c.l.b16 %v562
      %v663 = vunpack.c.l.b16 %v563
      %v664 = vunpack.c.l.b16 %v564
      %v665 = vunpack.c.l.b16 %v565
      %v666 = vunpack.c.l.b16 %v566
      %v667 = vunpack.c.l.b16 %v567
      %v668 = vunpack.c.l.b16 %v568
      %v669 = vunpack.c.l.b16 %v569
      %v670 = vunpack.c.l.b16 %v570
      %v671 = vunpack.c.l.b16 %v571
      %v672 = vunpack.c.l.b16 %v572
      %v673 = vunpack.c.l.b16 %v573
      %v674 = vunpack.c.l.b16 %v574
      %v675 = vunpack.c.l.b16 %v575
      %v676 = vunpack.c.l.b16 %v576
      %v677 = vunpack.c.l.b16 %v577
      %v678 = vunpack.c.l.b16 %v578
      %v679 = vunpack.c.l.b16 %v579
      %v680 = vunpack.c.l.b16 %v580
      %v681 = vunpack.c.l.b16 %v581
      %v682 = vunpack.c.l.b16 %v582
      %v683 = vunpack.c.l.b16 %v583
      %v684 = vunpack.c.l.b16 %v584
      %v685 = vunpack.c.l.b16 %v585
      %v686 = vunpack.c.l.b16 %v586
      %v687 = vunpack.c.l.b16 %v587
      %v688 = vunpack.c.l.b16 %v588
      %v689 = vunpack.c.l.b16 %v589
      %v690 = vunpack.c.l.b16 %v590
      %v691 = vunpack.c.l.b16 %v591
      %v692 = vunpack.c.l.b16 %v592
      %v693 = vunpack.c.l.b16 %v593
      %v694 = vunpack.c.l.b16 %v594
      %v695 = vunpack.c.l.b16 %v595
      %v696 = vunpack.c.l.b16 %v596
      %v697 = vunpack.c.l.b16 %v597
      %v698 = vunpack.c.l.b16 %v598
      %v699 = vunpack.c.l.b16 %v599
      %v700 = vunpack.c.l.b16 %v600
      %v701 = vunpack.c.l.b16 %v601
      %v702 = vunpack.c.l.b16 %v602
      %v703 = vunpack.c.l.b16 %v603
      %v704 = vunpack.c.l.b16 %v604
      %v705 = vunpack.c.l.b16 %v605
      %v706 = vpack.c.b16 %v659, %v658
      %v707 = vpack.c.b16 %v661, %v660
      %v708 = vpack.c.b16 %v663, %v662
      %v709 = vpack.c.b16 %v665, %v664
      %v710 = vpack.c.b16 %v667, %v666
      %v711 = vpack.c.b16 %v669, %v668
      %v712 = vpack.c.b16 %v671, %v670
      %v713 = vpack.c.b16 %v673, %v672
      %v714 = vpack.c.b16 %v675, %v674
      %v715 = vpack.c.b16 %v677, %v676
      %v716 = vpack.c.b16 %v679, %v678
      %v717 = vpack.c.b16 %v681, %v680
      %v718 = vpack.c.b16 %v683, %v682
      %v719 = vpack.c.b16 %v685, %v684
      %v720 = vpack.c.b16 %v687, %v686
      %v721 = vpack.c.b16 %v689, %v688
      %v722 = vpack.c.b16 %v691, %v690
      %v723 = vpack.c.b16 %v693, %v692
      %v724 = vpack.c.b16 %v695, %v694
      %v725 = vpack.c.b16 %v697, %v696
      %v726 = vpack.c.b16 %v699, %v698
      %v727 = vpack.c.b16 %v701, %v700
      %v728 = vpack.c.b16 %v703, %v702
      %v729 = vpack.c.b16 %v705, %v704
      %754 = vmatpush.bf16.msra.mxu0 %v713
      %755 = vmatpush.bf16.msra.mxu0 %v712
      %756 = vmatpush.bf16.msra.mxu0 %v711
      %757 = vmatpush.bf16.msra.mxu0 %v710
      %758 = vmatpush.bf16.msra.mxu0 %v709
      %759 = vmatpush.bf16.msra.mxu0 %v708
      %760 = vmatpush.bf16.msra.mxu0 %v707
      %761 = vmatpush.bf16.msra.mxu0 %v706
      %762 = vmatmul.bf16.gmra.mxu0 %v334
      %v763 = vpop.f32.mrf.mxu0
      %v764 = vadd.f32 %v608, %v763
      %v765 = vpop.f32.mrf.mxu0
      %v766 = vadd.f32 %v608, %v765
      %767 = vmatmul.bf16.gmra.mxu0 %v335
      %v768 = vpop.f32.mrf.mxu0
      %v769 = vadd.f32 %v608, %v768
      %v770 = vpop.f32.mrf.mxu0
      %v771 = vadd.f32 %v608, %v770
      %772 = vmatmul.bf16.gmra.mxu0 %v336
      %v773 = vpop.f32.mrf.mxu0
      %v774 = vadd.f32 %v608, %v773
      %v775 = vpop.f32.mrf.mxu0
      %v776 = vadd.f32 %v608, %v775
      %777 = vmatmul.bf16.gmra.mxu0 %v337
      %v778 = vpop.f32.mrf.mxu0
      %v779 = vadd.f32 %v608, %v778
      %v780 = vpop.f32.mrf.mxu0
      %v781 = vadd.f32 %v608, %v780
      %782 = vmatmul.bf16.gmra.mxu0 %v338
      %v783 = vpop.f32.mrf.mxu0
      %v784 = vadd.f32 %v608, %v783
      %v785 = vpop.f32.mrf.mxu0
      %v786 = vadd.f32 %v608, %v785
      %787 = vmatmul.bf16.gmra.mxu0 %v339
      %v788 = vpop.f32.mrf.mxu0
      %v789 = vadd.f32 %v608, %v788
      %v790 = vpop.f32.mrf.mxu0
      %v791 = vadd.f32 %v608, %v790
      %792 = vmatmul.bf16.gmra.mxu0 %v340
      %v793 = vpop.f32.mrf.mxu0
      %v794 = vadd.f32 %v608, %v793
      %v795 = vpop.f32.mrf.mxu0
      %v796 = vadd.f32 %v608, %v795
      %797 = vmatmul.bf16.gmra.mxu0 %v341
      %v798 = vpop.f32.mrf.mxu0
      %v799 = vadd.f32 %v608, %v798
      %v800 = vpop.f32.mrf.mxu0
      %v801 = vadd.f32 %v608, %v800
      %802 = vmatmul.bf16.gmra.mxu0 %v342
      %v803 = vpop.f32.mrf.mxu0
      %v804 = vadd.f32 %v608, %v803
      %v805 = vpop.f32.mrf.mxu0
      %v806 = vadd.f32 %v608, %v805
      %807 = vmatmul.bf16.gmra.mxu0 %v343
      %v808 = vpop.f32.mrf.mxu0
      %v809 = vadd.f32 %v608, %v808
      %v810 = vpop.f32.mrf.mxu0
      %v811 = vadd.f32 %v608, %v810
      %812 = vmatmul.bf16.gmra.mxu0 %v344
      %v813 = vpop.f32.mrf.mxu0
      %v814 = vadd.f32 %v608, %v813
      %v815 = vpop.f32.mrf.mxu0
      %v816 = vadd.f32 %v608, %v815
      %817 = vmatmul.bf16.gmra.mxu0 %v345
      %v818 = vpop.f32.mrf.mxu0
      %v819 = vadd.f32 %v608, %v818
      %v820 = vpop.f32.mrf.mxu0
      %v821 = vadd.f32 %v608, %v820
      %822 = vmatmul.bf16.gmra.mxu0 %v346
      %v823 = vpop.f32.mrf.mxu0
      %v824 = vadd.f32 %v608, %v823
      %v825 = vpop.f32.mrf.mxu0
      %v826 = vadd.f32 %v608, %v825
      %827 = vmatmul.bf16.gmra.mxu0 %v347
      %v828 = vpop.f32.mrf.mxu0
      %v829 = vadd.f32 %v608, %v828
      %v830 = vpop.f32.mrf.mxu0
      %v831 = vadd.f32 %v608, %v830
      %832 = vmatmul.bf16.gmra.mxu0 %v348
      %v833 = vpop.f32.mrf.mxu0
      %v834 = vadd.f32 %v608, %v833
      %v835 = vpop.f32.mrf.mxu0
      %v836 = vadd.f32 %v608, %v835
      %837 = vmatmul.bf16.gmra.mxu0 %v349
      %v838 = vpop.f32.mrf.mxu0
      %v839 = vadd.f32 %v608, %v838
      %v840 = vpop.f32.mrf.mxu0
      %v841 = vadd.f32 %v608, %v840
      %842 = vdwg.mxu0
      %843 = vmatpush.bf16.msra.mxu0 %v721
      %844 = vmatpush.bf16.msra.mxu0 %v720
      %845 = vmatpush.bf16.msra.mxu0 %v719
      %846 = vmatpush.bf16.msra.mxu0 %v718
      %847 = vmatpush.bf16.msra.mxu0 %v717
      %848 = vmatpush.bf16.msra.mxu0 %v716
      %849 = vmatpush.bf16.msra.mxu0 %v715
      %850 = vmatpush.bf16.msra.mxu0 %v714
      %851 = vmatmul.bf16.gmra.mxu0 %v430
      %v852 = vpop.f32.mrf.mxu0
      %v853 = vadd.f32 %v764, %v852
      %v854 = vpop.f32.mrf.mxu0
      %v855 = vadd.f32 %v766, %v854
      %856 = vmatmul.bf16.gmra.mxu0 %v431
      %v857 = vpop.f32.mrf.mxu0
      %v858 = vadd.f32 %v769, %v857
      %v859 = vpop.f32.mrf.mxu0
      %v860 = vadd.f32 %v771, %v859
      %861 = vmatmul.bf16.gmra.mxu0 %v432
      %v862 = vpop.f32.mrf.mxu0
      %v863 = vadd.f32 %v774, %v862
      %v864 = vpop.f32.mrf.mxu0
      %v865 = vadd.f32 %v776, %v864
      %866 = vmatmul.bf16.gmra.mxu0 %v433
      %v867 = vpop.f32.mrf.mxu0
      %v868 = vadd.f32 %v779, %v867
      %v869 = vpop.f32.mrf.mxu0
      %v870 = vadd.f32 %v781, %v869
      %871 = vmatmul.bf16.gmra.mxu0 %v434
      %v872 = vpop.f32.mrf.mxu0
      %v873 = vadd.f32 %v784, %v872
      %v874 = vpop.f32.mrf.mxu0
      %v875 = vadd.f32 %v786, %v874
      %876 = vmatmul.bf16.gmra.mxu0 %v435
      %v877 = vpop.f32.mrf.mxu0
      %v878 = vadd.f32 %v789, %v877
      %v879 = vpop.f32.mrf.mxu0
      %v880 = vadd.f32 %v791, %v879
      %881 = vmatmul.bf16.gmra.mxu0 %v436
      %v882 = vpop.f32.mrf.mxu0
      %v883 = vadd.f32 %v794, %v882
      %v884 = vpop.f32.mrf.mxu0
      %v885 = vadd.f32 %v796, %v884
      %886 = vmatmul.bf16.gmra.mxu0 %v437
      %v887 = vpop.f32.mrf.mxu0
      %v888 = vadd.f32 %v799, %v887
      %v889 = vpop.f32.mrf.mxu0
      %v890 = vadd.f32 %v801, %v889
      %891 = vmatmul.bf16.gmra.mxu0 %v438
      %v892 = vpop.f32.mrf.mxu0
      %v893 = vadd.f32 %v804, %v892
      %v894 = vpop.f32.mrf.mxu0
      %v895 = vadd.f32 %v806, %v894
      %896 = vmatmul.bf16.gmra.mxu0 %v439
      %v897 = vpop.f32.mrf.mxu0
      %v898 = vadd.f32 %v809, %v897
      %v899 = vpop.f32.mrf.mxu0
      %v900 = vadd.f32 %v811, %v899
      %901 = vmatmul.bf16.gmra.mxu0 %v440
      %v902 = vpop.f32.mrf.mxu0
      %v903 = vadd.f32 %v814, %v902
      %v904 = vpop.f32.mrf.mxu0
      %v905 = vadd.f32 %v816, %v904
      %906 = vmatmul.bf16.gmra.mxu0 %v441
      %v907 = vpop.f32.mrf.mxu0
      %v908 = vadd.f32 %v819, %v907
      %v909 = vpop.f32.mrf.mxu0
      %v910 = vadd.f32 %v821, %v909
      %911 = vmatmul.bf16.gmra.mxu0 %v442
      %v912 = vpop.f32.mrf.mxu0
      %v913 = vadd.f32 %v824, %v912
      %v914 = vpop.f32.mrf.mxu0
      %v915 = vadd.f32 %v826, %v914
      %916 = vmatmul.bf16.gmra.mxu0 %v443
      %v917 = vpop.f32.mrf.mxu0
      %v918 = vadd.f32 %v829, %v917
      %v919 = vpop.f32.mrf.mxu0
      %v920 = vadd.f32 %v831, %v919
      %921 = vmatmul.bf16.gmra.mxu0 %v444
      %v922 = vpop.f32.mrf.mxu0
      %v923 = vadd.f32 %v834, %v922
      %v924 = vpop.f32.mrf.mxu0
      %v925 = vadd.f32 %v836, %v924
      %926 = vmatmul.bf16.gmra.mxu0 %v445
      %v927 = vpop.f32.mrf.mxu0
      %v928 = vadd.f32 %v839, %v927
      %v929 = vpop.f32.mrf.mxu0
      %v930 = vadd.f32 %v841, %v929
      %931 = vdwg.mxu0
      %932 = vmatpush.bf16.msra.mxu0 %v729
      %933 = vmatpush.bf16.msra.mxu0 %v728
      %934 = vmatpush.bf16.msra.mxu0 %v727
      %935 = vmatpush.bf16.msra.mxu0 %v726
      %936 = vmatpush.bf16.msra.mxu0 %v725
      %937 = vmatpush.bf16.msra.mxu0 %v724
      %938 = vmatpush.bf16.msra.mxu0 %v723
      %939 = vmatpush.bf16.msra.mxu0 %v722
      %940 = vmatmul.bf16.gmra.mxu0 %v526
      %v941 = vpop.f32.mrf.mxu0
      %v942 = vadd.f32 %v853, %v941
      %v943 = vpop.f32.mrf.mxu0
      %v944 = vadd.f32 %v855, %v943
      %945 = vmatmul.bf16.gmra.mxu0 %v527
      %v946 = vpop.f32.mrf.mxu0
      %v947 = vadd.f32 %v858, %v946
      %v948 = vpop.f32.mrf.mxu0
      %v949 = vadd.f32 %v860, %v948
      %950 = vmatmul.bf16.gmra.mxu0 %v528
      %v951 = vpop.f32.mrf.mxu0
      %v952 = vadd.f32 %v863, %v951
      %v953 = vpop.f32.mrf.mxu0
      %v954 = vadd.f32 %v865, %v953
      %955 = vmatmul.bf16.gmra.mxu0 %v529
      %v956 = vpop.f32.mrf.mxu0
      %v957 = vadd.f32 %v868, %v956
      %v958 = vpop.f32.mrf.mxu0
      %v959 = vadd.f32 %v870, %v958
      %960 = vmatmul.bf16.gmra.mxu0 %v530
      %v961 = vpop.f32.mrf.mxu0
      %v962 = vadd.f32 %v873, %v961
      %v963 = vpop.f32.mrf.mxu0
      %v964 = vadd.f32 %v875, %v963
      %965 = vmatmul.bf16.gmra.mxu0 %v531
      %v966 = vpop.f32.mrf.mxu0
      %v967 = vadd.f32 %v878, %v966
      %v968 = vpop.f32.mrf.mxu0
      %v969 = vadd.f32 %v880, %v968
      %970 = vmatmul.bf16.gmra.mxu0 %v532
      %v971 = vpop.f32.mrf.mxu0
      %v972 = vadd.f32 %v883, %v971
      %v973 = vpop.f32.mrf.mxu0
      %v974 = vadd.f32 %v885, %v973
      %975 = vmatmul.bf16.gmra.mxu0 %v533
      %v976 = vpop.f32.mrf.mxu0
      %v977 = vadd.f32 %v888, %v976
      %v978 = vpop.f32.mrf.mxu0
      %v979 = vadd.f32 %v890, %v978
      %980 = vmatmul.bf16.gmra.mxu0 %v534
      %v981 = vpop.f32.mrf.mxu0
      %v982 = vadd.f32 %v893, %v981
      %v983 = vpop.f32.mrf.mxu0
      %v984 = vadd.f32 %v895, %v983
      %985 = vmatmul.bf16.gmra.mxu0 %v535
      %v986 = vpop.f32.mrf.mxu0
      %v987 = vadd.f32 %v898, %v986
      %v988 = vpop.f32.mrf.mxu0
      %v989 = vadd.f32 %v900, %v988
      %990 = vmatmul.bf16.gmra.mxu0 %v536
      %v991 = vpop.f32.mrf.mxu0
      %v992 = vadd.f32 %v903, %v991
      %v993 = vpop.f32.mrf.mxu0
      %v994 = vadd.f32 %v905, %v993
      %995 = vmatmul.bf16.gmra.mxu0 %v537
      %v996 = vpop.f32.mrf.mxu0
      %v997 = vadd.f32 %v908, %v996
      %v998 = vpop.f32.mrf.mxu0
      %v999 = vadd.f32 %v910, %v998
      %1000 = vmatmul.bf16.gmra.mxu0 %v538
      %v1001 = vpop.f32.mrf.mxu0
      %v1002 = vadd.f32 %v913, %v1001
      %v1003 = vpop.f32.mrf.mxu0
      %v1004 = vadd.f32 %v915, %v1003
      %1005 = vmatmul.bf16.gmra.mxu0 %v539
      %v1006 = vpop.f32.mrf.mxu0
      %v1007 = vadd.f32 %v918, %v1006
      %v1008 = vpop.f32.mrf.mxu0
      %v1009 = vadd.f32 %v920, %v1008
      %1010 = vmatmul.bf16.gmra.mxu0 %v540
      %v1011 = vpop.f32.mrf.mxu0
      %v1012 = vadd.f32 %v923, %v1011
      %v1013 = vpop.f32.mrf.mxu0
      %v1014 = vadd.f32 %v925, %v1013
      %1015 = vmatmul.bf16.gmra.mxu0 %v541
      %v1016 = vpop.f32.mrf.mxu0
      %v1017 = vadd.f32 %v928, %v1016
      %v1018 = vpop.f32.mrf.mxu0
      %v1019 = vadd.f32 %v930, %v1018
      %1020 = vdwg.mxu0
      %v1021 = vmax.f32 %v942, 0.0
      %v1022 = vmax.f32 %v944, 0.0
      %v1023 = vmax.f32 %v947, 0.0
      %v1024 = vmax.f32 %v949, 0.0
      %v1025 = vmax.f32 %v952, 0.0
      %v1026 = vmax.f32 %v954, 0.0
      %v1027 = vmax.f32 %v957, 0.0
      %v1028 = vmax.f32 %v959, 0.0
      %v1029 = vmax.f32 %v962, 0.0
      %v1030 = vmax.f32 %v964, 0.0
      %v1031 = vmax.f32 %v967, 0.0
      %v1032 = vmax.f32 %v969, 0.0
      %v1033 = vmax.f32 %v972, 0.0
      %v1034 = vmax.f32 %v974, 0.0
      %v1035 = vmax.f32 %v977, 0.0
      %v1036 = vmax.f32 %v979, 0.0
      %v1037 = vmax.f32 %v982, 0.0
      %v1038 = vmax.f32 %v984, 0.0
      %v1039 = vmax.f32 %v987, 0.0
      %v1040 = vmax.f32 %v989, 0.0
      %v1041 = vmax.f32 %v992, 0.0
      %v1042 = vmax.f32 %v994, 0.0
      %v1043 = vmax.f32 %v997, 0.0
      %v1044 = vmax.f32 %v999, 0.0
      %v1045 = vmax.f32 %v1002, 0.0
      %v1046 = vmax.f32 %v1004, 0.0
      %v1047 = vmax.f32 %v1007, 0.0
      %v1048 = vmax.f32 %v1009, 0.0
      %v1049 = vmax.f32 %v1012, 0.0
      %v1050 = vmax.f32 %v1014, 0.0
      %v1051 = vmax.f32 %v1017, 0.0
      %v1052 = vmax.f32 %v1019, 0.0
      %v1053 = vpack.c.bf16 %v1021, %v1021
      %v1054 = vpack.c.bf16 %v1022, %v1022
      %v1055 = vpack.c.bf16 %v1023, %v1023
      %v1056 = vpack.c.bf16 %v1024, %v1024
      %v1057 = vpack.c.bf16 %v1025, %v1025
      %v1058 = vpack.c.bf16 %v1026, %v1026
      %v1059 = vpack.c.bf16 %v1027, %v1027
      %v1060 = vpack.c.bf16 %v1028, %v1028
      %v1061 = vpack.c.bf16 %v1029, %v1029
      %v1062 = vpack.c.bf16 %v1030, %v1030
      %v1063 = vpack.c.bf16 %v1031, %v1031
      %v1064 = vpack.c.bf16 %v1032, %v1032
      %v1065 = vpack.c.bf16 %v1033, %v1033
      %v1066 = vpack.c.bf16 %v1034, %v1034
      %v1067 = vpack.c.bf16 %v1035, %v1035
      %v1068 = vpack.c.bf16 %v1036, %v1036
      %v1069 = vpack.c.bf16 %v1037, %v1037
      %v1070 = vpack.c.bf16 %v1038, %v1038
      %v1071 = vpack.c.bf16 %v1039, %v1039
      %v1072 = vpack.c.bf16 %v1040, %v1040
      %v1073 = vpack.c.bf16 %v1041, %v1041
      %v1074 = vpack.c.bf16 %v1042, %v1042
      %v1075 = vpack.c.bf16 %v1043, %v1043
      %v1076 = vpack.c.bf16 %v1044, %v1044
      %v1077 = vpack.c.bf16 %v1045, %v1045
      %v1078 = vpack.c.bf16 %v1046, %v1046
      %v1079 = vpack.c.bf16 %v1047, %v1047
      %v1080 = vpack.c.bf16 %v1048, %v1048
      %v1081 = vpack.c.bf16 %v1049, %v1049
      %v1082 = vpack.c.bf16 %v1050, %v1050
      %v1083 = vpack.c.bf16 %v1051, %v1051
      %v1084 = vpack.c.bf16 %v1052, %v1052
      %1085 = vst [vmem:[%s170] sm:$0xf] %v1053
      %1086 = vst [vmem:[%s170 + $0x4] sm:$0xf] %v1054
      %1087 = vst [vmem:[%s170 + $0x8] sm:$0xf] %v1055
      %1088 = vst [vmem:[%s170 + $0xc] sm:$0xf] %v1056
      %1089 = vst [vmem:[%s170 + $0x10] sm:$0xf] %v1057
      %1090 = vst [vmem:[%s170 + $0x14] sm:$0xf] %v1058
      %1091 = vst [vmem:[%s170 + $0x18] sm:$0xf] %v1059
      %1092 = vst [vmem:[%s170 + $0x1c] sm:$0xf] %v1060
      %1093 = vst [vmem:[%s170 + $0x20] sm:$0xf] %v1061
      %1094 = vst [vmem:[%s170 + $0x24] sm:$0xf] %v1062
      %1095 = vst [vmem:[%s170 + $0x28] sm:$0xf] %v1063
      %1096 = vst [vmem:[%s170 + $0x2c] sm:$0xf] %v1064
      %1097 = vst [vmem:[%s170 + $0x30] sm:$0xf] %v1065
      %1098 = vst [vmem:[%s170 + $0x34] sm:$0xf] %v1066
      %1099 = vst [vmem:[%s170 + $0x38] sm:$0xf] %v1067
      %1100 = vst [vmem:[%s170 + $0x3c] sm:$0xf] %v1068
      %1101 = vst [vmem:[%s170 + $0x40] sm:$0xf] %v1069
      %1102 = vst [vmem:[%s170 + $0x44] sm:$0xf] %v1070
      %1103 = vst [vmem:[%s170 + $0x48] sm:$0xf] %v1071
      %1104 = vst [vmem:[%s170 + $0x4c] sm:$0xf] %v1072
      %1105 = vst [vmem:[%s170 + $0x50] sm:$0xf] %v1073
      %1106 = vst [vmem:[%s170 + $0x54] sm:$0xf] %v1074
      %1107 = vst [vmem:[%s170 + $0x58] sm:$0xf] %v1075
      %1108 = vst [vmem:[%s170 + $0x5c] sm:$0xf] %v1076
      %1109 = vst [vmem:[%s170 + $0x60] sm:$0xf] %v1077
      %1110 = vst [vmem:[%s170 + $0x64] sm:$0xf] %v1078
      %1111 = vst [vmem:[%s170 + $0x68] sm:$0xf] %v1079
      %1112 = vst [vmem:[%s170 + $0x6c] sm:$0xf] %v1080
      %1113 = vst [vmem:[%s170 + $0x70] sm:$0xf] %v1081
      %1114 = vst [vmem:[%s170 + $0x74] sm:$0xf] %v1082
      %1115 = vst [vmem:[%s170 + $0x78] sm:$0xf] %v1083
      %1116 = vst [vmem:[%s170 + $0x7c] sm:$0xf] %v1084
      %s1117 = smul.u32 32, %s14
      %p1118 = scmp.lt.s32.totalorder %s1117, 63
      %s1119 = scalar_select %p1118, %s1117, 63
      %s1120 = smul.addr %s1119, 4
      %s1121 = scalar_lea.vmem %s3, %s1120
      // Predicated region
      $region33: #{convolutional_block.5} parent=31 // pred_check
        %p1122 = pneg %p100
      $region34: #{convolutional_block.5} parent=31 // pred_check_branch
        %1124 = sbr.rel (%p1122) target = $region36
      $region35: #{convolutional_block.5} parent=31 // pred_region
        %s1125 = smul.u32 32, %s14
      $region36: #{convolutional_block.5} parent=31 // pred_fallthru
        _
    $region32: #{convolutional_block.5} parent=5 // pred_fallthru
      _
    %p1126 = scmp.le.s32.totalorder 2, %s9
    // Predicated region
    $region37: #{convolutional_block.5} parent=5 // pred_check
      %p1127 = pneg %p1126
    $region38: #{convolutional_block.5} parent=5 // pred_check_branch
      %1129 = sbr.rel (%p1127) target = $region40
    $region39: #{convolutional_block.5} parent=5 // pred_region
      %s1130 = ssub.s32 %s9, 2
      // Predicated region
      $region41: #{convolutional_block.5} parent=39 // pred_check
        %p1131 = pneg %p106
      $region42: #{convolutional_block.5} parent=39 // pred_check_branch
        %1133 = sbr.rel (%p1131) target = $region44
      $region43: #{convolutional_block.5} parent=39 // pred_region
        %s1134 = smul.u32 32, %s15
        %p1135 = scmp.lt.s32.totalorder %s1134, 63
        %s1136 = scalar_select %p1135, %s1134, 63
        %s1137 = smul.addr %s1136, 4
        %s1138 = scalar_lea.vmem %s3, %s1137
      $region44: #{convolutional_block.5} parent=39 // pred_fallthru
        _
    $region40: #{convolutional_block.5} parent=5 // pred_fallthru
      _
  $region6: #{convolutional_block.5} parent=0 // loop_footer
    %s13 = sadd.s32 1, %s9
  $region7: #{convolutional_block.5} parent=0 // loop_footer_branch
    %8 = sbr.rel target = $region3
  $region8: #{convolutional_block.5} parent=0 // loop_exit
    _

// kernel: convolutional_block.7
$region0: #{convolutional_block.7}
  #allocation0 [shape = 'u32[]', space=smem, size = 0x4, offset = 0x4, fixed_abs, tag = 'smem constant byte address 0x4 - core index']
  #allocation1 [shape = 'u32[72,128]{1,0:T(1,128)}', space=vmem, size = 0x9000, scoped, tag = 'internal scratch']
  %s0 = inlined_call_operand.vmem [shape: bf16[2,1,6,64,128], index: 0, kind: input, shape index: {}]
  %s1 = inlined_call_operand.vmem [shape: bf16[2,4,64,128], index: 1, kind: input, shape index: {}]
  %s2 = inlined_call_operand.vmem [shape: bf16[512,128], index: 2, kind: input, shape index: {}]
  %s3 = inlined_call_operand.vmem [shape: f32[1,128], index: 3, kind: input, shape index: {}]
  %s4 = inlined_call_operand.vmem [shape: bf16[512,128], index: 4, kind: output, shape index: {}]
  %s5 = sld [smem:[#allocation0]]
  $region49: #{convolutional_block.7} parent=0
    _
  %s7 = ssub.s32 1, %s5
  %s8 = scalar_select 0, %s7, %s5
  loop: start=0, step=1, limit=4
  $region2: #{convolutional_block.7} parent=0 // loop_pre_header
    _
  $region3: #{convolutional_block.7} parent=0 // loop_header
    %s10 = sphi 0, %s14
    %p11 = scmp.ge.s32.totalorder %s10, 4
    %s20 = sphi 0, %s22
    %s23 = sphi 0, %s20
    %s24 = sphi 0, %s23
    %s40 = sphi 0, %s24
    %s46 = sphi 0, %s48
    %s49 = sphi 0, %s46
    %s50 = sphi 0, %s49
    %s66 = sphi 0, %s50
    %s70 = sphi 0, %s70
    %s72 = sphi 0, %s70
    %s73 = sphi 0, %s72
    %s87 = sphi 0, %s73
    %s91 = sphi 0, %s91
    %s93 = sphi 0, %s91
    %s94 = sphi 0, %s93
    %s108 = sphi 0, %s94
    %s114 = sphi 0, %s116
    %s117 = sphi 0, %s114
    %s118 = sphi 0, %s117
    %s134 = sphi 0, %s118
  $region4: #{convolutional_block.7} parent=0 // loop_header_branch
    %13 = sbr.rel (%p11) target = $region8
  $region5: #{convolutional_block.7} parent=0 // loop_body
    %s15 = ssub.s32 %s10, 1
    %s16 = ssub.s32 %s10, 2
    %s17 = sadd.s32 %s10, 1
    %s18 = ssub.s32 %s10, %s17
    %p19 = scmp.eq.s32.totalorder %s18, 0
    %s21 = sadd.s32 %s20, 1
    %s22 = scalar_select %p19, %s20, %s21
    %p25 = pneg %p19
    %p26 = scmp.eq.s32.totalorder %s10, 1
    %p27 = por %p25, %p26
    %p28 = scmp.ne.s32.totalorder %s20, %s23
    %p29 = scmp.eq.s32.totalorder %s10, 0
    %p30 = por %p28, %p29
    %p31 = scmp.ne.s32.totalorder %s20, %s23
    %p32 = scmp.eq.s32.totalorder %s15, 1
    %p33 = por %p31, %p32
    %p34 = scmp.ne.s32.totalorder %s23, %s24
    %p35 = scmp.eq.s32.totalorder %s15, 0
    %p36 = por %p34, %p35
    %p37 = scmp.ne.s32.totalorder %s23, %s24
    %p38 = scmp.eq.s32.totalorder %s16, 1
    %p39 = por %p37, %p38
    %p41 = scmp.ne.s32.totalorder %s24, %s40
    %p42 = scmp.eq.s32.totalorder %s16, 0
    %p43 = por %p41, %p42
    %s44 = ssub.s32 %s10, %s17
    %p45 = scmp.eq.s32.totalorder %s44, 0
    %s47 = sadd.s32 %s46, 1
    %s48 = scalar_select %p45, %s46, %s47
    %p51 = pneg %p45
    %p52 = scmp.eq.s32.totalorder %s10, 1
    %p53 = por %p51, %p52
    %p54 = scmp.ne.s32.totalorder %s46, %s49
    %p55 = scmp.eq.s32.totalorder %s10, 0
    %p56 = por %p54, %p55
    %p57 = scmp.ne.s32.totalorder %s46, %s49
    %p58 = scmp.eq.s32.totalorder %s15, 1
    %p59 = por %p57, %p58
    %p60 = scmp.ne.s32.totalorder %s49, %s50
    %p61 = scmp.eq.s32.totalorder %s15, 0
    %p62 = por %p60, %p61
    %p63 = scmp.ne.s32.totalorder %s49, %s50
    %p64 = scmp.eq.s32.totalorder %s16, 1
    %p65 = por %p63, %p64
    %p67 = scmp.ne.s32.totalorder %s50, %s66
    %p68 = scmp.eq.s32.totalorder %s16, 0
    %p69 = por %p67, %p68
    %s71 = sadd.s32 %s70, 1
    %p74 = scmp.eq.s32.totalorder %s10, 1
    %p75 = scmp.ne.s32.totalorder %s70, %s72
    %p76 = scmp.eq.s32.totalorder %s10, 0
    %p77 = por %p75, %p76
    %p78 = scmp.ne.s32.totalorder %s70, %s72
    %p79 = scmp.eq.s32.totalorder %s15, 1
    %p80 = por %p78, %p79
    %p81 = scmp.ne.s32.totalorder %s72, %s73
    %p82 = scmp.eq.s32.totalorder %s15, 0
    %p83 = por %p81, %p82
    %p84 = scmp.ne.s32.totalorder %s72, %s73
    %p85 = scmp.eq.s32.totalorder %s16, 1
    %p86 = por %p84, %p85
    %p88 = scmp.ne.s32.totalorder %s73, %s87
    %p89 = scmp.eq.s32.totalorder %s16, 0
    %p90 = por %p88, %p89
    %s92 = sadd.s32 %s91, 1
    %p95 = scmp.eq.s32.totalorder %s10, 1
    %p96 = scmp.ne.s32.totalorder %s91, %s93
    %p97 = scmp.eq.s32.totalorder %s10, 0
    %p98 = por %p96, %p97
    %p99 = scmp.ne.s32.totalorder %s91, %s93
    %p100 = scmp.eq.s32.totalorder %s15, 1
    %p101 = por %p99, %p100
    %p102 = scmp.ne.s32.totalorder %s93, %s94
    %p103 = scmp.eq.s32.totalorder %s15, 0
    %p104 = por %p102, %p103
    %p105 = scmp.ne.s32.totalorder %s93, %s94
    %p106 = scmp.eq.s32.totalorder %s16, 1
    %p107 = por %p105, %p106
    %p109 = scmp.ne.s32.totalorder %s94, %s108
    %p110 = scmp.eq.s32.totalorder %s16, 0
    %p111 = por %p109, %p110
    %s112 = ssub.s32 %s10, %s17
    %p113 = scmp.eq.s32.totalorder %s112, 0
    %s115 = sadd.s32 %s114, 1
    %s116 = scalar_select %p113, %s114, %s115
    %p119 = pneg %p113
    %p120 = scmp.eq.s32.totalorder %s10, 1
    %p121 = por %p119, %p120
    %p122 = scmp.ne.s32.totalorder %s114, %s117
    %p123 = scmp.eq.s32.totalorder %s10, 0
    %p124 = por %p122, %p123
    %p125 = scmp.ne.s32.totalorder %s114, %s117
    %p126 = scmp.eq.s32.totalorder %s15, 1
    %p127 = por %p125, %p126
    %p128 = scmp.ne.s32.totalorder %s117, %s118
    %p129 = scmp.eq.s32.totalorder %s15, 0
    %p130 = por %p128, %p129
    %p131 = scmp.ne.s32.totalorder %s117, %s118
    %p132 = scmp.eq.s32.totalorder %s16, 1
    %p133 = por %p131, %p132
    %p135 = scmp.ne.s32.totalorder %s118, %s134
    %p136 = scmp.eq.s32.totalorder %s16, 0
    %p137 = por %p135, %p136
    %p138 = scmp.le.s32.totalorder 1, %s10
    %p139 = scmp.lt.s32.totalorder %s10, 3
    %p140 = pnand %p138, %p139
    %p141 = pneg %p140
    // Predicated region
    $region9: #{convolutional_block.7} parent=5 // pred_check
      _
    $region10: #{convolutional_block.7} parent=5 // pred_check_branch
      %143 = sbr.rel (%p140) target = $region12
    $region11: #{convolutional_block.7} parent=5 // pred_region
      %s144 = ssub.s32 %s10, 1
      // Predicated region
      $region13: #{convolutional_block.7} parent=11 // pred_check
        %p145 = pneg %p83
      $region14: #{convolutional_block.7} parent=11 // pred_check_branch
        %147 = sbr.rel (%p145) target = $region16
      $region15: #{convolutional_block.7} parent=11 // pred_region
        _
      $region16: #{convolutional_block.7} parent=11 // pred_fallthru
        _
      // Predicated region
      $region17: #{convolutional_block.7} parent=11 // pred_check
        %p148 = pneg %p104
      $region18: #{convolutional_block.7} parent=11 // pred_check_branch
        %150 = sbr.rel (%p148) target = $region20
      $region19: #{convolutional_block.7} parent=11 // pred_region
        _
      $region20: #{convolutional_block.7} parent=11 // pred_fallthru
        _
    $region12: #{convolutional_block.7} parent=5 // pred_fallthru
      _
    %p151 = scmp.lt.s32.totalorder %s10, 2
    // Predicated region
    $region21: #{convolutional_block.7} parent=5 // pred_check
      %p152 = pneg %p151
    $region22: #{convolutional_block.7} parent=5 // pred_check_branch
      %154 = sbr.rel (%p152) target = $region24
    $region23: #{convolutional_block.7} parent=5 // pred_region
      // Predicated region
      $region25: #{convolutional_block.7} parent=23 // pred_check
        %p155 = pneg %p30
      $region26: #{convolutional_block.7} parent=23 // pred_check_branch
        %157 = sbr.rel (%p155) target = $region28
      $region27: #{convolutional_block.7} parent=23 // pred_region
        %p158 = scmp.lt.s32.totalorder %s10, 1
        %s159 = scalar_select %p158, %s10, 1
        %s160 = smul.addr %s159, 48
        %s161 = smul.addr %s160, 4
        %s162 = scalar_lea.vmem %s0, %s161
      $region28: #{convolutional_block.7} parent=23 // pred_fallthru
        _
      // Predicated region
      $region29: #{convolutional_block.7} parent=23 // pred_check
        %p163 = pneg %p56
      $region30: #{convolutional_block.7} parent=23 // pred_check_branch
        %165 = sbr.rel (%p163) target = $region32
      $region31: #{convolutional_block.7} parent=23 // pred_region
        %p166 = scmp.lt.s32.totalorder %s10, 1
        %s167 = scalar_select %p166, %s10, 1
        %s168 = smul.addr %s167, 32
        %s169 = smul.addr %s168, 4
        %s170 = scalar_lea.vmem %s1, %s169
      $region32: #{convolutional_block.7} parent=23 // pred_fallthru
        _
    $region24: #{convolutional_block.7} parent=5 // pred_fallthru
      _
    %p171 = scmp.le.s32.totalorder 1, %s10
    %p172 = scmp.lt.s32.totalorder %s10, 3
    %p173 = pnand %p171, %p172
    %p174 = pneg %p173
    // Predicated region
    $region33: #{convolutional_block.7} parent=5 // pred_check
      _
    $region34: #{convolutional_block.7} parent=5 // pred_check_branch
      %176 = sbr.rel (%p173) target = $region36
    $region35: #{convolutional_block.7} parent=5 // pred_region
      %s177 = ssub.s32 %s10, 1
      %p178 = scmp.lt.s32.totalorder %s15, 1
      %s179 = scalar_select %p178, %s15, 1
      %s180 = smul.addr %s179, 48
      %s181 = smul.addr %s180, 4
      %s182 = scalar_lea.vmem %s0, %s181
      %p183 = pneg %p36
      %p184 = pneg %p33
      %p185 = scmp.lt.s32.totalorder %s15, 1
      %s186 = scalar_select %p185, %s15, 1
      %s187 = smul.addr %s186, 32
      %s188 = smul.addr %s187, 4
      %s189 = scalar_lea.vmem %s1, %s188
      %p190 = pneg %p62
      %p191 = pneg %p59
      %p192 = pneg %p83
      %p193 = pneg %p80
      %p194 = pneg %p104
      %p195 = pneg %p101
      %p196 = pneg %p130
      %p197 = pneg %p127
      %s198 = smul.u32 32, %s15
      %p199 = scmp.lt.s32.totalorder %s198, 63
      %s200 = scalar_select %p199, %s198, 63
      %s201 = smul.addr %s200, 4
      %s202 = scalar_lea.vmem %s4, %s201
      %p203 = scmp.lt.s32.totalorder %s15, 1
      %s204 = scalar_select %p203, %s15, 1
      %s205 = smul.addr %s204, 48
      %s206 = smul.addr %s205, 4
      %s207 = scalar_lea.vmem %s0, %s206
      %p208 = scmp.lt.s32.totalorder %s15, 1
      %s209 = scalar_select %p208, %s15, 1
      %s210 = smul.addr %s209, 32
      %s211 = smul.addr %s210, 4
      %s212 = scalar_lea.vmem %s1, %s211
      %s213 = smul.u32 32, %s15
      %p214 = scmp.lt.s32.totalorder %s213, 63
      %s215 = scalar_select %p214, %s213, 63
      %s216 = smul.addr %s215, 4
      %s217 = scalar_lea.vmem %s4, %s216
      %s218 = smul.u32 32, %s15
      %v219 = vld [vmem:[%s207] sm:$0xf]
      %v220 = vld [vmem:[%s207 + $0x4] sm:$0xf]
      %v221 = vld [vmem:[%s207 + $0x8] sm:$0xf]
      %v222 = vld [vmem:[%s207 + $0xc] sm:$0xf]
      %v223 = vld [vmem:[%s207 + $0x10] sm:$0xf]
      %v224 = vld [vmem:[%s207 + $0x14] sm:$0xf]
      %v225 = vld [vmem:[%s207 + $0x18] sm:$0xf]
      %v226 = vld [vmem:[%s207 + $0x1c] sm:$0xf]
      %v227 = vld [vmem:[%s207 + $0x20] sm:$0xf]
      %v228 = vld [vmem:[%s207 + $0x24] sm:$0xf]
      %v229 = vld [vmem:[%s207 + $0x28] sm:$0xf]
      %v230 = vld [vmem:[%s207 + $0x2c] sm:$0xf]
      %v231 = vld [vmem:[%s207 + $0x30] sm:$0xf]
      %v232 = vld [vmem:[%s207 + $0x34] sm:$0xf]
      %v233 = vld [vmem:[%s207 + $0x38] sm:$0xf]
      %v234 = vld [vmem:[%s207 + $0x3c] sm:$0xf]
      %v235 = vld [vmem:[%s207 + $0x40] sm:$0xf]
      %v236 = vld [vmem:[%s207 + $0x44] sm:$0xf]
      %v237 = vld [vmem:[%s207 + $0x48] sm:$0xf]
      %v238 = vld [vmem:[%s207 + $0x4c] sm:$0xf]
      %v239 = vld [vmem:[%s207 + $0x50] sm:$0xf]
      %v240 = vld [vmem:[%s207 + $0x54] sm:$0xf]
      %v241 = vld [vmem:[%s207 + $0x58] sm:$0xf]
      %v242 = vld [vmem:[%s207 + $0x5c] sm:$0xf]
      %v243 = vld [vmem:[%s207 + $0x60] sm:$0xf]
      %v244 = vld [vmem:[%s207 + $0x64] sm:$0xf]
      %v245 = vld [vmem:[%s207 + $0x68] sm:$0xf]
      %v246 = vld [vmem:[%s207 + $0x6c] sm:$0xf]
      %v247 = vld [vmem:[%s207 + $0x70] sm:$0xf]
      %v248 = vld [vmem:[%s207 + $0x74] sm:$0xf]
      %v249 = vld [vmem:[%s207 + $0x78] sm:$0xf]
      %v250 = vld [vmem:[%s207 + $0x7c] sm:$0xf]
      %s251 = scalar_lea.vmem %s207, 32
      %v252 = vld [vmem:[%s251] sm:$0xf]
      %v253 = vld [vmem:[%s251 + $0x4] sm:$0xf]
      %v254 = vld [vmem:[%s251 + $0x8] sm:$0xf]
      %v255 = vld [vmem:[%s251 + $0xc] sm:$0xf]
      %v256 = vld [vmem:[%s251 + $0x10] sm:$0xf]
      %v257 = vld [vmem:[%s251 + $0x14] sm:$0xf]
      %v258 = vld [vmem:[%s251 + $0x18] sm:$0xf]
      %v259 = vld [vmem:[%s251 + $0x1c] sm:$0xf]
      %v260 = vld [vmem:[%s251 + $0x20] sm:$0xf]
      %v261 = vld [vmem:[%s251 + $0x24] sm:$0xf]
      %v262 = vld [vmem:[%s251 + $0x28] sm:$0xf]
      %v263 = vld [vmem:[%s251 + $0x2c] sm:$0xf]
      %v264 = vld [vmem:[%s251 + $0x30] sm:$0xf]
      %v265 = vld [vmem:[%s251 + $0x34] sm:$0xf]
      %v266 = vld [vmem:[%s251 + $0x38] sm:$0xf]
      %v267 = vld [vmem:[%s251 + $0x3c] sm:$0xf]
      %v268 = vld [vmem:[%s251 + $0x40] sm:$0xf]
      %v269 = vld [vmem:[%s251 + $0x44] sm:$0xf]
      %v270 = vld [vmem:[%s251 + $0x48] sm:$0xf]
      %v271 = vld [vmem:[%s251 + $0x4c] sm:$0xf]
      %v272 = vld [vmem:[%s251 + $0x50] sm:$0xf]
      %v273 = vld [vmem:[%s251 + $0x54] sm:$0xf]
      %v274 = vld [vmem:[%s251 + $0x58] sm:$0xf]
      %v275 = vld [vmem:[%s251 + $0x5c] sm:$0xf]
      %v276 = vld [vmem:[%s251 + $0x60] sm:$0xf]
      %v277 = vld [vmem:[%s251 + $0x64] sm:$0xf]
      %v278 = vld [vmem:[%s251 + $0x68] sm:$0xf]
      %v279 = vld [vmem:[%s251 + $0x6c] sm:$0xf]
      %v280 = vld [vmem:[%s251 + $0x70] sm:$0xf]
      %v281 = vld [vmem:[%s251 + $0x74] sm:$0xf]
      %v282 = vld [vmem:[%s251 + $0x78] sm:$0xf]
      %v283 = vld [vmem:[%s251 + $0x7c] sm:$0xf]
      %s284 = scalar_lea.vmem %s207, 64
      %v285 = vld [vmem:[%s284] sm:$0xf]
      %v286 = vld [vmem:[%s284 + $0x4] sm:$0xf]
      %v287 = vld [vmem:[%s284 + $0x8] sm:$0xf]
      %v288 = vld [vmem:[%s284 + $0xc] sm:$0xf]
      %v289 = vld [vmem:[%s284 + $0x10] sm:$0xf]
      %v290 = vld [vmem:[%s284 + $0x14] sm:$0xf]
      %v291 = vld [vmem:[%s284 + $0x18] sm:$0xf]
      %v292 = vld [vmem:[%s284 + $0x1c] sm:$0xf]
      %v293 = vld [vmem:[%s284 + $0x20] sm:$0xf]
      %v294 = vld [vmem:[%s284 + $0x24] sm:$0xf]
      %v295 = vld [vmem:[%s284 + $0x28] sm:$0xf]
      %v296 = vld [vmem:[%s284 + $0x2c] sm:$0xf]
      %v297 = vld [vmem:[%s284 + $0x30] sm:$0xf]
      %v298 = vld [vmem:[%s284 + $0x34] sm:$0xf]
      %v299 = vld [vmem:[%s284 + $0x38] sm:$0xf]
      %v300 = vld [vmem:[%s284 + $0x3c] sm:$0xf]
      %v301 = vld [vmem:[%s284 + $0x40] sm:$0xf]
      %v302 = vld [vmem:[%s284 + $0x44] sm:$0xf]
      %v303 = vld [vmem:[%s284 + $0x48] sm:$0xf]
      %v304 = vld [vmem:[%s284 + $0x4c] sm:$0xf]
      %v305 = vld [vmem:[%s284 + $0x50] sm:$0xf]
      %v306 = vld [vmem:[%s284 + $0x54] sm:$0xf]
      %v307 = vld [vmem:[%s284 + $0x58] sm:$0xf]
      %v308 = vld [vmem:[%s284 + $0x5c] sm:$0xf]
      %v309 = vld [vmem:[%s284 + $0x60] sm:$0xf]
      %v310 = vld [vmem:[%s284 + $0x64] sm:$0xf]
      %v311 = vld [vmem:[%s284 + $0x68] sm:$0xf]
      %v312 = vld [vmem:[%s284 + $0x6c] sm:$0xf]
      %v313 = vld [vmem:[%s284 + $0x70] sm:$0xf]
      %v314 = vld [vmem:[%s284 + $0x74] sm:$0xf]
      %v315 = vld [vmem:[%s284 + $0x78] sm:$0xf]
      %v316 = vld [vmem:[%s284 + $0x7c] sm:$0xf]
      %v317 = vld [vmem:[%s212] sm:$0xf]
      %v318 = vld [vmem:[%s212 + $0x4] sm:$0xf]
      %v319 = vld [vmem:[%s212 + $0x8] sm:$0xf]
      %v320 = vld [vmem:[%s212 + $0xc] sm:$0xf]
      %v321 = vld [vmem:[%s212 + $0x10] sm:$0xf]
      %v322 = vld [vmem:[%s212 + $0x14] sm:$0xf]
      %v323 = vld [vmem:[%s212 + $0x18] sm:$0xf]
      %v324 = vld [vmem:[%s212 + $0x1c] sm:$0xf]
      %v325 = vld [vmem:[%s212 + $0x20] sm:$0xf]
      %v326 = vld [vmem:[%s212 + $0x24] sm:$0xf]
      %v327 = vld [vmem:[%s212 + $0x28] sm:$0xf]
      %v328 = vld [vmem:[%s212 + $0x2c] sm:$0xf]
      %v329 = vld [vmem:[%s212 + $0x30] sm:$0xf]
      %v330 = vld [vmem:[%s212 + $0x34] sm:$0xf]
      %v331 = vld [vmem:[%s212 + $0x38] sm:$0xf]
      %v332 = vld [vmem:[%s212 + $0x3c] sm:$0xf]
      %v333 = vld [vmem:[%s212 + $0x40] sm:$0xf]
      %v334 = vld [vmem:[%s212 + $0x44] sm:$0xf]
      %v335 = vld [vmem:[%s212 + $0x48] sm:$0xf]
      %v336 = vld [vmem:[%s212 + $0x4c] sm:$0xf]
      %v337 = vld [vmem:[%s212 + $0x50] sm:$0xf]
      %v338 = vld [vmem:[%s212 + $0x54] sm:$0xf]
      %v339 = vld [vmem:[%s212 + $0x58] sm:$0xf]
      %v340 = vld [vmem:[%s212 + $0x5c] sm:$0xf]
      %v341 = vld [vmem:[%s212 + $0x60] sm:$0xf]
      %v342 = vld [vmem:[%s212 + $0x64] sm:$0xf]
      %v343 = vld [vmem:[%s212 + $0x68] sm:$0xf]
      %v344 = vld [vmem:[%s212 + $0x6c] sm:$0xf]
      %v345 = vld [vmem:[%s212 + $0x70] sm:$0xf]
      %v346 = vld [vmem:[%s212 + $0x74] sm:$0xf]
      %v347 = vld [vmem:[%s212 + $0x78] sm:$0xf]
      %v348 = vld [vmem:[%s212 + $0x7c] sm:$0xf]
      %v381 = vunpack.c.l.b16 %v219
      %v382 = vunpack.c.l.b16 %v220
      %v383 = vunpack.c.l.b16 %v221
      %v384 = vunpack.c.l.b16 %v222
      %v385 = vunpack.c.l.b16 %v223
      %v386 = vunpack.c.l.b16 %v224
      %v387 = vunpack.c.l.b16 %v225
      %v388 = vunpack.c.l.b16 %v226
      %v389 = vunpack.c.l.b16 %v227
      %v390 = vunpack.c.l.b16 %v228
      %v391 = vunpack.c.l.b16 %v229
      %v392 = vunpack.c.l.b16 %v230
      %v393 = vunpack.c.l.b16 %v231
      %v394 = vunpack.c.l.b16 %v232
      %v395 = vunpack.c.l.b16 %v233
      %v396 = vunpack.c.l.b16 %v234
      %v397 = vunpack.c.l.b16 %v235
      %v398 = vunpack.c.l.b16 %v236
      %v399 = vunpack.c.l.b16 %v237
      %v400 = vunpack.c.l.b16 %v238
      %v401 = vunpack.c.l.b16 %v239
      %v402 = vunpack.c.l.b16 %v240
      %v403 = vunpack.c.l.b16 %v241
      %v404 = vunpack.c.l.b16 %v242
      %v405 = vunpack.c.l.b16 %v243
      %v406 = vunpack.c.l.b16 %v244
      %v407 = vunpack.c.l.b16 %v245
      %v408 = vunpack.c.l.b16 %v246
      %v409 = vunpack.c.l.b16 %v247
      %v410 = vunpack.c.l.b16 %v248
      %v411 = vunpack.c.l.b16 %v249
      %v412 = vunpack.c.l.b16 %v250
      %v413 = vpack.c.b16 %v382, %v381
      %v414 = vpack.c.b16 %v384, %v383
      %v415 = vpack.c.b16 %v386, %v385
      %v416 = vpack.c.b16 %v388, %v387
      %v417 = vpack.c.b16 %v390, %v389
      %v418 = vpack.c.b16 %v392, %v391
      %v419 = vpack.c.b16 %v394, %v393
      %v420 = vpack.c.b16 %v396, %v395
      %v421 = vpack.c.b16 %v398, %v397
      %v422 = vpack.c.b16 %v400, %v399
      %v423 = vpack.c.b16 %v402, %v401
      %v424 = vpack.c.b16 %v404, %v403
      %v425 = vpack.c.b16 %v406, %v405
      %v426 = vpack.c.b16 %v408, %v407
      %v427 = vpack.c.b16 %v410, %v409
      %v428 = vpack.c.b16 %v412, %v411
      %v477 = vunpack.c.l.b16 %v252
      %v478 = vunpack.c.l.b16 %v253
      %v479 = vunpack.c.l.b16 %v254
      %v480 = vunpack.c.l.b16 %v255
      %v481 = vunpack.c.l.b16 %v256
      %v482 = vunpack.c.l.b16 %v257
      %v483 = vunpack.c.l.b16 %v258
      %v484 = vunpack.c.l.b16 %v259
      %v485 = vunpack.c.l.b16 %v260
      %v486 = vunpack.c.l.b16 %v261
      %v487 = vunpack.c.l.b16 %v262
      %v488 = vunpack.c.l.b16 %v263
      %v489 = vunpack.c.l.b16 %v264
      %v490 = vunpack.c.l.b16 %v265
      %v491 = vunpack.c.l.b16 %v266
      %v492 = vunpack.c.l.b16 %v267
      %v493 = vunpack.c.l.b16 %v268
      %v494 = vunpack.c.l.b16 %v269
      %v495 = vunpack.c.l.b16 %v270
      %v496 = vunpack.c.l.b16 %v271
      %v497 = vunpack.c.l.b16 %v272
      %v498 = vunpack.c.l.b16 %v273
      %v499 = vunpack.c.l.b16 %v274
      %v500 = vunpack.c.l.b16 %v275
      %v501 = vunpack.c.l.b16 %v276
      %v502 = vunpack.c.l.b16 %v277
      %v503 = vunpack.c.l.b16 %v278
      %v504 = vunpack.c.l.b16 %v279
      %v505 = vunpack.c.l.b16 %v280
      %v506 = vunpack.c.l.b16 %v281
      %v507 = vunpack.c.l.b16 %v282
      %v508 = vunpack.c.l.b16 %v283
      %v509 = vpack.c.b16 %v478, %v477
      %v510 = vpack.c.b16 %v480, %v479
      %v511 = vpack.c.b16 %v482, %v481
      %v512 = vpack.c.b16 %v484, %v483
      %v513 = vpack.c.b16 %v486, %v485
      %v514 = vpack.c.b16 %v488, %v487
      %v515 = vpack.c.b16 %v490, %v489
      %v516 = vpack.c.b16 %v492, %v491
      %v517 = vpack.c.b16 %v494, %v493
      %v518 = vpack.c.b16 %v496, %v495
      %v519 = vpack.c.b16 %v498, %v497
      %v520 = vpack.c.b16 %v500, %v499
      %v521 = vpack.c.b16 %v502, %v501
      %v522 = vpack.c.b16 %v504, %v503
      %v523 = vpack.c.b16 %v506, %v505
      %v524 = vpack.c.b16 %v508, %v507
      %v573 = vunpack.c.l.b16 %v285
      %v574 = vunpack.c.l.b16 %v286
      %v575 = vunpack.c.l.b16 %v287
      %v576 = vunpack.c.l.b16 %v288
      %v577 = vunpack.c.l.b16 %v289
      %v578 = vunpack.c.l.b16 %v290
      %v579 = vunpack.c.l.b16 %v291
      %v580 = vunpack.c.l.b16 %v292
      %v581 = vunpack.c.l.b16 %v293
      %v582 = vunpack.c.l.b16 %v294
      %v583 = vunpack.c.l.b16 %v295
      %v584 = vunpack.c.l.b16 %v296
      %v585 = vunpack.c.l.b16 %v297
      %v586 = vunpack.c.l.b16 %v298
      %v587 = vunpack.c.l.b16 %v299
      %v588 = vunpack.c.l.b16 %v300
      %v589 = vunpack.c.l.b16 %v301
      %v590 = vunpack.c.l.b16 %v302
      %v591 = vunpack.c.l.b16 %v303
      %v592 = vunpack.c.l.b16 %v304
      %v593 = vunpack.c.l.b16 %v305
      %v594 = vunpack.c.l.b16 %v306
      %v595 = vunpack.c.l.b16 %v307
      %v596 = vunpack.c.l.b16 %v308
      %v597 = vunpack.c.l.b16 %v309
      %v598 = vunpack.c.l.b16 %v310
      %v599 = vunpack.c.l.b16 %v311
      %v600 = vunpack.c.l.b16 %v312
      %v601 = vunpack.c.l.b16 %v313
      %v602 = vunpack.c.l.b16 %v314
      %v603 = vunpack.c.l.b16 %v315
      %v604 = vunpack.c.l.b16 %v316
      %v605 = vpack.c.b16 %v574, %v573
      %v606 = vpack.c.b16 %v576, %v575
      %v607 = vpack.c.b16 %v578, %v577
      %v608 = vpack.c.b16 %v580, %v579
      %v609 = vpack.c.b16 %v582, %v581
      %v610 = vpack.c.b16 %v584, %v583
      %v611 = vpack.c.b16 %v586, %v585
      %v612 = vpack.c.b16 %v588, %v587
      %v613 = vpack.c.b16 %v590, %v589
      %v614 = vpack.c.b16 %v592, %v591
      %v615 = vpack.c.b16 %v594, %v593
      %v616 = vpack.c.b16 %v596, %v595
      %v617 = vpack.c.b16 %v598, %v597
      %v618 = vpack.c.b16 %v600, %v599
      %v619 = vpack.c.b16 %v602, %v601
      %v620 = vpack.c.b16 %v604, %v603
      %v669 = vunpack.c.l.b16 %v317
      %v670 = vunpack.c.l.b16 %v318
      %v671 = vunpack.c.l.b16 %v319
      %v672 = vunpack.c.l.b16 %v320
      %v673 = vunpack.c.l.b16 %v321
      %v674 = vunpack.c.l.b16 %v322
      %v675 = vunpack.c.l.b16 %v323
      %v676 = vunpack.c.l.b16 %v324
      %v677 = vunpack.c.l.b16 %v325
      %v678 = vunpack.c.l.b16 %v326
      %v679 = vunpack.c.l.b16 %v327
      %v680 = vunpack.c.l.b16 %v328
      %v681 = vunpack.c.l.b16 %v329
      %v682 = vunpack.c.l.b16 %v330
      %v683 = vunpack.c.l.b16 %v331
      %v684 = vunpack.c.l.b16 %v332
      %v685 = vunpack.c.l.b16 %v333
      %v686 = vunpack.c.l.b16 %v334
      %v687 = vunpack.c.l.b16 %v335
      %v688 = vunpack.c.l.b16 %v336
      %v689 = vunpack.c.l.b16 %v337
      %v690 = vunpack.c.l.b16 %v338
      %v691 = vunpack.c.l.b16 %v339
      %v692 = vunpack.c.l.b16 %v340
      %v693 = vunpack.c.l.b16 %v341
      %v694 = vunpack.c.l.b16 %v342
      %v695 = vunpack.c.l.b16 %v343
      %v696 = vunpack.c.l.b16 %v344
      %v697 = vunpack.c.l.b16 %v345
      %v698 = vunpack.c.l.b16 %v346
      %v699 = vunpack.c.l.b16 %v347
      %v700 = vunpack.c.l.b16 %v348
      %v701 = vpack.c.b16 %v670, %v669
      %v702 = vpack.c.b16 %v672, %v671
      %v703 = vpack.c.b16 %v674, %v673
      %v704 = vpack.c.b16 %v676, %v675
      %v705 = vpack.c.b16 %v678, %v677
      %v706 = vpack.c.b16 %v680, %v679
      %v707 = vpack.c.b16 %v682, %v681
      %v708 = vpack.c.b16 %v684, %v683
      %v709 = vpack.c.b16 %v686, %v685
      %v710 = vpack.c.b16 %v688, %v687
      %v711 = vpack.c.b16 %v690, %v689
      %v712 = vpack.c.b16 %v692, %v691
      %v713 = vpack.c.b16 %v694, %v693
      %v714 = vpack.c.b16 %v696, %v695
      %v715 = vpack.c.b16 %v698, %v697
      %v716 = vpack.c.b16 %v700, %v699
      %v733 = vld [vmem:[%s2] sm:$0xf]
      %v734 = vld [vmem:[%s2 + $0x4] sm:$0xf]
      %v735 = vld [vmem:[%s2 + $0x8] sm:$0xf]
      %v736 = vld [vmem:[%s2 + $0xc] sm:$0xf]
      %v737 = vld [vmem:[%s2 + $0x10] sm:$0xf]
      %v738 = vld [vmem:[%s2 + $0x14] sm:$0xf]
      %v739 = vld [vmem:[%s2 + $0x18] sm:$0xf]
      %v740 = vld [vmem:[%s2 + $0x1c] sm:$0xf]
      %v741 = vld [vmem:[%s2 + $0x20] sm:$0xf]
      %v742 = vld [vmem:[%s2 + $0x24] sm:$0xf]
      %v743 = vld [vmem:[%s2 + $0x28] sm:$0xf]
      %v744 = vld [vmem:[%s2 + $0x2c] sm:$0xf]
      %v745 = vld [vmem:[%s2 + $0x30] sm:$0xf]
      %v746 = vld [vmem:[%s2 + $0x34] sm:$0xf]
      %v747 = vld [vmem:[%s2 + $0x38] sm:$0xf]
      %v748 = vld [vmem:[%s2 + $0x3c] sm:$0xf]
      %v749 = vld [vmem:[%s2 + $0x40] sm:$0xf]
      %v750 = vld [vmem:[%s2 + $0x44] sm:$0xf]
      %v751 = vld [vmem:[%s2 + $0x48] sm:$0xf]
      %v752 = vld [vmem:[%s2 + $0x4c] sm:$0xf]
      %v753 = vld [vmem:[%s2 + $0x50] sm:$0xf]
      %v754 = vld [vmem:[%s2 + $0x54] sm:$0xf]
      %v755 = vld [vmem:[%s2 + $0x58] sm:$0xf]
      %v756 = vld [vmem:[%s2 + $0x5c] sm:$0xf]
      %v757 = vld [vmem:[%s2 + $0x60] sm:$0xf]
      %v758 = vld [vmem:[%s2 + $0x64] sm:$0xf]
      %v759 = vld [vmem:[%s2 + $0x68] sm:$0xf]
      %v760 = vld [vmem:[%s2 + $0x6c] sm:$0xf]
      %v761 = vld [vmem:[%s2 + $0x70] sm:$0xf]
      %v762 = vld [vmem:[%s2 + $0x74] sm:$0xf]
      %v763 = vld [vmem:[%s2 + $0x78] sm:$0xf]
      %v764 = vld [vmem:[%s2 + $0x7c] sm:$0xf]
      %v765 = vld [vmem:[%s2 + $0x80] sm:$0xf]
      %v766 = vld [vmem:[%s2 + $0x84] sm:$0xf]
      %v767 = vld [vmem:[%s2 + $0x88] sm:$0xf]
      %v768 = vld [vmem:[%s2 + $0x8c] sm:$0xf]
      %v769 = vld [vmem:[%s2 + $0x90] sm:$0xf]
      %v770 = vld [vmem:[%s2 + $0x94] sm:$0xf]
      %v771 = vld [vmem:[%s2 + $0x98] sm:$0xf]
      %v772 = vld [vmem:[%s2 + $0x9c] sm:$0xf]
      %v773 = vld [vmem:[%s2 + $0xa0] sm:$0xf]
      %v774 = vld [vmem:[%s2 + $0xa4] sm:$0xf]
      %v775 = vld [vmem:[%s2 + $0xa8] sm:$0xf]
      %v776 = vld [vmem:[%s2 + $0xac] sm:$0xf]
      %v777 = vld [vmem:[%s2 + $0xb0] sm:$0xf]
      %v778 = vld [vmem:[%s2 + $0xb4] sm:$0xf]
      %v779 = vld [vmem:[%s2 + $0xb8] sm:$0xf]
      %v780 = vld [vmem:[%s2 + $0xbc] sm:$0xf]
      %v781 = vld [vmem:[%s2 + $0xc0] sm:$0xf]
      %v782 = vld [vmem:[%s2 + $0xc4] sm:$0xf]
      %v783 = vld [vmem:[%s2 + $0xc8] sm:$0xf]
      %v784 = vld [vmem:[%s2 + $0xcc] sm:$0xf]
      %v785 = vld [vmem:[%s2 + $0xd0] sm:$0xf]
      %v786 = vld [vmem:[%s2 + $0xd4] sm:$0xf]
      %v787 = vld [vmem:[%s2 + $0xd8] sm:$0xf]
      %v788 = vld [vmem:[%s2 + $0xdc] sm:$0xf]
      %v789 = vld [vmem:[%s2 + $0xe0] sm:$0xf]
      %v790 = vld [vmem:[%s2 + $0xe4] sm:$0xf]
      %v791 = vld [vmem:[%s2 + $0xe8] sm:$0xf]
      %v792 = vld [vmem:[%s2 + $0xec] sm:$0xf]
      %v793 = vld [vmem:[%s2 + $0xf0] sm:$0xf]
      %v794 = vld [vmem:[%s2 + $0xf4] sm:$0xf]
      %v795 = vld [vmem:[%s2 + $0xf8] sm:$0xf]
      %v796 = vld [vmem:[%s2 + $0xfc] sm:$0xf]
      %v797 = vld [vmem:[%s3] sm:$0x1]
      %v799 = vperm.slane %v797, 0
      %v865 = vunpack.c.l.b16 %v733
      %v866 = vunpack.c.l.b16 %v734
      %v867 = vunpack.c.l.b16 %v735
      %v868 = vunpack.c.l.b16 %v736
      %v869 = vunpack.c.l.b16 %v737
      %v870 = vunpack.c.l.b16 %v738
      %v871 = vunpack.c.l.b16 %v739
      %v872 = vunpack.c.l.b16 %v740
      %v873 = vunpack.c.l.b16 %v741
      %v874 = vunpack.c.l.b16 %v742
      %v875 = vunpack.c.l.b16 %v743
      %v876 = vunpack.c.l.b16 %v744
      %v877 = vunpack.c.l.b16 %v745
      %v878 = vunpack.c.l.b16 %v746
      %v879 = vunpack.c.l.b16 %v747
      %v880 = vunpack.c.l.b16 %v748
      %v881 = vunpack.c.l.b16 %v749
      %v882 = vunpack.c.l.b16 %v750
      %v883 = vunpack.c.l.b16 %v751
      %v884 = vunpack.c.l.b16 %v752
      %v885 = vunpack.c.l.b16 %v753
      %v886 = vunpack.c.l.b16 %v754
      %v887 = vunpack.c.l.b16 %v755
      %v888 = vunpack.c.l.b16 %v756
      %v889 = vunpack.c.l.b16 %v757
      %v890 = vunpack.c.l.b16 %v758
      %v891 = vunpack.c.l.b16 %v759
      %v892 = vunpack.c.l.b16 %v760
      %v893 = vunpack.c.l.b16 %v761
      %v894 = vunpack.c.l.b16 %v762
      %v895 = vunpack.c.l.b16 %v763
      %v896 = vunpack.c.l.b16 %v764
      %v897 = vunpack.c.l.b16 %v765
      %v898 = vunpack.c.l.b16 %v766
      %v899 = vunpack.c.l.b16 %v767
      %v900 = vunpack.c.l.b16 %v768
      %v901 = vunpack.c.l.b16 %v769
      %v902 = vunpack.c.l.b16 %v770
      %v903 = vunpack.c.l.b16 %v771
      %v904 = vunpack.c.l.b16 %v772
      %v905 = vunpack.c.l.b16 %v773
      %v906 = vunpack.c.l.b16 %v774
      %v907 = vunpack.c.l.b16 %v775
      %v908 = vunpack.c.l.b16 %v776
      %v909 = vunpack.c.l.b16 %v777
      %v910 = vunpack.c.l.b16 %v778
      %v911 = vunpack.c.l.b16 %v779
      %v912 = vunpack.c.l.b16 %v780
      %v913 = vunpack.c.l.b16 %v781
      %v914 = vunpack.c.l.b16 %v782
      %v915 = vunpack.c.l.b16 %v783
      %v916 = vunpack.c.l.b16 %v784
      %v917 = vunpack.c.l.b16 %v785
      %v918 = vunpack.c.l.b16 %v786
      %v919 = vunpack.c.l.b16 %v787
      %v920 = vunpack.c.l.b16 %v788
      %v921 = vunpack.c.l.b16 %v789
      %v922 = vunpack.c.l.b16 %v790
      %v923 = vunpack.c.l.b16 %v791
      %v924 = vunpack.c.l.b16 %v792
      %v925 = vunpack.c.l.b16 %v793
      %v926 = vunpack.c.l.b16 %v794
      %v927 = vunpack.c.l.b16 %v795
      %v928 = vunpack.c.l.b16 %v796
      %v929 = vpack.c.b16 %v866, %v865
      %v930 = vpack.c.b16 %v868, %v867
      %v931 = vpack.c.b16 %v870, %v869
      %v932 = vpack.c.b16 %v872, %v871
      %v933 = vpack.c.b16 %v874, %v873
      %v934 = vpack.c.b16 %v876, %v875
      %v935 = vpack.c.b16 %v878, %v877
      %v936 = vpack.c.b16 %v880, %v879
      %v937 = vpack.c.b16 %v882, %v881
      %v938 = vpack.c.b16 %v884, %v883
      %v939 = vpack.c.b16 %v886, %v885
      %v940 = vpack.c.b16 %v888, %v887
      %v941 = vpack.c.b16 %v890, %v889
      %v942 = vpack.c.b16 %v892, %v891
      %v943 = vpack.c.b16 %v894, %v893
      %v944 = vpack.c.b16 %v896, %v895
      %v945 = vpack.c.b16 %v898, %v897
      %v946 = vpack.c.b16 %v900, %v899
      %v947 = vpack.c.b16 %v902, %v901
      %v948 = vpack.c.b16 %v904, %v903
      %v949 = vpack.c.b16 %v906, %v905
      %v950 = vpack.c.b16 %v908, %v907
      %v951 = vpack.c.b16 %v910, %v909
      %v952 = vpack.c.b16 %v912, %v911
      %v953 = vpack.c.b16 %v914, %v913
      %v954 = vpack.c.b16 %v916, %v915
      %v955 = vpack.c.b16 %v918, %v917
      %v956 = vpack.c.b16 %v920, %v919
      %v957 = vpack.c.b16 %v922, %v921
      %v958 = vpack.c.b16 %v924, %v923
      %v959 = vpack.c.b16 %v926, %v925
      %v960 = vpack.c.b16 %v928, %v927
      %993 = vmatpush.bf16.msra.mxu0 %v936
      %994 = vmatpush.bf16.msra.mxu0 %v935
      %995 = vmatpush.bf16.msra.mxu0 %v934
      %996 = vmatpush.bf16.msra.mxu0 %v933
      %997 = vmatpush.bf16.msra.mxu0 %v932
      %998 = vmatpush.bf16.msra.mxu0 %v931
      %999 = vmatpush.bf16.msra.mxu0 %v930
      %1000 = vmatpush.bf16.msra.mxu0 %v929
      %1001 = vmatmul.bf16.gmra.mxu0 %v413
      %v1002 = vpop.f32.mrf.mxu0
      %v1003 = vadd.f32 %v799, %v1002
      %v1004 = vpop.f32.mrf.mxu0
      %v1005 = vadd.f32 %v799, %v1004
      %1006 = vmatmul.bf16.gmra.mxu0 %v414
      %v1007 = vpop.f32.mrf.mxu0
      %v1008 = vadd.f32 %v799, %v1007
      %v1009 = vpop.f32.mrf.mxu0
      %v1010 = vadd.f32 %v799, %v1009
      %1011 = vmatmul.bf16.gmra.mxu0 %v415
      %v1012 = vpop.f32.mrf.mxu0
      %v1013 = vadd.f32 %v799, %v1012
      %v1014 = vpop.f32.mrf.mxu0
      %v1015 = vadd.f32 %v799, %v1014
      %1016 = vmatmul.bf16.gmra.mxu0 %v416
      %v1017 = vpop.f32.mrf.mxu0
      %v1018 = vadd.f32 %v799, %v1017
      %v1019 = vpop.f32.mrf.mxu0
      %v1020 = vadd.f32 %v799, %v1019
      %1021 = vmatmul.bf16.gmra.mxu0 %v417
      %v1022 = vpop.f32.mrf.mxu0
      %v1023 = vadd.f32 %v799, %v1022
      %v1024 = vpop.f32.mrf.mxu0
      %v1025 = vadd.f32 %v799, %v1024
      %1026 = vmatmul.bf16.gmra.mxu0 %v418
      %v1027 = vpop.f32.mrf.mxu0
      %v1028 = vadd.f32 %v799, %v1027
      %v1029 = vpop.f32.mrf.mxu0
      %v1030 = vadd.f32 %v799, %v1029
      %1031 = vmatmul.bf16.gmra.mxu0 %v419
      %v1032 = vpop.f32.mrf.mxu0
      %v1033 = vadd.f32 %v799, %v1032
      %v1034 = vpop.f32.mrf.mxu0
      %v1035 = vadd.f32 %v799, %v1034
      %1036 = vmatmul.bf16.gmra.mxu0 %v420
      %v1037 = vpop.f32.mrf.mxu0
      %v1038 = vadd.f32 %v799, %v1037
      %v1039 = vpop.f32.mrf.mxu0
      %v1040 = vadd.f32 %v799, %v1039
      %1041 = vmatmul.bf16.gmra.mxu0 %v421
      %v1042 = vpop.f32.mrf.mxu0
      %v1043 = vadd.f32 %v799, %v1042
      %v1044 = vpop.f32.mrf.mxu0
      %v1045 = vadd.f32 %v799, %v1044
      %1046 = vmatmul.bf16.gmra.mxu0 %v422
      %v1047 = vpop.f32.mrf.mxu0
      %v1048 = vadd.f32 %v799, %v1047
      %v1049 = vpop.f32.mrf.mxu0
      %v1050 = vadd.f32 %v799, %v1049
      %1051 = vmatmul.bf16.gmra.mxu0 %v423
      %v1052 = vpop.f32.mrf.mxu0
      %v1053 = vadd.f32 %v799, %v1052
      %v1054 = vpop.f32.mrf.mxu0
      %v1055 = vadd.f32 %v799, %v1054
      %1056 = vmatmul.bf16.gmra.mxu0 %v424
      %v1057 = vpop.f32.mrf.mxu0
      %v1058 = vadd.f32 %v799, %v1057
      %v1059 = vpop.f32.mrf.mxu0
      %v1060 = vadd.f32 %v799, %v1059
      %1061 = vmatmul.bf16.gmra.mxu0 %v425
      %v1062 = vpop.f32.mrf.mxu0
      %v1063 = vadd.f32 %v799, %v1062
      %v1064 = vpop.f32.mrf.mxu0
      %v1065 = vadd.f32 %v799, %v1064
      %1066 = vmatmul.bf16.gmra.mxu0 %v426
      %v1067 = vpop.f32.mrf.mxu0
      %v1068 = vadd.f32 %v799, %v1067
      %v1069 = vpop.f32.mrf.mxu0
      %v1070 = vadd.f32 %v799, %v1069
      %1071 = vmatmul.bf16.gmra.mxu0 %v427
      %v1072 = vpop.f32.mrf.mxu0
      %v1073 = vadd.f32 %v799, %v1072
      %v1074 = vpop.f32.mrf.mxu0
      %v1075 = vadd.f32 %v799, %v1074
      %1076 = vmatmul.bf16.gmra.mxu0 %v428
      %v1077 = vpop.f32.mrf.mxu0
      %v1078 = vadd.f32 %v799, %v1077
      %v1079 = vpop.f32.mrf.mxu0
      %v1080 = vadd.f32 %v799, %v1079
      %1081 = vdwg.mxu0
      %1082 = vmatpush.bf16.msra.mxu0 %v944
      %1083 = vmatpush.bf16.msra.mxu0 %v943
      %1084 = vmatpush.bf16.msra.mxu0 %v942
      %1085 = vmatpush.bf16.msra.mxu0 %v941
      %1086 = vmatpush.bf16.msra.mxu0 %v940
      %1087 = vmatpush.bf16.msra.mxu0 %v939
      %1088 = vmatpush.bf16.msra.mxu0 %v938
      %1089 = vmatpush.bf16.msra.mxu0 %v937
      %1090 = vmatmul.bf16.gmra.mxu0 %v509
      %v1091 = vpop.f32.mrf.mxu0
      %v1092 = vadd.f32 %v1003, %v1091
      %v1093 = vpop.f32.mrf.mxu0
      %v1094 = vadd.f32 %v1005, %v1093
      %1095 = vmatmul.bf16.gmra.mxu0 %v510
      %v1096 = vpop.f32.mrf.mxu0
      %v1097 = vadd.f32 %v1008, %v1096
      %v1098 = vpop.f32.mrf.mxu0
      %v1099 = vadd.f32 %v1010, %v1098
      %1100 = vmatmul.bf16.gmra.mxu0 %v511
      %v1101 = vpop.f32.mrf.mxu0
      %v1102 = vadd.f32 %v1013, %v1101
      %v1103 = vpop.f32.mrf.mxu0
      %v1104 = vadd.f32 %v1015, %v1103
      %1105 = vmatmul.bf16.gmra.mxu0 %v512
      %v1106 = vpop.f32.mrf.mxu0
      %v1107 = vadd.f32 %v1018, %v1106
      %v1108 = vpop.f32.mrf.mxu0
      %v1109 = vadd.f32 %v1020, %v1108
      %1110 = vmatmul.bf16.gmra.mxu0 %v513
      %v1111 = vpop.f32.mrf.mxu0
      %v1112 = vadd.f32 %v1023, %v1111
      %v1113 = vpop.f32.mrf.mxu0
      %v1114 = vadd.f32 %v1025, %v1113
      %1115 = vmatmul.bf16.gmra.mxu0 %v514
      %v1116 = vpop.f32.mrf.mxu0
      %v1117 = vadd.f32 %v1028, %v1116
      %v1118 = vpop.f32.mrf.mxu0
      %v1119 = vadd.f32 %v1030, %v1118
      %1120 = vmatmul.bf16.gmra.mxu0 %v515
      %v1121 = vpop.f32.mrf.mxu0
      %v1122 = vadd.f32 %v1033, %v1121
      %v1123 = vpop.f32.mrf.mxu0
      %v1124 = vadd.f32 %v1035, %v1123
      %1125 = vmatmul.bf16.gmra.mxu0 %v516
      %v1126 = vpop.f32.mrf.mxu0
      %v1127 = vadd.f32 %v1038, %v1126
      %v1128 = vpop.f32.mrf.mxu0
      %v1129 = vadd.f32 %v1040, %v1128
      %1130 = vmatmul.bf16.gmra.mxu0 %v517
      %v1131 = vpop.f32.mrf.mxu0
      %v1132 = vadd.f32 %v1043, %v1131
      %v1133 = vpop.f32.mrf.mxu0
      %v1134 = vadd.f32 %v1045, %v1133
      %1135 = vmatmul.bf16.gmra.mxu0 %v518
      %v1136 = vpop.f32.mrf.mxu0
      %v1137 = vadd.f32 %v1048, %v1136
      %v1138 = vpop.f32.mrf.mxu0
      %v1139 = vadd.f32 %v1050, %v1138
      %1140 = vmatmul.bf16.gmra.mxu0 %v519
      %v1141 = vpop.f32.mrf.mxu0
      %v1142 = vadd.f32 %v1053, %v1141
      %v1143 = vpop.f32.mrf.mxu0
      %v1144 = vadd.f32 %v1055, %v1143
      %1145 = vmatmul.bf16.gmra.mxu0 %v520
      %v1146 = vpop.f32.mrf.mxu0
      %v1147 = vadd.f32 %v1058, %v1146
      %v1148 = vpop.f32.mrf.mxu0
      %v1149 = vadd.f32 %v1060, %v1148
      %1150 = vmatmul.bf16.gmra.mxu0 %v521
      %v1151 = vpop.f32.mrf.mxu0
      %v1152 = vadd.f32 %v1063, %v1151
      %v1153 = vpop.f32.mrf.mxu0
      %v1154 = vadd.f32 %v1065, %v1153
      %1155 = vmatmul.bf16.gmra.mxu0 %v522
      %v1156 = vpop.f32.mrf.mxu0
      %v1157 = vadd.f32 %v1068, %v1156
      %v1158 = vpop.f32.mrf.mxu0
      %v1159 = vadd.f32 %v1070, %v1158
      %1160 = vmatmul.bf16.gmra.mxu0 %v523
      %v1161 = vpop.f32.mrf.mxu0
      %v1162 = vadd.f32 %v1073, %v1161
      %v1163 = vpop.f32.mrf.mxu0
      %v1164 = vadd.f32 %v1075, %v1163
      %1165 = vmatmul.bf16.gmra.mxu0 %v524
      %v1166 = vpop.f32.mrf.mxu0
      %v1167 = vadd.f32 %v1078, %v1166
      %v1168 = vpop.f32.mrf.mxu0
      %v1169 = vadd.f32 %v1080, %v1168
      %1170 = vdwg.mxu0
      %1171 = vmatpush.bf16.msra.mxu0 %v952
      %1172 = vmatpush.bf16.msra.mxu0 %v951
      %1173 = vmatpush.bf16.msra.mxu0 %v950
      %1174 = vmatpush.bf16.msra.mxu0 %v949
      %1175 = vmatpush.bf16.msra.mxu0 %v948
      %1176 = vmatpush.bf16.msra.mxu0 %v947
      %1177 = vmatpush.bf16.msra.mxu0 %v946
      %1178 = vmatpush.bf16.msra.mxu0 %v945
      %1179 = vmatmul.bf16.gmra.mxu0 %v605
      %v1180 = vpop.f32.mrf.mxu0
      %v1181 = vadd.f32 %v1092, %v1180
      %v1182 = vpop.f32.mrf.mxu0
      %v1183 = vadd.f32 %v1094, %v1182
      %1184 = vmatmul.bf16.gmra.mxu0 %v606
      %v1185 = vpop.f32.mrf.mxu0
      %v1186 = vadd.f32 %v1097, %v1185
      %v1187 = vpop.f32.mrf.mxu0
      %v1188 = vadd.f32 %v1099, %v1187
      %1189 = vmatmul.bf16.gmra.mxu0 %v607
      %v1190 = vpop.f32.mrf.mxu0
      %v1191 = vadd.f32 %v1102, %v1190
      %v1192 = vpop.f32.mrf.mxu0
      %v1193 = vadd.f32 %v1104, %v1192
      %1194 = vmatmul.bf16.gmra.mxu0 %v608
      %v1195 = vpop.f32.mrf.mxu0
      %v1196 = vadd.f32 %v1107, %v1195
      %v1197 = vpop.f32.mrf.mxu0
      %v1198 = vadd.f32 %v1109, %v1197
      %1199 = vmatmul.bf16.gmra.mxu0 %v609
      %v1200 = vpop.f32.mrf.mxu0
      %v1201 = vadd.f32 %v1112, %v1200
      %v1202 = vpop.f32.mrf.mxu0
      %v1203 = vadd.f32 %v1114, %v1202
      %1204 = vmatmul.bf16.gmra.mxu0 %v610
      %v1205 = vpop.f32.mrf.mxu0
      %v1206 = vadd.f32 %v1117, %v1205
      %v1207 = vpop.f32.mrf.mxu0
      %v1208 = vadd.f32 %v1119, %v1207
      %1209 = vmatmul.bf16.gmra.mxu0 %v611
      %v1210 = vpop.f32.mrf.mxu0
      %v1211 = vadd.f32 %v1122, %v1210
      %v1212 = vpop.f32.mrf.mxu0
      %v1213 = vadd.f32 %v1124, %v1212
      %1214 = vmatmul.bf16.gmra.mxu0 %v612
      %v1215 = vpop.f32.mrf.mxu0
      %v1216 = vadd.f32 %v1127, %v1215
      %v1217 = vpop.f32.mrf.mxu0
      %v1218 = vadd.f32 %v1129, %v1217
      %1219 = vmatmul.bf16.gmra.mxu0 %v613
      %v1220 = vpop.f32.mrf.mxu0
      %v1221 = vadd.f32 %v1132, %v1220
      %v1222 = vpop.f32.mrf.mxu0
      %v1223 = vadd.f32 %v1134, %v1222
      %1224 = vmatmul.bf16.gmra.mxu0 %v614
      %v1225 = vpop.f32.mrf.mxu0
      %v1226 = vadd.f32 %v1137, %v1225
      %v1227 = vpop.f32.mrf.mxu0
      %v1228 = vadd.f32 %v1139, %v1227
      %1229 = vmatmul.bf16.gmra.mxu0 %v615
      %v1230 = vpop.f32.mrf.mxu0
      %v1231 = vadd.f32 %v1142, %v1230
      %v1232 = vpop.f32.mrf.mxu0
      %v1233 = vadd.f32 %v1144, %v1232
      %1234 = vmatmul.bf16.gmra.mxu0 %v616
      %v1235 = vpop.f32.mrf.mxu0
      %v1236 = vadd.f32 %v1147, %v1235
      %v1237 = vpop.f32.mrf.mxu0
      %v1238 = vadd.f32 %v1149, %v1237
      %1239 = vmatmul.bf16.gmra.mxu0 %v617
      %v1240 = vpop.f32.mrf.mxu0
      %v1241 = vadd.f32 %v1152, %v1240
      %v1242 = vpop.f32.mrf.mxu0
      %v1243 = vadd.f32 %v1154, %v1242
      %1244 = vmatmul.bf16.gmra.mxu0 %v618
      %v1245 = vpop.f32.mrf.mxu0
      %v1246 = vadd.f32 %v1157, %v1245
      %v1247 = vpop.f32.mrf.mxu0
      %v1248 = vadd.f32 %v1159, %v1247
      %1249 = vmatmul.bf16.gmra.mxu0 %v619
      %v1250 = vpop.f32.mrf.mxu0
      %v1251 = vadd.f32 %v1162, %v1250
      %v1252 = vpop.f32.mrf.mxu0
      %v1253 = vadd.f32 %v1164, %v1252
      %1254 = vmatmul.bf16.gmra.mxu0 %v620
      %v1255 = vpop.f32.mrf.mxu0
      %v1256 = vadd.f32 %v1167, %v1255
      %v1257 = vpop.f32.mrf.mxu0
      %v1258 = vadd.f32 %v1169, %v1257
      %1259 = vdwg.mxu0
      %1260 = vmatpush.bf16.msra.mxu0 %v960
      %1261 = vmatpush.bf16.msra.mxu0 %v959
      %1262 = vmatpush.bf16.msra.mxu0 %v958
      %1263 = vmatpush.bf16.msra.mxu0 %v957
      %1264 = vmatpush.bf16.msra.mxu0 %v956
      %1265 = vmatpush.bf16.msra.mxu0 %v955
      %1266 = vmatpush.bf16.msra.mxu0 %v954
      %1267 = vmatpush.bf16.msra.mxu0 %v953
      %1268 = vmatmul.bf16.gmra.mxu0 %v701
      %v1269 = vpop.f32.mrf.mxu0
      %v1270 = vadd.f32 %v1181, %v1269
      %v1271 = vpop.f32.mrf.mxu0
      %v1272 = vadd.f32 %v1183, %v1271
      %1273 = vmatmul.bf16.gmra.mxu0 %v702
      %v1274 = vpop.f32.mrf.mxu0
      %v1275 = vadd.f32 %v1186, %v1274
      %v1276 = vpop.f32.mrf.mxu0
      %v1277 = vadd.f32 %v1188, %v1276
      %1278 = vmatmul.bf16.gmra.mxu0 %v703
      %v1279 = vpop.f32.mrf.mxu0
      %v1280 = vadd.f32 %v1191, %v1279
      %v1281 = vpop.f32.mrf.mxu0
      %v1282 = vadd.f32 %v1193, %v1281
      %1283 = vmatmul.bf16.gmra.mxu0 %v704
      %v1284 = vpop.f32.mrf.mxu0
      %v1285 = vadd.f32 %v1196, %v1284
      %v1286 = vpop.f32.mrf.mxu0
      %v1287 = vadd.f32 %v1198, %v1286
      %1288 = vmatmul.bf16.gmra.mxu0 %v705
      %v1289 = vpop.f32.mrf.mxu0
      %v1290 = vadd.f32 %v1201, %v1289
      %v1291 = vpop.f32.mrf.mxu0
      %v1292 = vadd.f32 %v1203, %v1291
      %1293 = vmatmul.bf16.gmra.mxu0 %v706
      %v1294 = vpop.f32.mrf.mxu0
      %v1295 = vadd.f32 %v1206, %v1294
      %v1296 = vpop.f32.mrf.mxu0
      %v1297 = vadd.f32 %v1208, %v1296
      %1298 = vmatmul.bf16.gmra.mxu0 %v707
      %v1299 = vpop.f32.mrf.mxu0
      %v1300 = vadd.f32 %v1211, %v1299
      %v1301 = vpop.f32.mrf.mxu0
      %v1302 = vadd.f32 %v1213, %v1301
      %1303 = vmatmul.bf16.gmra.mxu0 %v708
      %v1304 = vpop.f32.mrf.mxu0
      %v1305 = vadd.f32 %v1216, %v1304
      %v1306 = vpop.f32.mrf.mxu0
      %v1307 = vadd.f32 %v1218, %v1306
      %1308 = vmatmul.bf16.gmra.mxu0 %v709
      %v1309 = vpop.f32.mrf.mxu0
      %v1310 = vadd.f32 %v1221, %v1309
      %v1311 = vpop.f32.mrf.mxu0
      %v1312 = vadd.f32 %v1223, %v1311
      %1313 = vmatmul.bf16.gmra.mxu0 %v710
      %v1314 = vpop.f32.mrf.mxu0
      %v1315 = vadd.f32 %v1226, %v1314
      %v1316 = vpop.f32.mrf.mxu0
      %v1317 = vadd.f32 %v1228, %v1316
      %1318 = vmatmul.bf16.gmra.mxu0 %v711
      %v1319 = vpop.f32.mrf.mxu0
      %v1320 = vadd.f32 %v1231, %v1319
      %v1321 = vpop.f32.mrf.mxu0
      %v1322 = vadd.f32 %v1233, %v1321
      %1323 = vmatmul.bf16.gmra.mxu0 %v712
      %v1324 = vpop.f32.mrf.mxu0
      %v1325 = vadd.f32 %v1236, %v1324
      %v1326 = vpop.f32.mrf.mxu0
      %v1327 = vadd.f32 %v1238, %v1326
      %1328 = vmatmul.bf16.gmra.mxu0 %v713
      %v1329 = vpop.f32.mrf.mxu0
      %v1330 = vadd.f32 %v1241, %v1329
      %v1331 = vpop.f32.mrf.mxu0
      %v1332 = vadd.f32 %v1243, %v1331
      %1333 = vmatmul.bf16.gmra.mxu0 %v714
      %v1334 = vpop.f32.mrf.mxu0
      %v1335 = vadd.f32 %v1246, %v1334
      %v1336 = vpop.f32.mrf.mxu0
      %v1337 = vadd.f32 %v1248, %v1336
      %1338 = vmatmul.bf16.gmra.mxu0 %v715
      %v1339 = vpop.f32.mrf.mxu0
      %v1340 = vadd.f32 %v1251, %v1339
      %v1341 = vpop.f32.mrf.mxu0
      %v1342 = vadd.f32 %v1253, %v1341
      %1343 = vmatmul.bf16.gmra.mxu0 %v716
      %v1344 = vpop.f32.mrf.mxu0
      %v1345 = vadd.f32 %v1256, %v1344
      %v1346 = vpop.f32.mrf.mxu0
      %v1347 = vadd.f32 %v1258, %v1346
      %1348 = vdwg.mxu0
      %v1349 = vmax.f32 %v1270, 0.0
      %v1350 = vmax.f32 %v1272, 0.0
      %v1351 = vmax.f32 %v1275, 0.0
      %v1352 = vmax.f32 %v1277, 0.0
      %v1353 = vmax.f32 %v1280, 0.0
      %v1354 = vmax.f32 %v1282, 0.0
      %v1355 = vmax.f32 %v1285, 0.0
      %v1356 = vmax.f32 %v1287, 0.0
      %v1357 = vmax.f32 %v1290, 0.0
      %v1358 = vmax.f32 %v1292, 0.0
      %v1359 = vmax.f32 %v1295, 0.0
      %v1360 = vmax.f32 %v1297, 0.0
      %v1361 = vmax.f32 %v1300, 0.0
      %v1362 = vmax.f32 %v1302, 0.0
      %v1363 = vmax.f32 %v1305, 0.0
      %v1364 = vmax.f32 %v1307, 0.0
      %v1365 = vmax.f32 %v1310, 0.0
      %v1366 = vmax.f32 %v1312, 0.0
      %v1367 = vmax.f32 %v1315, 0.0
      %v1368 = vmax.f32 %v1317, 0.0
      %v1369 = vmax.f32 %v1320, 0.0
      %v1370 = vmax.f32 %v1322, 0.0
      %v1371 = vmax.f32 %v1325, 0.0
      %v1372 = vmax.f32 %v1327, 0.0
      %v1373 = vmax.f32 %v1330, 0.0
      %v1374 = vmax.f32 %v1332, 0.0
      %v1375 = vmax.f32 %v1335, 0.0
      %v1376 = vmax.f32 %v1337, 0.0
      %v1377 = vmax.f32 %v1340, 0.0
      %v1378 = vmax.f32 %v1342, 0.0
      %v1379 = vmax.f32 %v1345, 0.0
      %v1380 = vmax.f32 %v1347, 0.0
      %v1381 = vpack.c.bf16 %v1349, %v1349
      %v1382 = vpack.c.bf16 %v1350, %v1350
      %v1383 = vpack.c.bf16 %v1351, %v1351
      %v1384 = vpack.c.bf16 %v1352, %v1352
      %v1385 = vpack.c.bf16 %v1353, %v1353
      %v1386 = vpack.c.bf16 %v1354, %v1354
      %v1387 = vpack.c.bf16 %v1355, %v1355
      %v1388 = vpack.c.bf16 %v1356, %v1356
      %v1389 = vpack.c.bf16 %v1357, %v1357
      %v1390 = vpack.c.bf16 %v1358, %v1358
      %v1391 = vpack.c.bf16 %v1359, %v1359
      %v1392 = vpack.c.bf16 %v1360, %v1360
      %v1393 = vpack.c.bf16 %v1361, %v1361
      %v1394 = vpack.c.bf16 %v1362, %v1362
      %v1395 = vpack.c.bf16 %v1363, %v1363
      %v1396 = vpack.c.bf16 %v1364, %v1364
      %v1397 = vpack.c.bf16 %v1365, %v1365
      %v1398 = vpack.c.bf16 %v1366, %v1366
      %v1399 = vpack.c.bf16 %v1367, %v1367
      %v1400 = vpack.c.bf16 %v1368, %v1368
      %v1401 = vpack.c.bf16 %v1369, %v1369
      %v1402 = vpack.c.bf16 %v1370, %v1370
      %v1403 = vpack.c.bf16 %v1371, %v1371
      %v1404 = vpack.c.bf16 %v1372, %v1372
      %v1405 = vpack.c.bf16 %v1373, %v1373
      %v1406 = vpack.c.bf16 %v1374, %v1374
      %v1407 = vpack.c.bf16 %v1375, %v1375
      %v1408 = vpack.c.bf16 %v1376, %v1376
      %v1409 = vpack.c.bf16 %v1377, %v1377
      %v1410 = vpack.c.bf16 %v1378, %v1378
      %v1411 = vpack.c.bf16 %v1379, %v1379
      %v1412 = vpack.c.bf16 %v1380, %v1380
      %1413 = vst [vmem:[%s217] sm:$0xf] %v1381
      %1414 = vst [vmem:[%s217 + $0x4] sm:$0xf] %v1382
      %1415 = vst [vmem:[%s217 + $0x8] sm:$0xf] %v1383
      %1416 = vst [vmem:[%s217 + $0xc] sm:$0xf] %v1384
      %1417 = vst [vmem:[%s217 + $0x10] sm:$0xf] %v1385
      %1418 = vst [vmem:[%s217 + $0x14] sm:$0xf] %v1386
      %1419 = vst [vmem:[%s217 + $0x18] sm:$0xf] %v1387
      %1420 = vst [vmem:[%s217 + $0x1c] sm:$0xf] %v1388
      %1421 = vst [vmem:[%s217 + $0x20] sm:$0xf] %v1389
      %1422 = vst [vmem:[%s217 + $0x24] sm:$0xf] %v1390
      %1423 = vst [vmem:[%s217 + $0x28] sm:$0xf] %v1391
      %1424 = vst [vmem:[%s217 + $0x2c] sm:$0xf] %v1392
      %1425 = vst [vmem:[%s217 + $0x30] sm:$0xf] %v1393
      %1426 = vst [vmem:[%s217 + $0x34] sm:$0xf] %v1394
      %1427 = vst [vmem:[%s217 + $0x38] sm:$0xf] %v1395
      %1428 = vst [vmem:[%s217 + $0x3c] sm:$0xf] %v1396
      %1429 = vst [vmem:[%s217 + $0x40] sm:$0xf] %v1397
      %1430 = vst [vmem:[%s217 + $0x44] sm:$0xf] %v1398
      %1431 = vst [vmem:[%s217 + $0x48] sm:$0xf] %v1399
      %1432 = vst [vmem:[%s217 + $0x4c] sm:$0xf] %v1400
      %1433 = vst [vmem:[%s217 + $0x50] sm:$0xf] %v1401
      %1434 = vst [vmem:[%s217 + $0x54] sm:$0xf] %v1402
      %1435 = vst [vmem:[%s217 + $0x58] sm:$0xf] %v1403
      %1436 = vst [vmem:[%s217 + $0x5c] sm:$0xf] %v1404
      %1437 = vst [vmem:[%s217 + $0x60] sm:$0xf] %v1405
      %1438 = vst [vmem:[%s217 + $0x64] sm:$0xf] %v1406
      %1439 = vst [vmem:[%s217 + $0x68] sm:$0xf] %v1407
      %1440 = vst [vmem:[%s217 + $0x6c] sm:$0xf] %v1408
      %1441 = vst [vmem:[%s217 + $0x70] sm:$0xf] %v1409
      %1442 = vst [vmem:[%s217 + $0x74] sm:$0xf] %v1410
      %1443 = vst [vmem:[%s217 + $0x78] sm:$0xf] %v1411
      %1444 = vst [vmem:[%s217 + $0x7c] sm:$0xf] %v1412
      %s1445 = smul.u32 32, %s15
      %p1446 = scmp.lt.s32.totalorder %s1445, 63
      %s1447 = scalar_select %p1446, %s1445, 63
      %s1448 = smul.addr %s1447, 4
      %s1449 = scalar_lea.vmem %s4, %s1448
      // Predicated region
      $region37: #{convolutional_block.7} parent=35 // pred_check
        %p1450 = pneg %p127
      $region38: #{convolutional_block.7} parent=35 // pred_check_branch
        %1452 = sbr.rel (%p1450) target = $region40
      $region39: #{convolutional_block.7} parent=35 // pred_region
        %s1453 = smul.u32 32, %s15
      $region40: #{convolutional_block.7} parent=35 // pred_fallthru
        _
    $region36: #{convolutional_block.7} parent=5 // pred_fallthru
      _
    %p1454 = scmp.le.s32.totalorder 2, %s10
    // Predicated region
    $region41: #{convolutional_block.7} parent=5 // pred_check
      %p1455 = pneg %p1454
    $region42: #{convolutional_block.7} parent=5 // pred_check_branch
      %1457 = sbr.rel (%p1455) target = $region44
    $region43: #{convolutional_block.7} parent=5 // pred_region
      %s1458 = ssub.s32 %s10, 2
      // Predicated region
      $region45: #{convolutional_block.7} parent=43 // pred_check
        %p1459 = pneg %p133
      $region46: #{convolutional_block.7} parent=43 // pred_check_branch
        %1461 = sbr.rel (%p1459) target = $region48
      $region47: #{convolutional_block.7} parent=43 // pred_region
        %s1462 = smul.u32 32, %s16
        %p1463 = scmp.lt.s32.totalorder %s1462, 63
        %s1464 = scalar_select %p1463, %s1462, 63
        %s1465 = smul.addr %s1464, 4
        %s1466 = scalar_lea.vmem %s4, %s1465
      $region48: #{convolutional_block.7} parent=43 // pred_fallthru
        _
    $region44: #{convolutional_block.7} parent=5 // pred_fallthru
      _
  $region6: #{convolutional_block.7} parent=0 // loop_footer
    %s14 = sadd.s32 1, %s10
  $region7: #{convolutional_block.7} parent=0 // loop_footer_branch
    %9 = sbr.rel target = $region3
  $region8: #{convolutional_block.7} parent=0 // loop_exit
    _

// kernel: convolutional_block.6
$region0: #{convolutional_block.6}
  #allocation0 [shape = 'u32[]', space=smem, size = 0x4, offset = 0x4, fixed_abs, tag = 'smem constant byte address 0x4 - core index']
  #allocation1 [shape = 'u32[72,128]{1,0:T(1,128)}', space=vmem, size = 0x9000, scoped, tag = 'internal scratch']
  %s0 = inlined_call_operand.vmem [shape: bf16[8,1,10,10,128], index: 0, kind: input, shape index: {}]
  %s1 = inlined_call_operand.vmem [shape: bf16[1152,128], index: 1, kind: input, shape index: {}]
  %s2 = inlined_call_operand.vmem [shape: f32[1,128], index: 2, kind: input, shape index: {}]
  %s3 = inlined_call_operand.vmem [shape: bf16[512,128], index: 3, kind: output, shape index: {}]
  %s4 = sld [smem:[#allocation0]]
  $region45: #{convolutional_block.6} parent=0
    _
  %s6 = ssub.s32 1, %s4
  %s7 = scalar_select 0, %s6, %s4
  loop: start=0, step=1, limit=6
  $region2: #{convolutional_block.6} parent=0 // loop_pre_header
    _
  $region3: #{convolutional_block.6} parent=0 // loop_header
    %s9 = sphi 0, %s13
    %p10 = scmp.ge.s32.totalorder %s9, 6
    %s19 = sphi 0, %s21
    %s22 = sphi 0, %s19
    %s23 = sphi 0, %s22
    %s39 = sphi 0, %s23
    %s43 = sphi 0, %s43
    %s45 = sphi 0, %s43
    %s46 = sphi 0, %s45
    %s60 = sphi 0, %s46
    %s64 = sphi 0, %s64
    %s66 = sphi 0, %s64
    %s67 = sphi 0, %s66
    %s81 = sphi 0, %s67
    %s87 = sphi 0, %s89
    %s90 = sphi 0, %s87
    %s91 = sphi 0, %s90
    %s107 = sphi 0, %s91
  $region4: #{convolutional_block.6} parent=0 // loop_header_branch
    %12 = sbr.rel (%p10) target = $region8
  $region5: #{convolutional_block.6} parent=0 // loop_body
    %s14 = ssub.s32 %s9, 1
    %s15 = ssub.s32 %s9, 2
    %s16 = sadd.s32 %s9, 1
    %s17 = ssub.s32 %s9, %s16
    %p18 = scmp.eq.s32.totalorder %s17, 0
    %s20 = sadd.s32 %s19, 1
    %s21 = scalar_select %p18, %s19, %s20
    %p24 = pneg %p18
    %p25 = scmp.eq.s32.totalorder %s9, 3
    %p26 = por %p24, %p25
    %p27 = scmp.ne.s32.totalorder %s19, %s22
    %p28 = scmp.eq.s32.totalorder %s9, 0
    %p29 = por %p27, %p28
    %p30 = scmp.ne.s32.totalorder %s19, %s22
    %p31 = scmp.eq.s32.totalorder %s14, 3
    %p32 = por %p30, %p31
    %p33 = scmp.ne.s32.totalorder %s22, %s23
    %p34 = scmp.eq.s32.totalorder %s14, 0
    %p35 = por %p33, %p34
    %p36 = scmp.ne.s32.totalorder %s22, %s23
    %p37 = scmp.eq.s32.totalorder %s15, 3
    %p38 = por %p36, %p37
    %p40 = scmp.ne.s32.totalorder %s23, %s39
    %p41 = scmp.eq.s32.totalorder %s15, 0
    %p42 = por %p40, %p41
    %s44 = sadd.s32 %s43, 1
    %p47 = scmp.eq.s32.totalorder %s9, 3
    %p48 = scmp.ne.s32.totalorder %s43, %s45
    %p49 = scmp.eq.s32.totalorder %s9, 0
    %p50 = por %p48, %p49
    %p51 = scmp.ne.s32.totalorder %s43, %s45
    %p52 = scmp.eq.s32.totalorder %s14, 3
    %p53 = por %p51, %p52
    %p54 = scmp.ne.s32.totalorder %s45, %s46
    %p55 = scmp.eq.s32.totalorder %s14, 0
    %p56 = por %p54, %p55
    %p57 = scmp.ne.s32.totalorder %s45, %s46
    %p58 = scmp.eq.s32.totalorder %s15, 3
    %p59 = por %p57, %p58
    %p61 = scmp.ne.s32.totalorder %s46, %s60
    %p62 = scmp.eq.s32.totalorder %s15, 0
    %p63 = por %p61, %p62
    %s65 = sadd.s32 %s64, 1
    %p68 = scmp.eq.s32.totalorder %s9, 3
    %p69 = scmp.ne.s32.totalorder %s64, %s66
    %p70 = scmp.eq.s32.totalorder %s9, 0
    %p71 = por %p69, %p70
    %p72 = scmp.ne.s32.totalorder %s64, %s66
    %p73 = scmp.eq.s32.totalorder %s14, 3
    %p74 = por %p72, %p73
    %p75 = scmp.ne.s32.totalorder %s66, %s67
    %p76 = scmp.eq.s32.totalorder %s14, 0
    %p77 = por %p75, %p76
    %p78 = scmp.ne.s32.totalorder %s66, %s67
    %p79 = scmp.eq.s32.totalorder %s15, 3
    %p80 = por %p78, %p79
    %p82 = scmp.ne.s32.totalorder %s67, %s81
    %p83 = scmp.eq.s32.totalorder %s15, 0
    %p84 = por %p82, %p83
    %s85 = ssub.s32 %s9, %s16
    %p86 = scmp.eq.s32.totalorder %s85, 0
    %s88 = sadd.s32 %s87, 1
    %s89 = scalar_select %p86, %s87, %s88
    %p92 = pneg %p86
    %p93 = scmp.eq.s32.totalorder %s9, 3
    %p94 = por %p92, %p93
    %p95 = scmp.ne.s32.totalorder %s87, %s90
    %p96 = scmp.eq.s32.totalorder %s9, 0
    %p97 = por %p95, %p96
    %p98 = scmp.ne.s32.totalorder %s87, %s90
    %p99 = scmp.eq.s32.totalorder %s14, 3
    %p100 = por %p98, %p99
    %p101 = scmp.ne.s32.totalorder %s90, %s91
    %p102 = scmp.eq.s32.totalorder %s14, 0
    %p103 = por %p101, %p102
    %p104 = scmp.ne.s32.totalorder %s90, %s91
    %p105 = scmp.eq.s32.totalorder %s15, 3
    %p106 = por %p104, %p105
    %p108 = scmp.ne.s32.totalorder %s91, %s107
    %p109 = scmp.eq.s32.totalorder %s15, 0
    %p110 = por %p108, %p109
    %p111 = scmp.le.s32.totalorder 1, %s9
    %p112 = scmp.lt.s32.totalorder %s9, 5
    %p113 = pnand %p111, %p112
    %p114 = pneg %p113
    // Predicated region
    $region9: #{convolutional_block.6} parent=5 // pred_check
      _
    $region10: #{convolutional_block.6} parent=5 // pred_check_branch
      %116 = sbr.rel (%p113) target = $region12
    $region11: #{convolutional_block.6} parent=5 // pred_region
      %s117 = ssub.s32 %s9, 1
      // Predicated region
      $region13: #{convolutional_block.6} parent=11 // pred_check
        %p118 = pneg %p56
      $region14: #{convolutional_block.6} parent=11 // pred_check_branch
        %120 = sbr.rel (%p118) target = $region16
      $region15: #{convolutional_block.6} parent=11 // pred_region
        _
      $region16: #{convolutional_block.6} parent=11 // pred_fallthru
        _
      // Predicated region
      $region17: #{convolutional_block.6} parent=11 // pred_check
        %p121 = pneg %p77
      $region18: #{convolutional_block.6} parent=11 // pred_check_branch
        %123 = sbr.rel (%p121) target = $region20
      $region19: #{convolutional_block.6} parent=11 // pred_region
        _
      $region20: #{convolutional_block.6} parent=11 // pred_fallthru
        _
    $region12: #{convolutional_block.6} parent=5 // pred_fallthru
      _
    %p124 = scmp.lt.s32.totalorder %s9, 4
    // Predicated region
    $region21: #{convolutional_block.6} parent=5 // pred_check
      %p125 = pneg %p124
    $region22: #{convolutional_block.6} parent=5 // pred_check_branch
      %127 = sbr.rel (%p125) target = $region24
    $region23: #{convolutional_block.6} parent=5 // pred_region
      // Predicated region
      $region25: #{convolutional_block.6} parent=23 // pred_check
        %p128 = pneg %p29
      $region26: #{convolutional_block.6} parent=23 // pred_check_branch
        %130 = sbr.rel (%p128) target = $region28
      $region27: #{convolutional_block.6} parent=23 // pred_region
        %s131 = smul.u32 2, %s9
        %p132 = scmp.lt.s32.totalorder %s131, 7
        %s133 = scalar_select %p132, %s131, 7
        %s134 = smul.addr %s133, 20
        %s135 = smul.addr %s134, 4
        %s136 = scalar_lea.vmem %s0, %s135
        %s137 = smul.u32 2, %s9
      $region28: #{convolutional_block.6} parent=23 // pred_fallthru
        _
    $region24: #{convolutional_block.6} parent=5 // pred_fallthru
      _
    %p138 = scmp.le.s32.totalorder 1, %s9
    %p139 = scmp.lt.s32.totalorder %s9, 5
    %p140 = pnand %p138, %p139
    %p141 = pneg %p140
    // Predicated region
    $region29: #{convolutional_block.6} parent=5 // pred_check
      _
    $region30: #{convolutional_block.6} parent=5 // pred_check_branch
      %143 = sbr.rel (%p140) target = $region32
    $region31: #{convolutional_block.6} parent=5 // pred_region
      %s144 = ssub.s32 %s9, 1
      %s145 = smul.u32 2, %s14
      %p146 = scmp.lt.s32.totalorder %s145, 7
      %s147 = scalar_select %p146, %s145, 7
      %s148 = smul.addr %s147, 20
      %s149 = smul.addr %s148, 4
      %s150 = scalar_lea.vmem %s0, %s149
      %p151 = pneg %p35
      %p152 = pneg %p32
      %p153 = pneg %p56
      %p154 = pneg %p53
      %p155 = pneg %p77
      %p156 = pneg %p74
      %p157 = pneg %p103
      %p158 = pneg %p100
      %s159 = smul.u32 16, %s14
      %p160 = scmp.lt.s32.totalorder %s159, 63
      %s161 = scalar_select %p160, %s159, 63
      %s162 = smul.addr %s161, 4
      %s163 = scalar_lea.vmem %s3, %s162
      %s164 = smul.u32 2, %s14
      %p165 = scmp.lt.s32.totalorder %s164, 7
      %s166 = scalar_select %p165, %s164, 7
      %s167 = smul.addr %s166, 20
      %s168 = smul.addr %s167, 4
      %s169 = scalar_lea.vmem %s0, %s168
      %s170 = smul.u32 2, %s14
      %s171 = smul.u32 16, %s14
      %p172 = scmp.lt.s32.totalorder %s171, 63
      %s173 = scalar_select %p172, %s171, 63
      %s174 = smul.addr %s173, 4
      %s175 = scalar_lea.vmem %s3, %s174
      %s176 = smul.u32 16, %s14
      %v177 = vld [vmem:[%s169] sm:$0xf]
      %v178 = vld [vmem:[%s169 + $0x8] sm:$0xf]
      %v179 = vld [vmem:[%s169 + $0x10] sm:$0xf]
      %v180 = vld [vmem:[%s169 + $0x18] sm:$0xf]
      %v181 = vld [vmem:[%s169 + $0x20] sm:$0xf]
      %v182 = vld [vmem:[%s169 + $0x28] sm:$0xf]
      %v183 = vld [vmem:[%s169 + $0x30] sm:$0xf]
      %v184 = vld [vmem:[%s169 + $0x38] sm:$0xf]
      %v185 = vld [vmem:[%s169 + $0x50] sm:$0xf]
      %v186 = vld [vmem:[%s169 + $0x58] sm:$0xf]
      %v187 = vld [vmem:[%s169 + $0x60] sm:$0xf]
      %v188 = vld [vmem:[%s169 + $0x68] sm:$0xf]
      %v189 = vld [vmem:[%s169 + $0x70] sm:$0xf]
      %v190 = vld [vmem:[%s169 + $0x78] sm:$0xf]
      %v191 = vld [vmem:[%s169 + $0x80] sm:$0xf]
      %v192 = vld [vmem:[%s169 + $0x88] sm:$0xf]
      %v193 = vunpack.c.l.bf16 %v177
      %v194 = vunpack.c.l.bf16 %v178
      %v195 = vunpack.c.l.bf16 %v179
      %v196 = vunpack.c.l.bf16 %v180
      %v197 = vunpack.c.l.bf16 %v181
      %v198 = vunpack.c.l.bf16 %v182
      %v199 = vunpack.c.l.bf16 %v183
      %v200 = vunpack.c.l.bf16 %v184
      %v201 = vunpack.c.l.bf16 %v185
      %v202 = vunpack.c.l.bf16 %v186
      %v203 = vunpack.c.l.bf16 %v187
      %v204 = vunpack.c.l.bf16 %v188
      %v205 = vunpack.c.l.bf16 %v189
      %v206 = vunpack.c.l.bf16 %v190
      %v207 = vunpack.c.l.bf16 %v191
      %v208 = vunpack.c.l.bf16 %v192
      %v209 = vpack.c.bf16 %v193, %v193
      %v210 = vpack.c.bf16 %v194, %v194
      %v211 = vpack.c.bf16 %v195, %v195
      %v212 = vpack.c.bf16 %v196, %v196
      %v213 = vpack.c.bf16 %v197, %v197
      %v214 = vpack.c.bf16 %v198, %v198
      %v215 = vpack.c.bf16 %v199, %v199
      %v216 = vpack.c.bf16 %v200, %v200
      %v217 = vpack.c.bf16 %v201, %v201
      %v218 = vpack.c.bf16 %v202, %v202
      %v219 = vpack.c.bf16 %v203, %v203
      %v220 = vpack.c.bf16 %v204, %v204
      %v221 = vpack.c.bf16 %v205, %v205
      %v222 = vpack.c.bf16 %v206, %v206
      %v223 = vpack.c.bf16 %v207, %v207
      %v224 = vpack.c.bf16 %v208, %v208
      %v225 = vld [vmem:[%s169 + $0x4] sm:$0x1]
      %v226 = vld [vmem:[%s169 + $0xc] sm:$0x1]
      %v227 = vld [vmem:[%s169 + $0x14] sm:$0x1]
      %v228 = vld [vmem:[%s169 + $0x1c] sm:$0x1]
      %v229 = vld [vmem:[%s169 + $0x24] sm:$0x1]
      %v230 = vld [vmem:[%s169 + $0x2c] sm:$0x1]
      %v231 = vld [vmem:[%s169 + $0x34] sm:$0x1]
      %v232 = vld [vmem:[%s169 + $0x3c] sm:$0x1]
      %v233 = vld [vmem:[%s169 + $0x54] sm:$0x1]
      %v234 = vld [vmem:[%s169 + $0x5c] sm:$0x1]
      %v235 = vld [vmem:[%s169 + $0x64] sm:$0x1]
      %v236 = vld [vmem:[%s169 + $0x6c] sm:$0x1]
      %v237 = vld [vmem:[%s169 + $0x74] sm:$0x1]
      %v238 = vld [vmem:[%s169 + $0x7c] sm:$0x1]
      %v239 = vld [vmem:[%s169 + $0x84] sm:$0x1]
      %v240 = vld [vmem:[%s169 + $0x8c] sm:$0x1]
      %v241 = vunpack.c.l.bf16 %v225
      %v242 = vunpack.c.l.bf16 %v226
      %v243 = vunpack.c.l.bf16 %v227
      %v244 = vunpack.c.l.bf16 %v228
      %v245 = vunpack.c.l.bf16 %v229
      %v246 = vunpack.c.l.bf16 %v230
      %v247 = vunpack.c.l.bf16 %v231
      %v248 = vunpack.c.l.bf16 %v232
      %v249 = vunpack.c.l.bf16 %v233
      %v250 = vunpack.c.l.bf16 %v234
      %v251 = vunpack.c.l.bf16 %v235
      %v252 = vunpack.c.l.bf16 %v236
      %v253 = vunpack.c.l.bf16 %v237
      %v254 = vunpack.c.l.bf16 %v238
      %v255 = vunpack.c.l.bf16 %v239
      %v256 = vunpack.c.l.bf16 %v240
      %vm289 = vcmask 1046528
      %v290 = vrot.slane %v193, 1
      %v291 = vrot.slane %v241, 1
      %v292 = vsel %vm289, %v290, %v291
      %v293 = vrot.slane %v194, 1
      %v294 = vrot.slane %v242, 1
      %v295 = vsel %vm289, %v293, %v294
      %v296 = vrot.slane %v195, 1
      %v297 = vrot.slane %v243, 1
      %v298 = vsel %vm289, %v296, %v297
      %v299 = vrot.slane %v196, 1
      %v300 = vrot.slane %v244, 1
      %v301 = vsel %vm289, %v299, %v300
      %v302 = vrot.slane %v197, 1
      %v303 = vrot.slane %v245, 1
      %v304 = vsel %vm289, %v302, %v303
      %v305 = vrot.slane %v198, 1
      %v306 = vrot.slane %v246, 1
      %v307 = vsel %vm289, %v305, %v306
      %v308 = vrot.slane %v199, 1
      %v309 = vrot.slane %v247, 1
      %v310 = vsel %vm289, %v308, %v309
      %v311 = vrot.slane %v200, 1
      %v312 = vrot.slane %v248, 1
      %v313 = vsel %vm289, %v311, %v312
      %v314 = vrot.slane %v201, 1
      %v315 = vrot.slane %v249, 1
      %v316 = vsel %vm289, %v314, %v315
      %v317 = vrot.slane %v202, 1
      %v318 = vrot.slane %v250, 1
      %v319 = vsel %vm289, %v317, %v318
      %v320 = vrot.slane %v203, 1
      %v321 = vrot.slane %v251, 1
      %v322 = vsel %vm289, %v320, %v321
      %v323 = vrot.slane %v204, 1
      %v324 = vrot.slane %v252, 1
      %v325 = vsel %vm289, %v323, %v324
      %v326 = vrot.slane %v205, 1
      %v327 = vrot.slane %v253, 1
      %v328 = vsel %vm289, %v326, %v327
      %v329 = vrot.slane %v206, 1
      %v330 = vrot.slane %v254, 1
      %v331 = vsel %vm289, %v329, %v330
      %v332 = vrot.slane %v207, 1
      %v333 = vrot.slane %v255, 1
      %v334 = vsel %vm289, %v332, %v333
      %v335 = vrot.slane %v208, 1
      %v336 = vrot.slane %v256, 1
      %v337 = vsel %vm289, %v335, %v336
      %v354 = vpack.c.bf16 %v292, %v292
      %v355 = vpack.c.bf16 %v295, %v295
      %v356 = vpack.c.bf16 %v298, %v298
      %v357 = vpack.c.bf16 %v301, %v301
      %v358 = vpack.c.bf16 %v304, %v304
      %v359 = vpack.c.bf16 %v307, %v307
      %v360 = vpack.c.bf16 %v310, %v310
      %v361 = vpack.c.bf16 %v313, %v313
      %v362 = vpack.c.bf16 %v316, %v316
      %v363 = vpack.c.bf16 %v319, %v319
      %v364 = vpack.c.bf16 %v322, %v322
      %v365 = vpack.c.bf16 %v325, %v325
      %v366 = vpack.c.bf16 %v328, %v328
      %v367 = vpack.c.bf16 %v331, %v331
      %v368 = vpack.c.bf16 %v334, %v334
      %v369 = vpack.c.bf16 %v337, %v337
      %v370 = vld [vmem:[%s169] sm:$0xe]
      %v371 = vld [vmem:[%s169 + $0x8] sm:$0xe]
      %v372 = vld [vmem:[%s169 + $0x10] sm:$0xe]
      %v373 = vld [vmem:[%s169 + $0x18] sm:$0xe]
      %v374 = vld [vmem:[%s169 + $0x20] sm:$0xe]
      %v375 = vld [vmem:[%s169 + $0x28] sm:$0xe]
      %v376 = vld [vmem:[%s169 + $0x30] sm:$0xe]
      %v377 = vld [vmem:[%s169 + $0x38] sm:$0xe]
      %v378 = vld [vmem:[%s169 + $0x50] sm:$0xe]
      %v379 = vld [vmem:[%s169 + $0x58] sm:$0xe]
      %v380 = vld [vmem:[%s169 + $0x60] sm:$0xe]
      %v381 = vld [vmem:[%s169 + $0x68] sm:$0xe]
      %v382 = vld [vmem:[%s169 + $0x70] sm:$0xe]
      %v383 = vld [vmem:[%s169 + $0x78] sm:$0xe]
      %v384 = vld [vmem:[%s169 + $0x80] sm:$0xe]
      %v385 = vld [vmem:[%s169 + $0x88] sm:$0xe]
      %v386 = vunpack.c.l.bf16 %v370
      %v387 = vunpack.c.l.bf16 %v371
      %v388 = vunpack.c.l.bf16 %v372
      %v389 = vunpack.c.l.bf16 %v373
      %v390 = vunpack.c.l.bf16 %v374
      %v391 = vunpack.c.l.bf16 %v375
      %v392 = vunpack.c.l.bf16 %v376
      %v393 = vunpack.c.l.bf16 %v377
      %v394 = vunpack.c.l.bf16 %v378
      %v395 = vunpack.c.l.bf16 %v379
      %v396 = vunpack.c.l.bf16 %v380
      %v397 = vunpack.c.l.bf16 %v381
      %v398 = vunpack.c.l.bf16 %v382
      %v399 = vunpack.c.l.bf16 %v383
      %v400 = vunpack.c.l.bf16 %v384
      %v401 = vunpack.c.l.bf16 %v385
      %vm418 = vcmask 1045504
      %v419 = vrot.slane %v386, 2
      %v420 = vrot.slane %v241, 2
      %v421 = vsel %vm418, %v419, %v420
      %v422 = vrot.slane %v387, 2
      %v423 = vrot.slane %v242, 2
      %v424 = vsel %vm418, %v422, %v423
      %v425 = vrot.slane %v388, 2
      %v426 = vrot.slane %v243, 2
      %v427 = vsel %vm418, %v425, %v426
      %v428 = vrot.slane %v389, 2
      %v429 = vrot.slane %v244, 2
      %v430 = vsel %vm418, %v428, %v429
      %v431 = vrot.slane %v390, 2
      %v432 = vrot.slane %v245, 2
      %v433 = vsel %vm418, %v431, %v432
      %v434 = vrot.slane %v391, 2
      %v435 = vrot.slane %v246, 2
      %v436 = vsel %vm418, %v434, %v435
      %v437 = vrot.slane %v392, 2
      %v438 = vrot.slane %v247, 2
      %v439 = vsel %vm418, %v437, %v438
      %v440 = vrot.slane %v393, 2
      %v441 = vrot.slane %v248, 2
      %v442 = vsel %vm418, %v440, %v441
      %v443 = vrot.slane %v394, 2
      %v444 = vrot.slane %v249, 2
      %v445 = vsel %vm418, %v443, %v444
      %v446 = vrot.slane %v395, 2
      %v447 = vrot.slane %v250, 2
      %v448 = vsel %vm418, %v446, %v447
      %v449 = vrot.slane %v396, 2
      %v450 = vrot.slane %v251, 2
      %v451 = vsel %vm418, %v449, %v450
      %v452 = vrot.slane %v397, 2
      %v453 = vrot.slane %v252, 2
      %v454 = vsel %vm418, %v452, %v453
      %v455 = vrot.slane %v398, 2
      %v456 = vrot.slane %v253, 2
      %v457 = vsel %vm418, %v455, %v456
      %v458 = vrot.slane %v399, 2
      %v459 = vrot.slane %v254, 2
      %v460 = vsel %vm418, %v458, %v459
      %v461 = vrot.slane %v400, 2
      %v462 = vrot.slane %v255, 2
      %v463 = vsel %vm418, %v461, %v462
      %v464 = vrot.slane %v401, 2
      %v465 = vrot.slane %v256, 2
      %v466 = vsel %vm418, %v464, %v465
      %v483 = vpack.c.bf16 %v421, %v421
      %v484 = vpack.c.bf16 %v424, %v424
      %v485 = vpack.c.bf16 %v427, %v427
      %v486 = vpack.c.bf16 %v430, %v430
      %v487 = vpack.c.bf16 %v433, %v433
      %v488 = vpack.c.bf16 %v436, %v436
      %v489 = vpack.c.bf16 %v439, %v439
      %v490 = vpack.c.bf16 %v442, %v442
      %v491 = vpack.c.bf16 %v445, %v445
      %v492 = vpack.c.bf16 %v448, %v448
      %v493 = vpack.c.bf16 %v451, %v451
      %v494 = vpack.c.bf16 %v454, %v454
      %v495 = vpack.c.bf16 %v457, %v457
      %v496 = vpack.c.bf16 %v460, %v460
      %v497 = vpack.c.bf16 %v463, %v463
      %v498 = vpack.c.bf16 %v466, %v466
      %s499 = scalar_lea.vmem %s169, 8
      %v500 = vld [vmem:[%s499] sm:$0xf]
      %v501 = vld [vmem:[%s499 + $0x8] sm:$0xf]
      %v502 = vld [vmem:[%s499 + $0x10] sm:$0xf]
      %v503 = vld [vmem:[%s499 + $0x18] sm:$0xf]
      %v504 = vld [vmem:[%s499 + $0x20] sm:$0xf]
      %v505 = vld [vmem:[%s499 + $0x28] sm:$0xf]
      %v506 = vld [vmem:[%s499 + $0x30] sm:$0xf]
      %v507 = vld [vmem:[%s499 + $0x38] sm:$0xf]
      %v508 = vld [vmem:[%s499 + $0x50] sm:$0xf]
      %v509 = vld [vmem:[%s499 + $0x58] sm:$0xf]
      %v510 = vld [vmem:[%s499 + $0x60] sm:$0xf]
      %v511 = vld [vmem:[%s499 + $0x68] sm:$0xf]
      %v512 = vld [vmem:[%s499 + $0x70] sm:$0xf]
      %v513 = vld [vmem:[%s499 + $0x78] sm:$0xf]
      %v514 = vld [vmem:[%s499 + $0x80] sm:$0xf]
      %v515 = vld [vmem:[%s499 + $0x88] sm:$0xf]
      %v516 = vunpack.c.l.bf16 %v500
      %v517 = vunpack.c.l.bf16 %v501
      %v518 = vunpack.c.l.bf16 %v502
      %v519 = vunpack.c.l.bf16 %v503
      %v520 = vunpack.c.l.bf16 %v504
      %v521 = vunpack.c.l.bf16 %v505
      %v522 = vunpack.c.l.bf16 %v506
      %v523 = vunpack.c.l.bf16 %v507
      %v524 = vunpack.c.l.bf16 %v508
      %v525 = vunpack.c.l.bf16 %v509
      %v526 = vunpack.c.l.bf16 %v510
      %v527 = vunpack.c.l.bf16 %v511
      %v528 = vunpack.c.l.bf16 %v512
      %v529 = vunpack.c.l.bf16 %v513
      %v530 = vunpack.c.l.bf16 %v514
      %v531 = vunpack.c.l.bf16 %v515
      %v532 = vpack.c.bf16 %v516, %v516
      %v533 = vpack.c.bf16 %v517, %v517
      %v534 = vpack.c.bf16 %v518, %v518
      %v535 = vpack.c.bf16 %v519, %v519
      %v536 = vpack.c.bf16 %v520, %v520
      %v537 = vpack.c.bf16 %v521, %v521
      %v538 = vpack.c.bf16 %v522, %v522
      %v539 = vpack.c.bf16 %v523, %v523
      %v540 = vpack.c.bf16 %v524, %v524
      %v541 = vpack.c.bf16 %v525, %v525
      %v542 = vpack.c.bf16 %v526, %v526
      %v543 = vpack.c.bf16 %v527, %v527
      %v544 = vpack.c.bf16 %v528, %v528
      %v545 = vpack.c.bf16 %v529, %v529
      %v546 = vpack.c.bf16 %v530, %v530
      %v547 = vpack.c.bf16 %v531, %v531
      %v548 = vld [vmem:[%s499 + $0x4] sm:$0x1]
      %v549 = vld [vmem:[%s499 + $0xc] sm:$0x1]
      %v550 = vld [vmem:[%s499 + $0x14] sm:$0x1]
      %v551 = vld [vmem:[%s499 + $0x1c] sm:$0x1]
      %v552 = vld [vmem:[%s499 + $0x24] sm:$0x1]
      %v553 = vld [vmem:[%s499 + $0x2c] sm:$0x1]
      %v554 = vld [vmem:[%s499 + $0x34] sm:$0x1]
      %v555 = vld [vmem:[%s499 + $0x3c] sm:$0x1]
      %v556 = vld [vmem:[%s499 + $0x54] sm:$0x1]
      %v557 = vld [vmem:[%s499 + $0x5c] sm:$0x1]
      %v558 = vld [vmem:[%s499 + $0x64] sm:$0x1]
      %v559 = vld [vmem:[%s499 + $0x6c] sm:$0x1]
      %v560 = vld [vmem:[%s499 + $0x74] sm:$0x1]
      %v561 = vld [vmem:[%s499 + $0x7c] sm:$0x1]
      %v562 = vld [vmem:[%s499 + $0x84] sm:$0x1]
      %v563 = vld [vmem:[%s499 + $0x8c] sm:$0x1]
      %v564 = vunpack.c.l.bf16 %v548
      %v565 = vunpack.c.l.bf16 %v549
      %v566 = vunpack.c.l.bf16 %v550
      %v567 = vunpack.c.l.bf16 %v551
      %v568 = vunpack.c.l.bf16 %v552
      %v569 = vunpack.c.l.bf16 %v553
      %v570 = vunpack.c.l.bf16 %v554
      %v571 = vunpack.c.l.bf16 %v555
      %v572 = vunpack.c.l.bf16 %v556
      %v573 = vunpack.c.l.bf16 %v557
      %v574 = vunpack.c.l.bf16 %v558
      %v575 = vunpack.c.l.bf16 %v559
      %v576 = vunpack.c.l.bf16 %v560
      %v577 = vunpack.c.l.bf16 %v561
      %v578 = vunpack.c.l.bf16 %v562
      %v579 = vunpack.c.l.bf16 %v563
      %v612 = vrot.slane %v516, 1
      %v613 = vrot.slane %v564, 1
      %v614 = vsel %vm289, %v612, %v613
      %v615 = vrot.slane %v517, 1
      %v616 = vrot.slane %v565, 1
      %v617 = vsel %vm289, %v615, %v616
      %v618 = vrot.slane %v518, 1
      %v619 = vrot.slane %v566, 1
      %v620 = vsel %vm289, %v618, %v619
      %v621 = vrot.slane %v519, 1
      %v622 = vrot.slane %v567, 1
      %v623 = vsel %vm289, %v621, %v622
      %v624 = vrot.slane %v520, 1
      %v625 = vrot.slane %v568, 1
      %v626 = vsel %vm289, %v624, %v625
      %v627 = vrot.slane %v521, 1
      %v628 = vrot.slane %v569, 1
      %v629 = vsel %vm289, %v627, %v628
      %v630 = vrot.slane %v522, 1
      %v631 = vrot.slane %v570, 1
      %v632 = vsel %vm289, %v630, %v631
      %v633 = vrot.slane %v523, 1
      %v634 = vrot.slane %v571, 1
      %v635 = vsel %vm289, %v633, %v634
      %v636 = vrot.slane %v524, 1
      %v637 = vrot.slane %v572, 1
      %v638 = vsel %vm289, %v636, %v637
      %v639 = vrot.slane %v525, 1
      %v640 = vrot.slane %v573, 1
      %v641 = vsel %vm289, %v639, %v640
      %v642 = vrot.slane %v526, 1
      %v643 = vrot.slane %v574, 1
      %v644 = vsel %vm289, %v642, %v643
      %v645 = vrot.slane %v527, 1
      %v646 = vrot.slane %v575, 1
      %v647 = vsel %vm289, %v645, %v646
      %v648 = vrot.slane %v528, 1
      %v649 = vrot.slane %v576, 1
      %v650 = vsel %vm289, %v648, %v649
      %v651 = vrot.slane %v529, 1
      %v652 = vrot.slane %v577, 1
      %v653 = vsel %vm289, %v651, %v652
      %v654 = vrot.slane %v530, 1
      %v655 = vrot.slane %v578, 1
      %v656 = vsel %vm289, %v654, %v655
      %v657 = vrot.slane %v531, 1
      %v658 = vrot.slane %v579, 1
      %v659 = vsel %vm289, %v657, %v658
      %v676 = vpack.c.bf16 %v614, %v614
      %v677 = vpack.c.bf16 %v617, %v617
      %v678 = vpack.c.bf16 %v620, %v620
      %v679 = vpack.c.bf16 %v623, %v623
      %v680 = vpack.c.bf16 %v626, %v626
      %v681 = vpack.c.bf16 %v629, %v629
      %v682 = vpack.c.bf16 %v632, %v632
      %v683 = vpack.c.bf16 %v635, %v635
      %v684 = vpack.c.bf16 %v638, %v638
      %v685 = vpack.c.bf16 %v641, %v641
      %v686 = vpack.c.bf16 %v644, %v644
      %v687 = vpack.c.bf16 %v647, %v647
      %v688 = vpack.c.bf16 %v650, %v650
      %v689 = vpack.c.bf16 %v653, %v653
      %v690 = vpack.c.bf16 %v656, %v656
      %v691 = vpack.c.bf16 %v659, %v659
      %v692 = vld [vmem:[%s499] sm:$0xe]
      %v693 = vld [vmem:[%s499 + $0x8] sm:$0xe]
      %v694 = vld [vmem:[%s499 + $0x10] sm:$0xe]
      %v695 = vld [vmem:[%s499 + $0x18] sm:$0xe]
      %v696 = vld [vmem:[%s499 + $0x20] sm:$0xe]
      %v697 = vld [vmem:[%s499 + $0x28] sm:$0xe]
      %v698 = vld [vmem:[%s499 + $0x30] sm:$0xe]
      %v699 = vld [vmem:[%s499 + $0x38] sm:$0xe]
      %v700 = vld [vmem:[%s499 + $0x50] sm:$0xe]
      %v701 = vld [vmem:[%s499 + $0x58] sm:$0xe]
      %v702 = vld [vmem:[%s499 + $0x60] sm:$0xe]
      %v703 = vld [vmem:[%s499 + $0x68] sm:$0xe]
      %v704 = vld [vmem:[%s499 + $0x70] sm:$0xe]
      %v705 = vld [vmem:[%s499 + $0x78] sm:$0xe]
      %v706 = vld [vmem:[%s499 + $0x80] sm:$0xe]
      %v707 = vld [vmem:[%s499 + $0x88] sm:$0xe]
      %v708 = vunpack.c.l.bf16 %v692
      %v709 = vunpack.c.l.bf16 %v693
      %v710 = vunpack.c.l.bf16 %v694
      %v711 = vunpack.c.l.bf16 %v695
      %v712 = vunpack.c.l.bf16 %v696
      %v713 = vunpack.c.l.bf16 %v697
      %v714 = vunpack.c.l.bf16 %v698
      %v715 = vunpack.c.l.bf16 %v699
      %v716 = vunpack.c.l.bf16 %v700
      %v717 = vunpack.c.l.bf16 %v701
      %v718 = vunpack.c.l.bf16 %v702
      %v719 = vunpack.c.l.bf16 %v703
      %v720 = vunpack.c.l.bf16 %v704
      %v721 = vunpack.c.l.bf16 %v705
      %v722 = vunpack.c.l.bf16 %v706
      %v723 = vunpack.c.l.bf16 %v707
      %v740 = vrot.slane %v708, 2
      %v741 = vrot.slane %v564, 2
      %v742 = vsel %vm418, %v740, %v741
      %v743 = vrot.slane %v709, 2
      %v744 = vrot.slane %v565, 2
      %v745 = vsel %vm418, %v743, %v744
      %v746 = vrot.slane %v710, 2
      %v747 = vrot.slane %v566, 2
      %v748 = vsel %vm418, %v746, %v747
      %v749 = vrot.slane %v711, 2
      %v750 = vrot.slane %v567, 2
      %v751 = vsel %vm418, %v749, %v750
      %v752 = vrot.slane %v712, 2
      %v753 = vrot.slane %v568, 2
      %v754 = vsel %vm418, %v752, %v753
      %v755 = vrot.slane %v713, 2
      %v756 = vrot.slane %v569, 2
      %v757 = vsel %vm418, %v755, %v756
      %v758 = vrot.slane %v714, 2
      %v759 = vrot.slane %v570, 2
      %v760 = vsel %vm418, %v758, %v759
      %v761 = vrot.slane %v715, 2
      %v762 = vrot.slane %v571, 2
      %v763 = vsel %vm418, %v761, %v762
      %v764 = vrot.slane %v716, 2
      %v765 = vrot.slane %v572, 2
      %v766 = vsel %vm418, %v764, %v765
      %v767 = vrot.slane %v717, 2
      %v768 = vrot.slane %v573, 2
      %v769 = vsel %vm418, %v767, %v768
      %v770 = vrot.slane %v718, 2
      %v771 = vrot.slane %v574, 2
      %v772 = vsel %vm418, %v770, %v771
      %v773 = vrot.slane %v719, 2
      %v774 = vrot.slane %v575, 2
      %v775 = vsel %vm418, %v773, %v774
      %v776 = vrot.slane %v720, 2
      %v777 = vrot.slane %v576, 2
      %v778 = vsel %vm418, %v776, %v777
      %v779 = vrot.slane %v721, 2
      %v780 = vrot.slane %v577, 2
      %v781 = vsel %vm418, %v779, %v780
      %v782 = vrot.slane %v722, 2
      %v783 = vrot.slane %v578, 2
      %v784 = vsel %vm418, %v782, %v783
      %v785 = vrot.slane %v723, 2
      %v786 = vrot.slane %v579, 2
      %v787 = vsel %vm418, %v785, %v786
      %v804 = vpack.c.bf16 %v742, %v742
      %v805 = vpack.c.bf16 %v745, %v745
      %v806 = vpack.c.bf16 %v748, %v748
      %v807 = vpack.c.bf16 %v751, %v751
      %v808 = vpack.c.bf16 %v754, %v754
      %v809 = vpack.c.bf16 %v757, %v757
      %v810 = vpack.c.bf16 %v760, %v760
      %v811 = vpack.c.bf16 %v763, %v763
      %v812 = vpack.c.bf16 %v766, %v766
      %v813 = vpack.c.bf16 %v769, %v769
      %v814 = vpack.c.bf16 %v772, %v772
      %v815 = vpack.c.bf16 %v775, %v775
      %v816 = vpack.c.bf16 %v778, %v778
      %v817 = vpack.c.bf16 %v781, %v781
      %v818 = vpack.c.bf16 %v784, %v784
      %v819 = vpack.c.bf16 %v787, %v787
      %s820 = scalar_lea.vmem %s169, 16
      %v821 = vld [vmem:[%s820] sm:$0xf]
      %v822 = vld [vmem:[%s820 + $0x8] sm:$0xf]
      %v823 = vld [vmem:[%s820 + $0x10] sm:$0xf]
      %v824 = vld [vmem:[%s820 + $0x18] sm:$0xf]
      %v825 = vld [vmem:[%s820 + $0x20] sm:$0xf]
      %v826 = vld [vmem:[%s820 + $0x28] sm:$0xf]
      %v827 = vld [vmem:[%s820 + $0x30] sm:$0xf]
      %v828 = vld [vmem:[%s820 + $0x38] sm:$0xf]
      %v829 = vld [vmem:[%s820 + $0x50] sm:$0xf]
      %v830 = vld [vmem:[%s820 + $0x58] sm:$0xf]
      %v831 = vld [vmem:[%s820 + $0x60] sm:$0xf]
      %v832 = vld [vmem:[%s820 + $0x68] sm:$0xf]
      %v833 = vld [vmem:[%s820 + $0x70] sm:$0xf]
      %v834 = vld [vmem:[%s820 + $0x78] sm:$0xf]
      %v835 = vld [vmem:[%s820 + $0x80] sm:$0xf]
      %v836 = vld [vmem:[%s820 + $0x88] sm:$0xf]
      %v837 = vunpack.c.l.bf16 %v821
      %v838 = vunpack.c.l.bf16 %v822
      %v839 = vunpack.c.l.bf16 %v823
      %v840 = vunpack.c.l.bf16 %v824
      %v841 = vunpack.c.l.bf16 %v825
      %v842 = vunpack.c.l.bf16 %v826
      %v843 = vunpack.c.l.bf16 %v827
      %v844 = vunpack.c.l.bf16 %v828
      %v845 = vunpack.c.l.bf16 %v829
      %v846 = vunpack.c.l.bf16 %v830
      %v847 = vunpack.c.l.bf16 %v831
      %v848 = vunpack.c.l.bf16 %v832
      %v849 = vunpack.c.l.bf16 %v833
      %v850 = vunpack.c.l.bf16 %v834
      %v851 = vunpack.c.l.bf16 %v835
      %v852 = vunpack.c.l.bf16 %v836
      %v853 = vpack.c.bf16 %v837, %v837
      %v854 = vpack.c.bf16 %v838, %v838
      %v855 = vpack.c.bf16 %v839, %v839
      %v856 = vpack.c.bf16 %v840, %v840
      %v857 = vpack.c.bf16 %v841, %v841
      %v858 = vpack.c.bf16 %v842, %v842
      %v859 = vpack.c.bf16 %v843, %v843
      %v860 = vpack.c.bf16 %v844, %v844
      %v861 = vpack.c.bf16 %v845, %v845
      %v862 = vpack.c.bf16 %v846, %v846
      %v863 = vpack.c.bf16 %v847, %v847
      %v864 = vpack.c.bf16 %v848, %v848
      %v865 = vpack.c.bf16 %v849, %v849
      %v866 = vpack.c.bf16 %v850, %v850
      %v867 = vpack.c.bf16 %v851, %v851
      %v868 = vpack.c.bf16 %v852, %v852
      %v869 = vld [vmem:[%s820 + $0x4] sm:$0x1]
      %v870 = vld [vmem:[%s820 + $0xc] sm:$0x1]
      %v871 = vld [vmem:[%s820 + $0x14] sm:$0x1]
      %v872 = vld [vmem:[%s820 + $0x1c] sm:$0x1]
      %v873 = vld [vmem:[%s820 + $0x24] sm:$0x1]
      %v874 = vld [vmem:[%s820 + $0x2c] sm:$0x1]
      %v875 = vld [vmem:[%s820 + $0x34] sm:$0x1]
      %v876 = vld [vmem:[%s820 + $0x3c] sm:$0x1]
      %v877 = vld [vmem:[%s820 + $0x54] sm:$0x1]
      %v878 = vld [vmem:[%s820 + $0x5c] sm:$0x1]
      %v879 = vld [vmem:[%s820 + $0x64] sm:$0x1]
      %v880 = vld [vmem:[%s820 + $0x6c] sm:$0x1]
      %v881 = vld [vmem:[%s820 + $0x74] sm:$0x1]
      %v882 = vld [vmem:[%s820 + $0x7c] sm:$0x1]
      %v883 = vld [vmem:[%s820 + $0x84] sm:$0x1]
      %v884 = vld [vmem:[%s820 + $0x8c] sm:$0x1]
      %v885 = vunpack.c.l.bf16 %v869
      %v886 = vunpack.c.l.bf16 %v870
      %v887 = vunpack.c.l.bf16 %v871
      %v888 = vunpack.c.l.bf16 %v872
      %v889 = vunpack.c.l.bf16 %v873
      %v890 = vunpack.c.l.bf16 %v874
      %v891 = vunpack.c.l.bf16 %v875
      %v892 = vunpack.c.l.bf16 %v876
      %v893 = vunpack.c.l.bf16 %v877
      %v894 = vunpack.c.l.bf16 %v878
      %v895 = vunpack.c.l.bf16 %v879
      %v896 = vunpack.c.l.bf16 %v880
      %v897 = vunpack.c.l.bf16 %v881
      %v898 = vunpack.c.l.bf16 %v882
      %v899 = vunpack.c.l.bf16 %v883
      %v900 = vunpack.c.l.bf16 %v884
      %v933 = vrot.slane %v837, 1
      %v934 = vrot.slane %v885, 1
      %v935 = vsel %vm289, %v933, %v934
      %v936 = vrot.slane %v838, 1
      %v937 = vrot.slane %v886, 1
      %v938 = vsel %vm289, %v936, %v937
      %v939 = vrot.slane %v839, 1
      %v940 = vrot.slane %v887, 1
      %v941 = vsel %vm289, %v939, %v940
      %v942 = vrot.slane %v840, 1
      %v943 = vrot.slane %v888, 1
      %v944 = vsel %vm289, %v942, %v943
      %v945 = vrot.slane %v841, 1
      %v946 = vrot.slane %v889, 1
      %v947 = vsel %vm289, %v945, %v946
      %v948 = vrot.slane %v842, 1
      %v949 = vrot.slane %v890, 1
      %v950 = vsel %vm289, %v948, %v949
      %v951 = vrot.slane %v843, 1
      %v952 = vrot.slane %v891, 1
      %v953 = vsel %vm289, %v951, %v952
      %v954 = vrot.slane %v844, 1
      %v955 = vrot.slane %v892, 1
      %v956 = vsel %vm289, %v954, %v955
      %v957 = vrot.slane %v845, 1
      %v958 = vrot.slane %v893, 1
      %v959 = vsel %vm289, %v957, %v958
      %v960 = vrot.slane %v846, 1
      %v961 = vrot.slane %v894, 1
      %v962 = vsel %vm289, %v960, %v961
      %v963 = vrot.slane %v847, 1
      %v964 = vrot.slane %v895, 1
      %v965 = vsel %vm289, %v963, %v964
      %v966 = vrot.slane %v848, 1
      %v967 = vrot.slane %v896, 1
      %v968 = vsel %vm289, %v966, %v967
      %v969 = vrot.slane %v849, 1
      %v970 = vrot.slane %v897, 1
      %v971 = vsel %vm289, %v969, %v970
      %v972 = vrot.slane %v850, 1
      %v973 = vrot.slane %v898, 1
      %v974 = vsel %vm289, %v972, %v973
      %v975 = vrot.slane %v851, 1
      %v976 = vrot.slane %v899, 1
      %v977 = vsel %vm289, %v975, %v976
      %v978 = vrot.slane %v852, 1
      %v979 = vrot.slane %v900, 1
      %v980 = vsel %vm289, %v978, %v979
      %v997 = vpack.c.bf16 %v935, %v935
      %v998 = vpack.c.bf16 %v938, %v938
      %v999 = vpack.c.bf16 %v941, %v941
      %v1000 = vpack.c.bf16 %v944, %v944
      %v1001 = vpack.c.bf16 %v947, %v947
      %v1002 = vpack.c.bf16 %v950, %v950
      %v1003 = vpack.c.bf16 %v953, %v953
      %v1004 = vpack.c.bf16 %v956, %v956
      %v1005 = vpack.c.bf16 %v959, %v959
      %v1006 = vpack.c.bf16 %v962, %v962
      %v1007 = vpack.c.bf16 %v965, %v965
      %v1008 = vpack.c.bf16 %v968, %v968
      %v1009 = vpack.c.bf16 %v971, %v971
      %v1010 = vpack.c.bf16 %v974, %v974
      %v1011 = vpack.c.bf16 %v977, %v977
      %v1012 = vpack.c.bf16 %v980, %v980
      %v1013 = vld [vmem:[%s820] sm:$0xe]
      %v1014 = vld [vmem:[%s820 + $0x8] sm:$0xe]
      %v1015 = vld [vmem:[%s820 + $0x10] sm:$0xe]
      %v1016 = vld [vmem:[%s820 + $0x18] sm:$0xe]
      %v1017 = vld [vmem:[%s820 + $0x20] sm:$0xe]
      %v1018 = vld [vmem:[%s820 + $0x28] sm:$0xe]
      %v1019 = vld [vmem:[%s820 + $0x30] sm:$0xe]
      %v1020 = vld [vmem:[%s820 + $0x38] sm:$0xe]
      %v1021 = vld [vmem:[%s820 + $0x50] sm:$0xe]
      %v1022 = vld [vmem:[%s820 + $0x58] sm:$0xe]
      %v1023 = vld [vmem:[%s820 + $0x60] sm:$0xe]
      %v1024 = vld [vmem:[%s820 + $0x68] sm:$0xe]
      %v1025 = vld [vmem:[%s820 + $0x70] sm:$0xe]
      %v1026 = vld [vmem:[%s820 + $0x78] sm:$0xe]
      %v1027 = vld [vmem:[%s820 + $0x80] sm:$0xe]
      %v1028 = vld [vmem:[%s820 + $0x88] sm:$0xe]
      %v1029 = vunpack.c.l.bf16 %v1013
      %v1030 = vunpack.c.l.bf16 %v1014
      %v1031 = vunpack.c.l.bf16 %v1015
      %v1032 = vunpack.c.l.bf16 %v1016
      %v1033 = vunpack.c.l.bf16 %v1017
      %v1034 = vunpack.c.l.bf16 %v1018
      %v1035 = vunpack.c.l.bf16 %v1019
      %v1036 = vunpack.c.l.bf16 %v1020
      %v1037 = vunpack.c.l.bf16 %v1021
      %v1038 = vunpack.c.l.bf16 %v1022
      %v1039 = vunpack.c.l.bf16 %v1023
      %v1040 = vunpack.c.l.bf16 %v1024
      %v1041 = vunpack.c.l.bf16 %v1025
      %v1042 = vunpack.c.l.bf16 %v1026
      %v1043 = vunpack.c.l.bf16 %v1027
      %v1044 = vunpack.c.l.bf16 %v1028
      %v1061 = vrot.slane %v1029, 2
      %v1062 = vrot.slane %v885, 2
      %v1063 = vsel %vm418, %v1061, %v1062
      %v1064 = vrot.slane %v1030, 2
      %v1065 = vrot.slane %v886, 2
      %v1066 = vsel %vm418, %v1064, %v1065
      %v1067 = vrot.slane %v1031, 2
      %v1068 = vrot.slane %v887, 2
      %v1069 = vsel %vm418, %v1067, %v1068
      %v1070 = vrot.slane %v1032, 2
      %v1071 = vrot.slane %v888, 2
      %v1072 = vsel %vm418, %v1070, %v1071
      %v1073 = vrot.slane %v1033, 2
      %v1074 = vrot.slane %v889, 2
      %v1075 = vsel %vm418, %v1073, %v1074
      %v1076 = vrot.slane %v1034, 2
      %v1077 = vrot.slane %v890, 2
      %v1078 = vsel %vm418, %v1076, %v1077
      %v1079 = vrot.slane %v1035, 2
      %v1080 = vrot.slane %v891, 2
      %v1081 = vsel %vm418, %v1079, %v1080
      %v1082 = vrot.slane %v1036, 2
      %v1083 = vrot.slane %v892, 2
      %v1084 = vsel %vm418, %v1082, %v1083
      %v1085 = vrot.slane %v1037, 2
      %v1086 = vrot.slane %v893, 2
      %v1087 = vsel %vm418, %v1085, %v1086
      %v1088 = vrot.slane %v1038, 2
      %v1089 = vrot.slane %v894, 2
      %v1090 = vsel %vm418, %v1088, %v1089
      %v1091 = vrot.slane %v1039, 2
      %v1092 = vrot.slane %v895, 2
      %v1093 = vsel %vm418, %v1091, %v1092
      %v1094 = vrot.slane %v1040, 2
      %v1095 = vrot.slane %v896, 2
      %v1096 = vsel %vm418, %v1094, %v1095
      %v1097 = vrot.slane %v1041, 2
      %v1098 = vrot.slane %v897, 2
      %v1099 = vsel %vm418, %v1097, %v1098
      %v1100 = vrot.slane %v1042, 2
      %v1101 = vrot.slane %v898, 2
      %v1102 = vsel %vm418, %v1100, %v1101
      %v1103 = vrot.slane %v1043, 2
      %v1104 = vrot.slane %v899, 2
      %v1105 = vsel %vm418, %v1103, %v1104
      %v1106 = vrot.slane %v1044, 2
      %v1107 = vrot.slane %v900, 2
      %v1108 = vsel %vm418, %v1106, %v1107
      %v1125 = vpack.c.bf16 %v1063, %v1063
      %v1126 = vpack.c.bf16 %v1066, %v1066
      %v1127 = vpack.c.bf16 %v1069, %v1069
      %v1128 = vpack.c.bf16 %v1072, %v1072
      %v1129 = vpack.c.bf16 %v1075, %v1075
      %v1130 = vpack.c.bf16 %v1078, %v1078
      %v1131 = vpack.c.bf16 %v1081, %v1081
      %v1132 = vpack.c.bf16 %v1084, %v1084
      %v1133 = vpack.c.bf16 %v1087, %v1087
      %v1134 = vpack.c.bf16 %v1090, %v1090
      %v1135 = vpack.c.bf16 %v1093, %v1093
      %v1136 = vpack.c.bf16 %v1096, %v1096
      %v1137 = vpack.c.bf16 %v1099, %v1099
      %v1138 = vpack.c.bf16 %v1102, %v1102
      %v1139 = vpack.c.bf16 %v1105, %v1105
      %v1140 = vpack.c.bf16 %v1108, %v1108
      %v1157 = vunpack.c.l.b16 %v209
      %v1158 = vunpack.c.l.b16 %v210
      %v1159 = vunpack.c.l.b16 %v211
      %v1160 = vunpack.c.l.b16 %v212
      %v1161 = vunpack.c.l.b16 %v213
      %v1162 = vunpack.c.l.b16 %v214
      %v1163 = vunpack.c.l.b16 %v215
      %v1164 = vunpack.c.l.b16 %v216
      %v1165 = vunpack.c.l.b16 %v217
      %v1166 = vunpack.c.l.b16 %v218
      %v1167 = vunpack.c.l.b16 %v219
      %v1168 = vunpack.c.l.b16 %v220
      %v1169 = vunpack.c.l.b16 %v221
      %v1170 = vunpack.c.l.b16 %v222
      %v1171 = vunpack.c.l.b16 %v223
      %v1172 = vunpack.c.l.b16 %v224
      %v1173 = vpack.c.b16 %v1158, %v1157
      %v1174 = vpack.c.b16 %v1160, %v1159
      %v1175 = vpack.c.b16 %v1162, %v1161
      %v1176 = vpack.c.b16 %v1164, %v1163
      %v1177 = vpack.c.b16 %v1166, %v1165
      %v1178 = vpack.c.b16 %v1168, %v1167
      %v1179 = vpack.c.b16 %v1170, %v1169
      %v1180 = vpack.c.b16 %v1172, %v1171
      %v1205 = vunpack.c.l.b16 %v354
      %v1206 = vunpack.c.l.b16 %v355
      %v1207 = vunpack.c.l.b16 %v356
      %v1208 = vunpack.c.l.b16 %v357
      %v1209 = vunpack.c.l.b16 %v358
      %v1210 = vunpack.c.l.b16 %v359
      %v1211 = vunpack.c.l.b16 %v360
      %v1212 = vunpack.c.l.b16 %v361
      %v1213 = vunpack.c.l.b16 %v362
      %v1214 = vunpack.c.l.b16 %v363
      %v1215 = vunpack.c.l.b16 %v364
      %v1216 = vunpack.c.l.b16 %v365
      %v1217 = vunpack.c.l.b16 %v366
      %v1218 = vunpack.c.l.b16 %v367
      %v1219 = vunpack.c.l.b16 %v368
      %v1220 = vunpack.c.l.b16 %v369
      %v1221 = vpack.c.b16 %v1206, %v1205
      %v1222 = vpack.c.b16 %v1208, %v1207
      %v1223 = vpack.c.b16 %v1210, %v1209
      %v1224 = vpack.c.b16 %v1212, %v1211
      %v1225 = vpack.c.b16 %v1214, %v1213
      %v1226 = vpack.c.b16 %v1216, %v1215
      %v1227 = vpack.c.b16 %v1218, %v1217
      %v1228 = vpack.c.b16 %v1220, %v1219
      %v1253 = vunpack.c.l.b16 %v483
      %v1254 = vunpack.c.l.b16 %v484
      %v1255 = vunpack.c.l.b16 %v485
      %v1256 = vunpack.c.l.b16 %v486
      %v1257 = vunpack.c.l.b16 %v487
      %v1258 = vunpack.c.l.b16 %v488
      %v1259 = vunpack.c.l.b16 %v489
      %v1260 = vunpack.c.l.b16 %v490
      %v1261 = vunpack.c.l.b16 %v491
      %v1262 = vunpack.c.l.b16 %v492
      %v1263 = vunpack.c.l.b16 %v493
      %v1264 = vunpack.c.l.b16 %v494
      %v1265 = vunpack.c.l.b16 %v495
      %v1266 = vunpack.c.l.b16 %v496
      %v1267 = vunpack.c.l.b16 %v497
      %v1268 = vunpack.c.l.b16 %v498
      %v1269 = vpack.c.b16 %v1254, %v1253
      %v1270 = vpack.c.b16 %v1256, %v1255
      %v1271 = vpack.c.b16 %v1258, %v1257
      %v1272 = vpack.c.b16 %v1260, %v1259
      %v1273 = vpack.c.b16 %v1262, %v1261
      %v1274 = vpack.c.b16 %v1264, %v1263
      %v1275 = vpack.c.b16 %v1266, %v1265
      %v1276 = vpack.c.b16 %v1268, %v1267
      %v1301 = vunpack.c.l.b16 %v532
      %v1302 = vunpack.c.l.b16 %v533
      %v1303 = vunpack.c.l.b16 %v534
      %v1304 = vunpack.c.l.b16 %v535
      %v1305 = vunpack.c.l.b16 %v536
      %v1306 = vunpack.c.l.b16 %v537
      %v1307 = vunpack.c.l.b16 %v538
      %v1308 = vunpack.c.l.b16 %v539
      %v1309 = vunpack.c.l.b16 %v540
      %v1310 = vunpack.c.l.b16 %v541
      %v1311 = vunpack.c.l.b16 %v542
      %v1312 = vunpack.c.l.b16 %v543
      %v1313 = vunpack.c.l.b16 %v544
      %v1314 = vunpack.c.l.b16 %v545
      %v1315 = vunpack.c.l.b16 %v546
      %v1316 = vunpack.c.l.b16 %v547
      %v1317 = vpack.c.b16 %v1302, %v1301
      %v1318 = vpack.c.b16 %v1304, %v1303
      %v1319 = vpack.c.b16 %v1306, %v1305
      %v1320 = vpack.c.b16 %v1308, %v1307
      %v1321 = vpack.c.b16 %v1310, %v1309
      %v1322 = vpack.c.b16 %v1312, %v1311
      %v1323 = vpack.c.b16 %v1314, %v1313
      %v1324 = vpack.c.b16 %v1316, %v1315
      %v1349 = vunpack.c.l.b16 %v676
      %v1350 = vunpack.c.l.b16 %v677
      %v1351 = vunpack.c.l.b16 %v678
      %v1352 = vunpack.c.l.b16 %v679
      %v1353 = vunpack.c.l.b16 %v680
      %v1354 = vunpack.c.l.b16 %v681
      %v1355 = vunpack.c.l.b16 %v682
      %v1356 = vunpack.c.l.b16 %v683
      %v1357 = vunpack.c.l.b16 %v684
      %v1358 = vunpack.c.l.b16 %v685
      %v1359 = vunpack.c.l.b16 %v686
      %v1360 = vunpack.c.l.b16 %v687
      %v1361 = vunpack.c.l.b16 %v688
      %v1362 = vunpack.c.l.b16 %v689
      %v1363 = vunpack.c.l.b16 %v690
      %v1364 = vunpack.c.l.b16 %v691
      %v1365 = vpack.c.b16 %v1350, %v1349
      %v1366 = vpack.c.b16 %v1352, %v1351
      %v1367 = vpack.c.b16 %v1354, %v1353
      %v1368 = vpack.c.b16 %v1356, %v1355
      %v1369 = vpack.c.b16 %v1358, %v1357
      %v1370 = vpack.c.b16 %v1360, %v1359
      %v1371 = vpack.c.b16 %v1362, %v1361
      %v1372 = vpack.c.b16 %v1364, %v1363
      %v1397 = vunpack.c.l.b16 %v804
      %v1398 = vunpack.c.l.b16 %v805
      %v1399 = vunpack.c.l.b16 %v806
      %v1400 = vunpack.c.l.b16 %v807
      %v1401 = vunpack.c.l.b16 %v808
      %v1402 = vunpack.c.l.b16 %v809
      %v1403 = vunpack.c.l.b16 %v810
      %v1404 = vunpack.c.l.b16 %v811
      %v1405 = vunpack.c.l.b16 %v812
      %v1406 = vunpack.c.l.b16 %v813
      %v1407 = vunpack.c.l.b16 %v814
      %v1408 = vunpack.c.l.b16 %v815
      %v1409 = vunpack.c.l.b16 %v816
      %v1410 = vunpack.c.l.b16 %v817
      %v1411 = vunpack.c.l.b16 %v818
      %v1412 = vunpack.c.l.b16 %v819
      %v1413 = vpack.c.b16 %v1398, %v1397
      %v1414 = vpack.c.b16 %v1400, %v1399
      %v1415 = vpack.c.b16 %v1402, %v1401
      %v1416 = vpack.c.b16 %v1404, %v1403
      %v1417 = vpack.c.b16 %v1406, %v1405
      %v1418 = vpack.c.b16 %v1408, %v1407
      %v1419 = vpack.c.b16 %v1410, %v1409
      %v1420 = vpack.c.b16 %v1412, %v1411
      %v1445 = vunpack.c.l.b16 %v853
      %v1446 = vunpack.c.l.b16 %v854
      %v1447 = vunpack.c.l.b16 %v855
      %v1448 = vunpack.c.l.b16 %v856
      %v1449 = vunpack.c.l.b16 %v857
      %v1450 = vunpack.c.l.b16 %v858
      %v1451 = vunpack.c.l.b16 %v859
      %v1452 = vunpack.c.l.b16 %v860
      %v1453 = vunpack.c.l.b16 %v861
      %v1454 = vunpack.c.l.b16 %v862
      %v1455 = vunpack.c.l.b16 %v863
      %v1456 = vunpack.c.l.b16 %v864
      %v1457 = vunpack.c.l.b16 %v865
      %v1458 = vunpack.c.l.b16 %v866
      %v1459 = vunpack.c.l.b16 %v867
      %v1460 = vunpack.c.l.b16 %v868
      %v1461 = vpack.c.b16 %v1446, %v1445
      %v1462 = vpack.c.b16 %v1448, %v1447
      %v1463 = vpack.c.b16 %v1450, %v1449
      %v1464 = vpack.c.b16 %v1452, %v1451
      %v1465 = vpack.c.b16 %v1454, %v1453
      %v1466 = vpack.c.b16 %v1456, %v1455
      %v1467 = vpack.c.b16 %v1458, %v1457
      %v1468 = vpack.c.b16 %v1460, %v1459
      %v1493 = vunpack.c.l.b16 %v997
      %v1494 = vunpack.c.l.b16 %v998
      %v1495 = vunpack.c.l.b16 %v999
      %v1496 = vunpack.c.l.b16 %v1000
      %v1497 = vunpack.c.l.b16 %v1001
      %v1498 = vunpack.c.l.b16 %v1002
      %v1499 = vunpack.c.l.b16 %v1003
      %v1500 = vunpack.c.l.b16 %v1004
      %v1501 = vunpack.c.l.b16 %v1005
      %v1502 = vunpack.c.l.b16 %v1006
      %v1503 = vunpack.c.l.b16 %v1007
      %v1504 = vunpack.c.l.b16 %v1008
      %v1505 = vunpack.c.l.b16 %v1009
      %v1506 = vunpack.c.l.b16 %v1010
      %v1507 = vunpack.c.l.b16 %v1011
      %v1508 = vunpack.c.l.b16 %v1012
      %v1509 = vpack.c.b16 %v1494, %v1493
      %v1510 = vpack.c.b16 %v1496, %v1495
      %v1511 = vpack.c.b16 %v1498, %v1497
      %v1512 = vpack.c.b16 %v1500, %v1499
      %v1513 = vpack.c.b16 %v1502, %v1501
      %v1514 = vpack.c.b16 %v1504, %v1503
      %v1515 = vpack.c.b16 %v1506, %v1505
      %v1516 = vpack.c.b16 %v1508, %v1507
      %v1541 = vunpack.c.l.b16 %v1125
      %v1542 = vunpack.c.l.b16 %v1126
      %v1543 = vunpack.c.l.b16 %v1127
      %v1544 = vunpack.c.l.b16 %v1128
      %v1545 = vunpack.c.l.b16 %v1129
      %v1546 = vunpack.c.l.b16 %v1130
      %v1547 = vunpack.c.l.b16 %v1131
      %v1548 = vunpack.c.l.b16 %v1132
      %v1549 = vunpack.c.l.b16 %v1133
      %v1550 = vunpack.c.l.b16 %v1134
      %v1551 = vunpack.c.l.b16 %v1135
      %v1552 = vunpack.c.l.b16 %v1136
      %v1553 = vunpack.c.l.b16 %v1137
      %v1554 = vunpack.c.l.b16 %v1138
      %v1555 = vunpack.c.l.b16 %v1139
      %v1556 = vunpack.c.l.b16 %v1140
      %v1557 = vpack.c.b16 %v1542, %v1541
      %v1558 = vpack.c.b16 %v1544, %v1543
      %v1559 = vpack.c.b16 %v1546, %v1545
      %v1560 = vpack.c.b16 %v1548, %v1547
      %v1561 = vpack.c.b16 %v1550, %v1549
      %v1562 = vpack.c.b16 %v1552, %v1551
      %v1563 = vpack.c.b16 %v1554, %v1553
      %v1564 = vpack.c.b16 %v1556, %v1555
      %v1573 = vld [vmem:[%s1] sm:$0xf]
      %v1574 = vld [vmem:[%s1 + $0x4] sm:$0xf]
      %v1575 = vld [vmem:[%s1 + $0x8] sm:$0xf]
      %v1576 = vld [vmem:[%s1 + $0xc] sm:$0xf]
      %v1577 = vld [vmem:[%s1 + $0x10] sm:$0xf]
      %v1578 = vld [vmem:[%s1 + $0x14] sm:$0xf]
      %v1579 = vld [vmem:[%s1 + $0x18] sm:$0xf]
      %v1580 = vld [vmem:[%s1 + $0x1c] sm:$0xf]
      %v1581 = vld [vmem:[%s1 + $0x20] sm:$0xf]
      %v1582 = vld [vmem:[%s1 + $0x24] sm:$0xf]
      %v1583 = vld [vmem:[%s1 + $0x28] sm:$0xf]
      %v1584 = vld [vmem:[%s1 + $0x2c] sm:$0xf]
      %v1585 = vld [vmem:[%s1 + $0x30] sm:$0xf]
      %v1586 = vld [vmem:[%s1 + $0x34] sm:$0xf]
      %v1587 = vld [vmem:[%s1 + $0x38] sm:$0xf]
      %v1588 = vld [vmem:[%s1 + $0x3c] sm:$0xf]
      %v1589 = vld [vmem:[%s1 + $0x40] sm:$0xf]
      %v1590 = vld [vmem:[%s1 + $0x44] sm:$0xf]
      %v1591 = vld [vmem:[%s1 + $0x48] sm:$0xf]
      %v1592 = vld [vmem:[%s1 + $0x4c] sm:$0xf]
      %v1593 = vld [vmem:[%s1 + $0x50] sm:$0xf]
      %v1594 = vld [vmem:[%s1 + $0x54] sm:$0xf]
      %v1595 = vld [vmem:[%s1 + $0x58] sm:$0xf]
      %v1596 = vld [vmem:[%s1 + $0x5c] sm:$0xf]
      %v1597 = vld [vmem:[%s1 + $0x60] sm:$0xf]
      %v1598 = vld [vmem:[%s1 + $0x64] sm:$0xf]
      %v1599 = vld [vmem:[%s1 + $0x68] sm:$0xf]
      %v1600 = vld [vmem:[%s1 + $0x6c] sm:$0xf]
      %v1601 = vld [vmem:[%s1 + $0x70] sm:$0xf]
      %v1602 = vld [vmem:[%s1 + $0x74] sm:$0xf]
      %v1603 = vld [vmem:[%s1 + $0x78] sm:$0xf]
      %v1604 = vld [vmem:[%s1 + $0x7c] sm:$0xf]
      %v1605 = vld [vmem:[%s1 + $0x80] sm:$0xf]
      %v1606 = vld [vmem:[%s1 + $0x84] sm:$0xf]
      %v1607 = vld [vmem:[%s1 + $0x88] sm:$0xf]
      %v1608 = vld [vmem:[%s1 + $0x8c] sm:$0xf]
      %v1609 = vld [vmem:[%s1 + $0x90] sm:$0xf]
      %v1610 = vld [vmem:[%s1 + $0x94] sm:$0xf]
      %v1611 = vld [vmem:[%s1 + $0x98] sm:$0xf]
      %v1612 = vld [vmem:[%s1 + $0x9c] sm:$0xf]
      %v1613 = vld [vmem:[%s1 + $0xa0] sm:$0xf]
      %v1614 = vld [vmem:[%s1 + $0xa4] sm:$0xf]
      %v1615 = vld [vmem:[%s1 + $0xa8] sm:$0xf]
      %v1616 = vld [vmem:[%s1 + $0xac] sm:$0xf]
      %v1617 = vld [vmem:[%s1 + $0xb0] sm:$0xf]
      %v1618 = vld [vmem:[%s1 + $0xb4] sm:$0xf]
      %v1619 = vld [vmem:[%s1 + $0xb8] sm:$0xf]
      %v1620 = vld [vmem:[%s1 + $0xbc] sm:$0xf]
      %v1621 = vld [vmem:[%s1 + $0xc0] sm:$0xf]
      %v1622 = vld [vmem:[%s1 + $0xc4] sm:$0xf]
      %v1623 = vld [vmem:[%s1 + $0xc8] sm:$0xf]
      %v1624 = vld [vmem:[%s1 + $0xcc] sm:$0xf]
      %v1625 = vld [vmem:[%s1 + $0xd0] sm:$0xf]
      %v1626 = vld [vmem:[%s1 + $0xd4] sm:$0xf]
      %v1627 = vld [vmem:[%s1 + $0xd8] sm:$0xf]
      %v1628 = vld [vmem:[%s1 + $0xdc] sm:$0xf]
      %v1629 = vld [vmem:[%s1 + $0xe0] sm:$0xf]
      %v1630 = vld [vmem:[%s1 + $0xe4] sm:$0xf]
      %v1631 = vld [vmem:[%s1 + $0xe8] sm:$0xf]
      %v1632 = vld [vmem:[%s1 + $0xec] sm:$0xf]
      %v1633 = vld [vmem:[%s1 + $0xf0] sm:$0xf]
      %v1634 = vld [vmem:[%s1 + $0xf4] sm:$0xf]
      %v1635 = vld [vmem:[%s1 + $0xf8] sm:$0xf]
      %v1636 = vld [vmem:[%s1 + $0xfc] sm:$0xf]
      %v1637 = vld [vmem:[%s1 + $0x100] sm:$0xf]
      %v1638 = vld [vmem:[%s1 + $0x104] sm:$0xf]
      %v1639 = vld [vmem:[%s1 + $0x108] sm:$0xf]
      %v1640 = vld [vmem:[%s1 + $0x10c] sm:$0xf]
      %v1641 = vld [vmem:[%s1 + $0x110] sm:$0xf]
      %v1642 = vld [vmem:[%s1 + $0x114] sm:$0xf]
      %v1643 = vld [vmem:[%s1 + $0x118] sm:$0xf]
      %v1644 = vld [vmem:[%s1 + $0x11c] sm:$0xf]
      %v1645 = vld [vmem:[%s1 + $0x120] sm:$0xf]
      %v1646 = vld [vmem:[%s1 + $0x124] sm:$0xf]
      %v1647 = vld [vmem:[%s1 + $0x128] sm:$0xf]
      %v1648 = vld [vmem:[%s1 + $0x12c] sm:$0xf]
      %v1649 = vld [vmem:[%s1 + $0x130] sm:$0xf]
      %v1650 = vld [vmem:[%s1 + $0x134] sm:$0xf]
      %v1651 = vld [vmem:[%s1 + $0x138] sm:$0xf]
      %v1652 = vld [vmem:[%s1 + $0x13c] sm:$0xf]
      %v1653 = vld [vmem:[%s1 + $0x140] sm:$0xf]
      %v1654 = vld [vmem:[%s1 + $0x144] sm:$0xf]
      %v1655 = vld [vmem:[%s1 + $0x148] sm:$0xf]
      %v1656 = vld [vmem:[%s1 + $0x14c] sm:$0xf]
      %v1657 = vld [vmem:[%s1 + $0x150] sm:$0xf]
      %v1658 = vld [vmem:[%s1 + $0x154] sm:$0xf]
      %v1659 = vld [vmem:[%s1 + $0x158] sm:$0xf]
      %v1660 = vld [vmem:[%s1 + $0x15c] sm:$0xf]
      %v1661 = vld [vmem:[%s1 + $0x160] sm:$0xf]
      %v1662 = vld [vmem:[%s1 + $0x164] sm:$0xf]
      %v1663 = vld [vmem:[%s1 + $0x168] sm:$0xf]
      %v1664 = vld [vmem:[%s1 + $0x16c] sm:$0xf]
      %v1665 = vld [vmem:[%s1 + $0x170] sm:$0xf]
      %v1666 = vld [vmem:[%s1 + $0x174] sm:$0xf]
      %v1667 = vld [vmem:[%s1 + $0x178] sm:$0xf]
      %v1668 = vld [vmem:[%s1 + $0x17c] sm:$0xf]
      %v1669 = vld [vmem:[%s1 + $0x180] sm:$0xf]
      %v1670 = vld [vmem:[%s1 + $0x184] sm:$0xf]
      %v1671 = vld [vmem:[%s1 + $0x188] sm:$0xf]
      %v1672 = vld [vmem:[%s1 + $0x18c] sm:$0xf]
      %v1673 = vld [vmem:[%s1 + $0x190] sm:$0xf]
      %v1674 = vld [vmem:[%s1 + $0x194] sm:$0xf]
      %v1675 = vld [vmem:[%s1 + $0x198] sm:$0xf]
      %v1676 = vld [vmem:[%s1 + $0x19c] sm:$0xf]
      %v1677 = vld [vmem:[%s1 + $0x1a0] sm:$0xf]
      %v1678 = vld [vmem:[%s1 + $0x1a4] sm:$0xf]
      %v1679 = vld [vmem:[%s1 + $0x1a8] sm:$0xf]
      %v1680 = vld [vmem:[%s1 + $0x1ac] sm:$0xf]
      %v1681 = vld [vmem:[%s1 + $0x1b0] sm:$0xf]
      %v1682 = vld [vmem:[%s1 + $0x1b4] sm:$0xf]
      %v1683 = vld [vmem:[%s1 + $0x1b8] sm:$0xf]
      %v1684 = vld [vmem:[%s1 + $0x1bc] sm:$0xf]
      %v1685 = vld [vmem:[%s1 + $0x1c0] sm:$0xf]
      %v1686 = vld [vmem:[%s1 + $0x1c4] sm:$0xf]
      %v1687 = vld [vmem:[%s1 + $0x1c8] sm:$0xf]
      %v1688 = vld [vmem:[%s1 + $0x1cc] sm:$0xf]
      %v1689 = vld [vmem:[%s1 + $0x1d0] sm:$0xf]
      %v1690 = vld [vmem:[%s1 + $0x1d4] sm:$0xf]
      %v1691 = vld [vmem:[%s1 + $0x1d8] sm:$0xf]
      %v1692 = vld [vmem:[%s1 + $0x1dc] sm:$0xf]
      %v1693 = vld [vmem:[%s1 + $0x1e0] sm:$0xf]
      %v1694 = vld [vmem:[%s1 + $0x1e4] sm:$0xf]
      %v1695 = vld [vmem:[%s1 + $0x1e8] sm:$0xf]
      %v1696 = vld [vmem:[%s1 + $0x1ec] sm:$0xf]
      %v1697 = vld [vmem:[%s1 + $0x1f0] sm:$0xf]
      %v1698 = vld [vmem:[%s1 + $0x1f4] sm:$0xf]
      %v1699 = vld [vmem:[%s1 + $0x1f8] sm:$0xf]
      %v1700 = vld [vmem:[%s1 + $0x1fc] sm:$0xf]
      %v1701 = vld [vmem:[%s1 + $0x200] sm:$0xf]
      %v1702 = vld [vmem:[%s1 + $0x204] sm:$0xf]
      %v1703 = vld [vmem:[%s1 + $0x208] sm:$0xf]
      %v1704 = vld [vmem:[%s1 + $0x20c] sm:$0xf]
      %v1705 = vld [vmem:[%s1 + $0x210] sm:$0xf]
      %v1706 = vld [vmem:[%s1 + $0x214] sm:$0xf]
      %v1707 = vld [vmem:[%s1 + $0x218] sm:$0xf]
      %v1708 = vld [vmem:[%s1 + $0x21c] sm:$0xf]
      %v1709 = vld [vmem:[%s1 + $0x220] sm:$0xf]
      %v1710 = vld [vmem:[%s1 + $0x224] sm:$0xf]
      %v1711 = vld [vmem:[%s1 + $0x228] sm:$0xf]
      %v1712 = vld [vmem:[%s1 + $0x22c] sm:$0xf]
      %v1713 = vld [vmem:[%s1 + $0x230] sm:$0xf]
      %v1714 = vld [vmem:[%s1 + $0x234] sm:$0xf]
      %v1715 = vld [vmem:[%s1 + $0x238] sm:$0xf]
      %v1716 = vld [vmem:[%s1 + $0x23c] sm:$0xf]
      %v1717 = vld [vmem:[%s2] sm:$0x1]
      %v1719 = vperm.slane %v1717, 0
      %v1865 = vunpack.c.l.b16 %v1573
      %v1866 = vunpack.c.l.b16 %v1574
      %v1867 = vunpack.c.l.b16 %v1575
      %v1868 = vunpack.c.l.b16 %v1576
      %v1869 = vunpack.c.l.b16 %v1577
      %v1870 = vunpack.c.l.b16 %v1578
      %v1871 = vunpack.c.l.b16 %v1579
      %v1872 = vunpack.c.l.b16 %v1580
      %v1873 = vunpack.c.l.b16 %v1581
      %v1874 = vunpack.c.l.b16 %v1582
      %v1875 = vunpack.c.l.b16 %v1583
      %v1876 = vunpack.c.l.b16 %v1584
      %v1877 = vunpack.c.l.b16 %v1585
      %v1878 = vunpack.c.l.b16 %v1586
      %v1879 = vunpack.c.l.b16 %v1587
      %v1880 = vunpack.c.l.b16 %v1588
      %v1881 = vunpack.c.l.b16 %v1589
      %v1882 = vunpack.c.l.b16 %v1590
      %v1883 = vunpack.c.l.b16 %v1591
      %v1884 = vunpack.c.l.b16 %v1592
      %v1885 = vunpack.c.l.b16 %v1593
      %v1886 = vunpack.c.l.b16 %v1594
      %v1887 = vunpack.c.l.b16 %v1595
      %v1888 = vunpack.c.l.b16 %v1596
      %v1889 = vunpack.c.l.b16 %v1597
      %v1890 = vunpack.c.l.b16 %v1598
      %v1891 = vunpack.c.l.b16 %v1599
      %v1892 = vunpack.c.l.b16 %v1600
      %v1893 = vunpack.c.l.b16 %v1601
      %v1894 = vunpack.c.l.b16 %v1602
      %v1895 = vunpack.c.l.b16 %v1603
      %v1896 = vunpack.c.l.b16 %v1604
      %v1897 = vunpack.c.l.b16 %v1605
      %v1898 = vunpack.c.l.b16 %v1606
      %v1899 = vunpack.c.l.b16 %v1607
      %v1900 = vunpack.c.l.b16 %v1608
      %v1901 = vunpack.c.l.b16 %v1609
      %v1902 = vunpack.c.l.b16 %v1610
      %v1903 = vunpack.c.l.b16 %v1611
      %v1904 = vunpack.c.l.b16 %v1612
      %v1905 = vunpack.c.l.b16 %v1613
      %v1906 = vunpack.c.l.b16 %v1614
      %v1907 = vunpack.c.l.b16 %v1615
      %v1908 = vunpack.c.l.b16 %v1616
      %v1909 = vunpack.c.l.b16 %v1617
      %v1910 = vunpack.c.l.b16 %v1618
      %v1911 = vunpack.c.l.b16 %v1619
      %v1912 = vunpack.c.l.b16 %v1620
      %v1913 = vunpack.c.l.b16 %v1621
      %v1914 = vunpack.c.l.b16 %v1622
      %v1915 = vunpack.c.l.b16 %v1623
      %v1916 = vunpack.c.l.b16 %v1624
      %v1917 = vunpack.c.l.b16 %v1625
      %v1918 = vunpack.c.l.b16 %v1626
      %v1919 = vunpack.c.l.b16 %v1627
      %v1920 = vunpack.c.l.b16 %v1628
      %v1921 = vunpack.c.l.b16 %v1629
      %v1922 = vunpack.c.l.b16 %v1630
      %v1923 = vunpack.c.l.b16 %v1631
      %v1924 = vunpack.c.l.b16 %v1632
      %v1925 = vunpack.c.l.b16 %v1633
      %v1926 = vunpack.c.l.b16 %v1634
      %v1927 = vunpack.c.l.b16 %v1635
      %v1928 = vunpack.c.l.b16 %v1636
      %v1929 = vunpack.c.l.b16 %v1637
      %v1930 = vunpack.c.l.b16 %v1638
      %v1931 = vunpack.c.l.b16 %v1639
      %v1932 = vunpack.c.l.b16 %v1640
      %v1933 = vunpack.c.l.b16 %v1641
      %v1934 = vunpack.c.l.b16 %v1642
      %v1935 = vunpack.c.l.b16 %v1643
      %v1936 = vunpack.c.l.b16 %v1644
      %v1937 = vunpack.c.l.b16 %v1645
      %v1938 = vunpack.c.l.b16 %v1646
      %v1939 = vunpack.c.l.b16 %v1647
      %v1940 = vunpack.c.l.b16 %v1648
      %v1941 = vunpack.c.l.b16 %v1649
      %v1942 = vunpack.c.l.b16 %v1650
      %v1943 = vunpack.c.l.b16 %v1651
      %v1944 = vunpack.c.l.b16 %v1652
      %v1945 = vunpack.c.l.b16 %v1653
      %v1946 = vunpack.c.l.b16 %v1654
      %v1947 = vunpack.c.l.b16 %v1655
      %v1948 = vunpack.c.l.b16 %v1656
      %v1949 = vunpack.c.l.b16 %v1657
      %v1950 = vunpack.c.l.b16 %v1658
      %v1951 = vunpack.c.l.b16 %v1659
      %v1952 = vunpack.c.l.b16 %v1660
      %v1953 = vunpack.c.l.b16 %v1661
      %v1954 = vunpack.c.l.b16 %v1662
      %v1955 = vunpack.c.l.b16 %v1663
      %v1956 = vunpack.c.l.b16 %v1664
      %v1957 = vunpack.c.l.b16 %v1665
      %v1958 = vunpack.c.l.b16 %v1666
      %v1959 = vunpack.c.l.b16 %v1667
      %v1960 = vunpack.c.l.b16 %v1668
      %v1961 = vunpack.c.l.b16 %v1669
      %v1962 = vunpack.c.l.b16 %v1670
      %v1963 = vunpack.c.l.b16 %v1671
      %v1964 = vunpack.c.l.b16 %v1672
      %v1965 = vunpack.c.l.b16 %v1673
      %v1966 = vunpack.c.l.b16 %v1674
      %v1967 = vunpack.c.l.b16 %v1675
      %v1968 = vunpack.c.l.b16 %v1676
      %v1969 = vunpack.c.l.b16 %v1677
      %v1970 = vunpack.c.l.b16 %v1678
      %v1971 = vunpack.c.l.b16 %v1679
      %v1972 = vunpack.c.l.b16 %v1680
      %v1973 = vunpack.c.l.b16 %v1681
      %v1974 = vunpack.c.l.b16 %v1682
      %v1975 = vunpack.c.l.b16 %v1683
      %v1976 = vunpack.c.l.b16 %v1684
      %v1977 = vunpack.c.l.b16 %v1685
      %v1978 = vunpack.c.l.b16 %v1686
      %v1979 = vunpack.c.l.b16 %v1687
      %v1980 = vunpack.c.l.b16 %v1688
      %v1981 = vunpack.c.l.b16 %v1689
      %v1982 = vunpack.c.l.b16 %v1690
      %v1983 = vunpack.c.l.b16 %v1691
      %v1984 = vunpack.c.l.b16 %v1692
      %v1985 = vunpack.c.l.b16 %v1693
      %v1986 = vunpack.c.l.b16 %v1694
      %v1987 = vunpack.c.l.b16 %v1695
      %v1988 = vunpack.c.l.b16 %v1696
      %v1989 = vunpack.c.l.b16 %v1697
      %v1990 = vunpack.c.l.b16 %v1698
      %v1991 = vunpack.c.l.b16 %v1699
      %v1992 = vunpack.c.l.b16 %v1700
      %v1993 = vunpack.c.l.b16 %v1701
      %v1994 = vunpack.c.l.b16 %v1702
      %v1995 = vunpack.c.l.b16 %v1703
      %v1996 = vunpack.c.l.b16 %v1704
      %v1997 = vunpack.c.l.b16 %v1705
      %v1998 = vunpack.c.l.b16 %v1706
      %v1999 = vunpack.c.l.b16 %v1707
      %v2000 = vunpack.c.l.b16 %v1708
      %v2001 = vunpack.c.l.b16 %v1709
      %v2002 = vunpack.c.l.b16 %v1710
      %v2003 = vunpack.c.l.b16 %v1711
      %v2004 = vunpack.c.l.b16 %v1712
      %v2005 = vunpack.c.l.b16 %v1713
      %v2006 = vunpack.c.l.b16 %v1714
      %v2007 = vunpack.c.l.b16 %v1715
      %v2008 = vunpack.c.l.b16 %v1716
      %v2009 = vpack.c.b16 %v1866, %v1865
      %v2010 = vpack.c.b16 %v1868, %v1867
      %v2011 = vpack.c.b16 %v1870, %v1869
      %v2012 = vpack.c.b16 %v1872, %v1871
      %v2013 = vpack.c.b16 %v1874, %v1873
      %v2014 = vpack.c.b16 %v1876, %v1875
      %v2015 = vpack.c.b16 %v1878, %v1877
      %v2016 = vpack.c.b16 %v1880, %v1879
      %v2017 = vpack.c.b16 %v1882, %v1881
      %v2018 = vpack.c.b16 %v1884, %v1883
      %v2019 = vpack.c.b16 %v1886, %v1885
      %v2020 = vpack.c.b16 %v1888, %v1887
      %v2021 = vpack.c.b16 %v1890, %v1889
      %v2022 = vpack.c.b16 %v1892, %v1891
      %v2023 = vpack.c.b16 %v1894, %v1893
      %v2024 = vpack.c.b16 %v1896, %v1895
      %v2025 = vpack.c.b16 %v1898, %v1897
      %v2026 = vpack.c.b16 %v1900, %v1899
      %v2027 = vpack.c.b16 %v1902, %v1901
      %v2028 = vpack.c.b16 %v1904, %v1903
      %v2029 = vpack.c.b16 %v1906, %v1905
      %v2030 = vpack.c.b16 %v1908, %v1907
      %v2031 = vpack.c.b16 %v1910, %v1909
      %v2032 = vpack.c.b16 %v1912, %v1911
      %v2033 = vpack.c.b16 %v1914, %v1913
      %v2034 = vpack.c.b16 %v1916, %v1915
      %v2035 = vpack.c.b16 %v1918, %v1917
      %v2036 = vpack.c.b16 %v1920, %v1919
      %v2037 = vpack.c.b16 %v1922, %v1921
      %v2038 = vpack.c.b16 %v1924, %v1923
      %v2039 = vpack.c.b16 %v1926, %v1925
      %v2040 = vpack.c.b16 %v1928, %v1927
      %v2041 = vpack.c.b16 %v1930, %v1929
      %v2042 = vpack.c.b16 %v1932, %v1931
      %v2043 = vpack.c.b16 %v1934, %v1933
      %v2044 = vpack.c.b16 %v1936, %v1935
      %v2045 = vpack.c.b16 %v1938, %v1937
      %v2046 = vpack.c.b16 %v1940, %v1939
      %v2047 = vpack.c.b16 %v1942, %v1941
      %v2048 = vpack.c.b16 %v1944, %v1943
      %v2049 = vpack.c.b16 %v1946, %v1945
      %v2050 = vpack.c.b16 %v1948, %v1947
      %v2051 = vpack.c.b16 %v1950, %v1949
      %v2052 = vpack.c.b16 %v1952, %v1951
      %v2053 = vpack.c.b16 %v1954, %v1953
      %v2054 = vpack.c.b16 %v1956, %v1955
      %v2055 = vpack.c.b16 %v1958, %v1957
      %v2056 = vpack.c.b16 %v1960, %v1959
      %v2057 = vpack.c.b16 %v1962, %v1961
      %v2058 = vpack.c.b16 %v1964, %v1963
      %v2059 = vpack.c.b16 %v1966, %v1965
      %v2060 = vpack.c.b16 %v1968, %v1967
      %v2061 = vpack.c.b16 %v1970, %v1969
      %v2062 = vpack.c.b16 %v1972, %v1971
      %v2063 = vpack.c.b16 %v1974, %v1973
      %v2064 = vpack.c.b16 %v1976, %v1975
      %v2065 = vpack.c.b16 %v1978, %v1977
      %v2066 = vpack.c.b16 %v1980, %v1979
      %v2067 = vpack.c.b16 %v1982, %v1981
      %v2068 = vpack.c.b16 %v1984, %v1983
      %v2069 = vpack.c.b16 %v1986, %v1985
      %v2070 = vpack.c.b16 %v1988, %v1987
      %v2071 = vpack.c.b16 %v1990, %v1989
      %v2072 = vpack.c.b16 %v1992, %v1991
      %v2073 = vpack.c.b16 %v1994, %v1993
      %v2074 = vpack.c.b16 %v1996, %v1995
      %v2075 = vpack.c.b16 %v1998, %v1997
      %v2076 = vpack.c.b16 %v2000, %v1999
      %v2077 = vpack.c.b16 %v2002, %v2001
      %v2078 = vpack.c.b16 %v2004, %v2003
      %v2079 = vpack.c.b16 %v2006, %v2005
      %v2080 = vpack.c.b16 %v2008, %v2007
      %2153 = vmatpush.bf16.msra.mxu0 %v2016
      %2154 = vmatpush.bf16.msra.mxu0 %v2015
      %2155 = vmatpush.bf16.msra.mxu0 %v2014
      %2156 = vmatpush.bf16.msra.mxu0 %v2013
      %2157 = vmatpush.bf16.msra.mxu0 %v2012
      %2158 = vmatpush.bf16.msra.mxu0 %v2011
      %2159 = vmatpush.bf16.msra.mxu0 %v2010
      %2160 = vmatpush.bf16.msra.mxu0 %v2009
      %2161 = vmatmul.bf16.gmra.mxu0 %v1173
      %v2162 = vpop.f32.mrf.mxu0
      %v2163 = vadd.f32 %v1719, %v2162
      %v2164 = vpop.f32.mrf.mxu0
      %v2165 = vadd.f32 %v1719, %v2164
      %2166 = vmatmul.bf16.gmra.mxu0 %v1174
      %v2167 = vpop.f32.mrf.mxu0
      %v2168 = vadd.f32 %v1719, %v2167
      %v2169 = vpop.f32.mrf.mxu0
      %v2170 = vadd.f32 %v1719, %v2169
      %2171 = vmatmul.bf16.gmra.mxu0 %v1175
      %v2172 = vpop.f32.mrf.mxu0
      %v2173 = vadd.f32 %v1719, %v2172
      %v2174 = vpop.f32.mrf.mxu0
      %v2175 = vadd.f32 %v1719, %v2174
      %2176 = vmatmul.bf16.gmra.mxu0 %v1176
      %v2177 = vpop.f32.mrf.mxu0
      %v2178 = vadd.f32 %v1719, %v2177
      %v2179 = vpop.f32.mrf.mxu0
      %v2180 = vadd.f32 %v1719, %v2179
      %2181 = vmatmul.bf16.gmra.mxu0 %v1177
      %v2182 = vpop.f32.mrf.mxu0
      %v2183 = vadd.f32 %v1719, %v2182
      %v2184 = vpop.f32.mrf.mxu0
      %v2185 = vadd.f32 %v1719, %v2184
      %2186 = vmatmul.bf16.gmra.mxu0 %v1178
      %v2187 = vpop.f32.mrf.mxu0
      %v2188 = vadd.f32 %v1719, %v2187
      %v2189 = vpop.f32.mrf.mxu0
      %v2190 = vadd.f32 %v1719, %v2189
      %2191 = vmatmul.bf16.gmra.mxu0 %v1179
      %v2192 = vpop.f32.mrf.mxu0
      %v2193 = vadd.f32 %v1719, %v2192
      %v2194 = vpop.f32.mrf.mxu0
      %v2195 = vadd.f32 %v1719, %v2194
      %2196 = vmatmul.bf16.gmra.mxu0 %v1180
      %v2197 = vpop.f32.mrf.mxu0
      %v2198 = vadd.f32 %v1719, %v2197
      %v2199 = vpop.f32.mrf.mxu0
      %v2200 = vadd.f32 %v1719, %v2199
      %2201 = vdwg.mxu0
      %2202 = vmatpush.bf16.msra.mxu0 %v2024
      %2203 = vmatpush.bf16.msra.mxu0 %v2023
      %2204 = vmatpush.bf16.msra.mxu0 %v2022
      %2205 = vmatpush.bf16.msra.mxu0 %v2021
      %2206 = vmatpush.bf16.msra.mxu0 %v2020
      %2207 = vmatpush.bf16.msra.mxu0 %v2019
      %2208 = vmatpush.bf16.msra.mxu0 %v2018
      %2209 = vmatpush.bf16.msra.mxu0 %v2017
      %2210 = vmatmul.bf16.gmra.mxu0 %v1221
      %v2211 = vpop.f32.mrf.mxu0
      %v2212 = vadd.f32 %v2163, %v2211
      %v2213 = vpop.f32.mrf.mxu0
      %v2214 = vadd.f32 %v2165, %v2213
      %2215 = vmatmul.bf16.gmra.mxu0 %v1222
      %v2216 = vpop.f32.mrf.mxu0
      %v2217 = vadd.f32 %v2168, %v2216
      %v2218 = vpop.f32.mrf.mxu0
      %v2219 = vadd.f32 %v2170, %v2218
      %2220 = vmatmul.bf16.gmra.mxu0 %v1223
      %v2221 = vpop.f32.mrf.mxu0
      %v2222 = vadd.f32 %v2173, %v2221
      %v2223 = vpop.f32.mrf.mxu0
      %v2224 = vadd.f32 %v2175, %v2223
      %2225 = vmatmul.bf16.gmra.mxu0 %v1224
      %v2226 = vpop.f32.mrf.mxu0
      %v2227 = vadd.f32 %v2178, %v2226
      %v2228 = vpop.f32.mrf.mxu0
      %v2229 = vadd.f32 %v2180, %v2228
      %2230 = vmatmul.bf16.gmra.mxu0 %v1225
      %v2231 = vpop.f32.mrf.mxu0
      %v2232 = vadd.f32 %v2183, %v2231
      %v2233 = vpop.f32.mrf.mxu0
      %v2234 = vadd.f32 %v2185, %v2233
      %2235 = vmatmul.bf16.gmra.mxu0 %v1226
      %v2236 = vpop.f32.mrf.mxu0
      %v2237 = vadd.f32 %v2188, %v2236
      %v2238 = vpop.f32.mrf.mxu0
      %v2239 = vadd.f32 %v2190, %v2238
      %2240 = vmatmul.bf16.gmra.mxu0 %v1227
      %v2241 = vpop.f32.mrf.mxu0
      %v2242 = vadd.f32 %v2193, %v2241
      %v2243 = vpop.f32.mrf.mxu0
      %v2244 = vadd.f32 %v2195, %v2243
      %2245 = vmatmul.bf16.gmra.mxu0 %v1228
      %v2246 = vpop.f32.mrf.mxu0
      %v2247 = vadd.f32 %v2198, %v2246
      %v2248 = vpop.f32.mrf.mxu0
      %v2249 = vadd.f32 %v2200, %v2248
      %2250 = vdwg.mxu0
      %2251 = vmatpush.bf16.msra.mxu0 %v2032
      %2252 = vmatpush.bf16.msra.mxu0 %v2031
      %2253 = vmatpush.bf16.msra.mxu0 %v2030
      %2254 = vmatpush.bf16.msra.mxu0 %v2029
      %2255 = vmatpush.bf16.msra.mxu0 %v2028
      %2256 = vmatpush.bf16.msra.mxu0 %v2027
      %2257 = vmatpush.bf16.msra.mxu0 %v2026
      %2258 = vmatpush.bf16.msra.mxu0 %v2025
      %2259 = vmatmul.bf16.gmra.mxu0 %v1269
      %v2260 = vpop.f32.mrf.mxu0
      %v2261 = vadd.f32 %v2212, %v2260
      %v2262 = vpop.f32.mrf.mxu0
      %v2263 = vadd.f32 %v2214, %v2262
      %2264 = vmatmul.bf16.gmra.mxu0 %v1270
      %v2265 = vpop.f32.mrf.mxu0
      %v2266 = vadd.f32 %v2217, %v2265
      %v2267 = vpop.f32.mrf.mxu0
      %v2268 = vadd.f32 %v2219, %v2267
      %2269 = vmatmul.bf16.gmra.mxu0 %v1271
      %v2270 = vpop.f32.mrf.mxu0
      %v2271 = vadd.f32 %v2222, %v2270
      %v2272 = vpop.f32.mrf.mxu0
      %v2273 = vadd.f32 %v2224, %v2272
      %2274 = vmatmul.bf16.gmra.mxu0 %v1272
      %v2275 = vpop.f32.mrf.mxu0
      %v2276 = vadd.f32 %v2227, %v2275
      %v2277 = vpop.f32.mrf.mxu0
      %v2278 = vadd.f32 %v2229, %v2277
      %2279 = vmatmul.bf16.gmra.mxu0 %v1273
      %v2280 = vpop.f32.mrf.mxu0
      %v2281 = vadd.f32 %v2232, %v2280
      %v2282 = vpop.f32.mrf.mxu0
      %v2283 = vadd.f32 %v2234, %v2282
      %2284 = vmatmul.bf16.gmra.mxu0 %v1274
      %v2285 = vpop.f32.mrf.mxu0
      %v2286 = vadd.f32 %v2237, %v2285
      %v2287 = vpop.f32.mrf.mxu0
      %v2288 = vadd.f32 %v2239, %v2287
      %2289 = vmatmul.bf16.gmra.mxu0 %v1275
      %v2290 = vpop.f32.mrf.mxu0
      %v2291 = vadd.f32 %v2242, %v2290
      %v2292 = vpop.f32.mrf.mxu0
      %v2293 = vadd.f32 %v2244, %v2292
      %2294 = vmatmul.bf16.gmra.mxu0 %v1276
      %v2295 = vpop.f32.mrf.mxu0
      %v2296 = vadd.f32 %v2247, %v2295
      %v2297 = vpop.f32.mrf.mxu0
      %v2298 = vadd.f32 %v2249, %v2297
      %2299 = vdwg.mxu0
      %2300 = vmatpush.bf16.msra.mxu0 %v2040
      %2301 = vmatpush.bf16.msra.mxu0 %v2039
      %2302 = vmatpush.bf16.msra.mxu0 %v2038
      %2303 = vmatpush.bf16.msra.mxu0 %v2037
      %2304 = vmatpush.bf16.msra.mxu0 %v2036
      %2305 = vmatpush.bf16.msra.mxu0 %v2035
      %2306 = vmatpush.bf16.msra.mxu0 %v2034
      %2307 = vmatpush.bf16.msra.mxu0 %v2033
      %2308 = vmatmul.bf16.gmra.mxu0 %v1317
      %v2309 = vpop.f32.mrf.mxu0
      %v2310 = vadd.f32 %v2261, %v2309
      %v2311 = vpop.f32.mrf.mxu0
      %v2312 = vadd.f32 %v2263, %v2311
      %2313 = vmatmul.bf16.gmra.mxu0 %v1318
      %v2314 = vpop.f32.mrf.mxu0
      %v2315 = vadd.f32 %v2266, %v2314
      %v2316 = vpop.f32.mrf.mxu0
      %v2317 = vadd.f32 %v2268, %v2316
      %2318 = vmatmul.bf16.gmra.mxu0 %v1319
      %v2319 = vpop.f32.mrf.mxu0
      %v2320 = vadd.f32 %v2271, %v2319
      %v2321 = vpop.f32.mrf.mxu0
      %v2322 = vadd.f32 %v2273, %v2321
      %2323 = vmatmul.bf16.gmra.mxu0 %v1320
      %v2324 = vpop.f32.mrf.mxu0
      %v2325 = vadd.f32 %v2276, %v2324
      %v2326 = vpop.f32.mrf.mxu0
      %v2327 = vadd.f32 %v2278, %v2326
      %2328 = vmatmul.bf16.gmra.mxu0 %v1321
      %v2329 = vpop.f32.mrf.mxu0
      %v2330 = vadd.f32 %v2281, %v2329
      %v2331 = vpop.f32.mrf.mxu0
      %v2332 = vadd.f32 %v2283, %v2331
      %2333 = vmatmul.bf16.gmra.mxu0 %v1322
      %v2334 = vpop.f32.mrf.mxu0
      %v2335 = vadd.f32 %v2286, %v2334
      %v2336 = vpop.f32.mrf.mxu0
      %v2337 = vadd.f32 %v2288, %v2336
      %2338 = vmatmul.bf16.gmra.mxu0 %v1323
      %v2339 = vpop.f32.mrf.mxu0
      %v2340 = vadd.f32 %v2291, %v2339
      %v2341 = vpop.f32.mrf.mxu0
      %v2342 = vadd.f32 %v2293, %v2341
      %2343 = vmatmul.bf16.gmra.mxu0 %v1324
      %v2344 = vpop.f32.mrf.mxu0
      %v2345 = vadd.f32 %v2296, %v2344
      %v2346 = vpop.f32.mrf.mxu0
      %v2347 = vadd.f32 %v2298, %v2346
      %2348 = vdwg.mxu0
      %2349 = vmatpush.bf16.msra.mxu0 %v2048
      %2350 = vmatpush.bf16.msra.mxu0 %v2047
      %2351 = vmatpush.bf16.msra.mxu0 %v2046
      %2352 = vmatpush.bf16.msra.mxu0 %v2045
      %2353 = vmatpush.bf16.msra.mxu0 %v2044
      %2354 = vmatpush.bf16.msra.mxu0 %v2043
      %2355 = vmatpush.bf16.msra.mxu0 %v2042
      %2356 = vmatpush.bf16.msra.mxu0 %v2041
      %2357 = vmatmul.bf16.gmra.mxu0 %v1365
      %v2358 = vpop.f32.mrf.mxu0
      %v2359 = vadd.f32 %v2310, %v2358
      %v2360 = vpop.f32.mrf.mxu0
      %v2361 = vadd.f32 %v2312, %v2360
      %2362 = vmatmul.bf16.gmra.mxu0 %v1366
      %v2363 = vpop.f32.mrf.mxu0
      %v2364 = vadd.f32 %v2315, %v2363
      %v2365 = vpop.f32.mrf.mxu0
      %v2366 = vadd.f32 %v2317, %v2365
      %2367 = vmatmul.bf16.gmra.mxu0 %v1367
      %v2368 = vpop.f32.mrf.mxu0
      %v2369 = vadd.f32 %v2320, %v2368
      %v2370 = vpop.f32.mrf.mxu0
      %v2371 = vadd.f32 %v2322, %v2370
      %2372 = vmatmul.bf16.gmra.mxu0 %v1368
      %v2373 = vpop.f32.mrf.mxu0
      %v2374 = vadd.f32 %v2325, %v2373
      %v2375 = vpop.f32.mrf.mxu0
      %v2376 = vadd.f32 %v2327, %v2375
      %2377 = vmatmul.bf16.gmra.mxu0 %v1369
      %v2378 = vpop.f32.mrf.mxu0
      %v2379 = vadd.f32 %v2330, %v2378
      %v2380 = vpop.f32.mrf.mxu0
      %v2381 = vadd.f32 %v2332, %v2380
      %2382 = vmatmul.bf16.gmra.mxu0 %v1370
      %v2383 = vpop.f32.mrf.mxu0
      %v2384 = vadd.f32 %v2335, %v2383
      %v2385 = vpop.f32.mrf.mxu0
      %v2386 = vadd.f32 %v2337, %v2385
      %2387 = vmatmul.bf16.gmra.mxu0 %v1371
      %v2388 = vpop.f32.mrf.mxu0
      %v2389 = vadd.f32 %v2340, %v2388
      %v2390 = vpop.f32.mrf.mxu0
      %v2391 = vadd.f32 %v2342, %v2390
      %2392 = vmatmul.bf16.gmra.mxu0 %v1372
      %v2393 = vpop.f32.mrf.mxu0
      %v2394 = vadd.f32 %v2345, %v2393
      %v2395 = vpop.f32.mrf.mxu0
      %v2396 = vadd.f32 %v2347, %v2395
      %2397 = vdwg.mxu0
      %2398 = vmatpush.bf16.msra.mxu0 %v2056
      %2399 = vmatpush.bf16.msra.mxu0 %v2055
      %2400 = vmatpush.bf16.msra.mxu0 %v2054
      %2401 = vmatpush.bf16.msra.mxu0 %v2053
      %2402 = vmatpush.bf16.msra.mxu0 %v2052
      %2403 = vmatpush.bf16.msra.mxu0 %v2051
      %2404 = vmatpush.bf16.msra.mxu0 %v2050
      %2405 = vmatpush.bf16.msra.mxu0 %v2049
      %2406 = vmatmul.bf16.gmra.mxu0 %v1413
      %v2407 = vpop.f32.mrf.mxu0
      %v2408 = vadd.f32 %v2359, %v2407
      %v2409 = vpop.f32.mrf.mxu0
      %v2410 = vadd.f32 %v2361, %v2409
      %2411 = vmatmul.bf16.gmra.mxu0 %v1414
      %v2412 = vpop.f32.mrf.mxu0
      %v2413 = vadd.f32 %v2364, %v2412
      %v2414 = vpop.f32.mrf.mxu0
      %v2415 = vadd.f32 %v2366, %v2414
      %2416 = vmatmul.bf16.gmra.mxu0 %v1415
      %v2417 = vpop.f32.mrf.mxu0
      %v2418 = vadd.f32 %v2369, %v2417
      %v2419 = vpop.f32.mrf.mxu0
      %v2420 = vadd.f32 %v2371, %v2419
      %2421 = vmatmul.bf16.gmra.mxu0 %v1416
      %v2422 = vpop.f32.mrf.mxu0
      %v2423 = vadd.f32 %v2374, %v2422
      %v2424 = vpop.f32.mrf.mxu0
      %v2425 = vadd.f32 %v2376, %v2424
      %2426 = vmatmul.bf16.gmra.mxu0 %v1417
      %v2427 = vpop.f32.mrf.mxu0
      %v2428 = vadd.f32 %v2379, %v2427
      %v2429 = vpop.f32.mrf.mxu0
      %v2430 = vadd.f32 %v2381, %v2429
      %2431 = vmatmul.bf16.gmra.mxu0 %v1418
      %v2432 = vpop.f32.mrf.mxu0
      %v2433 = vadd.f32 %v2384, %v2432
      %v2434 = vpop.f32.mrf.mxu0
      %v2435 = vadd.f32 %v2386, %v2434
      %2436 = vmatmul.bf16.gmra.mxu0 %v1419
      %v2437 = vpop.f32.mrf.mxu0
      %v2438 = vadd.f32 %v2389, %v2437
      %v2439 = vpop.f32.mrf.mxu0
      %v2440 = vadd.f32 %v2391, %v2439
      %2441 = vmatmul.bf16.gmra.mxu0 %v1420
      %v2442 = vpop.f32.mrf.mxu0
      %v2443 = vadd.f32 %v2394, %v2442
      %v2444 = vpop.f32.mrf.mxu0
      %v2445 = vadd.f32 %v2396, %v2444
      %2446 = vdwg.mxu0
      %2447 = vmatpush.bf16.msra.mxu0 %v2064
      %2448 = vmatpush.bf16.msra.mxu0 %v2063
      %2449 = vmatpush.bf16.msra.mxu0 %v2062
      %2450 = vmatpush.bf16.msra.mxu0 %v2061
      %2451 = vmatpush.bf16.msra.mxu0 %v2060
      %2452 = vmatpush.bf16.msra.mxu0 %v2059
      %2453 = vmatpush.bf16.msra.mxu0 %v2058
      %2454 = vmatpush.bf16.msra.mxu0 %v2057
      %2455 = vmatmul.bf16.gmra.mxu0 %v1461
      %v2456 = vpop.f32.mrf.mxu0
      %v2457 = vadd.f32 %v2408, %v2456
      %v2458 = vpop.f32.mrf.mxu0
      %v2459 = vadd.f32 %v2410, %v2458
      %2460 = vmatmul.bf16.gmra.mxu0 %v1462
      %v2461 = vpop.f32.mrf.mxu0
      %v2462 = vadd.f32 %v2413, %v2461
      %v2463 = vpop.f32.mrf.mxu0
      %v2464 = vadd.f32 %v2415, %v2463
      %2465 = vmatmul.bf16.gmra.mxu0 %v1463
      %v2466 = vpop.f32.mrf.mxu0
      %v2467 = vadd.f32 %v2418, %v2466
      %v2468 = vpop.f32.mrf.mxu0
      %v2469 = vadd.f32 %v2420, %v2468
      %2470 = vmatmul.bf16.gmra.mxu0 %v1464
      %v2471 = vpop.f32.mrf.mxu0
      %v2472 = vadd.f32 %v2423, %v2471
      %v2473 = vpop.f32.mrf.mxu0
      %v2474 = vadd.f32 %v2425, %v2473
      %2475 = vmatmul.bf16.gmra.mxu0 %v1465
      %v2476 = vpop.f32.mrf.mxu0
      %v2477 = vadd.f32 %v2428, %v2476
      %v2478 = vpop.f32.mrf.mxu0
      %v2479 = vadd.f32 %v2430, %v2478
      %2480 = vmatmul.bf16.gmra.mxu0 %v1466
      %v2481 = vpop.f32.mrf.mxu0
      %v2482 = vadd.f32 %v2433, %v2481
      %v2483 = vpop.f32.mrf.mxu0
      %v2484 = vadd.f32 %v2435, %v2483
      %2485 = vmatmul.bf16.gmra.mxu0 %v1467
      %v2486 = vpop.f32.mrf.mxu0
      %v2487 = vadd.f32 %v2438, %v2486
      %v2488 = vpop.f32.mrf.mxu0
      %v2489 = vadd.f32 %v2440, %v2488
      %2490 = vmatmul.bf16.gmra.mxu0 %v1468
      %v2491 = vpop.f32.mrf.mxu0
      %v2492 = vadd.f32 %v2443, %v2491
      %v2493 = vpop.f32.mrf.mxu0
      %v2494 = vadd.f32 %v2445, %v2493
      %2495 = vdwg.mxu0
      %2496 = vmatpush.bf16.msra.mxu0 %v2072
      %2497 = vmatpush.bf16.msra.mxu0 %v2071
      %2498 = vmatpush.bf16.msra.mxu0 %v2070
      %2499 = vmatpush.bf16.msra.mxu0 %v2069
      %2500 = vmatpush.bf16.msra.mxu0 %v2068
      %2501 = vmatpush.bf16.msra.mxu0 %v2067
      %2502 = vmatpush.bf16.msra.mxu0 %v2066
      %2503 = vmatpush.bf16.msra.mxu0 %v2065
      %2504 = vmatmul.bf16.gmra.mxu0 %v1509
      %v2505 = vpop.f32.mrf.mxu0
      %v2506 = vadd.f32 %v2457, %v2505
      %v2507 = vpop.f32.mrf.mxu0
      %v2508 = vadd.f32 %v2459, %v2507
      %2509 = vmatmul.bf16.gmra.mxu0 %v1510
      %v2510 = vpop.f32.mrf.mxu0
      %v2511 = vadd.f32 %v2462, %v2510
      %v2512 = vpop.f32.mrf.mxu0
      %v2513 = vadd.f32 %v2464, %v2512
      %2514 = vmatmul.bf16.gmra.mxu0 %v1511
      %v2515 = vpop.f32.mrf.mxu0
      %v2516 = vadd.f32 %v2467, %v2515
      %v2517 = vpop.f32.mrf.mxu0
      %v2518 = vadd.f32 %v2469, %v2517
      %2519 = vmatmul.bf16.gmra.mxu0 %v1512
      %v2520 = vpop.f32.mrf.mxu0
      %v2521 = vadd.f32 %v2472, %v2520
      %v2522 = vpop.f32.mrf.mxu0
      %v2523 = vadd.f32 %v2474, %v2522
      %2524 = vmatmul.bf16.gmra.mxu0 %v1513
      %v2525 = vpop.f32.mrf.mxu0
      %v2526 = vadd.f32 %v2477, %v2525
      %v2527 = vpop.f32.mrf.mxu0
      %v2528 = vadd.f32 %v2479, %v2527
      %2529 = vmatmul.bf16.gmra.mxu0 %v1514
      %v2530 = vpop.f32.mrf.mxu0
      %v2531 = vadd.f32 %v2482, %v2530
      %v2532 = vpop.f32.mrf.mxu0
      %v2533 = vadd.f32 %v2484, %v2532
      %2534 = vmatmul.bf16.gmra.mxu0 %v1515
      %v2535 = vpop.f32.mrf.mxu0
      %v2536 = vadd.f32 %v2487, %v2535
      %v2537 = vpop.f32.mrf.mxu0
      %v2538 = vadd.f32 %v2489, %v2537
      %2539 = vmatmul.bf16.gmra.mxu0 %v1516
      %v2540 = vpop.f32.mrf.mxu0
      %v2541 = vadd.f32 %v2492, %v2540
      %v2542 = vpop.f32.mrf.mxu0
      %v2543 = vadd.f32 %v2494, %v2542
      %2544 = vdwg.mxu0
      %2545 = vmatpush.bf16.msra.mxu0 %v2080
      %2546 = vmatpush.bf16.msra.mxu0 %v2079
      %2547 = vmatpush.bf16.msra.mxu0 %v2078
      %2548 = vmatpush.bf16.msra.mxu0 %v2077
      %2549 = vmatpush.bf16.msra.mxu0 %v2076
      %2550 = vmatpush.bf16.msra.mxu0 %v2075
      %2551 = vmatpush.bf16.msra.mxu0 %v2074
      %2552 = vmatpush.bf16.msra.mxu0 %v2073
      %2553 = vmatmul.bf16.gmra.mxu0 %v1557
      %v2554 = vpop.f32.mrf.mxu0
      %v2555 = vadd.f32 %v2506, %v2554
      %v2556 = vpop.f32.mrf.mxu0
      %v2557 = vadd.f32 %v2508, %v2556
      %2558 = vmatmul.bf16.gmra.mxu0 %v1558
      %v2559 = vpop.f32.mrf.mxu0
      %v2560 = vadd.f32 %v2511, %v2559
      %v2561 = vpop.f32.mrf.mxu0
      %v2562 = vadd.f32 %v2513, %v2561
      %2563 = vmatmul.bf16.gmra.mxu0 %v1559
      %v2564 = vpop.f32.mrf.mxu0
      %v2565 = vadd.f32 %v2516, %v2564
      %v2566 = vpop.f32.mrf.mxu0
      %v2567 = vadd.f32 %v2518, %v2566
      %2568 = vmatmul.bf16.gmra.mxu0 %v1560
      %v2569 = vpop.f32.mrf.mxu0
      %v2570 = vadd.f32 %v2521, %v2569
      %v2571 = vpop.f32.mrf.mxu0
      %v2572 = vadd.f32 %v2523, %v2571
      %2573 = vmatmul.bf16.gmra.mxu0 %v1561
      %v2574 = vpop.f32.mrf.mxu0
      %v2575 = vadd.f32 %v2526, %v2574
      %v2576 = vpop.f32.mrf.mxu0
      %v2577 = vadd.f32 %v2528, %v2576
      %2578 = vmatmul.bf16.gmra.mxu0 %v1562
      %v2579 = vpop.f32.mrf.mxu0
      %v2580 = vadd.f32 %v2531, %v2579
      %v2581 = vpop.f32.mrf.mxu0
      %v2582 = vadd.f32 %v2533, %v2581
      %2583 = vmatmul.bf16.gmra.mxu0 %v1563
      %v2584 = vpop.f32.mrf.mxu0
      %v2585 = vadd.f32 %v2536, %v2584
      %v2586 = vpop.f32.mrf.mxu0
      %v2587 = vadd.f32 %v2538, %v2586
      %2588 = vmatmul.bf16.gmra.mxu0 %v1564
      %v2589 = vpop.f32.mrf.mxu0
      %v2590 = vadd.f32 %v2541, %v2589
      %v2591 = vpop.f32.mrf.mxu0
      %v2592 = vadd.f32 %v2543, %v2591
      %2593 = vdwg.mxu0
      %v2594 = vpack.c.bf16 %v2555, %v2555
      %v2595 = vpack.c.bf16 %v2557, %v2557
      %v2596 = vpack.c.bf16 %v2560, %v2560
      %v2597 = vpack.c.bf16 %v2562, %v2562
      %v2598 = vpack.c.bf16 %v2565, %v2565
      %v2599 = vpack.c.bf16 %v2567, %v2567
      %v2600 = vpack.c.bf16 %v2570, %v2570
      %v2601 = vpack.c.bf16 %v2572, %v2572
      %v2602 = vpack.c.bf16 %v2575, %v2575
      %v2603 = vpack.c.bf16 %v2577, %v2577
      %v2604 = vpack.c.bf16 %v2580, %v2580
      %v2605 = vpack.c.bf16 %v2582, %v2582
      %v2606 = vpack.c.bf16 %v2585, %v2585
      %v2607 = vpack.c.bf16 %v2587, %v2587
      %v2608 = vpack.c.bf16 %v2590, %v2590
      %v2609 = vpack.c.bf16 %v2592, %v2592
      %2610 = vst [vmem:[%s175] sm:$0xf] %v2594
      %2611 = vst [vmem:[%s175 + $0x4] sm:$0xf] %v2595
      %2612 = vst [vmem:[%s175 + $0x8] sm:$0xf] %v2596
      %2613 = vst [vmem:[%s175 + $0xc] sm:$0xf] %v2597
      %2614 = vst [vmem:[%s175 + $0x10] sm:$0xf] %v2598
      %2615 = vst [vmem:[%s175 + $0x14] sm:$0xf] %v2599
      %2616 = vst [vmem:[%s175 + $0x18] sm:$0xf] %v2600
      %2617 = vst [vmem:[%s175 + $0x1c] sm:$0xf] %v2601
      %2618 = vst [vmem:[%s175 + $0x20] sm:$0xf] %v2602
      %2619 = vst [vmem:[%s175 + $0x24] sm:$0xf] %v2603
      %2620 = vst [vmem:[%s175 + $0x28] sm:$0xf] %v2604
      %2621 = vst [vmem:[%s175 + $0x2c] sm:$0xf] %v2605
      %2622 = vst [vmem:[%s175 + $0x30] sm:$0xf] %v2606
      %2623 = vst [vmem:[%s175 + $0x34] sm:$0xf] %v2607
      %2624 = vst [vmem:[%s175 + $0x38] sm:$0xf] %v2608
      %2625 = vst [vmem:[%s175 + $0x3c] sm:$0xf] %v2609
      %s2626 = smul.u32 16, %s14
      %p2627 = scmp.lt.s32.totalorder %s2626, 63
      %s2628 = scalar_select %p2627, %s2626, 63
      %s2629 = smul.addr %s2628, 4
      %s2630 = scalar_lea.vmem %s3, %s2629
      // Predicated region
      $region33: #{convolutional_block.6} parent=31 // pred_check
        %p2631 = pneg %p100
      $region34: #{convolutional_block.6} parent=31 // pred_check_branch
        %2633 = sbr.rel (%p2631) target = $region36
      $region35: #{convolutional_block.6} parent=31 // pred_region
        %s2634 = smul.u32 16, %s14
      $region36: #{convolutional_block.6} parent=31 // pred_fallthru
        _
    $region32: #{convolutional_block.6} parent=5 // pred_fallthru
      _
    %p2635 = scmp.le.s32.totalorder 2, %s9
    // Predicated region
    $region37: #{convolutional_block.6} parent=5 // pred_check
      %p2636 = pneg %p2635
    $region38: #{convolutional_block.6} parent=5 // pred_check_branch
      %2638 = sbr.rel (%p2636) target = $region40
    $region39: #{convolutional_block.6} parent=5 // pred_region
      %s2639 = ssub.s32 %s9, 2
      // Predicated region
      $region41: #{convolutional_block.6} parent=39 // pred_check
        %p2640 = pneg %p106
      $region42: #{convolutional_block.6} parent=39 // pred_check_branch
        %2642 = sbr.rel (%p2640) target = $region44
      $region43: #{convolutional_block.6} parent=39 // pred_region
        %s2643 = smul.u32 16, %s15
        %p2644 = scmp.lt.s32.totalorder %s2643, 63
        %s2645 = scalar_select %p2644, %s2643, 63
        %s2646 = smul.addr %s2645, 4
        %s2647 = scalar_lea.vmem %s3, %s2646
      $region44: #{convolutional_block.6} parent=39 // pred_fallthru
        _
    $region40: #{convolutional_block.6} parent=5 // pred_fallthru
      _
  $region6: #{convolutional_block.6} parent=0 // loop_footer
    %s13 = sadd.s32 1, %s9
  $region7: #{convolutional_block.6} parent=0 // loop_footer_branch
    %8 = sbr.rel target = $region3
  $region8: #{convolutional_block.6} parent=0 // loop_exit
    _

</llo_original>
